<compile_context>
chip_gen: v6e
topology: v6e:2x2x1
jax: 0.10.0
libtpu: 0.0.40
codegen_flags: <defaults>
</compile_context>

<pallas_src>
import jax
import jax.numpy as jnp
from jax.experimental import pallas as pl
from jax.experimental.pallas import tpu as pltpu

HIDDEN = 50
OUT = 10
NUM_LAYERS = 3

H_PAD = 128          # hidden padded to one lane tile -> gate slices at k*128
G_PAD = 4 * H_PAD    # 512
OUT_PAD = 128        # lane-dense kernel output, sliced to 10 in the wrapper
DIN_PAD = 128        # input feature dim (1) padded to a lane tile
B_PAD = 8            # batch padded to a full sublane tile


def _lstm_linear_kernel(x_ref,
                        wih0, whh0, b0,
                        wih1, whh1, b1,
                        wih2, whh2, b2,
                        wlin, blin,
                        out_ref,
                        xproj_buf, seq_buf):
    """3-layer LSTM over the sequence + final Linear, all resident in VMEM."""
    T, B, DIN = x_ref.shape
    H = H_PAD

    layers = ((wih0, whh0, b0), (wih1, whh1, b1), (wih2, whh2, b2))
    h_last = None

    for li, (wih, whh, b) in enumerate(layers):
        # ---- hoisted input projection: ONE batched matmul for all timesteps.
        if li == 0:
            x_all = x_ref[...].reshape(T * B, DIN).astype(jnp.bfloat16)
        else:
            x_all = seq_buf[...].reshape(T * B, H).astype(jnp.bfloat16)
        xproj = jnp.dot(x_all, wih[...], preferred_element_type=jnp.float32)
        xproj_buf[...] = xproj.reshape(T, B, G_PAD)

        # ---- hoisted per-layer loads / bias broadcast (not re-emitted per t).
        whh_v = whh[...]                                      # (H, 4H) bf16
        b_v = jnp.broadcast_to(b[...], (B, G_PAD))            # (B, 4H) f32
        write_seq = li < NUM_LAYERS - 1                       # last layer: only h_T needed

        def step(t, carry):
            h, c = carry                                      # f32 (B, H)
            gates = (xproj_buf[t]
                     + jnp.dot(h.astype(jnp.bfloat16), whh_v,
                               preferred_element_type=jnp.float32)
                     + b_v)
            # PyTorch gate order [i | f | g | o]; slices are lane-tile aligned.
            i_g = jax.nn.sigmoid(gates[:, 0 * H:1 * H])
            f_g = jax.nn.sigmoid(gates[:, 1 * H:2 * H])
            g_g = jnp.tanh(gates[:, 2 * H:3 * H])
            o_g = jax.nn.sigmoid(gates[:, 3 * H:4 * H])
            c_new = f_g * c + i_g * g_g
            h_new = o_g * jnp.tanh(c_new)
            if write_seq:
                seq_buf[t] = h_new                            # input to next layer
            return (h_new, c_new)

        h0 = jnp.zeros((B, H), jnp.float32)                   # PyTorch default h0/c0
        c0 = jnp.zeros((B, H), jnp.float32)
        h_last, _ = jax.lax.fori_loop(0, T, step, (h0, c0), unroll=True)

    # predictions = Linear(dropout(lstm_out[:, -1]))  (dropout = identity, eval)
    out_ref[...] = (jnp.dot(h_last.astype(jnp.bfloat16), wlin[...],
                            preferred_element_type=jnp.float32)
                    + blin[...])


def _full_spec(a):
    nd = a.ndim
    return pl.BlockSpec(a.shape, lambda i, _nd=nd: (0,) * _nd)


def crypto_predictor_forward(x, packed_params):
    """x: (B, T, D_in) batch-first float32, like the PyTorch module."""
    B, T, Din = x.shape

    # Pad & transpose to time-major (T, B_PAD, DIN_PAD); padding is zeros.
    xp = jnp.zeros((T, B_PAD, DIN_PAD), jnp.float32)
    xp = xp.at[:, :B, :Din].set(jnp.transpose(x, (1, 0, 2)))

    inputs = (xp,) + tuple(packed_params)
    out_shape = jax.ShapeDtypeStruct((B_PAD, OUT_PAD), jnp.float32)

    flops = (2 * (T * B_PAD) * DIN_PAD * G_PAD                 # layer-0 input proj
             + 2 * 2 * (T * B_PAD) * H_PAD * G_PAD             # layer-1/2 input proj
             + 2 * NUM_LAYERS * T * B_PAD * H_PAD * G_PAD      # recurrent h @ W_hh
             + 2 * B_PAD * H_PAD * OUT_PAD)                    # final linear
    transcendentals = NUM_LAYERS * T * B_PAD * H_PAD * 5       # 3 sigmoid + 2 tanh
    bytes_accessed = int(sum(a.size * a.dtype.itemsize for a in inputs)
                         + B_PAD * OUT_PAD * 4)

    grid_spec = pltpu.PrefetchScalarGridSpec(
        num_scalar_prefetch=0,
        grid=(1,),
        in_specs=[_full_spec(a) for a in inputs],
        out_specs=pl.BlockSpec((B_PAD, OUT_PAD), lambda i: (0, 0)),
        scratch_shapes=[
            pltpu.VMEM((T, B_PAD, G_PAD), jnp.float32),   # precomputed x @ W_ih per t
            pltpu.VMEM((T, B_PAD, H_PAD), jnp.float32),   # per-layer output sequence
        ],
    )
    out = pl.pallas_call(
        _lstm_linear_kernel,
        out_shape=out_shape,
        grid_spec=grid_spec,
        compiler_params=pltpu.CompilerParams(
            dimension_semantics=("arbitrary",),
            vmem_limit_bytes=8 * 1024 * 1024),
        cost_estimate=pl.CostEstimate(
            flops=flops, transcendentals=transcendentals,
            bytes_accessed=bytes_accessed),
    )(*inputs)
    return out[:B, :OUT]


# ----------------------------------------------------------------------------
# Parameter construction (PyTorch-equivalent raw params) + packing for kernel.
# ----------------------------------------------------------------------------

def init_params(key, input_size=1, hidden=HIDDEN, out=OUT):
    """Mirrors PyTorch's uniform(-1/sqrt(H), 1/sqrt(H)) init; returns raw params."""
    k = 1.0 / float(hidden) ** 0.5
    raw_layers = []
    for layer in range(NUM_LAYERS):
        din = input_size if layer == 0 else hidden
        key, k1, k2, k3, k4 = jax.random.split(key, 5)
        w_ih = jax.random.uniform(k1, (4 * hidden, din), jnp.float32, -k, k)
        w_hh = jax.random.uniform(k2, (4 * hidden, hidden), jnp.float32, -k, k)
        b_ih = jax.random.uniform(k3, (4 * hidden,), jnp.float32, -k, k)
        b_hh = jax.random.uniform(k4, (4 * hidden,), jnp.float32, -k, k)
        raw_layers.append((w_ih, w_hh, b_ih, b_hh))
    key, k1, k2 = jax.random.split(key, 3)
    w_lin = jax.random.uniform(k1, (out, hidden), jnp.float32, -k, k)
    b_lin = jax.random.uniform(k2, (out,), jnp.float32, -k, k)
    return raw_layers, (w_lin, b_lin)


def _pad_gate_cols(w_t, h=HIDDEN, hp=H_PAD):
    """(K, 4h) with [i|f|g|o] blocks -> (K, 4hp) with each gate lane-aligned."""
    K = w_t.shape[0]
    out = jnp.zeros((K, 4 * hp), w_t.dtype)
    for g in range(4):
        out = out.at[:, g * hp:g * hp + h].set(w_t[:, g * h:(g + 1) * h])
    return out


def _pad_gate_vec(b, h=HIDDEN, hp=H_PAD):
    out = jnp.zeros((4 * hp,), b.dtype)
    for g in range(4):
        out = out.at[g * hp:g * hp + h].set(b[g * h:(g + 1) * h])
    return out


def _pad_rows(w, kp):
    K, N = w.shape
    return jnp.zeros((kp, N), w.dtype).at[:K, :].set(w)


def pack_params(raw_layers, lin):
    """Pre-transpose, fold biases, zero-pad to lane-aligned shapes, cast to bf16."""
    packed = []
    for li, (w_ih, w_hh, b_ih, b_hh) in enumerate(raw_layers):
        kin = DIN_PAD if li == 0 else H_PAD
        wih_p = _pad_rows(_pad_gate_cols(w_ih.T), kin)          # (kin, 4*H_PAD)
        whh_p = _pad_rows(_pad_gate_cols(w_hh.T), H_PAD)        # (H_PAD, 4*H_PAD)
        b = _pad_gate_vec(b_ih + b_hh).reshape(1, G_PAD)        # folded biases, f32
        packed += [wih_p.astype(jnp.bfloat16),
                   whh_p.astype(jnp.bfloat16),
                   b.astype(jnp.float32)]
    w_lin, b_lin = lin
    wl = jnp.zeros((H_PAD, OUT_PAD), jnp.float32).at[:HIDDEN, :OUT].set(w_lin.T)
    bl = jnp.zeros((1, OUT_PAD), jnp.float32).at[0, :OUT].set(b_lin)
    packed += [wl.astype(jnp.bfloat16), bl]
    return tuple(packed)


# ----------------------------------------------------------------------------
# Pure-JAX reference (same math incl. bf16 matmul operands) for correctness.
# ----------------------------------------------------------------------------

def ref_forward(x, raw_layers, lin):
    B, T, _ = x.shape
    H = HIDDEN
    seq = x
    for (w_ih, w_hh, b_ih, b_hh) in raw_layers:
        wihT = w_ih.T.astype(jnp.bfloat16)
        whhT = w_hh.T.astype(jnp.bfloat16)
        b = (b_ih + b_hh)[None, :]
        h = jnp.zeros((B, H), jnp.float32)
        c = jnp.zeros((B, H), jnp.float32)
        outs = []
        for t in range(T):
            x_t = seq[:, t, :].astype(jnp.bfloat16)
            gates = (jnp.dot(x_t, wihT, preferred_element_type=jnp.float32)
                     + jnp.dot(h.astype(jnp.bfloat16), whhT,
                               preferred_element_type=jnp.float32)
                     + b)
            i = jax.nn.sigmoid(gates[:, :H])
            f = jax.nn.sigmoid(gates[:, H:2 * H])
            g = jnp.tanh(gates[:, 2 * H:3 * H])
            o = jax.nn.sigmoid(gates[:, 3 * H:])
            c = f * c + i * g
            h = o * jnp.tanh(c)
            outs.append(h)
        seq = jnp.stack(outs, axis=1)
    w_lin, b_lin = lin
    return (jnp.dot(seq[:, -1, :].astype(jnp.bfloat16),
                    w_lin.T.astype(jnp.bfloat16),
                    preferred_element_type=jnp.float32) + b_lin[None, :])


if __name__ == "__main__":
    key = jax.random.PRNGKey(0)
    k_x, k_p = jax.random.split(key)

    B, T, D_IN = 2, 8, 1                      # input_size=1 per the module
    x = jax.random.normal(k_x, (B, T, D_IN), jnp.float32)
    raw_layers, lin = init_params(k_p, input_size=D_IN)
    packed = pack_params(raw_layers, lin)

    out = jax.block_until_ready(crypto_predictor_forward(x, packed))
    ref = jax.block_until_ready(ref_forward(x, raw_layers, lin))

    assert out.shape == (B, OUT)
    assert jnp.allclose(out, ref, atol=1e-2, rtol=1e-2), (out, ref)

    print("KERNEL_OK")
</pallas_src>

<mosaic_0001>
module attributes {stable_mosaic.version = 11 : i64} {
  func.func @_lstm_linear_kernel(%arg0: i32, %arg1: memref<8x8x128xf32, #tpu.memory_space<vmem>>, %arg2: memref<128x512xbf16, #tpu.memory_space<vmem>>, %arg3: memref<128x512xbf16, #tpu.memory_space<vmem>>, %arg4: memref<1x512xf32, #tpu.memory_space<vmem>>, %arg5: memref<128x512xbf16, #tpu.memory_space<vmem>>, %arg6: memref<128x512xbf16, #tpu.memory_space<vmem>>, %arg7: memref<1x512xf32, #tpu.memory_space<vmem>>, %arg8: memref<128x512xbf16, #tpu.memory_space<vmem>>, %arg9: memref<128x512xbf16, #tpu.memory_space<vmem>>, %arg10: memref<1x512xf32, #tpu.memory_space<vmem>>, %arg11: memref<128x128xbf16, #tpu.memory_space<vmem>>, %arg12: memref<1x128xf32, #tpu.memory_space<vmem>>, %arg13: memref<8x128xf32, #tpu.memory_space<vmem>>, %arg14: memref<8x8x512xf32, #tpu.memory_space<vmem>>, %arg15: memref<8x8x128xf32, #tpu.memory_space<vmem>>) attributes {dimension_semantics = [#tpu.dimension_semantics<arbitrary>], iteration_bounds = array<i64: 1>, scalar_prefetch = 0 : i64, scratch_operands = 2 : i64, tpu.core_type = #tpu.core_type<tc>, window_params = [{pipeline_mode = #tpu.pipeline_mode<synchronous>, transform_indices = @transform_0, window_bounds = array<i64: 8, 8, 128>}, {pipeline_mode = #tpu.pipeline_mode<synchronous>, transform_indices = @transform_1, window_bounds = array<i64: 128, 512>}, {pipeline_mode = #tpu.pipeline_mode<synchronous>, transform_indices = @transform_2, window_bounds = array<i64: 128, 512>}, {pipeline_mode = #tpu.pipeline_mode<synchronous>, transform_indices = @transform_3, window_bounds = array<i64: 1, 512>}, {pipeline_mode = #tpu.pipeline_mode<synchronous>, transform_indices = @transform_4, window_bounds = array<i64: 128, 512>}, {pipeline_mode = #tpu.pipeline_mode<synchronous>, transform_indices = @transform_5, window_bounds = array<i64: 128, 512>}, {pipeline_mode = #tpu.pipeline_mode<synchronous>, transform_indices = @transform_6, window_bounds = array<i64: 1, 512>}, {pipeline_mode = #tpu.pipeline_mode<synchronous>, transform_indices = @transform_7, window_bounds = array<i64: 128, 512>}, {pipeline_mode = #tpu.pipeline_mode<synchronous>, transform_indices = @transform_8, window_bounds = array<i64: 128, 512>}, {pipeline_mode = #tpu.pipeline_mode<synchronous>, transform_indices = @transform_9, window_bounds = array<i64: 1, 512>}, {pipeline_mode = #tpu.pipeline_mode<synchronous>, transform_indices = @transform_10, window_bounds = array<i64: 128, 128>}, {pipeline_mode = #tpu.pipeline_mode<synchronous>, transform_indices = @transform_11, window_bounds = array<i64: 1, 128>}, {pipeline_mode = #tpu.pipeline_mode<synchronous>, transform_indices = @transform_12, window_bounds = array<i64: 8, 128>}]} {
    %c0 = arith.constant 0 : index
    %c0_0 = arith.constant 0 : index
    %c0_1 = arith.constant 0 : index
    %0 = vector.load %arg1[%c0, %c0_0, %c0_1] : memref<8x8x128xf32, #tpu.memory_space<vmem>>, vector<8x8x128xf32>
    %1 = vector.shape_cast %0 : vector<8x8x128xf32> to vector<64x128xf32>
    %2 = arith.truncf %1 : vector<64x128xf32> to vector<64x128xbf16>
    %c0_2 = arith.constant 0 : index
    %c0_3 = arith.constant 0 : index
    %3 = vector.load %arg2[%c0_2, %c0_3] : memref<128x512xbf16, #tpu.memory_space<vmem>>, vector<128x512xbf16>
    %cst = arith.constant dense<0.000000e+00> : vector<64x512xf32>
    %4 = tpu.matmul %2, %3, %cst {dimension_numbers = #tpu.dot_dimension_numbers<[1], [0], [0], [1], [0, 0, 1, 1], [], []>} : vector<64x128xbf16>, vector<128x512xbf16>, vector<64x512xf32> -> vector<64x512xf32>
    %5 = vector.shape_cast %4 : vector<64x512xf32> to vector<8x8x512xf32>
    %c0_4 = arith.constant 0 : index
    %c0_5 = arith.constant 0 : index
    %c0_6 = arith.constant 0 : index
    %6 = vector.load %arg14[%c0_4, %c0_5, %c0_6] : memref<8x8x512xf32, #tpu.memory_space<vmem>>, vector<8x8x512xf32>
    tpu.vector_store %arg14[%c0_4, %c0_5, %c0_6], %5 {strides = array<i32>} : memref<8x8x512xf32, #tpu.memory_space<vmem>>, vector<8x8x512xf32>,
    %c0_7 = arith.constant 0 : index
    %c0_8 = arith.constant 0 : index
    %7 = vector.load %arg3[%c0_7, %c0_8] : memref<128x512xbf16, #tpu.memory_space<vmem>>, vector<128x512xbf16>
    %c0_9 = arith.constant 0 : index
    %c0_10 = arith.constant 0 : index
    %8 = vector.load %arg4[%c0_9, %c0_10] : memref<1x512xf32, #tpu.memory_space<vmem>>, vector<1x512xf32>
    %9 = vector.shape_cast %8 : vector<1x512xf32> to vector<1x512xf32>
    %10 = vector.broadcast %9 : vector<1x512xf32> to vector<8x512xf32>
    %cst_11 = arith.constant 0.000000e+00 : f32
    %11 = vector.broadcast %cst_11 : f32 to vector<8x128xf32>
    %cst_12 = arith.constant 0.000000e+00 : f32
    %12 = vector.broadcast %cst_12 : f32 to vector<8x128xf32>
    %c0_i32 = arith.constant 0 : i32
    %13 = arith.index_cast %c0_i32 : i32 to index
    %c0_13 = arith.constant 0 : index
    %c0_14 = arith.constant 0 : index
    %14 = vector.load %arg14[%13, %c0_13, %c0_14] : memref<8x8x512xf32, #tpu.memory_space<vmem>>, vector<1x8x512xf32>
    %15 = vector.shape_cast %14 : vector<1x8x512xf32> to vector<8x512xf32>
    %16 = arith.truncf %11 : vector<8x128xf32> to vector<8x128xbf16>
    %cst_15 = arith.constant dense<0.000000e+00> : vector<8x512xf32>
    %17 = tpu.matmul %16, %7, %cst_15 {dimension_numbers = #tpu.dot_dimension_numbers<[1], [0], [0], [1], [0, 0, 1, 1], [], []>} : vector<8x128xbf16>, vector<128x512xbf16>, vector<8x512xf32> -> vector<8x512xf32>
    %18 = arith.addf %15, %17 : vector<8x512xf32>
    %19 = arith.addf %18, %10 : vector<8x512xf32>
    %20 = vector.extract_strided_slice %19 {offsets = [0, 0], sizes = [8, 128], strides = [1, 1]} : vector<8x512xf32> to vector<8x128xf32>
    %21 = arith.negf %20 : vector<8x128xf32>
    %22 = math.exp %21 : vector<8x128xf32>
    %cst_16 = arith.constant 1.000000e+00 : f32
    %23 = vector.broadcast %cst_16 : f32 to vector<8x128xf32>
    %24 = arith.addf %23, %22 : vector<8x128xf32>
    %25 = arith.divf %23, %24 : vector<8x128xf32>
    %26 = vector.extract_strided_slice %19 {offsets = [0, 128], sizes = [8, 128], strides = [1, 1]} : vector<8x512xf32> to vector<8x128xf32>
    %27 = arith.negf %26 : vector<8x128xf32>
    %28 = math.exp %27 : vector<8x128xf32>
    %cst_17 = arith.constant 1.000000e+00 : f32
    %29 = vector.broadcast %cst_17 : f32 to vector<8x128xf32>
    %30 = arith.addf %29, %28 : vector<8x128xf32>
    %31 = arith.divf %29, %30 : vector<8x128xf32>
    %32 = vector.extract_strided_slice %19 {offsets = [0, 256], sizes = [8, 128], strides = [1, 1]} : vector<8x512xf32> to vector<8x128xf32>
    %33 = math.tanh %32 : vector<8x128xf32>
    %34 = vector.extract_strided_slice %19 {offsets = [0, 384], sizes = [8, 128], strides = [1, 1]} : vector<8x512xf32> to vector<8x128xf32>
    %35 = arith.negf %34 : vector<8x128xf32>
    %36 = math.exp %35 : vector<8x128xf32>
    %cst_18 = arith.constant 1.000000e+00 : f32
    %37 = vector.broadcast %cst_18 : f32 to vector<8x128xf32>
    %38 = arith.addf %37, %36 : vector<8x128xf32>
    %39 = arith.divf %37, %38 : vector<8x128xf32>
    %40 = arith.mulf %31, %12 : vector<8x128xf32>
    %41 = arith.mulf %25, %33 : vector<8x128xf32>
    %42 = arith.addf %40, %41 : vector<8x128xf32>
    %43 = math.tanh %42 : vector<8x128xf32>
    %44 = arith.mulf %39, %43 : vector<8x128xf32>
    %45 = arith.index_cast %c0_i32 : i32 to index
    %c0_19 = arith.constant 0 : index
    %c0_20 = arith.constant 0 : index
    %46 = vector.load %arg15[%45, %c0_19, %c0_20] : memref<8x8x128xf32, #tpu.memory_space<vmem>>, vector<1x8x128xf32>
    %47 = vector.shape_cast %46 : vector<1x8x128xf32> to vector<8x128xf32>
    %48 = vector.shape_cast %44 : vector<8x128xf32> to vector<1x8x128xf32>
    tpu.vector_store %arg15[%45, %c0_19, %c0_20], %48 {strides = array<i32>} : memref<8x8x128xf32, #tpu.memory_space<vmem>>, vector<1x8x128xf32>,
    %c1_i32 = arith.constant 1 : i32
    %49 = arith.index_cast %c1_i32 : i32 to index
    %c0_21 = arith.constant 0 : index
    %c0_22 = arith.constant 0 : index
    %50 = vector.load %arg14[%49, %c0_21, %c0_22] : memref<8x8x512xf32, #tpu.memory_space<vmem>>, vector<1x8x512xf32>
    %51 = vector.shape_cast %50 : vector<1x8x512xf32> to vector<8x512xf32>
    %52 = arith.truncf %44 : vector<8x128xf32> to vector<8x128xbf16>
    %cst_23 = arith.constant dense<0.000000e+00> : vector<8x512xf32>
    %53 = tpu.matmul %52, %7, %cst_23 {dimension_numbers = #tpu.dot_dimension_numbers<[1], [0], [0], [1], [0, 0, 1, 1], [], []>} : vector<8x128xbf16>, vector<128x512xbf16>, vector<8x512xf32> -> vector<8x512xf32>
    %54 = arith.addf %51, %53 : vector<8x512xf32>
    %55 = arith.addf %54, %10 : vector<8x512xf32>
    %56 = vector.extract_strided_slice %55 {offsets = [0, 0], sizes = [8, 128], strides = [1, 1]} : vector<8x512xf32> to vector<8x128xf32>
    %57 = arith.negf %56 : vector<8x128xf32>
    %58 = math.exp %57 : vector<8x128xf32>
    %cst_24 = arith.constant 1.000000e+00 : f32
    %59 = vector.broadcast %cst_24 : f32 to vector<8x128xf32>
    %60 = arith.addf %59, %58 : vector<8x128xf32>
    %61 = arith.divf %59, %60 : vector<8x128xf32>
    %62 = vector.extract_strided_slice %55 {offsets = [0, 128], sizes = [8, 128], strides = [1, 1]} : vector<8x512xf32> to vector<8x128xf32>
    %63 = arith.negf %62 : vector<8x128xf32>
    %64 = math.exp %63 : vector<8x128xf32>
    %cst_25 = arith.constant 1.000000e+00 : f32
    %65 = vector.broadcast %cst_25 : f32 to vector<8x128xf32>
    %66 = arith.addf %65, %64 : vector<8x128xf32>
    %67 = arith.divf %65, %66 : vector<8x128xf32>
    %68 = vector.extract_strided_slice %55 {offsets = [0, 256], sizes = [8, 128], strides = [1, 1]} : vector<8x512xf32> to vector<8x128xf32>
    %69 = math.tanh %68 : vector<8x128xf32>
    %70 = vector.extract_strided_slice %55 {offsets = [0, 384], sizes = [8, 128], strides = [1, 1]} : vector<8x512xf32> to vector<8x128xf32>
    %71 = arith.negf %70 : vector<8x128xf32>
    %72 = math.exp %71 : vector<8x128xf32>
    %cst_26 = arith.constant 1.000000e+00 : f32
    %73 = vector.broadcast %cst_26 : f32 to vector<8x128xf32>
    %74 = arith.addf %73, %72 : vector<8x128xf32>
    %75 = arith.divf %73, %74 : vector<8x128xf32>
    %76 = arith.mulf %67, %42 : vector<8x128xf32>
    %77 = arith.mulf %61, %69 : vector<8x128xf32>
    %78 = arith.addf %76, %77 : vector<8x128xf32>
    %79 = math.tanh %78 : vector<8x128xf32>
    %80 = arith.mulf %75, %79 : vector<8x128xf32>
    %81 = arith.index_cast %c1_i32 : i32 to index
    %c0_27 = arith.constant 0 : index
    %c0_28 = arith.constant 0 : index
    %82 = vector.load %arg15[%81, %c0_27, %c0_28] : memref<8x8x128xf32, #tpu.memory_space<vmem>>, vector<1x8x128xf32>
    %83 = vector.shape_cast %82 : vector<1x8x128xf32> to vector<8x128xf32>
    %84 = vector.shape_cast %80 : vector<8x128xf32> to vector<1x8x128xf32>
    tpu.vector_store %arg15[%81, %c0_27, %c0_28], %84 {strides = array<i32>} : memref<8x8x128xf32, #tpu.memory_space<vmem>>, vector<1x8x128xf32>,
    %c2_i32 = arith.constant 2 : i32
    %85 = arith.index_cast %c2_i32 : i32 to index
    %c0_29 = arith.constant 0 : index
    %c0_30 = arith.constant 0 : index
    %86 = vector.load %arg14[%85, %c0_29, %c0_30] : memref<8x8x512xf32, #tpu.memory_space<vmem>>, vector<1x8x512xf32>
    %87 = vector.shape_cast %86 : vector<1x8x512xf32> to vector<8x512xf32>
    %88 = arith.truncf %80 : vector<8x128xf32> to vector<8x128xbf16>
    %cst_31 = arith.constant dense<0.000000e+00> : vector<8x512xf32>
    %89 = tpu.matmul %88, %7, %cst_31 {dimension_numbers = #tpu.dot_dimension_numbers<[1], [0], [0], [1], [0, 0, 1, 1], [], []>} : vector<8x128xbf16>, vector<128x512xbf16>, vector<8x512xf32> -> vector<8x512xf32>
    %90 = arith.addf %87, %89 : vector<8x512xf32>
    %91 = arith.addf %90, %10 : vector<8x512xf32>
    %92 = vector.extract_strided_slice %91 {offsets = [0, 0], sizes = [8, 128], strides = [1, 1]} : vector<8x512xf32> to vector<8x128xf32>
    %93 = arith.negf %92 : vector<8x128xf32>
    %94 = math.exp %93 : vector<8x128xf32>
    %cst_32 = arith.constant 1.000000e+00 : f32
    %95 = vector.broadcast %cst_32 : f32 to vector<8x128xf32>
    %96 = arith.addf %95, %94 : vector<8x128xf32>
    %97 = arith.divf %95, %96 : vector<8x128xf32>
    %98 = vector.extract_strided_slice %91 {offsets = [0, 128], sizes = [8, 128], strides = [1, 1]} : vector<8x512xf32> to vector<8x128xf32>
    %99 = arith.negf %98 : vector<8x128xf32>
    %100 = math.exp %99 : vector<8x128xf32>
    %cst_33 = arith.constant 1.000000e+00 : f32
    %101 = vector.broadcast %cst_33 : f32 to vector<8x128xf32>
    %102 = arith.addf %101, %100 : vector<8x128xf32>
    %103 = arith.divf %101, %102 : vector<8x128xf32>
    %104 = vector.extract_strided_slice %91 {offsets = [0, 256], sizes = [8, 128], strides = [1, 1]} : vector<8x512xf32> to vector<8x128xf32>
    %105 = math.tanh %104 : vector<8x128xf32>
    %106 = vector.extract_strided_slice %91 {offsets = [0, 384], sizes = [8, 128], strides = [1, 1]} : vector<8x512xf32> to vector<8x128xf32>
    %107 = arith.negf %106 : vector<8x128xf32>
    %108 = math.exp %107 : vector<8x128xf32>
    %cst_34 = arith.constant 1.000000e+00 : f32
    %109 = vector.broadcast %cst_34 : f32 to vector<8x128xf32>
    %110 = arith.addf %109, %108 : vector<8x128xf32>
    %111 = arith.divf %109, %110 : vector<8x128xf32>
    %112 = arith.mulf %103, %78 : vector<8x128xf32>
    %113 = arith.mulf %97, %105 : vector<8x128xf32>
    %114 = arith.addf %112, %113 : vector<8x128xf32>
    %115 = math.tanh %114 : vector<8x128xf32>
    %116 = arith.mulf %111, %115 : vector<8x128xf32>
    %117 = arith.index_cast %c2_i32 : i32 to index
    %c0_35 = arith.constant 0 : index
    %c0_36 = arith.constant 0 : index
    %118 = vector.load %arg15[%117, %c0_35, %c0_36] : memref<8x8x128xf32, #tpu.memory_space<vmem>>, vector<1x8x128xf32>
    %119 = vector.shape_cast %118 : vector<1x8x128xf32> to vector<8x128xf32>
    %120 = vector.shape_cast %116 : vector<8x128xf32> to vector<1x8x128xf32>
    tpu.vector_store %arg15[%117, %c0_35, %c0_36], %120 {strides = array<i32>} : memref<8x8x128xf32, #tpu.memory_space<vmem>>, vector<1x8x128xf32>,
    %c3_i32 = arith.constant 3 : i32
    %121 = arith.index_cast %c3_i32 : i32 to index
    %c0_37 = arith.constant 0 : index
    %c0_38 = arith.constant 0 : index
    %122 = vector.load %arg14[%121, %c0_37, %c0_38] : memref<8x8x512xf32, #tpu.memory_space<vmem>>, vector<1x8x512xf32>
    %123 = vector.shape_cast %122 : vector<1x8x512xf32> to vector<8x512xf32>
    %124 = arith.truncf %116 : vector<8x128xf32> to vector<8x128xbf16>
    %cst_39 = arith.constant dense<0.000000e+00> : vector<8x512xf32>
    %125 = tpu.matmul %124, %7, %cst_39 {dimension_numbers = #tpu.dot_dimension_numbers<[1], [0], [0], [1], [0, 0, 1, 1], [], []>} : vector<8x128xbf16>, vector<128x512xbf16>, vector<8x512xf32> -> vector<8x512xf32>
    %126 = arith.addf %123, %125 : vector<8x512xf32>
    %127 = arith.addf %126, %10 : vector<8x512xf32>
    %128 = vector.extract_strided_slice %127 {offsets = [0, 0], sizes = [8, 128], strides = [1, 1]} : vector<8x512xf32> to vector<8x128xf32>
    %129 = arith.negf %128 : vector<8x128xf32>
    %130 = math.exp %129 : vector<8x128xf32>
    %cst_40 = arith.constant 1.000000e+00 : f32
    %131 = vector.broadcast %cst_40 : f32 to vector<8x128xf32>
    %132 = arith.addf %131, %130 : vector<8x128xf32>
    %133 = arith.divf %131, %132 : vector<8x128xf32>
    %134 = vector.extract_strided_slice %127 {offsets = [0, 128], sizes = [8, 128], strides = [1, 1]} : vector<8x512xf32> to vector<8x128xf32>
    %135 = arith.negf %134 : vector<8x128xf32>
    %136 = math.exp %135 : vector<8x128xf32>
    %cst_41 = arith.constant 1.000000e+00 : f32
    %137 = vector.broadcast %cst_41 : f32 to vector<8x128xf32>
    %138 = arith.addf %137, %136 : vector<8x128xf32>
    %139 = arith.divf %137, %138 : vector<8x128xf32>
    %140 = vector.extract_strided_slice %127 {offsets = [0, 256], sizes = [8, 128], strides = [1, 1]} : vector<8x512xf32> to vector<8x128xf32>
    %141 = math.tanh %140 : vector<8x128xf32>
    %142 = vector.extract_strided_slice %127 {offsets = [0, 384], sizes = [8, 128], strides = [1, 1]} : vector<8x512xf32> to vector<8x128xf32>
    %143 = arith.negf %142 : vector<8x128xf32>
    %144 = math.exp %143 : vector<8x128xf32>
    %cst_42 = arith.constant 1.000000e+00 : f32
    %145 = vector.broadcast %cst_42 : f32 to vector<8x128xf32>
    %146 = arith.addf %145, %144 : vector<8x128xf32>
    %147 = arith.divf %145, %146 : vector<8x128xf32>
    %148 = arith.mulf %139, %114 : vector<8x128xf32>
    %149 = arith.mulf %133, %141 : vector<8x128xf32>
    %150 = arith.addf %148, %149 : vector<8x128xf32>
    %151 = math.tanh %150 : vector<8x128xf32>
    %152 = arith.mulf %147, %151 : vector<8x128xf32>
    %153 = arith.index_cast %c3_i32 : i32 to index
    %c0_43 = arith.constant 0 : index
    %c0_44 = arith.constant 0 : index
    %154 = vector.load %arg15[%153, %c0_43, %c0_44] : memref<8x8x128xf32, #tpu.memory_space<vmem>>, vector<1x8x128xf32>
    %155 = vector.shape_cast %154 : vector<1x8x128xf32> to vector<8x128xf32>
    %156 = vector.shape_cast %152 : vector<8x128xf32> to vector<1x8x128xf32>
    tpu.vector_store %arg15[%153, %c0_43, %c0_44], %156 {strides = array<i32>} : memref<8x8x128xf32, #tpu.memory_space<vmem>>, vector<1x8x128xf32>,
    %c4_i32 = arith.constant 4 : i32
    %157 = arith.index_cast %c4_i32 : i32 to index
    %c0_45 = arith.constant 0 : index
    %c0_46 = arith.constant 0 : index
    %158 = vector.load %arg14[%157, %c0_45, %c0_46] : memref<8x8x512xf32, #tpu.memory_space<vmem>>, vector<1x8x512xf32>
    %159 = vector.shape_cast %158 : vector<1x8x512xf32> to vector<8x512xf32>
    %160 = arith.truncf %152 : vector<8x128xf32> to vector<8x128xbf16>
    %cst_47 = arith.constant dense<0.000000e+00> : vector<8x512xf32>
    %161 = tpu.matmul %160, %7, %cst_47 {dimension_numbers = #tpu.dot_dimension_numbers<[1], [0], [0], [1], [0, 0, 1, 1], [], []>} : vector<8x128xbf16>, vector<128x512xbf16>, vector<8x512xf32> -> vector<8x512xf32>
    %162 = arith.addf %159, %161 : vector<8x512xf32>
    %163 = arith.addf %162, %10 : vector<8x512xf32>
    %164 = vector.extract_strided_slice %163 {offsets = [0, 0], sizes = [8, 128], strides = [1, 1]} : vector<8x512xf32> to vector<8x128xf32>
    %165 = arith.negf %164 : vector<8x128xf32>
    %166 = math.exp %165 : vector<8x128xf32>
    %cst_48 = arith.constant 1.000000e+00 : f32
    %167 = vector.broadcast %cst_48 : f32 to vector<8x128xf32>
    %168 = arith.addf %167, %166 : vector<8x128xf32>
    %169 = arith.divf %167, %168 : vector<8x128xf32>
    %170 = vector.extract_strided_slice %163 {offsets = [0, 128], sizes = [8, 128], strides = [1, 1]} : vector<8x512xf32> to vector<8x128xf32>
    %171 = arith.negf %170 : vector<8x128xf32>
    %172 = math.exp %171 : vector<8x128xf32>
    %cst_49 = arith.constant 1.000000e+00 : f32
    %173 = vector.broadcast %cst_49 : f32 to vector<8x128xf32>
    %174 = arith.addf %173, %172 : vector<8x128xf32>
    %175 = arith.divf %173, %174 : vector<8x128xf32>
    %176 = vector.extract_strided_slice %163 {offsets = [0, 256], sizes = [8, 128], strides = [1, 1]} : vector<8x512xf32> to vector<8x128xf32>
    %177 = math.tanh %176 : vector<8x128xf32>
    %178 = vector.extract_strided_slice %163 {offsets = [0, 384], sizes = [8, 128], strides = [1, 1]} : vector<8x512xf32> to vector<8x128xf32>
    %179 = arith.negf %178 : vector<8x128xf32>
    %180 = math.exp %179 : vector<8x128xf32>
    %cst_50 = arith.constant 1.000000e+00 : f32
    %181 = vector.broadcast %cst_50 : f32 to vector<8x128xf32>
    %182 = arith.addf %181, %180 : vector<8x128xf32>
    %183 = arith.divf %181, %182 : vector<8x128xf32>
    %184 = arith.mulf %175, %150 : vector<8x128xf32>
    %185 = arith.mulf %169, %177 : vector<8x128xf32>
    %186 = arith.addf %184, %185 : vector<8x128xf32>
    %187 = math.tanh %186 : vector<8x128xf32>
    %188 = arith.mulf %183, %187 : vector<8x128xf32>
    %189 = arith.index_cast %c4_i32 : i32 to index
    %c0_51 = arith.constant 0 : index
    %c0_52 = arith.constant 0 : index
    %190 = vector.load %arg15[%189, %c0_51, %c0_52] : memref<8x8x128xf32, #tpu.memory_space<vmem>>, vector<1x8x128xf32>
    %191 = vector.shape_cast %190 : vector<1x8x128xf32> to vector<8x128xf32>
    %192 = vector.shape_cast %188 : vector<8x128xf32> to vector<1x8x128xf32>
    tpu.vector_store %arg15[%189, %c0_51, %c0_52], %192 {strides = array<i32>} : memref<8x8x128xf32, #tpu.memory_space<vmem>>, vector<1x8x128xf32>,
    %c5_i32 = arith.constant 5 : i32
    %193 = arith.index_cast %c5_i32 : i32 to index
    %c0_53 = arith.constant 0 : index
    %c0_54 = arith.constant 0 : index
    %194 = vector.load %arg14[%193, %c0_53, %c0_54] : memref<8x8x512xf32, #tpu.memory_space<vmem>>, vector<1x8x512xf32>
    %195 = vector.shape_cast %194 : vector<1x8x512xf32> to vector<8x512xf32>
    %196 = arith.truncf %188 : vector<8x128xf32> to vector<8x128xbf16>
    %cst_55 = arith.constant dense<0.000000e+00> : vector<8x512xf32>
    %197 = tpu.matmul %196, %7, %cst_55 {dimension_numbers = #tpu.dot_dimension_numbers<[1], [0], [0], [1], [0, 0, 1, 1], [], []>} : vector<8x128xbf16>, vector<128x512xbf16>, vector<8x512xf32> -> vector<8x512xf32>
    %198 = arith.addf %195, %197 : vector<8x512xf32>
    %199 = arith.addf %198, %10 : vector<8x512xf32>
    %200 = vector.extract_strided_slice %199 {offsets = [0, 0], sizes = [8, 128], strides = [1, 1]} : vector<8x512xf32> to vector<8x128xf32>
    %201 = arith.negf %200 : vector<8x128xf32>
    %202 = math.exp %201 : vector<8x128xf32>
    %cst_56 = arith.constant 1.000000e+00 : f32
    %203 = vector.broadcast %cst_56 : f32 to vector<8x128xf32>
    %204 = arith.addf %203, %202 : vector<8x128xf32>
    %205 = arith.divf %203, %204 : vector<8x128xf32>
    %206 = vector.extract_strided_slice %199 {offsets = [0, 128], sizes = [8, 128], strides = [1, 1]} : vector<8x512xf32> to vector<8x128xf32>
    %207 = arith.negf %206 : vector<8x128xf32>
    %208 = math.exp %207 : vector<8x128xf32>
    %cst_57 = arith.constant 1.000000e+00 : f32
    %209 = vector.broadcast %cst_57 : f32 to vector<8x128xf32>
    %210 = arith.addf %209, %208 : vector<8x128xf32>
    %211 = arith.divf %209, %210 : vector<8x128xf32>
    %212 = vector.extract_strided_slice %199 {offsets = [0, 256], sizes = [8, 128], strides = [1, 1]} : vector<8x512xf32> to vector<8x128xf32>
    %213 = math.tanh %212 : vector<8x128xf32>
    %214 = vector.extract_strided_slice %199 {offsets = [0, 384], sizes = [8, 128], strides = [1, 1]} : vector<8x512xf32> to vector<8x128xf32>
    %215 = arith.negf %214 : vector<8x128xf32>
    %216 = math.exp %215 : vector<8x128xf32>
    %cst_58 = arith.constant 1.000000e+00 : f32
    %217 = vector.broadcast %cst_58 : f32 to vector<8x128xf32>
    %218 = arith.addf %217, %216 : vector<8x128xf32>
    %219 = arith.divf %217, %218 : vector<8x128xf32>
    %220 = arith.mulf %211, %186 : vector<8x128xf32>
    %221 = arith.mulf %205, %213 : vector<8x128xf32>
    %222 = arith.addf %220, %221 : vector<8x128xf32>
    %223 = math.tanh %222 : vector<8x128xf32>
    %224 = arith.mulf %219, %223 : vector<8x128xf32>
    %225 = arith.index_cast %c5_i32 : i32 to index
    %c0_59 = arith.constant 0 : index
    %c0_60 = arith.constant 0 : index
    %226 = vector.load %arg15[%225, %c0_59, %c0_60] : memref<8x8x128xf32, #tpu.memory_space<vmem>>, vector<1x8x128xf32>
    %227 = vector.shape_cast %226 : vector<1x8x128xf32> to vector<8x128xf32>
    %228 = vector.shape_cast %224 : vector<8x128xf32> to vector<1x8x128xf32>
    tpu.vector_store %arg15[%225, %c0_59, %c0_60], %228 {strides = array<i32>} : memref<8x8x128xf32, #tpu.memory_space<vmem>>, vector<1x8x128xf32>,
    %c6_i32 = arith.constant 6 : i32
    %229 = arith.index_cast %c6_i32 : i32 to index
    %c0_61 = arith.constant 0 : index
    %c0_62 = arith.constant 0 : index
    %230 = vector.load %arg14[%229, %c0_61, %c0_62] : memref<8x8x512xf32, #tpu.memory_space<vmem>>, vector<1x8x512xf32>
    %231 = vector.shape_cast %230 : vector<1x8x512xf32> to vector<8x512xf32>
    %232 = arith.truncf %224 : vector<8x128xf32> to vector<8x128xbf16>
    %cst_63 = arith.constant dense<0.000000e+00> : vector<8x512xf32>
    %233 = tpu.matmul %232, %7, %cst_63 {dimension_numbers = #tpu.dot_dimension_numbers<[1], [0], [0], [1], [0, 0, 1, 1], [], []>} : vector<8x128xbf16>, vector<128x512xbf16>, vector<8x512xf32> -> vector<8x512xf32>
    %234 = arith.addf %231, %233 : vector<8x512xf32>
    %235 = arith.addf %234, %10 : vector<8x512xf32>
    %236 = vector.extract_strided_slice %235 {offsets = [0, 0], sizes = [8, 128], strides = [1, 1]} : vector<8x512xf32> to vector<8x128xf32>
    %237 = arith.negf %236 : vector<8x128xf32>
    %238 = math.exp %237 : vector<8x128xf32>
    %cst_64 = arith.constant 1.000000e+00 : f32
    %239 = vector.broadcast %cst_64 : f32 to vector<8x128xf32>
    %240 = arith.addf %239, %238 : vector<8x128xf32>
    %241 = arith.divf %239, %240 : vector<8x128xf32>
    %242 = vector.extract_strided_slice %235 {offsets = [0, 128], sizes = [8, 128], strides = [1, 1]} : vector<8x512xf32> to vector<8x128xf32>
    %243 = arith.negf %242 : vector<8x128xf32>
    %244 = math.exp %243 : vector<8x128xf32>
    %cst_65 = arith.constant 1.000000e+00 : f32
    %245 = vector.broadcast %cst_65 : f32 to vector<8x128xf32>
    %246 = arith.addf %245, %244 : vector<8x128xf32>
    %247 = arith.divf %245, %246 : vector<8x128xf32>
    %248 = vector.extract_strided_slice %235 {offsets = [0, 256], sizes = [8, 128], strides = [1, 1]} : vector<8x512xf32> to vector<8x128xf32>
    %249 = math.tanh %248 : vector<8x128xf32>
    %250 = vector.extract_strided_slice %235 {offsets = [0, 384], sizes = [8, 128], strides = [1, 1]} : vector<8x512xf32> to vector<8x128xf32>
    %251 = arith.negf %250 : vector<8x128xf32>
    %252 = math.exp %251 : vector<8x128xf32>
    %cst_66 = arith.constant 1.000000e+00 : f32
    %253 = vector.broadcast %cst_66 : f32 to vector<8x128xf32>
    %254 = arith.addf %253, %252 : vector<8x128xf32>
    %255 = arith.divf %253, %254 : vector<8x128xf32>
    %256 = arith.mulf %247, %222 : vector<8x128xf32>
    %257 = arith.mulf %241, %249 : vector<8x128xf32>
    %258 = arith.addf %256, %257 : vector<8x128xf32>
    %259 = math.tanh %258 : vector<8x128xf32>
    %260 = arith.mulf %255, %259 : vector<8x128xf32>
    %261 = arith.index_cast %c6_i32 : i32 to index
    %c0_67 = arith.constant 0 : index
    %c0_68 = arith.constant 0 : index
    %262 = vector.load %arg15[%261, %c0_67, %c0_68] : memref<8x8x128xf32, #tpu.memory_space<vmem>>, vector<1x8x128xf32>
    %263 = vector.shape_cast %262 : vector<1x8x128xf32> to vector<8x128xf32>
    %264 = vector.shape_cast %260 : vector<8x128xf32> to vector<1x8x128xf32>
    tpu.vector_store %arg15[%261, %c0_67, %c0_68], %264 {strides = array<i32>} : memref<8x8x128xf32, #tpu.memory_space<vmem>>, vector<1x8x128xf32>,
    %c7_i32 = arith.constant 7 : i32
    %265 = arith.index_cast %c7_i32 : i32 to index
    %c0_69 = arith.constant 0 : index
    %c0_70 = arith.constant 0 : index
    %266 = vector.load %arg14[%265, %c0_69, %c0_70] : memref<8x8x512xf32, #tpu.memory_space<vmem>>, vector<1x8x512xf32>
    %267 = vector.shape_cast %266 : vector<1x8x512xf32> to vector<8x512xf32>
    %268 = arith.truncf %260 : vector<8x128xf32> to vector<8x128xbf16>
    %cst_71 = arith.constant dense<0.000000e+00> : vector<8x512xf32>
    %269 = tpu.matmul %268, %7, %cst_71 {dimension_numbers = #tpu.dot_dimension_numbers<[1], [0], [0], [1], [0, 0, 1, 1], [], []>} : vector<8x128xbf16>, vector<128x512xbf16>, vector<8x512xf32> -> vector<8x512xf32>
    %270 = arith.addf %267, %269 : vector<8x512xf32>
    %271 = arith.addf %270, %10 : vector<8x512xf32>
    %272 = vector.extract_strided_slice %271 {offsets = [0, 0], sizes = [8, 128], strides = [1, 1]} : vector<8x512xf32> to vector<8x128xf32>
    %273 = arith.negf %272 : vector<8x128xf32>
    %274 = math.exp %273 : vector<8x128xf32>
    %cst_72 = arith.constant 1.000000e+00 : f32
    %275 = vector.broadcast %cst_72 : f32 to vector<8x128xf32>
    %276 = arith.addf %275, %274 : vector<8x128xf32>
    %277 = arith.divf %275, %276 : vector<8x128xf32>
    %278 = vector.extract_strided_slice %271 {offsets = [0, 128], sizes = [8, 128], strides = [1, 1]} : vector<8x512xf32> to vector<8x128xf32>
    %279 = arith.negf %278 : vector<8x128xf32>
    %280 = math.exp %279 : vector<8x128xf32>
    %cst_73 = arith.constant 1.000000e+00 : f32
    %281 = vector.broadcast %cst_73 : f32 to vector<8x128xf32>
    %282 = arith.addf %281, %280 : vector<8x128xf32>
    %283 = arith.divf %281, %282 : vector<8x128xf32>
    %284 = vector.extract_strided_slice %271 {offsets = [0, 256], sizes = [8, 128], strides = [1, 1]} : vector<8x512xf32> to vector<8x128xf32>
    %285 = math.tanh %284 : vector<8x128xf32>
    %286 = vector.extract_strided_slice %271 {offsets = [0, 384], sizes = [8, 128], strides = [1, 1]} : vector<8x512xf32> to vector<8x128xf32>
    %287 = arith.negf %286 : vector<8x128xf32>
    %288 = math.exp %287 : vector<8x128xf32>
    %cst_74 = arith.constant 1.000000e+00 : f32
    %289 = vector.broadcast %cst_74 : f32 to vector<8x128xf32>
    %290 = arith.addf %289, %288 : vector<8x128xf32>
    %291 = arith.divf %289, %290 : vector<8x128xf32>
    %292 = arith.mulf %283, %258 : vector<8x128xf32>
    %293 = arith.mulf %277, %285 : vector<8x128xf32>
    %294 = arith.addf %292, %293 : vector<8x128xf32>
    %295 = math.tanh %294 : vector<8x128xf32>
    %296 = arith.mulf %291, %295 : vector<8x128xf32>
    %297 = arith.index_cast %c7_i32 : i32 to index
    %c0_75 = arith.constant 0 : index
    %c0_76 = arith.constant 0 : index
    %298 = vector.load %arg15[%297, %c0_75, %c0_76] : memref<8x8x128xf32, #tpu.memory_space<vmem>>, vector<1x8x128xf32>
    %299 = vector.shape_cast %298 : vector<1x8x128xf32> to vector<8x128xf32>
    %300 = vector.shape_cast %296 : vector<8x128xf32> to vector<1x8x128xf32>
    tpu.vector_store %arg15[%297, %c0_75, %c0_76], %300 {strides = array<i32>} : memref<8x8x128xf32, #tpu.memory_space<vmem>>, vector<1x8x128xf32>,
    %c8_i32 = arith.constant 8 : i32
    %c0_77 = arith.constant 0 : index
    %c0_78 = arith.constant 0 : index
    %c0_79 = arith.constant 0 : index
    %301 = vector.load %arg15[%c0_77, %c0_78, %c0_79] : memref<8x8x128xf32, #tpu.memory_space<vmem>>, vector<8x8x128xf32>
    %302 = vector.shape_cast %301 : vector<8x8x128xf32> to vector<64x128xf32>
    %303 = arith.truncf %302 : vector<64x128xf32> to vector<64x128xbf16>
    %c0_80 = arith.constant 0 : index
    %c0_81 = arith.constant 0 : index
    %304 = vector.load %arg5[%c0_80, %c0_81] : memref<128x512xbf16, #tpu.memory_space<vmem>>, vector<128x512xbf16>
    %cst_82 = arith.constant dense<0.000000e+00> : vector<64x512xf32>
    %305 = tpu.matmul %303, %304, %cst_82 {dimension_numbers = #tpu.dot_dimension_numbers<[1], [0], [0], [1], [0, 0, 1, 1], [], []>} : vector<64x128xbf16>, vector<128x512xbf16>, vector<64x512xf32> -> vector<64x512xf32>
    %306 = vector.shape_cast %305 : vector<64x512xf32> to vector<8x8x512xf32>
    %c0_83 = arith.constant 0 : index
    %c0_84 = arith.constant 0 : index
    %c0_85 = arith.constant 0 : index
    %307 = vector.load %arg14[%c0_83, %c0_84, %c0_85] : memref<8x8x512xf32, #tpu.memory_space<vmem>>, vector<8x8x512xf32>
    tpu.vector_store %arg14[%c0_83, %c0_84, %c0_85], %306 {strides = array<i32>} : memref<8x8x512xf32, #tpu.memory_space<vmem>>, vector<8x8x512xf32>,
    %c0_86 = arith.constant 0 : index
    %c0_87 = arith.constant 0 : index
    %308 = vector.load %arg6[%c0_86, %c0_87] : memref<128x512xbf16, #tpu.memory_space<vmem>>, vector<128x512xbf16>
    %c0_88 = arith.constant 0 : index
    %c0_89 = arith.constant 0 : index
    %309 = vector.load %arg7[%c0_88, %c0_89] : memref<1x512xf32, #tpu.memory_space<vmem>>, vector<1x512xf32>
    %310 = vector.shape_cast %309 : vector<1x512xf32> to vector<1x512xf32>
    %311 = vector.broadcast %310 : vector<1x512xf32> to vector<8x512xf32>
    %cst_90 = arith.constant 0.000000e+00 : f32
    %312 = vector.broadcast %cst_90 : f32 to vector<8x128xf32>
    %cst_91 = arith.constant 0.000000e+00 : f32
    %313 = vector.broadcast %cst_91 : f32 to vector<8x128xf32>
    %c0_i32_92 = arith.constant 0 : i32
    %314 = arith.index_cast %c0_i32_92 : i32 to index
    %c0_93 = arith.constant 0 : index
    %c0_94 = arith.constant 0 : index
    %315 = vector.load %arg14[%314, %c0_93, %c0_94] : memref<8x8x512xf32, #tpu.memory_space<vmem>>, vector<1x8x512xf32>
    %316 = vector.shape_cast %315 : vector<1x8x512xf32> to vector<8x512xf32>
    %317 = arith.truncf %312 : vector<8x128xf32> to vector<8x128xbf16>
    %cst_95 = arith.constant dense<0.000000e+00> : vector<8x512xf32>
    %318 = tpu.matmul %317, %308, %cst_95 {dimension_numbers = #tpu.dot_dimension_numbers<[1], [0], [0], [1], [0, 0, 1, 1], [], []>} : vector<8x128xbf16>, vector<128x512xbf16>, vector<8x512xf32> -> vector<8x512xf32>
    %319 = arith.addf %316, %318 : vector<8x512xf32>
    %320 = arith.addf %319, %311 : vector<8x512xf32>
    %321 = vector.extract_strided_slice %320 {offsets = [0, 0], sizes = [8, 128], strides = [1, 1]} : vector<8x512xf32> to vector<8x128xf32>
    %322 = arith.negf %321 : vector<8x128xf32>
    %323 = math.exp %322 : vector<8x128xf32>
    %cst_96 = arith.constant 1.000000e+00 : f32
    %324 = vector.broadcast %cst_96 : f32 to vector<8x128xf32>
    %325 = arith.addf %324, %323 : vector<8x128xf32>
    %326 = arith.divf %324, %325 : vector<8x128xf32>
    %327 = vector.extract_strided_slice %320 {offsets = [0, 128], sizes = [8, 128], strides = [1, 1]} : vector<8x512xf32> to vector<8x128xf32>
    %328 = arith.negf %327 : vector<8x128xf32>
    %329 = math.exp %328 : vector<8x128xf32>
    %cst_97 = arith.constant 1.000000e+00 : f32
    %330 = vector.broadcast %cst_97 : f32 to vector<8x128xf32>
    %331 = arith.addf %330, %329 : vector<8x128xf32>
    %332 = arith.divf %330, %331 : vector<8x128xf32>
    %333 = vector.extract_strided_slice %320 {offsets = [0, 256], sizes = [8, 128], strides = [1, 1]} : vector<8x512xf32> to vector<8x128xf32>
    %334 = math.tanh %333 : vector<8x128xf32>
    %335 = vector.extract_strided_slice %320 {offsets = [0, 384], sizes = [8, 128], strides = [1, 1]} : vector<8x512xf32> to vector<8x128xf32>
    %336 = arith.negf %335 : vector<8x128xf32>
    %337 = math.exp %336 : vector<8x128xf32>
    %cst_98 = arith.constant 1.000000e+00 : f32
    %338 = vector.broadcast %cst_98 : f32 to vector<8x128xf32>
    %339 = arith.addf %338, %337 : vector<8x128xf32>
    %340 = arith.divf %338, %339 : vector<8x128xf32>
    %341 = arith.mulf %332, %313 : vector<8x128xf32>
    %342 = arith.mulf %326, %334 : vector<8x128xf32>
    %343 = arith.addf %341, %342 : vector<8x128xf32>
    %344 = math.tanh %343 : vector<8x128xf32>
    %345 = arith.mulf %340, %344 : vector<8x128xf32>
    %346 = arith.index_cast %c0_i32_92 : i32 to index
    %c0_99 = arith.constant 0 : index
    %c0_100 = arith.constant 0 : index
    %347 = vector.load %arg15[%346, %c0_99, %c0_100] : memref<8x8x128xf32, #tpu.memory_space<vmem>>, vector<1x8x128xf32>
    %348 = vector.shape_cast %347 : vector<1x8x128xf32> to vector<8x128xf32>
    %349 = vector.shape_cast %345 : vector<8x128xf32> to vector<1x8x128xf32>
    tpu.vector_store %arg15[%346, %c0_99, %c0_100], %349 {strides = array<i32>} : memref<8x8x128xf32, #tpu.memory_space<vmem>>, vector<1x8x128xf32>,
    %c1_i32_101 = arith.constant 1 : i32
    %350 = arith.index_cast %c1_i32_101 : i32 to index
    %c0_102 = arith.constant 0 : index
    %c0_103 = arith.constant 0 : index
    %351 = vector.load %arg14[%350, %c0_102, %c0_103] : memref<8x8x512xf32, #tpu.memory_space<vmem>>, vector<1x8x512xf32>
    %352 = vector.shape_cast %351 : vector<1x8x512xf32> to vector<8x512xf32>
    %353 = arith.truncf %345 : vector<8x128xf32> to vector<8x128xbf16>
    %cst_104 = arith.constant dense<0.000000e+00> : vector<8x512xf32>
    %354 = tpu.matmul %353, %308, %cst_104 {dimension_numbers = #tpu.dot_dimension_numbers<[1], [0], [0], [1], [0, 0, 1, 1], [], []>} : vector<8x128xbf16>, vector<128x512xbf16>, vector<8x512xf32> -> vector<8x512xf32>
    %355 = arith.addf %352, %354 : vector<8x512xf32>
    %356 = arith.addf %355, %311 : vector<8x512xf32>
    %357 = vector.extract_strided_slice %356 {offsets = [0, 0], sizes = [8, 128], strides = [1, 1]} : vector<8x512xf32> to vector<8x128xf32>
    %358 = arith.negf %357 : vector<8x128xf32>
    %359 = math.exp %358 : vector<8x128xf32>
    %cst_105 = arith.constant 1.000000e+00 : f32
    %360 = vector.broadcast %cst_105 : f32 to vector<8x128xf32>
    %361 = arith.addf %360, %359 : vector<8x128xf32>
    %362 = arith.divf %360, %361 : vector<8x128xf32>
    %363 = vector.extract_strided_slice %356 {offsets = [0, 128], sizes = [8, 128], strides = [1, 1]} : vector<8x512xf32> to vector<8x128xf32>
    %364 = arith.negf %363 : vector<8x128xf32>
    %365 = math.exp %364 : vector<8x128xf32>
    %cst_106 = arith.constant 1.000000e+00 : f32
    %366 = vector.broadcast %cst_106 : f32 to vector<8x128xf32>
    %367 = arith.addf %366, %365 : vector<8x128xf32>
    %368 = arith.divf %366, %367 : vector<8x128xf32>
    %369 = vector.extract_strided_slice %356 {offsets = [0, 256], sizes = [8, 128], strides = [1, 1]} : vector<8x512xf32> to vector<8x128xf32>
    %370 = math.tanh %369 : vector<8x128xf32>
    %371 = vector.extract_strided_slice %356 {offsets = [0, 384], sizes = [8, 128], strides = [1, 1]} : vector<8x512xf32> to vector<8x128xf32>
    %372 = arith.negf %371 : vector<8x128xf32>
    %373 = math.exp %372 : vector<8x128xf32>
    %cst_107 = arith.constant 1.000000e+00 : f32
    %374 = vector.broadcast %cst_107 : f32 to vector<8x128xf32>
    %375 = arith.addf %374, %373 : vector<8x128xf32>
    %376 = arith.divf %374, %375 : vector<8x128xf32>
    %377 = arith.mulf %368, %343 : vector<8x128xf32>
    %378 = arith.mulf %362, %370 : vector<8x128xf32>
    %379 = arith.addf %377, %378 : vector<8x128xf32>
    %380 = math.tanh %379 : vector<8x128xf32>
    %381 = arith.mulf %376, %380 : vector<8x128xf32>
    %382 = arith.index_cast %c1_i32_101 : i32 to index
    %c0_108 = arith.constant 0 : index
    %c0_109 = arith.constant 0 : index
    %383 = vector.load %arg15[%382, %c0_108, %c0_109] : memref<8x8x128xf32, #tpu.memory_space<vmem>>, vector<1x8x128xf32>
    %384 = vector.shape_cast %383 : vector<1x8x128xf32> to vector<8x128xf32>
    %385 = vector.shape_cast %381 : vector<8x128xf32> to vector<1x8x128xf32>
    tpu.vector_store %arg15[%382, %c0_108, %c0_109], %385 {strides = array<i32>} : memref<8x8x128xf32, #tpu.memory_space<vmem>>, vector<1x8x128xf32>,
    %c2_i32_110 = arith.constant 2 : i32
    %386 = arith.index_cast %c2_i32_110 : i32 to index
    %c0_111 = arith.constant 0 : index
    %c0_112 = arith.constant 0 : index
    %387 = vector.load %arg14[%386, %c0_111, %c0_112] : memref<8x8x512xf32, #tpu.memory_space<vmem>>, vector<1x8x512xf32>
    %388 = vector.shape_cast %387 : vector<1x8x512xf32> to vector<8x512xf32>
    %389 = arith.truncf %381 : vector<8x128xf32> to vector<8x128xbf16>
    %cst_113 = arith.constant dense<0.000000e+00> : vector<8x512xf32>
    %390 = tpu.matmul %389, %308, %cst_113 {dimension_numbers = #tpu.dot_dimension_numbers<[1], [0], [0], [1], [0, 0, 1, 1], [], []>} : vector<8x128xbf16>, vector<128x512xbf16>, vector<8x512xf32> -> vector<8x512xf32>
    %391 = arith.addf %388, %390 : vector<8x512xf32>
    %392 = arith.addf %391, %311 : vector<8x512xf32>
    %393 = vector.extract_strided_slice %392 {offsets = [0, 0], sizes = [8, 128], strides = [1, 1]} : vector<8x512xf32> to vector<8x128xf32>
    %394 = arith.negf %393 : vector<8x128xf32>
    %395 = math.exp %394 : vector<8x128xf32>
    %cst_114 = arith.constant 1.000000e+00 : f32
    %396 = vector.broadcast %cst_114 : f32 to vector<8x128xf32>
    %397 = arith.addf %396, %395 : vector<8x128xf32>
    %398 = arith.divf %396, %397 : vector<8x128xf32>
    %399 = vector.extract_strided_slice %392 {offsets = [0, 128], sizes = [8, 128], strides = [1, 1]} : vector<8x512xf32> to vector<8x128xf32>
    %400 = arith.negf %399 : vector<8x128xf32>
    %401 = math.exp %400 : vector<8x128xf32>
    %cst_115 = arith.constant 1.000000e+00 : f32
    %402 = vector.broadcast %cst_115 : f32 to vector<8x128xf32>
    %403 = arith.addf %402, %401 : vector<8x128xf32>
    %404 = arith.divf %402, %403 : vector<8x128xf32>
    %405 = vector.extract_strided_slice %392 {offsets = [0, 256], sizes = [8, 128], strides = [1, 1]} : vector<8x512xf32> to vector<8x128xf32>
    %406 = math.tanh %405 : vector<8x128xf32>
    %407 = vector.extract_strided_slice %392 {offsets = [0, 384], sizes = [8, 128], strides = [1, 1]} : vector<8x512xf32> to vector<8x128xf32>
    %408 = arith.negf %407 : vector<8x128xf32>
    %409 = math.exp %408 : vector<8x128xf32>
    %cst_116 = arith.constant 1.000000e+00 : f32
    %410 = vector.broadcast %cst_116 : f32 to vector<8x128xf32>
    %411 = arith.addf %410, %409 : vector<8x128xf32>
    %412 = arith.divf %410, %411 : vector<8x128xf32>
    %413 = arith.mulf %404, %379 : vector<8x128xf32>
    %414 = arith.mulf %398, %406 : vector<8x128xf32>
    %415 = arith.addf %413, %414 : vector<8x128xf32>
    %416 = math.tanh %415 : vector<8x128xf32>
    %417 = arith.mulf %412, %416 : vector<8x128xf32>
    %418 = arith.index_cast %c2_i32_110 : i32 to index
    %c0_117 = arith.constant 0 : index
    %c0_118 = arith.constant 0 : index
    %419 = vector.load %arg15[%418, %c0_117, %c0_118] : memref<8x8x128xf32, #tpu.memory_space<vmem>>, vector<1x8x128xf32>
    %420 = vector.shape_cast %419 : vector<1x8x128xf32> to vector<8x128xf32>
    %421 = vector.shape_cast %417 : vector<8x128xf32> to vector<1x8x128xf32>
    tpu.vector_store %arg15[%418, %c0_117, %c0_118], %421 {strides = array<i32>} : memref<8x8x128xf32, #tpu.memory_space<vmem>>, vector<1x8x128xf32>,
    %c3_i32_119 = arith.constant 3 : i32
    %422 = arith.index_cast %c3_i32_119 : i32 to index
    %c0_120 = arith.constant 0 : index
    %c0_121 = arith.constant 0 : index
    %423 = vector.load %arg14[%422, %c0_120, %c0_121] : memref<8x8x512xf32, #tpu.memory_space<vmem>>, vector<1x8x512xf32>
    %424 = vector.shape_cast %423 : vector<1x8x512xf32> to vector<8x512xf32>
    %425 = arith.truncf %417 : vector<8x128xf32> to vector<8x128xbf16>
    %cst_122 = arith.constant dense<0.000000e+00> : vector<8x512xf32>
    %426 = tpu.matmul %425, %308, %cst_122 {dimension_numbers = #tpu.dot_dimension_numbers<[1], [0], [0], [1], [0, 0, 1, 1], [], []>} : vector<8x128xbf16>, vector<128x512xbf16>, vector<8x512xf32> -> vector<8x512xf32>
    %427 = arith.addf %424, %426 : vector<8x512xf32>
    %428 = arith.addf %427, %311 : vector<8x512xf32>
    %429 = vector.extract_strided_slice %428 {offsets = [0, 0], sizes = [8, 128], strides = [1, 1]} : vector<8x512xf32> to vector<8x128xf32>
    %430 = arith.negf %429 : vector<8x128xf32>
    %431 = math.exp %430 : vector<8x128xf32>
    %cst_123 = arith.constant 1.000000e+00 : f32
    %432 = vector.broadcast %cst_123 : f32 to vector<8x128xf32>
    %433 = arith.addf %432, %431 : vector<8x128xf32>
    %434 = arith.divf %432, %433 : vector<8x128xf32>
    %435 = vector.extract_strided_slice %428 {offsets = [0, 128], sizes = [8, 128], strides = [1, 1]} : vector<8x512xf32> to vector<8x128xf32>
    %436 = arith.negf %435 : vector<8x128xf32>
    %437 = math.exp %436 : vector<8x128xf32>
    %cst_124 = arith.constant 1.000000e+00 : f32
    %438 = vector.broadcast %cst_124 : f32 to vector<8x128xf32>
    %439 = arith.addf %438, %437 : vector<8x128xf32>
    %440 = arith.divf %438, %439 : vector<8x128xf32>
    %441 = vector.extract_strided_slice %428 {offsets = [0, 256], sizes = [8, 128], strides = [1, 1]} : vector<8x512xf32> to vector<8x128xf32>
    %442 = math.tanh %441 : vector<8x128xf32>
    %443 = vector.extract_strided_slice %428 {offsets = [0, 384], sizes = [8, 128], strides = [1, 1]} : vector<8x512xf32> to vector<8x128xf32>
    %444 = arith.negf %443 : vector<8x128xf32>
    %445 = math.exp %444 : vector<8x128xf32>
    %cst_125 = arith.constant 1.000000e+00 : f32
    %446 = vector.broadcast %cst_125 : f32 to vector<8x128xf32>
    %447 = arith.addf %446, %445 : vector<8x128xf32>
    %448 = arith.divf %446, %447 : vector<8x128xf32>
    %449 = arith.mulf %440, %415 : vector<8x128xf32>
    %450 = arith.mulf %434, %442 : vector<8x128xf32>
    %451 = arith.addf %449, %450 : vector<8x128xf32>
    %452 = math.tanh %451 : vector<8x128xf32>
    %453 = arith.mulf %448, %452 : vector<8x128xf32>
    %454 = arith.index_cast %c3_i32_119 : i32 to index
    %c0_126 = arith.constant 0 : index
    %c0_127 = arith.constant 0 : index
    %455 = vector.load %arg15[%454, %c0_126, %c0_127] : memref<8x8x128xf32, #tpu.memory_space<vmem>>, vector<1x8x128xf32>
    %456 = vector.shape_cast %455 : vector<1x8x128xf32> to vector<8x128xf32>
    %457 = vector.shape_cast %453 : vector<8x128xf32> to vector<1x8x128xf32>
    tpu.vector_store %arg15[%454, %c0_126, %c0_127], %457 {strides = array<i32>} : memref<8x8x128xf32, #tpu.memory_space<vmem>>, vector<1x8x128xf32>,
    %c4_i32_128 = arith.constant 4 : i32
    %458 = arith.index_cast %c4_i32_128 : i32 to index
    %c0_129 = arith.constant 0 : index
    %c0_130 = arith.constant 0 : index
    %459 = vector.load %arg14[%458, %c0_129, %c0_130] : memref<8x8x512xf32, #tpu.memory_space<vmem>>, vector<1x8x512xf32>
    %460 = vector.shape_cast %459 : vector<1x8x512xf32> to vector<8x512xf32>
    %461 = arith.truncf %453 : vector<8x128xf32> to vector<8x128xbf16>
    %cst_131 = arith.constant dense<0.000000e+00> : vector<8x512xf32>
    %462 = tpu.matmul %461, %308, %cst_131 {dimension_numbers = #tpu.dot_dimension_numbers<[1], [0], [0], [1], [0, 0, 1, 1], [], []>} : vector<8x128xbf16>, vector<128x512xbf16>, vector<8x512xf32> -> vector<8x512xf32>
    %463 = arith.addf %460, %462 : vector<8x512xf32>
    %464 = arith.addf %463, %311 : vector<8x512xf32>
    %465 = vector.extract_strided_slice %464 {offsets = [0, 0], sizes = [8, 128], strides = [1, 1]} : vector<8x512xf32> to vector<8x128xf32>
    %466 = arith.negf %465 : vector<8x128xf32>
    %467 = math.exp %466 : vector<8x128xf32>
    %cst_132 = arith.constant 1.000000e+00 : f32
    %468 = vector.broadcast %cst_132 : f32 to vector<8x128xf32>
    %469 = arith.addf %468, %467 : vector<8x128xf32>
    %470 = arith.divf %468, %469 : vector<8x128xf32>
    %471 = vector.extract_strided_slice %464 {offsets = [0, 128], sizes = [8, 128], strides = [1, 1]} : vector<8x512xf32> to vector<8x128xf32>
    %472 = arith.negf %471 : vector<8x128xf32>
    %473 = math.exp %472 : vector<8x128xf32>
    %cst_133 = arith.constant 1.000000e+00 : f32
    %474 = vector.broadcast %cst_133 : f32 to vector<8x128xf32>
    %475 = arith.addf %474, %473 : vector<8x128xf32>
    %476 = arith.divf %474, %475 : vector<8x128xf32>
    %477 = vector.extract_strided_slice %464 {offsets = [0, 256], sizes = [8, 128], strides = [1, 1]} : vector<8x512xf32> to vector<8x128xf32>
    %478 = math.tanh %477 : vector<8x128xf32>
    %479 = vector.extract_strided_slice %464 {offsets = [0, 384], sizes = [8, 128], strides = [1, 1]} : vector<8x512xf32> to vector<8x128xf32>
    %480 = arith.negf %479 : vector<8x128xf32>
    %481 = math.exp %480 : vector<8x128xf32>
    %cst_134 = arith.constant 1.000000e+00 : f32
    %482 = vector.broadcast %cst_134 : f32 to vector<8x128xf32>
    %483 = arith.addf %482, %481 : vector<8x128xf32>
    %484 = arith.divf %482, %483 : vector<8x128xf32>
    %485 = arith.mulf %476, %451 : vector<8x128xf32>
    %486 = arith.mulf %470, %478 : vector<8x128xf32>
    %487 = arith.addf %485, %486 : vector<8x128xf32>
    %488 = math.tanh %487 : vector<8x128xf32>
    %489 = arith.mulf %484, %488 : vector<8x128xf32>
    %490 = arith.index_cast %c4_i32_128 : i32 to index
    %c0_135 = arith.constant 0 : index
    %c0_136 = arith.constant 0 : index
    %491 = vector.load %arg15[%490, %c0_135, %c0_136] : memref<8x8x128xf32, #tpu.memory_space<vmem>>, vector<1x8x128xf32>
    %492 = vector.shape_cast %491 : vector<1x8x128xf32> to vector<8x128xf32>
    %493 = vector.shape_cast %489 : vector<8x128xf32> to vector<1x8x128xf32>
    tpu.vector_store %arg15[%490, %c0_135, %c0_136], %493 {strides = array<i32>} : memref<8x8x128xf32, #tpu.memory_space<vmem>>, vector<1x8x128xf32>,
    %c5_i32_137 = arith.constant 5 : i32
    %494 = arith.index_cast %c5_i32_137 : i32 to index
    %c0_138 = arith.constant 0 : index
    %c0_139 = arith.constant 0 : index
    %495 = vector.load %arg14[%494, %c0_138, %c0_139] : memref<8x8x512xf32, #tpu.memory_space<vmem>>, vector<1x8x512xf32>
    %496 = vector.shape_cast %495 : vector<1x8x512xf32> to vector<8x512xf32>
    %497 = arith.truncf %489 : vector<8x128xf32> to vector<8x128xbf16>
    %cst_140 = arith.constant dense<0.000000e+00> : vector<8x512xf32>
    %498 = tpu.matmul %497, %308, %cst_140 {dimension_numbers = #tpu.dot_dimension_numbers<[1], [0], [0], [1], [0, 0, 1, 1], [], []>} : vector<8x128xbf16>, vector<128x512xbf16>, vector<8x512xf32> -> vector<8x512xf32>
    %499 = arith.addf %496, %498 : vector<8x512xf32>
    %500 = arith.addf %499, %311 : vector<8x512xf32>
    %501 = vector.extract_strided_slice %500 {offsets = [0, 0], sizes = [8, 128], strides = [1, 1]} : vector<8x512xf32> to vector<8x128xf32>
    %502 = arith.negf %501 : vector<8x128xf32>
    %503 = math.exp %502 : vector<8x128xf32>
    %cst_141 = arith.constant 1.000000e+00 : f32
    %504 = vector.broadcast %cst_141 : f32 to vector<8x128xf32>
    %505 = arith.addf %504, %503 : vector<8x128xf32>
    %506 = arith.divf %504, %505 : vector<8x128xf32>
    %507 = vector.extract_strided_slice %500 {offsets = [0, 128], sizes = [8, 128], strides = [1, 1]} : vector<8x512xf32> to vector<8x128xf32>
    %508 = arith.negf %507 : vector<8x128xf32>
    %509 = math.exp %508 : vector<8x128xf32>
    %cst_142 = arith.constant 1.000000e+00 : f32
    %510 = vector.broadcast %cst_142 : f32 to vector<8x128xf32>
    %511 = arith.addf %510, %509 : vector<8x128xf32>
    %512 = arith.divf %510, %511 : vector<8x128xf32>
    %513 = vector.extract_strided_slice %500 {offsets = [0, 256], sizes = [8, 128], strides = [1, 1]} : vector<8x512xf32> to vector<8x128xf32>
    %514 = math.tanh %513 : vector<8x128xf32>
    %515 = vector.extract_strided_slice %500 {offsets = [0, 384], sizes = [8, 128], strides = [1, 1]} : vector<8x512xf32> to vector<8x128xf32>
    %516 = arith.negf %515 : vector<8x128xf32>
    %517 = math.exp %516 : vector<8x128xf32>
    %cst_143 = arith.constant 1.000000e+00 : f32
    %518 = vector.broadcast %cst_143 : f32 to vector<8x128xf32>
    %519 = arith.addf %518, %517 : vector<8x128xf32>
    %520 = arith.divf %518, %519 : vector<8x128xf32>
    %521 = arith.mulf %512, %487 : vector<8x128xf32>
    %522 = arith.mulf %506, %514 : vector<8x128xf32>
    %523 = arith.addf %521, %522 : vector<8x128xf32>
    %524 = math.tanh %523 : vector<8x128xf32>
    %525 = arith.mulf %520, %524 : vector<8x128xf32>
    %526 = arith.index_cast %c5_i32_137 : i32 to index
    %c0_144 = arith.constant 0 : index
    %c0_145 = arith.constant 0 : index
    %527 = vector.load %arg15[%526, %c0_144, %c0_145] : memref<8x8x128xf32, #tpu.memory_space<vmem>>, vector<1x8x128xf32>
    %528 = vector.shape_cast %527 : vector<1x8x128xf32> to vector<8x128xf32>
    %529 = vector.shape_cast %525 : vector<8x128xf32> to vector<1x8x128xf32>
    tpu.vector_store %arg15[%526, %c0_144, %c0_145], %529 {strides = array<i32>} : memref<8x8x128xf32, #tpu.memory_space<vmem>>, vector<1x8x128xf32>,
    %c6_i32_146 = arith.constant 6 : i32
    %530 = arith.index_cast %c6_i32_146 : i32 to index
    %c0_147 = arith.constant 0 : index
    %c0_148 = arith.constant 0 : index
    %531 = vector.load %arg14[%530, %c0_147, %c0_148] : memref<8x8x512xf32, #tpu.memory_space<vmem>>, vector<1x8x512xf32>
    %532 = vector.shape_cast %531 : vector<1x8x512xf32> to vector<8x512xf32>
    %533 = arith.truncf %525 : vector<8x128xf32> to vector<8x128xbf16>
    %cst_149 = arith.constant dense<0.000000e+00> : vector<8x512xf32>
    %534 = tpu.matmul %533, %308, %cst_149 {dimension_numbers = #tpu.dot_dimension_numbers<[1], [0], [0], [1], [0, 0, 1, 1], [], []>} : vector<8x128xbf16>, vector<128x512xbf16>, vector<8x512xf32> -> vector<8x512xf32>
    %535 = arith.addf %532, %534 : vector<8x512xf32>
    %536 = arith.addf %535, %311 : vector<8x512xf32>
    %537 = vector.extract_strided_slice %536 {offsets = [0, 0], sizes = [8, 128], strides = [1, 1]} : vector<8x512xf32> to vector<8x128xf32>
    %538 = arith.negf %537 : vector<8x128xf32>
    %539 = math.exp %538 : vector<8x128xf32>
    %cst_150 = arith.constant 1.000000e+00 : f32
    %540 = vector.broadcast %cst_150 : f32 to vector<8x128xf32>
    %541 = arith.addf %540, %539 : vector<8x128xf32>
    %542 = arith.divf %540, %541 : vector<8x128xf32>
    %543 = vector.extract_strided_slice %536 {offsets = [0, 128], sizes = [8, 128], strides = [1, 1]} : vector<8x512xf32> to vector<8x128xf32>
    %544 = arith.negf %543 : vector<8x128xf32>
    %545 = math.exp %544 : vector<8x128xf32>
    %cst_151 = arith.constant 1.000000e+00 : f32
    %546 = vector.broadcast %cst_151 : f32 to vector<8x128xf32>
    %547 = arith.addf %546, %545 : vector<8x128xf32>
    %548 = arith.divf %546, %547 : vector<8x128xf32>
    %549 = vector.extract_strided_slice %536 {offsets = [0, 256], sizes = [8, 128], strides = [1, 1]} : vector<8x512xf32> to vector<8x128xf32>
    %550 = math.tanh %549 : vector<8x128xf32>
    %551 = vector.extract_strided_slice %536 {offsets = [0, 384], sizes = [8, 128], strides = [1, 1]} : vector<8x512xf32> to vector<8x128xf32>
    %552 = arith.negf %551 : vector<8x128xf32>
    %553 = math.exp %552 : vector<8x128xf32>
    %cst_152 = arith.constant 1.000000e+00 : f32
    %554 = vector.broadcast %cst_152 : f32 to vector<8x128xf32>
    %555 = arith.addf %554, %553 : vector<8x128xf32>
    %556 = arith.divf %554, %555 : vector<8x128xf32>
    %557 = arith.mulf %548, %523 : vector<8x128xf32>
    %558 = arith.mulf %542, %550 : vector<8x128xf32>
    %559 = arith.addf %557, %558 : vector<8x128xf32>
    %560 = math.tanh %559 : vector<8x128xf32>
    %561 = arith.mulf %556, %560 : vector<8x128xf32>
    %562 = arith.index_cast %c6_i32_146 : i32 to index
    %c0_153 = arith.constant 0 : index
    %c0_154 = arith.constant 0 : index
    %563 = vector.load %arg15[%562, %c0_153, %c0_154] : memref<8x8x128xf32, #tpu.memory_space<vmem>>, vector<1x8x128xf32>
    %564 = vector.shape_cast %563 : vector<1x8x128xf32> to vector<8x128xf32>
    %565 = vector.shape_cast %561 : vector<8x128xf32> to vector<1x8x128xf32>
    tpu.vector_store %arg15[%562, %c0_153, %c0_154], %565 {strides = array<i32>} : memref<8x8x128xf32, #tpu.memory_space<vmem>>, vector<1x8x128xf32>,
    %c7_i32_155 = arith.constant 7 : i32
    %566 = arith.index_cast %c7_i32_155 : i32 to index
    %c0_156 = arith.constant 0 : index
    %c0_157 = arith.constant 0 : index
    %567 = vector.load %arg14[%566, %c0_156, %c0_157] : memref<8x8x512xf32, #tpu.memory_space<vmem>>, vector<1x8x512xf32>
    %568 = vector.shape_cast %567 : vector<1x8x512xf32> to vector<8x512xf32>
    %569 = arith.truncf %561 : vector<8x128xf32> to vector<8x128xbf16>
    %cst_158 = arith.constant dense<0.000000e+00> : vector<8x512xf32>
    %570 = tpu.matmul %569, %308, %cst_158 {dimension_numbers = #tpu.dot_dimension_numbers<[1], [0], [0], [1], [0, 0, 1, 1], [], []>} : vector<8x128xbf16>, vector<128x512xbf16>, vector<8x512xf32> -> vector<8x512xf32>
    %571 = arith.addf %568, %570 : vector<8x512xf32>
    %572 = arith.addf %571, %311 : vector<8x512xf32>
    %573 = vector.extract_strided_slice %572 {offsets = [0, 0], sizes = [8, 128], strides = [1, 1]} : vector<8x512xf32> to vector<8x128xf32>
    %574 = arith.negf %573 : vector<8x128xf32>
    %575 = math.exp %574 : vector<8x128xf32>
    %cst_159 = arith.constant 1.000000e+00 : f32
    %576 = vector.broadcast %cst_159 : f32 to vector<8x128xf32>
    %577 = arith.addf %576, %575 : vector<8x128xf32>
    %578 = arith.divf %576, %577 : vector<8x128xf32>
    %579 = vector.extract_strided_slice %572 {offsets = [0, 128], sizes = [8, 128], strides = [1, 1]} : vector<8x512xf32> to vector<8x128xf32>
    %580 = arith.negf %579 : vector<8x128xf32>
    %581 = math.exp %580 : vector<8x128xf32>
    %cst_160 = arith.constant 1.000000e+00 : f32
    %582 = vector.broadcast %cst_160 : f32 to vector<8x128xf32>
    %583 = arith.addf %582, %581 : vector<8x128xf32>
    %584 = arith.divf %582, %583 : vector<8x128xf32>
    %585 = vector.extract_strided_slice %572 {offsets = [0, 256], sizes = [8, 128], strides = [1, 1]} : vector<8x512xf32> to vector<8x128xf32>
    %586 = math.tanh %585 : vector<8x128xf32>
    %587 = vector.extract_strided_slice %572 {offsets = [0, 384], sizes = [8, 128], strides = [1, 1]} : vector<8x512xf32> to vector<8x128xf32>
    %588 = arith.negf %587 : vector<8x128xf32>
    %589 = math.exp %588 : vector<8x128xf32>
    %cst_161 = arith.constant 1.000000e+00 : f32
    %590 = vector.broadcast %cst_161 : f32 to vector<8x128xf32>
    %591 = arith.addf %590, %589 : vector<8x128xf32>
    %592 = arith.divf %590, %591 : vector<8x128xf32>
    %593 = arith.mulf %584, %559 : vector<8x128xf32>
    %594 = arith.mulf %578, %586 : vector<8x128xf32>
    %595 = arith.addf %593, %594 : vector<8x128xf32>
    %596 = math.tanh %595 : vector<8x128xf32>
    %597 = arith.mulf %592, %596 : vector<8x128xf32>
    %598 = arith.index_cast %c7_i32_155 : i32 to index
    %c0_162 = arith.constant 0 : index
    %c0_163 = arith.constant 0 : index
    %599 = vector.load %arg15[%598, %c0_162, %c0_163] : memref<8x8x128xf32, #tpu.memory_space<vmem>>, vector<1x8x128xf32>
    %600 = vector.shape_cast %599 : vector<1x8x128xf32> to vector<8x128xf32>
    %601 = vector.shape_cast %597 : vector<8x128xf32> to vector<1x8x128xf32>
    tpu.vector_store %arg15[%598, %c0_162, %c0_163], %601 {strides = array<i32>} : memref<8x8x128xf32, #tpu.memory_space<vmem>>, vector<1x8x128xf32>,
    %c8_i32_164 = arith.constant 8 : i32
    %c0_165 = arith.constant 0 : index
    %c0_166 = arith.constant 0 : index
    %c0_167 = arith.constant 0 : index
    %602 = vector.load %arg15[%c0_165, %c0_166, %c0_167] : memref<8x8x128xf32, #tpu.memory_space<vmem>>, vector<8x8x128xf32>
    %603 = vector.shape_cast %602 : vector<8x8x128xf32> to vector<64x128xf32>
    %604 = arith.truncf %603 : vector<64x128xf32> to vector<64x128xbf16>
    %c0_168 = arith.constant 0 : index
    %c0_169 = arith.constant 0 : index
    %605 = vector.load %arg8[%c0_168, %c0_169] : memref<128x512xbf16, #tpu.memory_space<vmem>>, vector<128x512xbf16>
    %cst_170 = arith.constant dense<0.000000e+00> : vector<64x512xf32>
    %606 = tpu.matmul %604, %605, %cst_170 {dimension_numbers = #tpu.dot_dimension_numbers<[1], [0], [0], [1], [0, 0, 1, 1], [], []>} : vector<64x128xbf16>, vector<128x512xbf16>, vector<64x512xf32> -> vector<64x512xf32>
    %607 = vector.shape_cast %606 : vector<64x512xf32> to vector<8x8x512xf32>
    %c0_171 = arith.constant 0 : index
    %c0_172 = arith.constant 0 : index
    %c0_173 = arith.constant 0 : index
    %608 = vector.load %arg14[%c0_171, %c0_172, %c0_173] : memref<8x8x512xf32, #tpu.memory_space<vmem>>, vector<8x8x512xf32>
    tpu.vector_store %arg14[%c0_171, %c0_172, %c0_173], %607 {strides = array<i32>} : memref<8x8x512xf32, #tpu.memory_space<vmem>>, vector<8x8x512xf32>,
    %c0_174 = arith.constant 0 : index
    %c0_175 = arith.constant 0 : index
    %609 = vector.load %arg9[%c0_174, %c0_175] : memref<128x512xbf16, #tpu.memory_space<vmem>>, vector<128x512xbf16>
    %c0_176 = arith.constant 0 : index
    %c0_177 = arith.constant 0 : index
    %610 = vector.load %arg10[%c0_176, %c0_177] : memref<1x512xf32, #tpu.memory_space<vmem>>, vector<1x512xf32>
    %611 = vector.shape_cast %610 : vector<1x512xf32> to vector<1x512xf32>
    %612 = vector.broadcast %611 : vector<1x512xf32> to vector<8x512xf32>
    %cst_178 = arith.constant 0.000000e+00 : f32
    %613 = vector.broadcast %cst_178 : f32 to vector<8x128xf32>
    %cst_179 = arith.constant 0.000000e+00 : f32
    %614 = vector.broadcast %cst_179 : f32 to vector<8x128xf32>
    %c0_i32_180 = arith.constant 0 : i32
    %615 = arith.index_cast %c0_i32_180 : i32 to index
    %c0_181 = arith.constant 0 : index
    %c0_182 = arith.constant 0 : index
    %616 = vector.load %arg14[%615, %c0_181, %c0_182] : memref<8x8x512xf32, #tpu.memory_space<vmem>>, vector<1x8x512xf32>
    %617 = vector.shape_cast %616 : vector<1x8x512xf32> to vector<8x512xf32>
    %618 = arith.truncf %613 : vector<8x128xf32> to vector<8x128xbf16>
    %cst_183 = arith.constant dense<0.000000e+00> : vector<8x512xf32>
    %619 = tpu.matmul %618, %609, %cst_183 {dimension_numbers = #tpu.dot_dimension_numbers<[1], [0], [0], [1], [0, 0, 1, 1], [], []>} : vector<8x128xbf16>, vector<128x512xbf16>, vector<8x512xf32> -> vector<8x512xf32>
    %620 = arith.addf %617, %619 : vector<8x512xf32>
    %621 = arith.addf %620, %612 : vector<8x512xf32>
    %622 = vector.extract_strided_slice %621 {offsets = [0, 0], sizes = [8, 128], strides = [1, 1]} : vector<8x512xf32> to vector<8x128xf32>
    %623 = arith.negf %622 : vector<8x128xf32>
    %624 = math.exp %623 : vector<8x128xf32>
    %cst_184 = arith.constant 1.000000e+00 : f32
    %625 = vector.broadcast %cst_184 : f32 to vector<8x128xf32>
    %626 = arith.addf %625, %624 : vector<8x128xf32>
    %627 = arith.divf %625, %626 : vector<8x128xf32>
    %628 = vector.extract_strided_slice %621 {offsets = [0, 128], sizes = [8, 128], strides = [1, 1]} : vector<8x512xf32> to vector<8x128xf32>
    %629 = arith.negf %628 : vector<8x128xf32>
    %630 = math.exp %629 : vector<8x128xf32>
    %cst_185 = arith.constant 1.000000e+00 : f32
    %631 = vector.broadcast %cst_185 : f32 to vector<8x128xf32>
    %632 = arith.addf %631, %630 : vector<8x128xf32>
    %633 = arith.divf %631, %632 : vector<8x128xf32>
    %634 = vector.extract_strided_slice %621 {offsets = [0, 256], sizes = [8, 128], strides = [1, 1]} : vector<8x512xf32> to vector<8x128xf32>
    %635 = math.tanh %634 : vector<8x128xf32>
    %636 = vector.extract_strided_slice %621 {offsets = [0, 384], sizes = [8, 128], strides = [1, 1]} : vector<8x512xf32> to vector<8x128xf32>
    %637 = arith.negf %636 : vector<8x128xf32>
    %638 = math.exp %637 : vector<8x128xf32>
    %cst_186 = arith.constant 1.000000e+00 : f32
    %639 = vector.broadcast %cst_186 : f32 to vector<8x128xf32>
    %640 = arith.addf %639, %638 : vector<8x128xf32>
    %641 = arith.divf %639, %640 : vector<8x128xf32>
    %642 = arith.mulf %633, %614 : vector<8x128xf32>
    %643 = arith.mulf %627, %635 : vector<8x128xf32>
    %644 = arith.addf %642, %643 : vector<8x128xf32>
    %645 = math.tanh %644 : vector<8x128xf32>
    %646 = arith.mulf %641, %645 : vector<8x128xf32>
    %c1_i32_187 = arith.constant 1 : i32
    %647 = arith.index_cast %c1_i32_187 : i32 to index
    %c0_188 = arith.constant 0 : index
    %c0_189 = arith.constant 0 : index
    %648 = vector.load %arg14[%647, %c0_188, %c0_189] : memref<8x8x512xf32, #tpu.memory_space<vmem>>, vector<1x8x512xf32>
    %649 = vector.shape_cast %648 : vector<1x8x512xf32> to vector<8x512xf32>
    %650 = arith.truncf %646 : vector<8x128xf32> to vector<8x128xbf16>
    %cst_190 = arith.constant dense<0.000000e+00> : vector<8x512xf32>
    %651 = tpu.matmul %650, %609, %cst_190 {dimension_numbers = #tpu.dot_dimension_numbers<[1], [0], [0], [1], [0, 0, 1, 1], [], []>} : vector<8x128xbf16>, vector<128x512xbf16>, vector<8x512xf32> -> vector<8x512xf32>
    %652 = arith.addf %649, %651 : vector<8x512xf32>
    %653 = arith.addf %652, %612 : vector<8x512xf32>
    %654 = vector.extract_strided_slice %653 {offsets = [0, 0], sizes = [8, 128], strides = [1, 1]} : vector<8x512xf32> to vector<8x128xf32>
    %655 = arith.negf %654 : vector<8x128xf32>
    %656 = math.exp %655 : vector<8x128xf32>
    %cst_191 = arith.constant 1.000000e+00 : f32
    %657 = vector.broadcast %cst_191 : f32 to vector<8x128xf32>
    %658 = arith.addf %657, %656 : vector<8x128xf32>
    %659 = arith.divf %657, %658 : vector<8x128xf32>
    %660 = vector.extract_strided_slice %653 {offsets = [0, 128], sizes = [8, 128], strides = [1, 1]} : vector<8x512xf32> to vector<8x128xf32>
    %661 = arith.negf %660 : vector<8x128xf32>
    %662 = math.exp %661 : vector<8x128xf32>
    %cst_192 = arith.constant 1.000000e+00 : f32
    %663 = vector.broadcast %cst_192 : f32 to vector<8x128xf32>
    %664 = arith.addf %663, %662 : vector<8x128xf32>
    %665 = arith.divf %663, %664 : vector<8x128xf32>
    %666 = vector.extract_strided_slice %653 {offsets = [0, 256], sizes = [8, 128], strides = [1, 1]} : vector<8x512xf32> to vector<8x128xf32>
    %667 = math.tanh %666 : vector<8x128xf32>
    %668 = vector.extract_strided_slice %653 {offsets = [0, 384], sizes = [8, 128], strides = [1, 1]} : vector<8x512xf32> to vector<8x128xf32>
    %669 = arith.negf %668 : vector<8x128xf32>
    %670 = math.exp %669 : vector<8x128xf32>
    %cst_193 = arith.constant 1.000000e+00 : f32
    %671 = vector.broadcast %cst_193 : f32 to vector<8x128xf32>
    %672 = arith.addf %671, %670 : vector<8x128xf32>
    %673 = arith.divf %671, %672 : vector<8x128xf32>
    %674 = arith.mulf %665, %644 : vector<8x128xf32>
    %675 = arith.mulf %659, %667 : vector<8x128xf32>
    %676 = arith.addf %674, %675 : vector<8x128xf32>
    %677 = math.tanh %676 : vector<8x128xf32>
    %678 = arith.mulf %673, %677 : vector<8x128xf32>
    %c2_i32_194 = arith.constant 2 : i32
    %679 = arith.index_cast %c2_i32_194 : i32 to index
    %c0_195 = arith.constant 0 : index
    %c0_196 = arith.constant 0 : index
    %680 = vector.load %arg14[%679, %c0_195, %c0_196] : memref<8x8x512xf32, #tpu.memory_space<vmem>>, vector<1x8x512xf32>
    %681 = vector.shape_cast %680 : vector<1x8x512xf32> to vector<8x512xf32>
    %682 = arith.truncf %678 : vector<8x128xf32> to vector<8x128xbf16>
    %cst_197 = arith.constant dense<0.000000e+00> : vector<8x512xf32>
    %683 = tpu.matmul %682, %609, %cst_197 {dimension_numbers = #tpu.dot_dimension_numbers<[1], [0], [0], [1], [0, 0, 1, 1], [], []>} : vector<8x128xbf16>, vector<128x512xbf16>, vector<8x512xf32> -> vector<8x512xf32>
    %684 = arith.addf %681, %683 : vector<8x512xf32>
    %685 = arith.addf %684, %612 : vector<8x512xf32>
    %686 = vector.extract_strided_slice %685 {offsets = [0, 0], sizes = [8, 128], strides = [1, 1]} : vector<8x512xf32> to vector<8x128xf32>
    %687 = arith.negf %686 : vector<8x128xf32>
    %688 = math.exp %687 : vector<8x128xf32>
    %cst_198 = arith.constant 1.000000e+00 : f32
    %689 = vector.broadcast %cst_198 : f32 to vector<8x128xf32>
    %690 = arith.addf %689, %688 : vector<8x128xf32>
    %691 = arith.divf %689, %690 : vector<8x128xf32>
    %692 = vector.extract_strided_slice %685 {offsets = [0, 128], sizes = [8, 128], strides = [1, 1]} : vector<8x512xf32> to vector<8x128xf32>
    %693 = arith.negf %692 : vector<8x128xf32>
    %694 = math.exp %693 : vector<8x128xf32>
    %cst_199 = arith.constant 1.000000e+00 : f32
    %695 = vector.broadcast %cst_199 : f32 to vector<8x128xf32>
    %696 = arith.addf %695, %694 : vector<8x128xf32>
    %697 = arith.divf %695, %696 : vector<8x128xf32>
    %698 = vector.extract_strided_slice %685 {offsets = [0, 256], sizes = [8, 128], strides = [1, 1]} : vector<8x512xf32> to vector<8x128xf32>
    %699 = math.tanh %698 : vector<8x128xf32>
    %700 = vector.extract_strided_slice %685 {offsets = [0, 384], sizes = [8, 128], strides = [1, 1]} : vector<8x512xf32> to vector<8x128xf32>
    %701 = arith.negf %700 : vector<8x128xf32>
    %702 = math.exp %701 : vector<8x128xf32>
    %cst_200 = arith.constant 1.000000e+00 : f32
    %703 = vector.broadcast %cst_200 : f32 to vector<8x128xf32>
    %704 = arith.addf %703, %702 : vector<8x128xf32>
    %705 = arith.divf %703, %704 : vector<8x128xf32>
    %706 = arith.mulf %697, %676 : vector<8x128xf32>
    %707 = arith.mulf %691, %699 : vector<8x128xf32>
    %708 = arith.addf %706, %707 : vector<8x128xf32>
    %709 = math.tanh %708 : vector<8x128xf32>
    %710 = arith.mulf %705, %709 : vector<8x128xf32>
    %c3_i32_201 = arith.constant 3 : i32
    %711 = arith.index_cast %c3_i32_201 : i32 to index
    %c0_202 = arith.constant 0 : index
    %c0_203 = arith.constant 0 : index
    %712 = vector.load %arg14[%711, %c0_202, %c0_203] : memref<8x8x512xf32, #tpu.memory_space<vmem>>, vector<1x8x512xf32>
    %713 = vector.shape_cast %712 : vector<1x8x512xf32> to vector<8x512xf32>
    %714 = arith.truncf %710 : vector<8x128xf32> to vector<8x128xbf16>
    %cst_204 = arith.constant dense<0.000000e+00> : vector<8x512xf32>
    %715 = tpu.matmul %714, %609, %cst_204 {dimension_numbers = #tpu.dot_dimension_numbers<[1], [0], [0], [1], [0, 0, 1, 1], [], []>} : vector<8x128xbf16>, vector<128x512xbf16>, vector<8x512xf32> -> vector<8x512xf32>
    %716 = arith.addf %713, %715 : vector<8x512xf32>
    %717 = arith.addf %716, %612 : vector<8x512xf32>
    %718 = vector.extract_strided_slice %717 {offsets = [0, 0], sizes = [8, 128], strides = [1, 1]} : vector<8x512xf32> to vector<8x128xf32>
    %719 = arith.negf %718 : vector<8x128xf32>
    %720 = math.exp %719 : vector<8x128xf32>
    %cst_205 = arith.constant 1.000000e+00 : f32
    %721 = vector.broadcast %cst_205 : f32 to vector<8x128xf32>
    %722 = arith.addf %721, %720 : vector<8x128xf32>
    %723 = arith.divf %721, %722 : vector<8x128xf32>
    %724 = vector.extract_strided_slice %717 {offsets = [0, 128], sizes = [8, 128], strides = [1, 1]} : vector<8x512xf32> to vector<8x128xf32>
    %725 = arith.negf %724 : vector<8x128xf32>
    %726 = math.exp %725 : vector<8x128xf32>
    %cst_206 = arith.constant 1.000000e+00 : f32
    %727 = vector.broadcast %cst_206 : f32 to vector<8x128xf32>
    %728 = arith.addf %727, %726 : vector<8x128xf32>
    %729 = arith.divf %727, %728 : vector<8x128xf32>
    %730 = vector.extract_strided_slice %717 {offsets = [0, 256], sizes = [8, 128], strides = [1, 1]} : vector<8x512xf32> to vector<8x128xf32>
    %731 = math.tanh %730 : vector<8x128xf32>
    %732 = vector.extract_strided_slice %717 {offsets = [0, 384], sizes = [8, 128], strides = [1, 1]} : vector<8x512xf32> to vector<8x128xf32>
    %733 = arith.negf %732 : vector<8x128xf32>
    %734 = math.exp %733 : vector<8x128xf32>
    %cst_207 = arith.constant 1.000000e+00 : f32
    %735 = vector.broadcast %cst_207 : f32 to vector<8x128xf32>
    %736 = arith.addf %735, %734 : vector<8x128xf32>
    %737 = arith.divf %735, %736 : vector<8x128xf32>
    %738 = arith.mulf %729, %708 : vector<8x128xf32>
    %739 = arith.mulf %723, %731 : vector<8x128xf32>
    %740 = arith.addf %738, %739 : vector<8x128xf32>
    %741 = math.tanh %740 : vector<8x128xf32>
    %742 = arith.mulf %737, %741 : vector<8x128xf32>
    %c4_i32_208 = arith.constant 4 : i32
    %743 = arith.index_cast %c4_i32_208 : i32 to index
    %c0_209 = arith.constant 0 : index
    %c0_210 = arith.constant 0 : index
    %744 = vector.load %arg14[%743, %c0_209, %c0_210] : memref<8x8x512xf32, #tpu.memory_space<vmem>>, vector<1x8x512xf32>
    %745 = vector.shape_cast %744 : vector<1x8x512xf32> to vector<8x512xf32>
    %746 = arith.truncf %742 : vector<8x128xf32> to vector<8x128xbf16>
    %cst_211 = arith.constant dense<0.000000e+00> : vector<8x512xf32>
    %747 = tpu.matmul %746, %609, %cst_211 {dimension_numbers = #tpu.dot_dimension_numbers<[1], [0], [0], [1], [0, 0, 1, 1], [], []>} : vector<8x128xbf16>, vector<128x512xbf16>, vector<8x512xf32> -> vector<8x512xf32>
    %748 = arith.addf %745, %747 : vector<8x512xf32>
    %749 = arith.addf %748, %612 : vector<8x512xf32>
    %750 = vector.extract_strided_slice %749 {offsets = [0, 0], sizes = [8, 128], strides = [1, 1]} : vector<8x512xf32> to vector<8x128xf32>
    %751 = arith.negf %750 : vector<8x128xf32>
    %752 = math.exp %751 : vector<8x128xf32>
    %cst_212 = arith.constant 1.000000e+00 : f32
    %753 = vector.broadcast %cst_212 : f32 to vector<8x128xf32>
    %754 = arith.addf %753, %752 : vector<8x128xf32>
    %755 = arith.divf %753, %754 : vector<8x128xf32>
    %756 = vector.extract_strided_slice %749 {offsets = [0, 128], sizes = [8, 128], strides = [1, 1]} : vector<8x512xf32> to vector<8x128xf32>
    %757 = arith.negf %756 : vector<8x128xf32>
    %758 = math.exp %757 : vector<8x128xf32>
    %cst_213 = arith.constant 1.000000e+00 : f32
    %759 = vector.broadcast %cst_213 : f32 to vector<8x128xf32>
    %760 = arith.addf %759, %758 : vector<8x128xf32>
    %761 = arith.divf %759, %760 : vector<8x128xf32>
    %762 = vector.extract_strided_slice %749 {offsets = [0, 256], sizes = [8, 128], strides = [1, 1]} : vector<8x512xf32> to vector<8x128xf32>
    %763 = math.tanh %762 : vector<8x128xf32>
    %764 = vector.extract_strided_slice %749 {offsets = [0, 384], sizes = [8, 128], strides = [1, 1]} : vector<8x512xf32> to vector<8x128xf32>
    %765 = arith.negf %764 : vector<8x128xf32>
    %766 = math.exp %765 : vector<8x128xf32>
    %cst_214 = arith.constant 1.000000e+00 : f32
    %767 = vector.broadcast %cst_214 : f32 to vector<8x128xf32>
    %768 = arith.addf %767, %766 : vector<8x128xf32>
    %769 = arith.divf %767, %768 : vector<8x128xf32>
    %770 = arith.mulf %761, %740 : vector<8x128xf32>
    %771 = arith.mulf %755, %763 : vector<8x128xf32>
    %772 = arith.addf %770, %771 : vector<8x128xf32>
    %773 = math.tanh %772 : vector<8x128xf32>
    %774 = arith.mulf %769, %773 : vector<8x128xf32>
    %c5_i32_215 = arith.constant 5 : i32
    %775 = arith.index_cast %c5_i32_215 : i32 to index
    %c0_216 = arith.constant 0 : index
    %c0_217 = arith.constant 0 : index
    %776 = vector.load %arg14[%775, %c0_216, %c0_217] : memref<8x8x512xf32, #tpu.memory_space<vmem>>, vector<1x8x512xf32>
    %777 = vector.shape_cast %776 : vector<1x8x512xf32> to vector<8x512xf32>
    %778 = arith.truncf %774 : vector<8x128xf32> to vector<8x128xbf16>
    %cst_218 = arith.constant dense<0.000000e+00> : vector<8x512xf32>
    %779 = tpu.matmul %778, %609, %cst_218 {dimension_numbers = #tpu.dot_dimension_numbers<[1], [0], [0], [1], [0, 0, 1, 1], [], []>} : vector<8x128xbf16>, vector<128x512xbf16>, vector<8x512xf32> -> vector<8x512xf32>
    %780 = arith.addf %777, %779 : vector<8x512xf32>
    %781 = arith.addf %780, %612 : vector<8x512xf32>
    %782 = vector.extract_strided_slice %781 {offsets = [0, 0], sizes = [8, 128], strides = [1, 1]} : vector<8x512xf32> to vector<8x128xf32>
    %783 = arith.negf %782 : vector<8x128xf32>
    %784 = math.exp %783 : vector<8x128xf32>
    %cst_219 = arith.constant 1.000000e+00 : f32
    %785 = vector.broadcast %cst_219 : f32 to vector<8x128xf32>
    %786 = arith.addf %785, %784 : vector<8x128xf32>
    %787 = arith.divf %785, %786 : vector<8x128xf32>
    %788 = vector.extract_strided_slice %781 {offsets = [0, 128], sizes = [8, 128], strides = [1, 1]} : vector<8x512xf32> to vector<8x128xf32>
    %789 = arith.negf %788 : vector<8x128xf32>
    %790 = math.exp %789 : vector<8x128xf32>
    %cst_220 = arith.constant 1.000000e+00 : f32
    %791 = vector.broadcast %cst_220 : f32 to vector<8x128xf32>
    %792 = arith.addf %791, %790 : vector<8x128xf32>
    %793 = arith.divf %791, %792 : vector<8x128xf32>
    %794 = vector.extract_strided_slice %781 {offsets = [0, 256], sizes = [8, 128], strides = [1, 1]} : vector<8x512xf32> to vector<8x128xf32>
    %795 = math.tanh %794 : vector<8x128xf32>
    %796 = vector.extract_strided_slice %781 {offsets = [0, 384], sizes = [8, 128], strides = [1, 1]} : vector<8x512xf32> to vector<8x128xf32>
    %797 = arith.negf %796 : vector<8x128xf32>
    %798 = math.exp %797 : vector<8x128xf32>
    %cst_221 = arith.constant 1.000000e+00 : f32
    %799 = vector.broadcast %cst_221 : f32 to vector<8x128xf32>
    %800 = arith.addf %799, %798 : vector<8x128xf32>
    %801 = arith.divf %799, %800 : vector<8x128xf32>
    %802 = arith.mulf %793, %772 : vector<8x128xf32>
    %803 = arith.mulf %787, %795 : vector<8x128xf32>
    %804 = arith.addf %802, %803 : vector<8x128xf32>
    %805 = math.tanh %804 : vector<8x128xf32>
    %806 = arith.mulf %801, %805 : vector<8x128xf32>
    %c6_i32_222 = arith.constant 6 : i32
    %807 = arith.index_cast %c6_i32_222 : i32 to index
    %c0_223 = arith.constant 0 : index
    %c0_224 = arith.constant 0 : index
    %808 = vector.load %arg14[%807, %c0_223, %c0_224] : memref<8x8x512xf32, #tpu.memory_space<vmem>>, vector<1x8x512xf32>
    %809 = vector.shape_cast %808 : vector<1x8x512xf32> to vector<8x512xf32>
    %810 = arith.truncf %806 : vector<8x128xf32> to vector<8x128xbf16>
    %cst_225 = arith.constant dense<0.000000e+00> : vector<8x512xf32>
    %811 = tpu.matmul %810, %609, %cst_225 {dimension_numbers = #tpu.dot_dimension_numbers<[1], [0], [0], [1], [0, 0, 1, 1], [], []>} : vector<8x128xbf16>, vector<128x512xbf16>, vector<8x512xf32> -> vector<8x512xf32>
    %812 = arith.addf %809, %811 : vector<8x512xf32>
    %813 = arith.addf %812, %612 : vector<8x512xf32>
    %814 = vector.extract_strided_slice %813 {offsets = [0, 0], sizes = [8, 128], strides = [1, 1]} : vector<8x512xf32> to vector<8x128xf32>
    %815 = arith.negf %814 : vector<8x128xf32>
    %816 = math.exp %815 : vector<8x128xf32>
    %cst_226 = arith.constant 1.000000e+00 : f32
    %817 = vector.broadcast %cst_226 : f32 to vector<8x128xf32>
    %818 = arith.addf %817, %816 : vector<8x128xf32>
    %819 = arith.divf %817, %818 : vector<8x128xf32>
    %820 = vector.extract_strided_slice %813 {offsets = [0, 128], sizes = [8, 128], strides = [1, 1]} : vector<8x512xf32> to vector<8x128xf32>
    %821 = arith.negf %820 : vector<8x128xf32>
    %822 = math.exp %821 : vector<8x128xf32>
    %cst_227 = arith.constant 1.000000e+00 : f32
    %823 = vector.broadcast %cst_227 : f32 to vector<8x128xf32>
    %824 = arith.addf %823, %822 : vector<8x128xf32>
    %825 = arith.divf %823, %824 : vector<8x128xf32>
    %826 = vector.extract_strided_slice %813 {offsets = [0, 256], sizes = [8, 128], strides = [1, 1]} : vector<8x512xf32> to vector<8x128xf32>
    %827 = math.tanh %826 : vector<8x128xf32>
    %828 = vector.extract_strided_slice %813 {offsets = [0, 384], sizes = [8, 128], strides = [1, 1]} : vector<8x512xf32> to vector<8x128xf32>
    %829 = arith.negf %828 : vector<8x128xf32>
    %830 = math.exp %829 : vector<8x128xf32>
    %cst_228 = arith.constant 1.000000e+00 : f32
    %831 = vector.broadcast %cst_228 : f32 to vector<8x128xf32>
    %832 = arith.addf %831, %830 : vector<8x128xf32>
    %833 = arith.divf %831, %832 : vector<8x128xf32>
    %834 = arith.mulf %825, %804 : vector<8x128xf32>
    %835 = arith.mulf %819, %827 : vector<8x128xf32>
    %836 = arith.addf %834, %835 : vector<8x128xf32>
    %837 = math.tanh %836 : vector<8x128xf32>
    %838 = arith.mulf %833, %837 : vector<8x128xf32>
    %c7_i32_229 = arith.constant 7 : i32
    %839 = arith.index_cast %c7_i32_229 : i32 to index
    %c0_230 = arith.constant 0 : index
    %c0_231 = arith.constant 0 : index
    %840 = vector.load %arg14[%839, %c0_230, %c0_231] : memref<8x8x512xf32, #tpu.memory_space<vmem>>, vector<1x8x512xf32>
    %841 = vector.shape_cast %840 : vector<1x8x512xf32> to vector<8x512xf32>
    %842 = arith.truncf %838 : vector<8x128xf32> to vector<8x128xbf16>
    %cst_232 = arith.constant dense<0.000000e+00> : vector<8x512xf32>
    %843 = tpu.matmul %842, %609, %cst_232 {dimension_numbers = #tpu.dot_dimension_numbers<[1], [0], [0], [1], [0, 0, 1, 1], [], []>} : vector<8x128xbf16>, vector<128x512xbf16>, vector<8x512xf32> -> vector<8x512xf32>
    %844 = arith.addf %841, %843 : vector<8x512xf32>
    %845 = arith.addf %844, %612 : vector<8x512xf32>
    %846 = vector.extract_strided_slice %845 {offsets = [0, 0], sizes = [8, 128], strides = [1, 1]} : vector<8x512xf32> to vector<8x128xf32>
    %847 = arith.negf %846 : vector<8x128xf32>
    %848 = math.exp %847 : vector<8x128xf32>
    %cst_233 = arith.constant 1.000000e+00 : f32
    %849 = vector.broadcast %cst_233 : f32 to vector<8x128xf32>
    %850 = arith.addf %849, %848 : vector<8x128xf32>
    %851 = arith.divf %849, %850 : vector<8x128xf32>
    %852 = vector.extract_strided_slice %845 {offsets = [0, 128], sizes = [8, 128], strides = [1, 1]} : vector<8x512xf32> to vector<8x128xf32>
    %853 = arith.negf %852 : vector<8x128xf32>
    %854 = math.exp %853 : vector<8x128xf32>
    %cst_234 = arith.constant 1.000000e+00 : f32
    %855 = vector.broadcast %cst_234 : f32 to vector<8x128xf32>
    %856 = arith.addf %855, %854 : vector<8x128xf32>
    %857 = arith.divf %855, %856 : vector<8x128xf32>
    %858 = vector.extract_strided_slice %845 {offsets = [0, 256], sizes = [8, 128], strides = [1, 1]} : vector<8x512xf32> to vector<8x128xf32>
    %859 = math.tanh %858 : vector<8x128xf32>
    %860 = vector.extract_strided_slice %845 {offsets = [0, 384], sizes = [8, 128], strides = [1, 1]} : vector<8x512xf32> to vector<8x128xf32>
    %861 = arith.negf %860 : vector<8x128xf32>
    %862 = math.exp %861 : vector<8x128xf32>
    %cst_235 = arith.constant 1.000000e+00 : f32
    %863 = vector.broadcast %cst_235 : f32 to vector<8x128xf32>
    %864 = arith.addf %863, %862 : vector<8x128xf32>
    %865 = arith.divf %863, %864 : vector<8x128xf32>
    %866 = arith.mulf %857, %836 : vector<8x128xf32>
    %867 = arith.mulf %851, %859 : vector<8x128xf32>
    %868 = arith.addf %866, %867 : vector<8x128xf32>
    %869 = math.tanh %868 : vector<8x128xf32>
    %870 = arith.mulf %865, %869 : vector<8x128xf32>
    %c8_i32_236 = arith.constant 8 : i32
    %871 = arith.truncf %870 : vector<8x128xf32> to vector<8x128xbf16>
    %c0_237 = arith.constant 0 : index
    %c0_238 = arith.constant 0 : index
    %872 = vector.load %arg11[%c0_237, %c0_238] : memref<128x128xbf16, #tpu.memory_space<vmem>>, vector<128x128xbf16>
    %cst_239 = arith.constant dense<0.000000e+00> : vector<8x128xf32>
    %873 = tpu.matmul %871, %872, %cst_239 {dimension_numbers = #tpu.dot_dimension_numbers<[1], [0], [0], [1], [0, 0, 1, 1], [], []>} : vector<8x128xbf16>, vector<128x128xbf16>, vector<8x128xf32> -> vector<8x128xf32>
    %c0_240 = arith.constant 0 : index
    %c0_241 = arith.constant 0 : index
    %874 = vector.load %arg12[%c0_240, %c0_241] : memref<1x128xf32, #tpu.memory_space<vmem>>, vector<1x128xf32>
    %875 = vector.broadcast %874 : vector<1x128xf32> to vector<8x128xf32>
    %876 = arith.addf %873, %875 : vector<8x128xf32>
    %c0_242 = arith.constant 0 : index
    %c0_243 = arith.constant 0 : index
    %877 = vector.load %arg13[%c0_242, %c0_243] : memref<8x128xf32, #tpu.memory_space<vmem>>, vector<8x128xf32>
    tpu.vector_store %arg13[%c0_242, %c0_243], %876 {strides = array<i32>} : memref<8x128xf32, #tpu.memory_space<vmem>>, vector<8x128xf32>,
    return
  }
  func.func @transform_0(%arg0: i32) -> (i32, i32, i32) {
    %c0_i32 = arith.constant 0 : i32
    %c0_i32_0 = arith.constant 0 : i32
    %c0_i32_1 = arith.constant 0 : i32
    %c0_i32_2 = arith.constant 0 : i32
    return %c0_i32, %c0_i32_0, %c0_i32_1 : i32, i32, i32
  }
  func.func @transform_1(%arg0: i32) -> (i32, i32) {
    %c0_i32 = arith.constant 0 : i32
    %c0_i32_0 = arith.constant 0 : i32
    %c0_i32_1 = arith.constant 0 : i32
    return %c0_i32, %c0_i32_0 : i32, i32
  }
  func.func @transform_2(%arg0: i32) -> (i32, i32) {
    %c0_i32 = arith.constant 0 : i32
    %c0_i32_0 = arith.constant 0 : i32
    %c0_i32_1 = arith.constant 0 : i32
    return %c0_i32, %c0_i32_0 : i32, i32
  }
  func.func @transform_3(%arg0: i32) -> (i32, i32) {
    %c0_i32 = arith.constant 0 : i32
    %c0_i32_0 = arith.constant 0 : i32
    %c0_i32_1 = arith.constant 0 : i32
    return %c0_i32, %c0_i32_0 : i32, i32
  }
  func.func @transform_4(%arg0: i32) -> (i32, i32) {
    %c0_i32 = arith.constant 0 : i32
    %c0_i32_0 = arith.constant 0 : i32
    %c0_i32_1 = arith.constant 0 : i32
    return %c0_i32, %c0_i32_0 : i32, i32
  }
  func.func @transform_5(%arg0: i32) -> (i32, i32) {
    %c0_i32 = arith.constant 0 : i32
    %c0_i32_0 = arith.constant 0 : i32
    %c0_i32_1 = arith.constant 0 : i32
    return %c0_i32, %c0_i32_0 : i32, i32
  }
  func.func @transform_6(%arg0: i32) -> (i32, i32) {
    %c0_i32 = arith.constant 0 : i32
    %c0_i32_0 = arith.constant 0 : i32
    %c0_i32_1 = arith.constant 0 : i32
    return %c0_i32, %c0_i32_0 : i32, i32
  }
  func.func @transform_7(%arg0: i32) -> (i32, i32) {
    %c0_i32 = arith.constant 0 : i32
    %c0_i32_0 = arith.constant 0 : i32
    %c0_i32_1 = arith.constant 0 : i32
    return %c0_i32, %c0_i32_0 : i32, i32
  }
  func.func @transform_8(%arg0: i32) -> (i32, i32) {
    %c0_i32 = arith.constant 0 : i32
    %c0_i32_0 = arith.constant 0 : i32
    %c0_i32_1 = arith.constant 0 : i32
    return %c0_i32, %c0_i32_0 : i32, i32
  }
  func.func @transform_9(%arg0: i32) -> (i32, i32) {
    %c0_i32 = arith.constant 0 : i32
    %c0_i32_0 = arith.constant 0 : i32
    %c0_i32_1 = arith.constant 0 : i32
    return %c0_i32, %c0_i32_0 : i32, i32
  }
  func.func @transform_10(%arg0: i32) -> (i32, i32) {
    %c0_i32 = arith.constant 0 : i32
    %c0_i32_0 = arith.constant 0 : i32
    %c0_i32_1 = arith.constant 0 : i32
    return %c0_i32, %c0_i32_0 : i32, i32
  }
  func.func @transform_11(%arg0: i32) -> (i32, i32) {
    %c0_i32 = arith.constant 0 : i32
    %c0_i32_0 = arith.constant 0 : i32
    %c0_i32_1 = arith.constant 0 : i32
    return %c0_i32, %c0_i32_0 : i32, i32
  }
  func.func @transform_12(%arg0: i32) -> (i32, i32) {
    %c0_i32 = arith.constant 0 : i32
    %c0_i32_0 = arith.constant 0 : i32
    %c0_i32_1 = arith.constant 0 : i32
    return %c0_i32, %c0_i32_0 : i32, i32
  }
}

</mosaic_0001>

<llo_original>
// kernel: tpu_custom_call.1
$region0: #{tpu_custom_call.1}
  #allocation0 [shape = 'u32[]', space=smem, size = 0x4, offset = 0x4, fixed_abs, tag = 'smem constant byte address 0x4 - core index']
  #allocation1 [shape = 'u32[144,128]{1,0:T(1,128)}', space=vmem, size = 0x12000, scoped, tag = 'internal scratch']
  #allocation2 [shape = 'f32[8,8,512]{2,1,0:T(8,128)}', space=vmem, size = 0x20000, scoped, tag = 'scratch operand']
  #allocation3 [shape = 'f32[8,8,128]{2,1,0:T(8,128)}', space=vmem, size = 0x8000, scoped, tag = 'scratch operand']
  %s0 = inlined_call_operand.hbm [shape: f32[8,8,128], index: 0, kind: input, shape index: {}]
  %s1 = inlined_call_operand.hbm [shape: bf16[128,512], index: 1, kind: input, shape index: {}]
  %s2 = inlined_call_operand.hbm [shape: bf16[128,512], index: 2, kind: input, shape index: {}]
  %s3 = inlined_call_operand.vmem [shape: f32[1,512], index: 3, kind: input, shape index: {}]
  %s4 = inlined_call_operand.hbm [shape: bf16[128,512], index: 4, kind: input, shape index: {}]
  %s5 = inlined_call_operand.hbm [shape: bf16[128,512], index: 5, kind: input, shape index: {}]
  %s6 = inlined_call_operand.vmem [shape: f32[1,512], index: 6, kind: input, shape index: {}]
  %s7 = inlined_call_operand.hbm [shape: bf16[128,512], index: 7, kind: input, shape index: {}]
  %s8 = inlined_call_operand.hbm [shape: bf16[128,512], index: 8, kind: input, shape index: {}]
  %s9 = inlined_call_operand.vmem [shape: f32[1,512], index: 9, kind: input, shape index: {}]
  %s10 = inlined_call_operand.hbm [shape: bf16[128,128], index: 10, kind: input, shape index: {}]
  %s11 = inlined_call_operand.vmem [shape: f32[1,128], index: 11, kind: input, shape index: {}]
  %s12 = inlined_call_operand.hbm [shape: f32[8,128], index: 12, kind: output, shape index: {}]
  %s13 = sld [smem:[#allocation0]]
  $region90: #{tpu_custom_call.1} parent=0
    _
  %s15 = ssub.s32 1, %s13
  %s16 = scalar_select 0, %s15, %s13
  $region1: #{tpu_custom_call.1} parent=0
    #allocation4 [shape = 'u8[32768]{0}', space=vmem, size = 0x8000, scoped, tag = 'input window, operand 0, single buffered']
    #allocation5 [shape = 's32[1]{0}', space=sflag, size = 0x4, scoped, tag = 'scoped memory for tpu_custom_call.1']
    #allocation6 [shape = 's32[1]{0}', space=sflag, size = 0x4, scoped, tag = 'scoped memory for tpu_custom_call.1']
    #allocation7 [shape = 'u8[131072]{0}', space=vmem, size = 0x20000, scoped, tag = 'input window, operand 1, single buffered']
    #allocation8 [shape = 's32[1]{0}', space=sflag, size = 0x4, scoped, tag = 'scoped memory for tpu_custom_call.1']
    #allocation9 [shape = 'u8[131072]{0}', space=vmem, size = 0x20000, scoped, tag = 'input window, operand 2, single buffered']
    #allocation10 [shape = 'u8[131072]{0}', space=vmem, size = 0x20000, scoped, tag = 'input window, operand 4, single buffered']
    #allocation11 [shape = 's32[1]{0}', space=sflag, size = 0x4, scoped, tag = 'scoped memory for tpu_custom_call.1']
    #allocation12 [shape = 'u8[131072]{0}', space=vmem, size = 0x20000, scoped, tag = 'input window, operand 5, single buffered']
    #allocation13 [shape = 'u8[131072]{0}', space=vmem, size = 0x20000, scoped, tag = 'input window, operand 7, single buffered']
    #allocation14 [shape = 's32[1]{0}', space=sflag, size = 0x4, scoped, tag = 'scoped memory for tpu_custom_call.1']
    #allocation15 [shape = 'u8[131072]{0}', space=vmem, size = 0x20000, scoped, tag = 'input window, operand 8, single buffered']
    #allocation16 [shape = 'u8[32768]{0}', space=vmem, size = 0x8000, scoped, tag = 'input window, operand 10, single buffered']
    #allocation17 [shape = 's32[1]{0}', space=sflag, size = 0x4, scoped, tag = 'scoped memory for tpu_custom_call.1']
    #allocation18 [shape = 'u8[4096]{0}', space=vmem, size = 0x1000, scoped, tag = 'output window, operand 0, single buffered']
    %17 = vsyncpa [#allocation5], 0
    %18 = vsyncpa [#allocation8], 0
    %19 = vsyncpa [#allocation11], 0
    %20 = vsyncpa [#allocation14], 0
    %21 = vsyncpa [#allocation17], 0
    %22 = vsyncpa [#allocation6], 0
    // Predicated region
    $region2: #{tpu_custom_call.1} parent=1 // pred_check
      _
    $region3: #{tpu_custom_call.1} parent=1 // pred_check_branch
      %24 = sbr.rel (0) target = $region5
    $region4: #{tpu_custom_call.1} parent=1 // pred_region
      %s26 = ssub.s32 1024, 1024
      %27 = vsyncadd [#allocation5], %s26
      %s28 = sshll.u32 [#allocation4], 4
      %s29 = int_to_ptr.vmem [resolvable:$true] %s28
      %34 = dma.hbm_to_vmem [thread:$0]  %s0, 1024, %s29, [#allocation5], 128, 128, 8
    $region5: #{tpu_custom_call.1} parent=1 // pred_fallthru
      _
    // Predicated region
    $region6: #{tpu_custom_call.1} parent=1 // pred_check
      _
    $region7: #{tpu_custom_call.1} parent=1 // pred_check_branch
      %36 = sbr.rel (0) target = $region9
    $region8: #{tpu_custom_call.1} parent=1 // pred_region
      %s38 = ssub.s32 4096, 4096
      %39 = vsyncadd [#allocation8], %s38
      %s40 = sshll.u32 [#allocation7], 4
      %s41 = int_to_ptr.vmem [resolvable:$true] %s40
      %46 = dma.hbm_to_vmem [thread:$0]  %s1, 4096, %s41, [#allocation8], 256, 256, 16
    $region9: #{tpu_custom_call.1} parent=1 // pred_fallthru
      _
    // Predicated region
    $region10: #{tpu_custom_call.1} parent=1 // pred_check
      _
    $region11: #{tpu_custom_call.1} parent=1 // pred_check_branch
      %48 = sbr.rel (0) target = $region13
    $region12: #{tpu_custom_call.1} parent=1 // pred_region
      %s50 = ssub.s32 4096, 4096
      %51 = vsyncadd [#allocation8], %s50
      %s52 = sshll.u32 [#allocation9], 4
      %s53 = int_to_ptr.vmem [resolvable:$true] %s52
      %58 = dma.hbm_to_vmem [thread:$0]  %s2, 4096, %s53, [#allocation8], 256, 256, 16
    $region13: #{tpu_custom_call.1} parent=1 // pred_fallthru
      _
    // Predicated region
    $region14: #{tpu_custom_call.1} parent=1 // pred_check
      _
    $region15: #{tpu_custom_call.1} parent=1 // pred_check_branch
      %60 = sbr.rel (0) target = $region17
    $region16: #{tpu_custom_call.1} parent=1 // pred_region
      _
    $region17: #{tpu_custom_call.1} parent=1 // pred_fallthru
      _
    // Predicated region
    $region18: #{tpu_custom_call.1} parent=1 // pred_check
      _
    $region19: #{tpu_custom_call.1} parent=1 // pred_check_branch
      %62 = sbr.rel (0) target = $region21
    $region20: #{tpu_custom_call.1} parent=1 // pred_region
      %s64 = ssub.s32 4096, 4096
      %65 = vsyncadd [#allocation11], %s64
      %s66 = sshll.u32 [#allocation10], 4
      %s67 = int_to_ptr.vmem [resolvable:$true] %s66
      %72 = dma.hbm_to_vmem [thread:$0]  %s4, 4096, %s67, [#allocation11], 256, 256, 16
    $region21: #{tpu_custom_call.1} parent=1 // pred_fallthru
      _
    // Predicated region
    $region22: #{tpu_custom_call.1} parent=1 // pred_check
      _
    $region23: #{tpu_custom_call.1} parent=1 // pred_check_branch
      %74 = sbr.rel (0) target = $region25
    $region24: #{tpu_custom_call.1} parent=1 // pred_region
      %s76 = ssub.s32 4096, 4096
      %77 = vsyncadd [#allocation11], %s76
      %s78 = sshll.u32 [#allocation12], 4
      %s79 = int_to_ptr.vmem [resolvable:$true] %s78
      %84 = dma.hbm_to_vmem [thread:$0]  %s5, 4096, %s79, [#allocation11], 256, 256, 16
    $region25: #{tpu_custom_call.1} parent=1 // pred_fallthru
      _
    // Predicated region
    $region26: #{tpu_custom_call.1} parent=1 // pred_check
      _
    $region27: #{tpu_custom_call.1} parent=1 // pred_check_branch
      %86 = sbr.rel (0) target = $region29
    $region28: #{tpu_custom_call.1} parent=1 // pred_region
      _
    $region29: #{tpu_custom_call.1} parent=1 // pred_fallthru
      _
    // Predicated region
    $region30: #{tpu_custom_call.1} parent=1 // pred_check
      _
    $region31: #{tpu_custom_call.1} parent=1 // pred_check_branch
      %88 = sbr.rel (0) target = $region33
    $region32: #{tpu_custom_call.1} parent=1 // pred_region
      %s90 = ssub.s32 4096, 4096
      %91 = vsyncadd [#allocation14], %s90
      %s92 = sshll.u32 [#allocation13], 4
      %s93 = int_to_ptr.vmem [resolvable:$true] %s92
      %98 = dma.hbm_to_vmem [thread:$0]  %s7, 4096, %s93, [#allocation14], 256, 256, 16
    $region33: #{tpu_custom_call.1} parent=1 // pred_fallthru
      _
    // Predicated region
    $region34: #{tpu_custom_call.1} parent=1 // pred_check
      _
    $region35: #{tpu_custom_call.1} parent=1 // pred_check_branch
      %100 = sbr.rel (0) target = $region37
    $region36: #{tpu_custom_call.1} parent=1 // pred_region
      %s102 = ssub.s32 4096, 4096
      %103 = vsyncadd [#allocation14], %s102
      %s104 = sshll.u32 [#allocation15], 4
      %s105 = int_to_ptr.vmem [resolvable:$true] %s104
      %110 = dma.hbm_to_vmem [thread:$0]  %s8, 4096, %s105, [#allocation14], 256, 256, 16
    $region37: #{tpu_custom_call.1} parent=1 // pred_fallthru
      _
    // Predicated region
    $region38: #{tpu_custom_call.1} parent=1 // pred_check
      _
    $region39: #{tpu_custom_call.1} parent=1 // pred_check_branch
      %112 = sbr.rel (0) target = $region41
    $region40: #{tpu_custom_call.1} parent=1 // pred_region
      _
    $region41: #{tpu_custom_call.1} parent=1 // pred_fallthru
      _
    // Predicated region
    $region42: #{tpu_custom_call.1} parent=1 // pred_check
      _
    $region43: #{tpu_custom_call.1} parent=1 // pred_check_branch
      %114 = sbr.rel (0) target = $region45
    $region44: #{tpu_custom_call.1} parent=1 // pred_region
      %s116 = ssub.s32 1024, 1024
      %117 = vsyncadd [#allocation17], %s116
      %s118 = sshll.u32 [#allocation16], 4
      %s119 = int_to_ptr.vmem [resolvable:$true] %s118
      %124 = dma.hbm_to_vmem [thread:$0]  %s10, 1024, %s119, [#allocation17], 64, 64, 4
    $region45: #{tpu_custom_call.1} parent=1 // pred_fallthru
      _
    // Predicated region
    $region46: #{tpu_custom_call.1} parent=1 // pred_check
      _
    $region47: #{tpu_custom_call.1} parent=1 // pred_check_branch
      %126 = sbr.rel (0) target = $region49
    $region48: #{tpu_custom_call.1} parent=1 // pred_region
      _
    $region49: #{tpu_custom_call.1} parent=1 // pred_fallthru
      _
    // Predicated region
    $region50: #{tpu_custom_call.1} parent=1 // pred_check
      _
    $region51: #{tpu_custom_call.1} parent=1 // pred_check_branch
      %128 = sbr.rel (0) target = $region53
    $region52: #{tpu_custom_call.1} parent=1 // pred_region
      %129 = dma.done [#allocation5], 1024
    $region53: #{tpu_custom_call.1} parent=1 // pred_fallthru
      _
    // Predicated region
    $region54: #{tpu_custom_call.1} parent=1 // pred_check
      _
    $region55: #{tpu_custom_call.1} parent=1 // pred_check_branch
      %131 = sbr.rel (0) target = $region57
    $region56: #{tpu_custom_call.1} parent=1 // pred_region
      %132 = dma.done [#allocation8], 4096
    $region57: #{tpu_custom_call.1} parent=1 // pred_fallthru
      _
    // Predicated region
    $region58: #{tpu_custom_call.1} parent=1 // pred_check
      _
    $region59: #{tpu_custom_call.1} parent=1 // pred_check_branch
      %134 = sbr.rel (0) target = $region61
    $region60: #{tpu_custom_call.1} parent=1 // pred_region
      %135 = dma.done [#allocation8], 4096
    $region61: #{tpu_custom_call.1} parent=1 // pred_fallthru
      _
    // Predicated region
    $region62: #{tpu_custom_call.1} parent=1 // pred_check
      _
    $region63: #{tpu_custom_call.1} parent=1 // pred_check_branch
      %137 = sbr.rel (0) target = $region65
    $region64: #{tpu_custom_call.1} parent=1 // pred_region
      %138 = dma.done [#allocation11], 4096
    $region65: #{tpu_custom_call.1} parent=1 // pred_fallthru
      _
    // Predicated region
    $region66: #{tpu_custom_call.1} parent=1 // pred_check
      _
    $region67: #{tpu_custom_call.1} parent=1 // pred_check_branch
      %140 = sbr.rel (0) target = $region69
    $region68: #{tpu_custom_call.1} parent=1 // pred_region
      %141 = dma.done [#allocation11], 4096
    $region69: #{tpu_custom_call.1} parent=1 // pred_fallthru
      _
    // Predicated region
    $region70: #{tpu_custom_call.1} parent=1 // pred_check
      _
    $region71: #{tpu_custom_call.1} parent=1 // pred_check_branch
      %143 = sbr.rel (0) target = $region73
    $region72: #{tpu_custom_call.1} parent=1 // pred_region
      %144 = dma.done [#allocation14], 4096
    $region73: #{tpu_custom_call.1} parent=1 // pred_fallthru
      _
    // Predicated region
    $region74: #{tpu_custom_call.1} parent=1 // pred_check
      _
    $region75: #{tpu_custom_call.1} parent=1 // pred_check_branch
      %146 = sbr.rel (0) target = $region77
    $region76: #{tpu_custom_call.1} parent=1 // pred_region
      %147 = dma.done [#allocation14], 4096
    $region77: #{tpu_custom_call.1} parent=1 // pred_fallthru
      _
    // Predicated region
    $region78: #{tpu_custom_call.1} parent=1 // pred_check
      _
    $region79: #{tpu_custom_call.1} parent=1 // pred_check_branch
      %149 = sbr.rel (0) target = $region81
    $region80: #{tpu_custom_call.1} parent=1 // pred_region
      %150 = dma.done [#allocation17], 1024
    $region81: #{tpu_custom_call.1} parent=1 // pred_fallthru
      _
    %v152 = vld [vmem:[#allocation4] sm:$0xff]
    %v153 = vld [vmem:[#allocation4 + $0x8] sm:$0xff]
    %v154 = vld [vmem:[#allocation4 + $0x10] sm:$0xff]
    %v155 = vld [vmem:[#allocation4 + $0x18] sm:$0xff]
    %v156 = vld [vmem:[#allocation4 + $0x20] sm:$0xff]
    %v157 = vld [vmem:[#allocation4 + $0x28] sm:$0xff]
    %v158 = vld [vmem:[#allocation4 + $0x30] sm:$0xff]
    %v159 = vld [vmem:[#allocation4 + $0x38] sm:$0xff]
    %v160 = vpack.c.bf16 %v153, %v152
    %v161 = vpack.c.bf16 %v155, %v154
    %v162 = vpack.c.bf16 %v157, %v156
    %v163 = vpack.c.bf16 %v159, %v158
    %v164 = vld [vmem:[#allocation7] sm:$0xff]
    %v165 = vld [vmem:[#allocation7 + $0x8] sm:$0xff]
    %v166 = vld [vmem:[#allocation7 + $0x10] sm:$0xff]
    %v167 = vld [vmem:[#allocation7 + $0x18] sm:$0xff]
    %v168 = vld [vmem:[#allocation7 + $0x20] sm:$0xff]
    %v169 = vld [vmem:[#allocation7 + $0x28] sm:$0xff]
    %v170 = vld [vmem:[#allocation7 + $0x30] sm:$0xff]
    %v171 = vld [vmem:[#allocation7 + $0x38] sm:$0xff]
    %v172 = vld [vmem:[#allocation7 + $0x40] sm:$0xff]
    %v173 = vld [vmem:[#allocation7 + $0x48] sm:$0xff]
    %v174 = vld [vmem:[#allocation7 + $0x50] sm:$0xff]
    %v175 = vld [vmem:[#allocation7 + $0x58] sm:$0xff]
    %v176 = vld [vmem:[#allocation7 + $0x60] sm:$0xff]
    %v177 = vld [vmem:[#allocation7 + $0x68] sm:$0xff]
    %v178 = vld [vmem:[#allocation7 + $0x70] sm:$0xff]
    %v179 = vld [vmem:[#allocation7 + $0x78] sm:$0xff]
    %v180 = vld [vmem:[#allocation7 + $0x80] sm:$0xff]
    %v181 = vld [vmem:[#allocation7 + $0x88] sm:$0xff]
    %v182 = vld [vmem:[#allocation7 + $0x90] sm:$0xff]
    %v183 = vld [vmem:[#allocation7 + $0x98] sm:$0xff]
    %v184 = vld [vmem:[#allocation7 + $0xa0] sm:$0xff]
    %v185 = vld [vmem:[#allocation7 + $0xa8] sm:$0xff]
    %v186 = vld [vmem:[#allocation7 + $0xb0] sm:$0xff]
    %v187 = vld [vmem:[#allocation7 + $0xb8] sm:$0xff]
    %v188 = vld [vmem:[#allocation7 + $0xc0] sm:$0xff]
    %v189 = vld [vmem:[#allocation7 + $0xc8] sm:$0xff]
    %v190 = vld [vmem:[#allocation7 + $0xd0] sm:$0xff]
    %v191 = vld [vmem:[#allocation7 + $0xd8] sm:$0xff]
    %v192 = vld [vmem:[#allocation7 + $0xe0] sm:$0xff]
    %v193 = vld [vmem:[#allocation7 + $0xe8] sm:$0xff]
    %v194 = vld [vmem:[#allocation7 + $0xf0] sm:$0xff]
    %v195 = vld [vmem:[#allocation7 + $0xf8] sm:$0xff]
    %v228 = vunpack.c.l.b16 %v164
    %v229 = vunpack.c.h.b16 %v164
    %v230 = vunpack.c.l.b16 %v165
    %v231 = vunpack.c.h.b16 %v165
    %v232 = vunpack.c.l.b16 %v166
    %v233 = vunpack.c.h.b16 %v166
    %v234 = vunpack.c.l.b16 %v167
    %v235 = vunpack.c.h.b16 %v167
    %v236 = vunpack.c.l.b16 %v168
    %v237 = vunpack.c.h.b16 %v168
    %v238 = vunpack.c.l.b16 %v169
    %v239 = vunpack.c.h.b16 %v169
    %v240 = vunpack.c.l.b16 %v170
    %v241 = vunpack.c.h.b16 %v170
    %v242 = vunpack.c.l.b16 %v171
    %v243 = vunpack.c.h.b16 %v171
    %v244 = vunpack.c.l.b16 %v172
    %v245 = vunpack.c.h.b16 %v172
    %v246 = vunpack.c.l.b16 %v173
    %v247 = vunpack.c.h.b16 %v173
    %v248 = vunpack.c.l.b16 %v174
    %v249 = vunpack.c.h.b16 %v174
    %v250 = vunpack.c.l.b16 %v175
    %v251 = vunpack.c.h.b16 %v175
    %v252 = vunpack.c.l.b16 %v176
    %v253 = vunpack.c.h.b16 %v176
    %v254 = vunpack.c.l.b16 %v177
    %v255 = vunpack.c.h.b16 %v177
    %v256 = vunpack.c.l.b16 %v178
    %v257 = vunpack.c.h.b16 %v178
    %v258 = vunpack.c.l.b16 %v179
    %v259 = vunpack.c.h.b16 %v179
    %v260 = vunpack.c.l.b16 %v180
    %v261 = vunpack.c.h.b16 %v180
    %v262 = vunpack.c.l.b16 %v181
    %v263 = vunpack.c.h.b16 %v181
    %v264 = vunpack.c.l.b16 %v182
    %v265 = vunpack.c.h.b16 %v182
    %v266 = vunpack.c.l.b16 %v183
    %v267 = vunpack.c.h.b16 %v183
    %v268 = vunpack.c.l.b16 %v184
    %v269 = vunpack.c.h.b16 %v184
    %v270 = vunpack.c.l.b16 %v185
    %v271 = vunpack.c.h.b16 %v185
    %v272 = vunpack.c.l.b16 %v186
    %v273 = vunpack.c.h.b16 %v186
    %v274 = vunpack.c.l.b16 %v187
    %v275 = vunpack.c.h.b16 %v187
    %v276 = vunpack.c.l.b16 %v188
    %v277 = vunpack.c.h.b16 %v188
    %v278 = vunpack.c.l.b16 %v189
    %v279 = vunpack.c.h.b16 %v189
    %v280 = vunpack.c.l.b16 %v190
    %v281 = vunpack.c.h.b16 %v190
    %v282 = vunpack.c.l.b16 %v191
    %v283 = vunpack.c.h.b16 %v191
    %v284 = vunpack.c.l.b16 %v192
    %v285 = vunpack.c.h.b16 %v192
    %v286 = vunpack.c.l.b16 %v193
    %v287 = vunpack.c.h.b16 %v193
    %v288 = vunpack.c.l.b16 %v194
    %v289 = vunpack.c.h.b16 %v194
    %v290 = vunpack.c.l.b16 %v195
    %v291 = vunpack.c.h.b16 %v195
    %v292 = vpack.c.b16 %v232, %v228
    %v293 = vpack.c.b16 %v233, %v229
    %v294 = vpack.c.b16 %v234, %v230
    %v295 = vpack.c.b16 %v235, %v231
    %v296 = vpack.c.b16 %v240, %v236
    %v297 = vpack.c.b16 %v241, %v237
    %v298 = vpack.c.b16 %v242, %v238
    %v299 = vpack.c.b16 %v243, %v239
    %v300 = vpack.c.b16 %v248, %v244
    %v301 = vpack.c.b16 %v249, %v245
    %v302 = vpack.c.b16 %v250, %v246
    %v303 = vpack.c.b16 %v251, %v247
    %v304 = vpack.c.b16 %v256, %v252
    %v305 = vpack.c.b16 %v257, %v253
    %v306 = vpack.c.b16 %v258, %v254
    %v307 = vpack.c.b16 %v259, %v255
    %v308 = vpack.c.b16 %v264, %v260
    %v309 = vpack.c.b16 %v265, %v261
    %v310 = vpack.c.b16 %v266, %v262
    %v311 = vpack.c.b16 %v267, %v263
    %v312 = vpack.c.b16 %v272, %v268
    %v313 = vpack.c.b16 %v273, %v269
    %v314 = vpack.c.b16 %v274, %v270
    %v315 = vpack.c.b16 %v275, %v271
    %v316 = vpack.c.b16 %v280, %v276
    %v317 = vpack.c.b16 %v281, %v277
    %v318 = vpack.c.b16 %v282, %v278
    %v319 = vpack.c.b16 %v283, %v279
    %v320 = vpack.c.b16 %v288, %v284
    %v321 = vpack.c.b16 %v289, %v285
    %v322 = vpack.c.b16 %v290, %v286
    %v323 = vpack.c.b16 %v291, %v287
    %356 = vmatprep.subr.bf16.mxu0 %v321
    %357 = vmatpush1.bf16.msra.mxu0 %v320
    %358 = vmatprep.subr.bf16.mxu0 %v317
    %359 = vmatpush1.bf16.msra.mxu0 %v316
    %360 = vmatprep.subr.bf16.mxu0 %v313
    %361 = vmatpush1.bf16.msra.mxu0 %v312
    %362 = vmatprep.subr.bf16.mxu0 %v309
    %363 = vmatpush1.bf16.msra.mxu0 %v308
    %364 = vmatprep.subr.bf16.mxu0 %v305
    %365 = vmatpush1.bf16.msra.mxu0 %v304
    %366 = vmatprep.subr.bf16.mxu0 %v301
    %367 = vmatpush1.bf16.msra.mxu0 %v300
    %368 = vmatprep.subr.bf16.mxu0 %v297
    %369 = vmatpush1.bf16.msra.mxu0 %v296
    %370 = vmatprep.subr.bf16.mxu0 %v293
    %371 = vmatpush1.bf16.msra.mxu0 %v292
    %372 = vmatprep.subr.bf16.mxu0 0
    %373 = vmatpush2.bf16.msra.mxu0 0
    %374 = vmatprep.subr.bf16.mxu0 0
    %375 = vmatpush2.bf16.msra.mxu0 0
    %376 = vmatprep.subr.bf16.mxu0 0
    %377 = vmatpush2.bf16.msra.mxu0 0
    %378 = vmatprep.subr.bf16.mxu0 0
    %379 = vmatpush2.bf16.msra.mxu0 0
    %380 = vmatprep.subr.bf16.mxu0 0
    %381 = vmatpush2.bf16.msra.mxu0 0
    %382 = vmatprep.subr.bf16.mxu0 0
    %383 = vmatpush2.bf16.msra.mxu0 0
    %384 = vmatprep.subr.bf16.mxu0 0
    %385 = vmatpush2.bf16.msra.mxu0 0
    %386 = vmatprep.subr.bf16.mxu0 0
    %387 = vmatpush2.bf16.msra.mxu0 0
    %388 = vmatprep.mubr.bf16.mxu0 0
    %389 = vmatmul.mubr.bf16.gmra.mxu0 %v160
    %v390 = vpop.f32.mrf.mxu0
    %v391 = vadd.f32 0.0, %v390
    %v392 = vpop.f32.mrf.mxu0
    %v393 = vadd.f32 0.0, %v392
    %v394 = vpop.f32.mrf.mxu0
    %v395 = vadd.f32 0.0, %v394
    %v396 = vpop.f32.mrf.mxu0
    %v397 = vadd.f32 0.0, %v396
    %398 = vmatprep.mubr.bf16.mxu0 0
    %399 = vmatmul.mubr.bf16.gmra.mxu0 %v161
    %v400 = vpop.f32.mrf.mxu0
    %v401 = vadd.f32 0.0, %v400
    %v402 = vpop.f32.mrf.mxu0
    %v403 = vadd.f32 0.0, %v402
    %v404 = vpop.f32.mrf.mxu0
    %v405 = vadd.f32 0.0, %v404
    %v406 = vpop.f32.mrf.mxu0
    %v407 = vadd.f32 0.0, %v406
    %408 = vmatprep.mubr.bf16.mxu0 0
    %409 = vmatmul.mubr.bf16.gmra.mxu0 %v162
    %v410 = vpop.f32.mrf.mxu0
    %v411 = vadd.f32 0.0, %v410
    %v412 = vpop.f32.mrf.mxu0
    %v413 = vadd.f32 0.0, %v412
    %v414 = vpop.f32.mrf.mxu0
    %v415 = vadd.f32 0.0, %v414
    %v416 = vpop.f32.mrf.mxu0
    %v417 = vadd.f32 0.0, %v416
    %418 = vmatprep.mubr.bf16.mxu0 0
    %419 = vmatmul.mubr.bf16.gmra.mxu0 %v163
    %v420 = vpop.f32.mrf.mxu0
    %v421 = vadd.f32 0.0, %v420
    %v422 = vpop.f32.mrf.mxu0
    %v423 = vadd.f32 0.0, %v422
    %v424 = vpop.f32.mrf.mxu0
    %v425 = vadd.f32 0.0, %v424
    %v426 = vpop.f32.mrf.mxu0
    %v427 = vadd.f32 0.0, %v426
    %428 = vdwg.mxu0
    %429 = vmatprep.subr.bf16.mxu0 %v323
    %430 = vmatpush1.bf16.msra.mxu0 %v322
    %431 = vmatprep.subr.bf16.mxu0 %v319
    %432 = vmatpush1.bf16.msra.mxu0 %v318
    %433 = vmatprep.subr.bf16.mxu0 %v315
    %434 = vmatpush1.bf16.msra.mxu0 %v314
    %435 = vmatprep.subr.bf16.mxu0 %v311
    %436 = vmatpush1.bf16.msra.mxu0 %v310
    %437 = vmatprep.subr.bf16.mxu0 %v307
    %438 = vmatpush1.bf16.msra.mxu0 %v306
    %439 = vmatprep.subr.bf16.mxu0 %v303
    %440 = vmatpush1.bf16.msra.mxu0 %v302
    %441 = vmatprep.subr.bf16.mxu0 %v299
    %442 = vmatpush1.bf16.msra.mxu0 %v298
    %443 = vmatprep.subr.bf16.mxu0 %v295
    %444 = vmatpush1.bf16.msra.mxu0 %v294
    %445 = vmatprep.subr.bf16.mxu0 0
    %446 = vmatpush2.bf16.msra.mxu0 0
    %447 = vmatprep.subr.bf16.mxu0 0
    %448 = vmatpush2.bf16.msra.mxu0 0
    %449 = vmatprep.subr.bf16.mxu0 0
    %450 = vmatpush2.bf16.msra.mxu0 0
    %451 = vmatprep.subr.bf16.mxu0 0
    %452 = vmatpush2.bf16.msra.mxu0 0
    %453 = vmatprep.subr.bf16.mxu0 0
    %454 = vmatpush2.bf16.msra.mxu0 0
    %455 = vmatprep.subr.bf16.mxu0 0
    %456 = vmatpush2.bf16.msra.mxu0 0
    %457 = vmatprep.subr.bf16.mxu0 0
    %458 = vmatpush2.bf16.msra.mxu0 0
    %459 = vmatprep.subr.bf16.mxu0 0
    %460 = vmatpush2.bf16.msra.mxu0 0
    %461 = vmatprep.mubr.bf16.mxu0 0
    %462 = vmatmul.mubr.bf16.gmra.mxu0 %v160
    %v463 = vpop.f32.mrf.mxu0
    %v464 = vadd.f32 0.0, %v463
    %v465 = vpop.f32.mrf.mxu0
    %v466 = vadd.f32 0.0, %v465
    %v467 = vpop.f32.mrf.mxu0
    %v468 = vadd.f32 0.0, %v467
    %v469 = vpop.f32.mrf.mxu0
    %v470 = vadd.f32 0.0, %v469
    %471 = vmatprep.mubr.bf16.mxu0 0
    %472 = vmatmul.mubr.bf16.gmra.mxu0 %v161
    %v473 = vpop.f32.mrf.mxu0
    %v474 = vadd.f32 0.0, %v473
    %v475 = vpop.f32.mrf.mxu0
    %v476 = vadd.f32 0.0, %v475
    %v477 = vpop.f32.mrf.mxu0
    %v478 = vadd.f32 0.0, %v477
    %v479 = vpop.f32.mrf.mxu0
    %v480 = vadd.f32 0.0, %v479
    %481 = vmatprep.mubr.bf16.mxu0 0
    %482 = vmatmul.mubr.bf16.gmra.mxu0 %v162
    %v483 = vpop.f32.mrf.mxu0
    %v484 = vadd.f32 0.0, %v483
    %v485 = vpop.f32.mrf.mxu0
    %v486 = vadd.f32 0.0, %v485
    %v487 = vpop.f32.mrf.mxu0
    %v488 = vadd.f32 0.0, %v487
    %v489 = vpop.f32.mrf.mxu0
    %v490 = vadd.f32 0.0, %v489
    %491 = vmatprep.mubr.bf16.mxu0 0
    %492 = vmatmul.mubr.bf16.gmra.mxu0 %v163
    %v493 = vpop.f32.mrf.mxu0
    %v494 = vadd.f32 0.0, %v493
    %v495 = vpop.f32.mrf.mxu0
    %v496 = vadd.f32 0.0, %v495
    %v497 = vpop.f32.mrf.mxu0
    %v498 = vadd.f32 0.0, %v497
    %v499 = vpop.f32.mrf.mxu0
    %v500 = vadd.f32 0.0, %v499
    %501 = vdwg.mxu0
    %502 = vst [vmem:[#allocation2] sm:$0xff] %v391
    %503 = vst [vmem:[#allocation2 + $0x8] sm:$0xff] %v393
    %504 = vst [vmem:[#allocation2 + $0x10] sm:$0xff] %v464
    %505 = vst [vmem:[#allocation2 + $0x18] sm:$0xff] %v466
    %506 = vst [vmem:[#allocation2 + $0x20] sm:$0xff] %v395
    %507 = vst [vmem:[#allocation2 + $0x28] sm:$0xff] %v397
    %508 = vst [vmem:[#allocation2 + $0x30] sm:$0xff] %v468
    %509 = vst [vmem:[#allocation2 + $0x38] sm:$0xff] %v470
    %510 = vst [vmem:[#allocation2 + $0x40] sm:$0xff] %v401
    %511 = vst [vmem:[#allocation2 + $0x48] sm:$0xff] %v403
    %512 = vst [vmem:[#allocation2 + $0x50] sm:$0xff] %v474
    %513 = vst [vmem:[#allocation2 + $0x58] sm:$0xff] %v476
    %514 = vst [vmem:[#allocation2 + $0x60] sm:$0xff] %v405
    %515 = vst [vmem:[#allocation2 + $0x68] sm:$0xff] %v407
    %516 = vst [vmem:[#allocation2 + $0x70] sm:$0xff] %v478
    %517 = vst [vmem:[#allocation2 + $0x78] sm:$0xff] %v480
    %518 = vst [vmem:[#allocation2 + $0x80] sm:$0xff] %v411
    %519 = vst [vmem:[#allocation2 + $0x88] sm:$0xff] %v413
    %520 = vst [vmem:[#allocation2 + $0x90] sm:$0xff] %v484
    %521 = vst [vmem:[#allocation2 + $0x98] sm:$0xff] %v486
    %522 = vst [vmem:[#allocation2 + $0xa0] sm:$0xff] %v415
    %523 = vst [vmem:[#allocation2 + $0xa8] sm:$0xff] %v417
    %524 = vst [vmem:[#allocation2 + $0xb0] sm:$0xff] %v488
    %525 = vst [vmem:[#allocation2 + $0xb8] sm:$0xff] %v490
    %526 = vst [vmem:[#allocation2 + $0xc0] sm:$0xff] %v421
    %527 = vst [vmem:[#allocation2 + $0xc8] sm:$0xff] %v423
    %528 = vst [vmem:[#allocation2 + $0xd0] sm:$0xff] %v494
    %529 = vst [vmem:[#allocation2 + $0xd8] sm:$0xff] %v496
    %530 = vst [vmem:[#allocation2 + $0xe0] sm:$0xff] %v425
    %531 = vst [vmem:[#allocation2 + $0xe8] sm:$0xff] %v427
    %532 = vst [vmem:[#allocation2 + $0xf0] sm:$0xff] %v498
    %533 = vst [vmem:[#allocation2 + $0xf8] sm:$0xff] %v500
    %v534 = vld [vmem:[#allocation9] sm:$0xff]
    %v535 = vld [vmem:[#allocation9 + $0x8] sm:$0xff]
    %v536 = vld [vmem:[#allocation9 + $0x10] sm:$0xff]
    %v537 = vld [vmem:[#allocation9 + $0x18] sm:$0xff]
    %v538 = vld [vmem:[#allocation9 + $0x20] sm:$0xff]
    %v539 = vld [vmem:[#allocation9 + $0x28] sm:$0xff]
    %v540 = vld [vmem:[#allocation9 + $0x30] sm:$0xff]
    %v541 = vld [vmem:[#allocation9 + $0x38] sm:$0xff]
    %v542 = vld [vmem:[#allocation9 + $0x40] sm:$0xff]
    %v543 = vld [vmem:[#allocation9 + $0x48] sm:$0xff]
    %v544 = vld [vmem:[#allocation9 + $0x50] sm:$0xff]
    %v545 = vld [vmem:[#allocation9 + $0x58] sm:$0xff]
    %v546 = vld [vmem:[#allocation9 + $0x60] sm:$0xff]
    %v547 = vld [vmem:[#allocation9 + $0x68] sm:$0xff]
    %v548 = vld [vmem:[#allocation9 + $0x70] sm:$0xff]
    %v549 = vld [vmem:[#allocation9 + $0x78] sm:$0xff]
    %v550 = vld [vmem:[#allocation9 + $0x80] sm:$0xff]
    %v551 = vld [vmem:[#allocation9 + $0x88] sm:$0xff]
    %v552 = vld [vmem:[#allocation9 + $0x90] sm:$0xff]
    %v553 = vld [vmem:[#allocation9 + $0x98] sm:$0xff]
    %v554 = vld [vmem:[#allocation9 + $0xa0] sm:$0xff]
    %v555 = vld [vmem:[#allocation9 + $0xa8] sm:$0xff]
    %v556 = vld [vmem:[#allocation9 + $0xb0] sm:$0xff]
    %v557 = vld [vmem:[#allocation9 + $0xb8] sm:$0xff]
    %v558 = vld [vmem:[#allocation9 + $0xc0] sm:$0xff]
    %v559 = vld [vmem:[#allocation9 + $0xc8] sm:$0xff]
    %v560 = vld [vmem:[#allocation9 + $0xd0] sm:$0xff]
    %v561 = vld [vmem:[#allocation9 + $0xd8] sm:$0xff]
    %v562 = vld [vmem:[#allocation9 + $0xe0] sm:$0xff]
    %v563 = vld [vmem:[#allocation9 + $0xe8] sm:$0xff]
    %v564 = vld [vmem:[#allocation9 + $0xf0] sm:$0xff]
    %v565 = vld [vmem:[#allocation9 + $0xf8] sm:$0xff]
    %v566 = vld [vmem:[%s3] sm:$0xf]
    %v568 = vlaneseq
    %v569 = vshrl.u32 %v568, 7
    %v570 = vsub.s32 0, %v569
    %v571 = vrot.slane %v566, %v570
    %v572 = vlaneseq
    %v573 = vshrl.u32 %v572, 7
    %v574 = vsub.s32 1, %v573
    %v575 = vrot.slane %v566, %v574
    %v576 = vlaneseq
    %v577 = vshrl.u32 %v576, 7
    %v578 = vsub.s32 2, %v577
    %v579 = vrot.slane %v566, %v578
    %v580 = vlaneseq
    %v581 = vshrl.u32 %v580, 7
    %v582 = vsub.s32 3, %v581
    %v583 = vrot.slane %v566, %v582
    %v588 = vld [vmem:[#allocation2] sm:$0xff]
    %v589 = vld [vmem:[#allocation2 + $0x8] sm:$0xff]
    %v590 = vld [vmem:[#allocation2 + $0x10] sm:$0xff]
    %v591 = vld [vmem:[#allocation2 + $0x18] sm:$0xff]
    %v624 = vunpack.c.l.b16 %v534
    %v625 = vunpack.c.h.b16 %v534
    %v626 = vunpack.c.l.b16 %v535
    %v627 = vunpack.c.h.b16 %v535
    %v628 = vunpack.c.l.b16 %v536
    %v629 = vunpack.c.h.b16 %v536
    %v630 = vunpack.c.l.b16 %v537
    %v631 = vunpack.c.h.b16 %v537
    %v632 = vunpack.c.l.b16 %v538
    %v633 = vunpack.c.h.b16 %v538
    %v634 = vunpack.c.l.b16 %v539
    %v635 = vunpack.c.h.b16 %v539
    %v636 = vunpack.c.l.b16 %v540
    %v637 = vunpack.c.h.b16 %v540
    %v638 = vunpack.c.l.b16 %v541
    %v639 = vunpack.c.h.b16 %v541
    %v640 = vunpack.c.l.b16 %v542
    %v641 = vunpack.c.h.b16 %v542
    %v642 = vunpack.c.l.b16 %v543
    %v643 = vunpack.c.h.b16 %v543
    %v644 = vunpack.c.l.b16 %v544
    %v645 = vunpack.c.h.b16 %v544
    %v646 = vunpack.c.l.b16 %v545
    %v647 = vunpack.c.h.b16 %v545
    %v648 = vunpack.c.l.b16 %v546
    %v649 = vunpack.c.h.b16 %v546
    %v650 = vunpack.c.l.b16 %v547
    %v651 = vunpack.c.h.b16 %v547
    %v652 = vunpack.c.l.b16 %v548
    %v653 = vunpack.c.h.b16 %v548
    %v654 = vunpack.c.l.b16 %v549
    %v655 = vunpack.c.h.b16 %v549
    %v656 = vunpack.c.l.b16 %v550
    %v657 = vunpack.c.h.b16 %v550
    %v658 = vunpack.c.l.b16 %v551
    %v659 = vunpack.c.h.b16 %v551
    %v660 = vunpack.c.l.b16 %v552
    %v661 = vunpack.c.h.b16 %v552
    %v662 = vunpack.c.l.b16 %v553
    %v663 = vunpack.c.h.b16 %v553
    %v664 = vunpack.c.l.b16 %v554
    %v665 = vunpack.c.h.b16 %v554
    %v666 = vunpack.c.l.b16 %v555
    %v667 = vunpack.c.h.b16 %v555
    %v668 = vunpack.c.l.b16 %v556
    %v669 = vunpack.c.h.b16 %v556
    %v670 = vunpack.c.l.b16 %v557
    %v671 = vunpack.c.h.b16 %v557
    %v672 = vunpack.c.l.b16 %v558
    %v673 = vunpack.c.h.b16 %v558
    %v674 = vunpack.c.l.b16 %v559
    %v675 = vunpack.c.h.b16 %v559
    %v676 = vunpack.c.l.b16 %v560
    %v677 = vunpack.c.h.b16 %v560
    %v678 = vunpack.c.l.b16 %v561
    %v679 = vunpack.c.h.b16 %v561
    %v680 = vunpack.c.l.b16 %v562
    %v681 = vunpack.c.h.b16 %v562
    %v682 = vunpack.c.l.b16 %v563
    %v683 = vunpack.c.h.b16 %v563
    %v684 = vunpack.c.l.b16 %v564
    %v685 = vunpack.c.h.b16 %v564
    %v686 = vunpack.c.l.b16 %v565
    %v687 = vunpack.c.h.b16 %v565
    %v688 = vpack.c.b16 %v628, %v624
    %v689 = vpack.c.b16 %v629, %v625
    %v690 = vpack.c.b16 %v630, %v626
    %v691 = vpack.c.b16 %v631, %v627
    %v692 = vpack.c.b16 %v636, %v632
    %v693 = vpack.c.b16 %v637, %v633
    %v694 = vpack.c.b16 %v638, %v634
    %v695 = vpack.c.b16 %v639, %v635
    %v696 = vpack.c.b16 %v644, %v640
    %v697 = vpack.c.b16 %v645, %v641
    %v698 = vpack.c.b16 %v646, %v642
    %v699 = vpack.c.b16 %v647, %v643
    %v700 = vpack.c.b16 %v652, %v648
    %v701 = vpack.c.b16 %v653, %v649
    %v702 = vpack.c.b16 %v654, %v650
    %v703 = vpack.c.b16 %v655, %v651
    %v704 = vpack.c.b16 %v660, %v656
    %v705 = vpack.c.b16 %v661, %v657
    %v706 = vpack.c.b16 %v662, %v658
    %v707 = vpack.c.b16 %v663, %v659
    %v708 = vpack.c.b16 %v668, %v664
    %v709 = vpack.c.b16 %v669, %v665
    %v710 = vpack.c.b16 %v670, %v666
    %v711 = vpack.c.b16 %v671, %v667
    %v712 = vpack.c.b16 %v676, %v672
    %v713 = vpack.c.b16 %v677, %v673
    %v714 = vpack.c.b16 %v678, %v674
    %v715 = vpack.c.b16 %v679, %v675
    %v716 = vpack.c.b16 %v684, %v680
    %v717 = vpack.c.b16 %v685, %v681
    %v718 = vpack.c.b16 %v686, %v682
    %v719 = vpack.c.b16 %v687, %v683
    %752 = vmatprep.subr.bf16.mxu0 %v717
    %753 = vmatpush1.bf16.msra.mxu0 %v716
    %754 = vmatprep.subr.bf16.mxu0 %v713
    %755 = vmatpush1.bf16.msra.mxu0 %v712
    %756 = vmatprep.subr.bf16.mxu0 %v709
    %757 = vmatpush1.bf16.msra.mxu0 %v708
    %758 = vmatprep.subr.bf16.mxu0 %v705
    %759 = vmatpush1.bf16.msra.mxu0 %v704
    %760 = vmatprep.subr.bf16.mxu0 %v701
    %761 = vmatpush1.bf16.msra.mxu0 %v700
    %762 = vmatprep.subr.bf16.mxu0 %v697
    %763 = vmatpush1.bf16.msra.mxu0 %v696
    %764 = vmatprep.subr.bf16.mxu0 %v693
    %765 = vmatpush1.bf16.msra.mxu0 %v692
    %766 = vmatprep.subr.bf16.mxu0 %v689
    %767 = vmatpush1.bf16.msra.mxu0 %v688
    %768 = vmatprep.subr.bf16.mxu0 0
    %769 = vmatpush2.bf16.msra.mxu0 0
    %770 = vmatprep.subr.bf16.mxu0 0
    %771 = vmatpush2.bf16.msra.mxu0 0
    %772 = vmatprep.subr.bf16.mxu0 0
    %773 = vmatpush2.bf16.msra.mxu0 0
    %774 = vmatprep.subr.bf16.mxu0 0
    %775 = vmatpush2.bf16.msra.mxu0 0
    %776 = vmatprep.subr.bf16.mxu0 0
    %777 = vmatpush2.bf16.msra.mxu0 0
    %778 = vmatprep.subr.bf16.mxu0 0
    %779 = vmatpush2.bf16.msra.mxu0 0
    %780 = vmatprep.subr.bf16.mxu0 0
    %781 = vmatpush2.bf16.msra.mxu0 0
    %782 = vmatprep.subr.bf16.mxu0 0
    %783 = vmatpush2.bf16.msra.mxu0 0
    %784 = vmatprep.mubr.bf16.mxu0 0
    %785 = vmatmul.mubr.bf16.gmra.mxu0 0
    %v786 = vpop.f32.mrf.mxu0
    %v787 = vadd.f32 0.0, %v786
    %v788 = vpop.f32.mrf.mxu0
    %v789 = vadd.f32 0.0, %v788
    %v790 = vpop.f32.mrf.mxu0
    %v791 = vpop.f32.mrf.mxu0
    %792 = vdwg.mxu0
    %793 = vmatprep.subr.bf16.mxu0 %v719
    %794 = vmatpush1.bf16.msra.mxu0 %v718
    %795 = vmatprep.subr.bf16.mxu0 %v715
    %796 = vmatpush1.bf16.msra.mxu0 %v714
    %797 = vmatprep.subr.bf16.mxu0 %v711
    %798 = vmatpush1.bf16.msra.mxu0 %v710
    %799 = vmatprep.subr.bf16.mxu0 %v707
    %800 = vmatpush1.bf16.msra.mxu0 %v706
    %801 = vmatprep.subr.bf16.mxu0 %v703
    %802 = vmatpush1.bf16.msra.mxu0 %v702
    %803 = vmatprep.subr.bf16.mxu0 %v699
    %804 = vmatpush1.bf16.msra.mxu0 %v698
    %805 = vmatprep.subr.bf16.mxu0 %v695
    %806 = vmatpush1.bf16.msra.mxu0 %v694
    %807 = vmatprep.subr.bf16.mxu0 %v691
    %808 = vmatpush1.bf16.msra.mxu0 %v690
    %809 = vmatprep.subr.bf16.mxu0 0
    %810 = vmatpush2.bf16.msra.mxu0 0
    %811 = vmatprep.subr.bf16.mxu0 0
    %812 = vmatpush2.bf16.msra.mxu0 0
    %813 = vmatprep.subr.bf16.mxu0 0
    %814 = vmatpush2.bf16.msra.mxu0 0
    %815 = vmatprep.subr.bf16.mxu0 0
    %816 = vmatpush2.bf16.msra.mxu0 0
    %817 = vmatprep.subr.bf16.mxu0 0
    %818 = vmatpush2.bf16.msra.mxu0 0
    %819 = vmatprep.subr.bf16.mxu0 0
    %820 = vmatpush2.bf16.msra.mxu0 0
    %821 = vmatprep.subr.bf16.mxu0 0
    %822 = vmatpush2.bf16.msra.mxu0 0
    %823 = vmatprep.subr.bf16.mxu0 0
    %824 = vmatpush2.bf16.msra.mxu0 0
    %825 = vmatprep.mubr.bf16.mxu0 0
    %826 = vmatmul.mubr.bf16.gmra.mxu0 0
    %v827 = vpop.f32.mrf.mxu0
    %v828 = vadd.f32 0.0, %v827
    %v829 = vpop.f32.mrf.mxu0
    %v830 = vadd.f32 0.0, %v829
    %v831 = vpop.f32.mrf.mxu0
    %v832 = vpop.f32.mrf.mxu0
    %833 = vdwg.mxu0
    %v834 = vadd.f32 %v588, %v787
    %v835 = vadd.f32 %v589, %v789
    %v836 = vadd.f32 %v590, %v828
    %v837 = vadd.f32 %v591, %v830
    %v838 = vadd.f32 %v834, %v571
    %v839 = vadd.f32 %v835, %v575
    %v840 = vadd.f32 %v836, %v579
    %v841 = vadd.f32 %v837, %v583
    %v842 = vxor.u32 %v838, 2147483648
    %v843 = vmul.f32 %v842, 1.442695
    %v844 = vpow.pop %v843
    %v845 = vadd.f32 %v844, 1.0
    %v846 = vrcp.pop %v845
    %v847 = vmul.f32 1.0, %v846
    %v848 = vxor.u32 %v839, 2147483648
    %v849 = vmul.f32 %v848, 1.442695
    %v850 = vpow.pop %v849
    %v851 = vadd.f32 %v850, 1.0
    %v852 = vrcp.pop %v851
    %v853 = vmul.f32 1.0, %v852
    %v854 = vtanh.pop %v840
    %v855 = vxor.u32 %v841, 2147483648
    %v856 = vmul.f32 %v855, 1.442695
    %v857 = vpow.pop %v856
    %v858 = vadd.f32 %v857, 1.0
    %v859 = vrcp.pop %v858
    %v860 = vmul.f32 1.0, %v859
    %v861 = vmul.f32 %v853, 0.0
    %v862 = vmul.f32 %v847, %v854
    %v863 = vadd.f32 %v861, %v862
    %v864 = vtanh.pop %v863
    %v865 = vmul.f32 %v860, %v864
    %866 = vst [vmem:[#allocation3] sm:$0xff] %v865
    %s867 = scalar_lea.vmem [#allocation2], 32
    %v868 = vld [vmem:[%s867] sm:$0xff]
    %v869 = vld [vmem:[%s867 + $0x8] sm:$0xff]
    %v870 = vld [vmem:[%s867 + $0x10] sm:$0xff]
    %v871 = vld [vmem:[%s867 + $0x18] sm:$0xff]
    %v872 = vpack.c.bf16 %v865, %v865
    %873 = vmatprep.subr.bf16.mxu0 %v717
    %874 = vmatpush1.bf16.msra.mxu0 %v716
    %875 = vmatprep.subr.bf16.mxu0 %v713
    %876 = vmatpush1.bf16.msra.mxu0 %v712
    %877 = vmatprep.subr.bf16.mxu0 %v709
    %878 = vmatpush1.bf16.msra.mxu0 %v708
    %879 = vmatprep.subr.bf16.mxu0 %v705
    %880 = vmatpush1.bf16.msra.mxu0 %v704
    %881 = vmatprep.subr.bf16.mxu0 %v701
    %882 = vmatpush1.bf16.msra.mxu0 %v700
    %883 = vmatprep.subr.bf16.mxu0 %v697
    %884 = vmatpush1.bf16.msra.mxu0 %v696
    %885 = vmatprep.subr.bf16.mxu0 %v693
    %886 = vmatpush1.bf16.msra.mxu0 %v692
    %887 = vmatprep.subr.bf16.mxu0 %v689
    %888 = vmatpush1.bf16.msra.mxu0 %v688
    %889 = vmatprep.subr.bf16.mxu0 0
    %890 = vmatpush2.bf16.msra.mxu0 0
    %891 = vmatprep.subr.bf16.mxu0 0
    %892 = vmatpush2.bf16.msra.mxu0 0
    %893 = vmatprep.subr.bf16.mxu0 0
    %894 = vmatpush2.bf16.msra.mxu0 0
    %895 = vmatprep.subr.bf16.mxu0 0
    %896 = vmatpush2.bf16.msra.mxu0 0
    %897 = vmatprep.subr.bf16.mxu0 0
    %898 = vmatpush2.bf16.msra.mxu0 0
    %899 = vmatprep.subr.bf16.mxu0 0
    %900 = vmatpush2.bf16.msra.mxu0 0
    %901 = vmatprep.subr.bf16.mxu0 0
    %902 = vmatpush2.bf16.msra.mxu0 0
    %903 = vmatprep.subr.bf16.mxu0 0
    %904 = vmatpush2.bf16.msra.mxu0 0
    %905 = vmatprep.mubr.bf16.mxu0 0
    %906 = vmatmul.mubr.bf16.gmra.mxu0 %v872
    %v907 = vpop.f32.mrf.mxu0
    %v908 = vadd.f32 0.0, %v907
    %v909 = vpop.f32.mrf.mxu0
    %v910 = vadd.f32 0.0, %v909
    %v911 = vpop.f32.mrf.mxu0
    %v912 = vpop.f32.mrf.mxu0
    %913 = vdwg.mxu0
    %914 = vmatprep.subr.bf16.mxu0 %v719
    %915 = vmatpush1.bf16.msra.mxu0 %v718
    %916 = vmatprep.subr.bf16.mxu0 %v715
    %917 = vmatpush1.bf16.msra.mxu0 %v714
    %918 = vmatprep.subr.bf16.mxu0 %v711
    %919 = vmatpush1.bf16.msra.mxu0 %v710
    %920 = vmatprep.subr.bf16.mxu0 %v707
    %921 = vmatpush1.bf16.msra.mxu0 %v706
    %922 = vmatprep.subr.bf16.mxu0 %v703
    %923 = vmatpush1.bf16.msra.mxu0 %v702
    %924 = vmatprep.subr.bf16.mxu0 %v699
    %925 = vmatpush1.bf16.msra.mxu0 %v698
    %926 = vmatprep.subr.bf16.mxu0 %v695
    %927 = vmatpush1.bf16.msra.mxu0 %v694
    %928 = vmatprep.subr.bf16.mxu0 %v691
    %929 = vmatpush1.bf16.msra.mxu0 %v690
    %930 = vmatprep.subr.bf16.mxu0 0
    %931 = vmatpush2.bf16.msra.mxu0 0
    %932 = vmatprep.subr.bf16.mxu0 0
    %933 = vmatpush2.bf16.msra.mxu0 0
    %934 = vmatprep.subr.bf16.mxu0 0
    %935 = vmatpush2.bf16.msra.mxu0 0
    %936 = vmatprep.subr.bf16.mxu0 0
    %937 = vmatpush2.bf16.msra.mxu0 0
    %938 = vmatprep.subr.bf16.mxu0 0
    %939 = vmatpush2.bf16.msra.mxu0 0
    %940 = vmatprep.subr.bf16.mxu0 0
    %941 = vmatpush2.bf16.msra.mxu0 0
    %942 = vmatprep.subr.bf16.mxu0 0
    %943 = vmatpush2.bf16.msra.mxu0 0
    %944 = vmatprep.subr.bf16.mxu0 0
    %945 = vmatpush2.bf16.msra.mxu0 0
    %946 = vmatprep.mubr.bf16.mxu0 0
    %947 = vmatmul.mubr.bf16.gmra.mxu0 %v872
    %v948 = vpop.f32.mrf.mxu0
    %v949 = vadd.f32 0.0, %v948
    %v950 = vpop.f32.mrf.mxu0
    %v951 = vadd.f32 0.0, %v950
    %v952 = vpop.f32.mrf.mxu0
    %v953 = vpop.f32.mrf.mxu0
    %954 = vdwg.mxu0
    %v955 = vadd.f32 %v868, %v908
    %v956 = vadd.f32 %v869, %v910
    %v957 = vadd.f32 %v870, %v949
    %v958 = vadd.f32 %v871, %v951
    %v959 = vadd.f32 %v955, %v571
    %v960 = vadd.f32 %v956, %v575
    %v961 = vadd.f32 %v957, %v579
    %v962 = vadd.f32 %v958, %v583
    %v963 = vxor.u32 %v959, 2147483648
    %v964 = vmul.f32 %v963, 1.442695
    %v965 = vpow.pop %v964
    %v966 = vadd.f32 %v965, 1.0
    %v967 = vrcp.pop %v966
    %v968 = vmul.f32 1.0, %v967
    %v969 = vxor.u32 %v960, 2147483648
    %v970 = vmul.f32 %v969, 1.442695
    %v971 = vpow.pop %v970
    %v972 = vadd.f32 %v971, 1.0
    %v973 = vrcp.pop %v972
    %v974 = vmul.f32 1.0, %v973
    %v975 = vtanh.pop %v961
    %v976 = vxor.u32 %v962, 2147483648
    %v977 = vmul.f32 %v976, 1.442695
    %v978 = vpow.pop %v977
    %v979 = vadd.f32 %v978, 1.0
    %v980 = vrcp.pop %v979
    %v981 = vmul.f32 1.0, %v980
    %v982 = vmul.f32 %v974, %v863
    %v983 = vmul.f32 %v968, %v975
    %v984 = vadd.f32 %v982, %v983
    %v985 = vtanh.pop %v984
    %v986 = vmul.f32 %v981, %v985
    %s987 = scalar_lea.vmem [#allocation3], 8
    %988 = vst [vmem:[%s987] sm:$0xff] %v986
    %s989 = scalar_lea.vmem [#allocation2], 64
    %v990 = vld [vmem:[%s989] sm:$0xff]
    %v991 = vld [vmem:[%s989 + $0x8] sm:$0xff]
    %v992 = vld [vmem:[%s989 + $0x10] sm:$0xff]
    %v993 = vld [vmem:[%s989 + $0x18] sm:$0xff]
    %v994 = vpack.c.bf16 %v986, %v986
    %995 = vmatprep.subr.bf16.mxu0 %v717
    %996 = vmatpush1.bf16.msra.mxu0 %v716
    %997 = vmatprep.subr.bf16.mxu0 %v713
    %998 = vmatpush1.bf16.msra.mxu0 %v712
    %999 = vmatprep.subr.bf16.mxu0 %v709
    %1000 = vmatpush1.bf16.msra.mxu0 %v708
    %1001 = vmatprep.subr.bf16.mxu0 %v705
    %1002 = vmatpush1.bf16.msra.mxu0 %v704
    %1003 = vmatprep.subr.bf16.mxu0 %v701
    %1004 = vmatpush1.bf16.msra.mxu0 %v700
    %1005 = vmatprep.subr.bf16.mxu0 %v697
    %1006 = vmatpush1.bf16.msra.mxu0 %v696
    %1007 = vmatprep.subr.bf16.mxu0 %v693
    %1008 = vmatpush1.bf16.msra.mxu0 %v692
    %1009 = vmatprep.subr.bf16.mxu0 %v689
    %1010 = vmatpush1.bf16.msra.mxu0 %v688
    %1011 = vmatprep.subr.bf16.mxu0 0
    %1012 = vmatpush2.bf16.msra.mxu0 0
    %1013 = vmatprep.subr.bf16.mxu0 0
    %1014 = vmatpush2.bf16.msra.mxu0 0
    %1015 = vmatprep.subr.bf16.mxu0 0
    %1016 = vmatpush2.bf16.msra.mxu0 0
    %1017 = vmatprep.subr.bf16.mxu0 0
    %1018 = vmatpush2.bf16.msra.mxu0 0
    %1019 = vmatprep.subr.bf16.mxu0 0
    %1020 = vmatpush2.bf16.msra.mxu0 0
    %1021 = vmatprep.subr.bf16.mxu0 0
    %1022 = vmatpush2.bf16.msra.mxu0 0
    %1023 = vmatprep.subr.bf16.mxu0 0
    %1024 = vmatpush2.bf16.msra.mxu0 0
    %1025 = vmatprep.subr.bf16.mxu0 0
    %1026 = vmatpush2.bf16.msra.mxu0 0
    %1027 = vmatprep.mubr.bf16.mxu0 0
    %1028 = vmatmul.mubr.bf16.gmra.mxu0 %v994
    %v1029 = vpop.f32.mrf.mxu0
    %v1030 = vadd.f32 0.0, %v1029
    %v1031 = vpop.f32.mrf.mxu0
    %v1032 = vadd.f32 0.0, %v1031
    %v1033 = vpop.f32.mrf.mxu0
    %v1034 = vpop.f32.mrf.mxu0
    %1035 = vdwg.mxu0
    %1036 = vmatprep.subr.bf16.mxu0 %v719
    %1037 = vmatpush1.bf16.msra.mxu0 %v718
    %1038 = vmatprep.subr.bf16.mxu0 %v715
    %1039 = vmatpush1.bf16.msra.mxu0 %v714
    %1040 = vmatprep.subr.bf16.mxu0 %v711
    %1041 = vmatpush1.bf16.msra.mxu0 %v710
    %1042 = vmatprep.subr.bf16.mxu0 %v707
    %1043 = vmatpush1.bf16.msra.mxu0 %v706
    %1044 = vmatprep.subr.bf16.mxu0 %v703
    %1045 = vmatpush1.bf16.msra.mxu0 %v702
    %1046 = vmatprep.subr.bf16.mxu0 %v699
    %1047 = vmatpush1.bf16.msra.mxu0 %v698
    %1048 = vmatprep.subr.bf16.mxu0 %v695
    %1049 = vmatpush1.bf16.msra.mxu0 %v694
    %1050 = vmatprep.subr.bf16.mxu0 %v691
    %1051 = vmatpush1.bf16.msra.mxu0 %v690
    %1052 = vmatprep.subr.bf16.mxu0 0
    %1053 = vmatpush2.bf16.msra.mxu0 0
    %1054 = vmatprep.subr.bf16.mxu0 0
    %1055 = vmatpush2.bf16.msra.mxu0 0
    %1056 = vmatprep.subr.bf16.mxu0 0
    %1057 = vmatpush2.bf16.msra.mxu0 0
    %1058 = vmatprep.subr.bf16.mxu0 0
    %1059 = vmatpush2.bf16.msra.mxu0 0
    %1060 = vmatprep.subr.bf16.mxu0 0
    %1061 = vmatpush2.bf16.msra.mxu0 0
    %1062 = vmatprep.subr.bf16.mxu0 0
    %1063 = vmatpush2.bf16.msra.mxu0 0
    %1064 = vmatprep.subr.bf16.mxu0 0
    %1065 = vmatpush2.bf16.msra.mxu0 0
    %1066 = vmatprep.subr.bf16.mxu0 0
    %1067 = vmatpush2.bf16.msra.mxu0 0
    %1068 = vmatprep.mubr.bf16.mxu0 0
    %1069 = vmatmul.mubr.bf16.gmra.mxu0 %v994
    %v1070 = vpop.f32.mrf.mxu0
    %v1071 = vadd.f32 0.0, %v1070
    %v1072 = vpop.f32.mrf.mxu0
    %v1073 = vadd.f32 0.0, %v1072
    %v1074 = vpop.f32.mrf.mxu0
    %v1075 = vpop.f32.mrf.mxu0
    %1076 = vdwg.mxu0
    %v1077 = vadd.f32 %v990, %v1030
    %v1078 = vadd.f32 %v991, %v1032
    %v1079 = vadd.f32 %v992, %v1071
    %v1080 = vadd.f32 %v993, %v1073
    %v1081 = vadd.f32 %v1077, %v571
    %v1082 = vadd.f32 %v1078, %v575
    %v1083 = vadd.f32 %v1079, %v579
    %v1084 = vadd.f32 %v1080, %v583
    %v1085 = vxor.u32 %v1081, 2147483648
    %v1086 = vmul.f32 %v1085, 1.442695
    %v1087 = vpow.pop %v1086
    %v1088 = vadd.f32 %v1087, 1.0
    %v1089 = vrcp.pop %v1088
    %v1090 = vmul.f32 1.0, %v1089
    %v1091 = vxor.u32 %v1082, 2147483648
    %v1092 = vmul.f32 %v1091, 1.442695
    %v1093 = vpow.pop %v1092
    %v1094 = vadd.f32 %v1093, 1.0
    %v1095 = vrcp.pop %v1094
    %v1096 = vmul.f32 1.0, %v1095
    %v1097 = vtanh.pop %v1083
    %v1098 = vxor.u32 %v1084, 2147483648
    %v1099 = vmul.f32 %v1098, 1.442695
    %v1100 = vpow.pop %v1099
    %v1101 = vadd.f32 %v1100, 1.0
    %v1102 = vrcp.pop %v1101
    %v1103 = vmul.f32 1.0, %v1102
    %v1104 = vmul.f32 %v1096, %v984
    %v1105 = vmul.f32 %v1090, %v1097
    %v1106 = vadd.f32 %v1104, %v1105
    %v1107 = vtanh.pop %v1106
    %v1108 = vmul.f32 %v1103, %v1107
    %s1109 = scalar_lea.vmem [#allocation3], 16
    %1110 = vst [vmem:[%s1109] sm:$0xff] %v1108
    %s1111 = scalar_lea.vmem [#allocation2], 96
    %v1112 = vld [vmem:[%s1111] sm:$0xff]
    %v1113 = vld [vmem:[%s1111 + $0x8] sm:$0xff]
    %v1114 = vld [vmem:[%s1111 + $0x10] sm:$0xff]
    %v1115 = vld [vmem:[%s1111 + $0x18] sm:$0xff]
    %v1116 = vpack.c.bf16 %v1108, %v1108
    %1117 = vmatprep.subr.bf16.mxu0 %v717
    %1118 = vmatpush1.bf16.msra.mxu0 %v716
    %1119 = vmatprep.subr.bf16.mxu0 %v713
    %1120 = vmatpush1.bf16.msra.mxu0 %v712
    %1121 = vmatprep.subr.bf16.mxu0 %v709
    %1122 = vmatpush1.bf16.msra.mxu0 %v708
    %1123 = vmatprep.subr.bf16.mxu0 %v705
    %1124 = vmatpush1.bf16.msra.mxu0 %v704
    %1125 = vmatprep.subr.bf16.mxu0 %v701
    %1126 = vmatpush1.bf16.msra.mxu0 %v700
    %1127 = vmatprep.subr.bf16.mxu0 %v697
    %1128 = vmatpush1.bf16.msra.mxu0 %v696
    %1129 = vmatprep.subr.bf16.mxu0 %v693
    %1130 = vmatpush1.bf16.msra.mxu0 %v692
    %1131 = vmatprep.subr.bf16.mxu0 %v689
    %1132 = vmatpush1.bf16.msra.mxu0 %v688
    %1133 = vmatprep.subr.bf16.mxu0 0
    %1134 = vmatpush2.bf16.msra.mxu0 0
    %1135 = vmatprep.subr.bf16.mxu0 0
    %1136 = vmatpush2.bf16.msra.mxu0 0
    %1137 = vmatprep.subr.bf16.mxu0 0
    %1138 = vmatpush2.bf16.msra.mxu0 0
    %1139 = vmatprep.subr.bf16.mxu0 0
    %1140 = vmatpush2.bf16.msra.mxu0 0
    %1141 = vmatprep.subr.bf16.mxu0 0
    %1142 = vmatpush2.bf16.msra.mxu0 0
    %1143 = vmatprep.subr.bf16.mxu0 0
    %1144 = vmatpush2.bf16.msra.mxu0 0
    %1145 = vmatprep.subr.bf16.mxu0 0
    %1146 = vmatpush2.bf16.msra.mxu0 0
    %1147 = vmatprep.subr.bf16.mxu0 0
    %1148 = vmatpush2.bf16.msra.mxu0 0
    %1149 = vmatprep.mubr.bf16.mxu0 0
    %1150 = vmatmul.mubr.bf16.gmra.mxu0 %v1116
    %v1151 = vpop.f32.mrf.mxu0
    %v1152 = vadd.f32 0.0, %v1151
    %v1153 = vpop.f32.mrf.mxu0
    %v1154 = vadd.f32 0.0, %v1153
    %v1155 = vpop.f32.mrf.mxu0
    %v1156 = vpop.f32.mrf.mxu0
    %1157 = vdwg.mxu0
    %1158 = vmatprep.subr.bf16.mxu0 %v719
    %1159 = vmatpush1.bf16.msra.mxu0 %v718
    %1160 = vmatprep.subr.bf16.mxu0 %v715
    %1161 = vmatpush1.bf16.msra.mxu0 %v714
    %1162 = vmatprep.subr.bf16.mxu0 %v711
    %1163 = vmatpush1.bf16.msra.mxu0 %v710
    %1164 = vmatprep.subr.bf16.mxu0 %v707
    %1165 = vmatpush1.bf16.msra.mxu0 %v706
    %1166 = vmatprep.subr.bf16.mxu0 %v703
    %1167 = vmatpush1.bf16.msra.mxu0 %v702
    %1168 = vmatprep.subr.bf16.mxu0 %v699
    %1169 = vmatpush1.bf16.msra.mxu0 %v698
    %1170 = vmatprep.subr.bf16.mxu0 %v695
    %1171 = vmatpush1.bf16.msra.mxu0 %v694
    %1172 = vmatprep.subr.bf16.mxu0 %v691
    %1173 = vmatpush1.bf16.msra.mxu0 %v690
    %1174 = vmatprep.subr.bf16.mxu0 0
    %1175 = vmatpush2.bf16.msra.mxu0 0
    %1176 = vmatprep.subr.bf16.mxu0 0
    %1177 = vmatpush2.bf16.msra.mxu0 0
    %1178 = vmatprep.subr.bf16.mxu0 0
    %1179 = vmatpush2.bf16.msra.mxu0 0
    %1180 = vmatprep.subr.bf16.mxu0 0
    %1181 = vmatpush2.bf16.msra.mxu0 0
    %1182 = vmatprep.subr.bf16.mxu0 0
    %1183 = vmatpush2.bf16.msra.mxu0 0
    %1184 = vmatprep.subr.bf16.mxu0 0
    %1185 = vmatpush2.bf16.msra.mxu0 0
    %1186 = vmatprep.subr.bf16.mxu0 0
    %1187 = vmatpush2.bf16.msra.mxu0 0
    %1188 = vmatprep.subr.bf16.mxu0 0
    %1189 = vmatpush2.bf16.msra.mxu0 0
    %1190 = vmatprep.mubr.bf16.mxu0 0
    %1191 = vmatmul.mubr.bf16.gmra.mxu0 %v1116
    %v1192 = vpop.f32.mrf.mxu0
    %v1193 = vadd.f32 0.0, %v1192
    %v1194 = vpop.f32.mrf.mxu0
    %v1195 = vadd.f32 0.0, %v1194
    %v1196 = vpop.f32.mrf.mxu0
    %v1197 = vpop.f32.mrf.mxu0
    %1198 = vdwg.mxu0
    %v1199 = vadd.f32 %v1112, %v1152
    %v1200 = vadd.f32 %v1113, %v1154
    %v1201 = vadd.f32 %v1114, %v1193
    %v1202 = vadd.f32 %v1115, %v1195
    %v1203 = vadd.f32 %v1199, %v571
    %v1204 = vadd.f32 %v1200, %v575
    %v1205 = vadd.f32 %v1201, %v579
    %v1206 = vadd.f32 %v1202, %v583
    %v1207 = vxor.u32 %v1203, 2147483648
    %v1208 = vmul.f32 %v1207, 1.442695
    %v1209 = vpow.pop %v1208
    %v1210 = vadd.f32 %v1209, 1.0
    %v1211 = vrcp.pop %v1210
    %v1212 = vmul.f32 1.0, %v1211
    %v1213 = vxor.u32 %v1204, 2147483648
    %v1214 = vmul.f32 %v1213, 1.442695
    %v1215 = vpow.pop %v1214
    %v1216 = vadd.f32 %v1215, 1.0
    %v1217 = vrcp.pop %v1216
    %v1218 = vmul.f32 1.0, %v1217
    %v1219 = vtanh.pop %v1205
    %v1220 = vxor.u32 %v1206, 2147483648
    %v1221 = vmul.f32 %v1220, 1.442695
    %v1222 = vpow.pop %v1221
    %v1223 = vadd.f32 %v1222, 1.0
    %v1224 = vrcp.pop %v1223
    %v1225 = vmul.f32 1.0, %v1224
    %v1226 = vmul.f32 %v1218, %v1106
    %v1227 = vmul.f32 %v1212, %v1219
    %v1228 = vadd.f32 %v1226, %v1227
    %v1229 = vtanh.pop %v1228
    %v1230 = vmul.f32 %v1225, %v1229
    %s1231 = scalar_lea.vmem [#allocation3], 24
    %1232 = vst [vmem:[%s1231] sm:$0xff] %v1230
    %s1233 = scalar_lea.vmem [#allocation2], 128
    %v1234 = vld [vmem:[%s1233] sm:$0xff]
    %v1235 = vld [vmem:[%s1233 + $0x8] sm:$0xff]
    %v1236 = vld [vmem:[%s1233 + $0x10] sm:$0xff]
    %v1237 = vld [vmem:[%s1233 + $0x18] sm:$0xff]
    %v1238 = vpack.c.bf16 %v1230, %v1230
    %1239 = vmatprep.subr.bf16.mxu0 %v717
    %1240 = vmatpush1.bf16.msra.mxu0 %v716
    %1241 = vmatprep.subr.bf16.mxu0 %v713
    %1242 = vmatpush1.bf16.msra.mxu0 %v712
    %1243 = vmatprep.subr.bf16.mxu0 %v709
    %1244 = vmatpush1.bf16.msra.mxu0 %v708
    %1245 = vmatprep.subr.bf16.mxu0 %v705
    %1246 = vmatpush1.bf16.msra.mxu0 %v704
    %1247 = vmatprep.subr.bf16.mxu0 %v701
    %1248 = vmatpush1.bf16.msra.mxu0 %v700
    %1249 = vmatprep.subr.bf16.mxu0 %v697
    %1250 = vmatpush1.bf16.msra.mxu0 %v696
    %1251 = vmatprep.subr.bf16.mxu0 %v693
    %1252 = vmatpush1.bf16.msra.mxu0 %v692
    %1253 = vmatprep.subr.bf16.mxu0 %v689
    %1254 = vmatpush1.bf16.msra.mxu0 %v688
    %1255 = vmatprep.subr.bf16.mxu0 0
    %1256 = vmatpush2.bf16.msra.mxu0 0
    %1257 = vmatprep.subr.bf16.mxu0 0
    %1258 = vmatpush2.bf16.msra.mxu0 0
    %1259 = vmatprep.subr.bf16.mxu0 0
    %1260 = vmatpush2.bf16.msra.mxu0 0
    %1261 = vmatprep.subr.bf16.mxu0 0
    %1262 = vmatpush2.bf16.msra.mxu0 0
    %1263 = vmatprep.subr.bf16.mxu0 0
    %1264 = vmatpush2.bf16.msra.mxu0 0
    %1265 = vmatprep.subr.bf16.mxu0 0
    %1266 = vmatpush2.bf16.msra.mxu0 0
    %1267 = vmatprep.subr.bf16.mxu0 0
    %1268 = vmatpush2.bf16.msra.mxu0 0
    %1269 = vmatprep.subr.bf16.mxu0 0
    %1270 = vmatpush2.bf16.msra.mxu0 0
    %1271 = vmatprep.mubr.bf16.mxu0 0
    %1272 = vmatmul.mubr.bf16.gmra.mxu0 %v1238
    %v1273 = vpop.f32.mrf.mxu0
    %v1274 = vadd.f32 0.0, %v1273
    %v1275 = vpop.f32.mrf.mxu0
    %v1276 = vadd.f32 0.0, %v1275
    %v1277 = vpop.f32.mrf.mxu0
    %v1278 = vpop.f32.mrf.mxu0
    %1279 = vdwg.mxu0
    %1280 = vmatprep.subr.bf16.mxu0 %v719
    %1281 = vmatpush1.bf16.msra.mxu0 %v718
    %1282 = vmatprep.subr.bf16.mxu0 %v715
    %1283 = vmatpush1.bf16.msra.mxu0 %v714
    %1284 = vmatprep.subr.bf16.mxu0 %v711
    %1285 = vmatpush1.bf16.msra.mxu0 %v710
    %1286 = vmatprep.subr.bf16.mxu0 %v707
    %1287 = vmatpush1.bf16.msra.mxu0 %v706
    %1288 = vmatprep.subr.bf16.mxu0 %v703
    %1289 = vmatpush1.bf16.msra.mxu0 %v702
    %1290 = vmatprep.subr.bf16.mxu0 %v699
    %1291 = vmatpush1.bf16.msra.mxu0 %v698
    %1292 = vmatprep.subr.bf16.mxu0 %v695
    %1293 = vmatpush1.bf16.msra.mxu0 %v694
    %1294 = vmatprep.subr.bf16.mxu0 %v691
    %1295 = vmatpush1.bf16.msra.mxu0 %v690
    %1296 = vmatprep.subr.bf16.mxu0 0
    %1297 = vmatpush2.bf16.msra.mxu0 0
    %1298 = vmatprep.subr.bf16.mxu0 0
    %1299 = vmatpush2.bf16.msra.mxu0 0
    %1300 = vmatprep.subr.bf16.mxu0 0
    %1301 = vmatpush2.bf16.msra.mxu0 0
    %1302 = vmatprep.subr.bf16.mxu0 0
    %1303 = vmatpush2.bf16.msra.mxu0 0
    %1304 = vmatprep.subr.bf16.mxu0 0
    %1305 = vmatpush2.bf16.msra.mxu0 0
    %1306 = vmatprep.subr.bf16.mxu0 0
    %1307 = vmatpush2.bf16.msra.mxu0 0
    %1308 = vmatprep.subr.bf16.mxu0 0
    %1309 = vmatpush2.bf16.msra.mxu0 0
    %1310 = vmatprep.subr.bf16.mxu0 0
    %1311 = vmatpush2.bf16.msra.mxu0 0
    %1312 = vmatprep.mubr.bf16.mxu0 0
    %1313 = vmatmul.mubr.bf16.gmra.mxu0 %v1238
    %v1314 = vpop.f32.mrf.mxu0
    %v1315 = vadd.f32 0.0, %v1314
    %v1316 = vpop.f32.mrf.mxu0
    %v1317 = vadd.f32 0.0, %v1316
    %v1318 = vpop.f32.mrf.mxu0
    %v1319 = vpop.f32.mrf.mxu0
    %1320 = vdwg.mxu0
    %v1321 = vadd.f32 %v1234, %v1274
    %v1322 = vadd.f32 %v1235, %v1276
    %v1323 = vadd.f32 %v1236, %v1315
    %v1324 = vadd.f32 %v1237, %v1317
    %v1325 = vadd.f32 %v1321, %v571
    %v1326 = vadd.f32 %v1322, %v575
    %v1327 = vadd.f32 %v1323, %v579
    %v1328 = vadd.f32 %v1324, %v583
    %v1329 = vxor.u32 %v1325, 2147483648
    %v1330 = vmul.f32 %v1329, 1.442695
    %v1331 = vpow.pop %v1330
    %v1332 = vadd.f32 %v1331, 1.0
    %v1333 = vrcp.pop %v1332
    %v1334 = vmul.f32 1.0, %v1333
    %v1335 = vxor.u32 %v1326, 2147483648
    %v1336 = vmul.f32 %v1335, 1.442695
    %v1337 = vpow.pop %v1336
    %v1338 = vadd.f32 %v1337, 1.0
    %v1339 = vrcp.pop %v1338
    %v1340 = vmul.f32 1.0, %v1339
    %v1341 = vtanh.pop %v1327
    %v1342 = vxor.u32 %v1328, 2147483648
    %v1343 = vmul.f32 %v1342, 1.442695
    %v1344 = vpow.pop %v1343
    %v1345 = vadd.f32 %v1344, 1.0
    %v1346 = vrcp.pop %v1345
    %v1347 = vmul.f32 1.0, %v1346
    %v1348 = vmul.f32 %v1340, %v1228
    %v1349 = vmul.f32 %v1334, %v1341
    %v1350 = vadd.f32 %v1348, %v1349
    %v1351 = vtanh.pop %v1350
    %v1352 = vmul.f32 %v1347, %v1351
    %s1353 = scalar_lea.vmem [#allocation3], 32
    %1354 = vst [vmem:[%s1353] sm:$0xff] %v1352
    %s1355 = scalar_lea.vmem [#allocation2], 160
    %v1356 = vld [vmem:[%s1355] sm:$0xff]
    %v1357 = vld [vmem:[%s1355 + $0x8] sm:$0xff]
    %v1358 = vld [vmem:[%s1355 + $0x10] sm:$0xff]
    %v1359 = vld [vmem:[%s1355 + $0x18] sm:$0xff]
    %v1360 = vpack.c.bf16 %v1352, %v1352
    %1361 = vmatprep.subr.bf16.mxu0 %v717
    %1362 = vmatpush1.bf16.msra.mxu0 %v716
    %1363 = vmatprep.subr.bf16.mxu0 %v713
    %1364 = vmatpush1.bf16.msra.mxu0 %v712
    %1365 = vmatprep.subr.bf16.mxu0 %v709
    %1366 = vmatpush1.bf16.msra.mxu0 %v708
    %1367 = vmatprep.subr.bf16.mxu0 %v705
    %1368 = vmatpush1.bf16.msra.mxu0 %v704
    %1369 = vmatprep.subr.bf16.mxu0 %v701
    %1370 = vmatpush1.bf16.msra.mxu0 %v700
    %1371 = vmatprep.subr.bf16.mxu0 %v697
    %1372 = vmatpush1.bf16.msra.mxu0 %v696
    %1373 = vmatprep.subr.bf16.mxu0 %v693
    %1374 = vmatpush1.bf16.msra.mxu0 %v692
    %1375 = vmatprep.subr.bf16.mxu0 %v689
    %1376 = vmatpush1.bf16.msra.mxu0 %v688
    %1377 = vmatprep.subr.bf16.mxu0 0
    %1378 = vmatpush2.bf16.msra.mxu0 0
    %1379 = vmatprep.subr.bf16.mxu0 0
    %1380 = vmatpush2.bf16.msra.mxu0 0
    %1381 = vmatprep.subr.bf16.mxu0 0
    %1382 = vmatpush2.bf16.msra.mxu0 0
    %1383 = vmatprep.subr.bf16.mxu0 0
    %1384 = vmatpush2.bf16.msra.mxu0 0
    %1385 = vmatprep.subr.bf16.mxu0 0
    %1386 = vmatpush2.bf16.msra.mxu0 0
    %1387 = vmatprep.subr.bf16.mxu0 0
    %1388 = vmatpush2.bf16.msra.mxu0 0
    %1389 = vmatprep.subr.bf16.mxu0 0
    %1390 = vmatpush2.bf16.msra.mxu0 0
    %1391 = vmatprep.subr.bf16.mxu0 0
    %1392 = vmatpush2.bf16.msra.mxu0 0
    %1393 = vmatprep.mubr.bf16.mxu0 0
    %1394 = vmatmul.mubr.bf16.gmra.mxu0 %v1360
    %v1395 = vpop.f32.mrf.mxu0
    %v1396 = vadd.f32 0.0, %v1395
    %v1397 = vpop.f32.mrf.mxu0
    %v1398 = vadd.f32 0.0, %v1397
    %v1399 = vpop.f32.mrf.mxu0
    %v1400 = vpop.f32.mrf.mxu0
    %1401 = vdwg.mxu0
    %1402 = vmatprep.subr.bf16.mxu0 %v719
    %1403 = vmatpush1.bf16.msra.mxu0 %v718
    %1404 = vmatprep.subr.bf16.mxu0 %v715
    %1405 = vmatpush1.bf16.msra.mxu0 %v714
    %1406 = vmatprep.subr.bf16.mxu0 %v711
    %1407 = vmatpush1.bf16.msra.mxu0 %v710
    %1408 = vmatprep.subr.bf16.mxu0 %v707
    %1409 = vmatpush1.bf16.msra.mxu0 %v706
    %1410 = vmatprep.subr.bf16.mxu0 %v703
    %1411 = vmatpush1.bf16.msra.mxu0 %v702
    %1412 = vmatprep.subr.bf16.mxu0 %v699
    %1413 = vmatpush1.bf16.msra.mxu0 %v698
    %1414 = vmatprep.subr.bf16.mxu0 %v695
    %1415 = vmatpush1.bf16.msra.mxu0 %v694
    %1416 = vmatprep.subr.bf16.mxu0 %v691
    %1417 = vmatpush1.bf16.msra.mxu0 %v690
    %1418 = vmatprep.subr.bf16.mxu0 0
    %1419 = vmatpush2.bf16.msra.mxu0 0
    %1420 = vmatprep.subr.bf16.mxu0 0
    %1421 = vmatpush2.bf16.msra.mxu0 0
    %1422 = vmatprep.subr.bf16.mxu0 0
    %1423 = vmatpush2.bf16.msra.mxu0 0
    %1424 = vmatprep.subr.bf16.mxu0 0
    %1425 = vmatpush2.bf16.msra.mxu0 0
    %1426 = vmatprep.subr.bf16.mxu0 0
    %1427 = vmatpush2.bf16.msra.mxu0 0
    %1428 = vmatprep.subr.bf16.mxu0 0
    %1429 = vmatpush2.bf16.msra.mxu0 0
    %1430 = vmatprep.subr.bf16.mxu0 0
    %1431 = vmatpush2.bf16.msra.mxu0 0
    %1432 = vmatprep.subr.bf16.mxu0 0
    %1433 = vmatpush2.bf16.msra.mxu0 0
    %1434 = vmatprep.mubr.bf16.mxu0 0
    %1435 = vmatmul.mubr.bf16.gmra.mxu0 %v1360
    %v1436 = vpop.f32.mrf.mxu0
    %v1437 = vadd.f32 0.0, %v1436
    %v1438 = vpop.f32.mrf.mxu0
    %v1439 = vadd.f32 0.0, %v1438
    %v1440 = vpop.f32.mrf.mxu0
    %v1441 = vpop.f32.mrf.mxu0
    %1442 = vdwg.mxu0
    %v1443 = vadd.f32 %v1356, %v1396
    %v1444 = vadd.f32 %v1357, %v1398
    %v1445 = vadd.f32 %v1358, %v1437
    %v1446 = vadd.f32 %v1359, %v1439
    %v1447 = vadd.f32 %v1443, %v571
    %v1448 = vadd.f32 %v1444, %v575
    %v1449 = vadd.f32 %v1445, %v579
    %v1450 = vadd.f32 %v1446, %v583
    %v1451 = vxor.u32 %v1447, 2147483648
    %v1452 = vmul.f32 %v1451, 1.442695
    %v1453 = vpow.pop %v1452
    %v1454 = vadd.f32 %v1453, 1.0
    %v1455 = vrcp.pop %v1454
    %v1456 = vmul.f32 1.0, %v1455
    %v1457 = vxor.u32 %v1448, 2147483648
    %v1458 = vmul.f32 %v1457, 1.442695
    %v1459 = vpow.pop %v1458
    %v1460 = vadd.f32 %v1459, 1.0
    %v1461 = vrcp.pop %v1460
    %v1462 = vmul.f32 1.0, %v1461
    %v1463 = vtanh.pop %v1449
    %v1464 = vxor.u32 %v1450, 2147483648
    %v1465 = vmul.f32 %v1464, 1.442695
    %v1466 = vpow.pop %v1465
    %v1467 = vadd.f32 %v1466, 1.0
    %v1468 = vrcp.pop %v1467
    %v1469 = vmul.f32 1.0, %v1468
    %v1470 = vmul.f32 %v1462, %v1350
    %v1471 = vmul.f32 %v1456, %v1463
    %v1472 = vadd.f32 %v1470, %v1471
    %v1473 = vtanh.pop %v1472
    %v1474 = vmul.f32 %v1469, %v1473
    %s1475 = scalar_lea.vmem [#allocation3], 40
    %1476 = vst [vmem:[%s1475] sm:$0xff] %v1474
    %s1477 = scalar_lea.vmem [#allocation2], 192
    %v1478 = vld [vmem:[%s1477] sm:$0xff]
    %v1479 = vld [vmem:[%s1477 + $0x8] sm:$0xff]
    %v1480 = vld [vmem:[%s1477 + $0x10] sm:$0xff]
    %v1481 = vld [vmem:[%s1477 + $0x18] sm:$0xff]
    %v1482 = vpack.c.bf16 %v1474, %v1474
    %1483 = vmatprep.subr.bf16.mxu0 %v717
    %1484 = vmatpush1.bf16.msra.mxu0 %v716
    %1485 = vmatprep.subr.bf16.mxu0 %v713
    %1486 = vmatpush1.bf16.msra.mxu0 %v712
    %1487 = vmatprep.subr.bf16.mxu0 %v709
    %1488 = vmatpush1.bf16.msra.mxu0 %v708
    %1489 = vmatprep.subr.bf16.mxu0 %v705
    %1490 = vmatpush1.bf16.msra.mxu0 %v704
    %1491 = vmatprep.subr.bf16.mxu0 %v701
    %1492 = vmatpush1.bf16.msra.mxu0 %v700
    %1493 = vmatprep.subr.bf16.mxu0 %v697
    %1494 = vmatpush1.bf16.msra.mxu0 %v696
    %1495 = vmatprep.subr.bf16.mxu0 %v693
    %1496 = vmatpush1.bf16.msra.mxu0 %v692
    %1497 = vmatprep.subr.bf16.mxu0 %v689
    %1498 = vmatpush1.bf16.msra.mxu0 %v688
    %1499 = vmatprep.subr.bf16.mxu0 0
    %1500 = vmatpush2.bf16.msra.mxu0 0
    %1501 = vmatprep.subr.bf16.mxu0 0
    %1502 = vmatpush2.bf16.msra.mxu0 0
    %1503 = vmatprep.subr.bf16.mxu0 0
    %1504 = vmatpush2.bf16.msra.mxu0 0
    %1505 = vmatprep.subr.bf16.mxu0 0
    %1506 = vmatpush2.bf16.msra.mxu0 0
    %1507 = vmatprep.subr.bf16.mxu0 0
    %1508 = vmatpush2.bf16.msra.mxu0 0
    %1509 = vmatprep.subr.bf16.mxu0 0
    %1510 = vmatpush2.bf16.msra.mxu0 0
    %1511 = vmatprep.subr.bf16.mxu0 0
    %1512 = vmatpush2.bf16.msra.mxu0 0
    %1513 = vmatprep.subr.bf16.mxu0 0
    %1514 = vmatpush2.bf16.msra.mxu0 0
    %1515 = vmatprep.mubr.bf16.mxu0 0
    %1516 = vmatmul.mubr.bf16.gmra.mxu0 %v1482
    %v1517 = vpop.f32.mrf.mxu0
    %v1518 = vadd.f32 0.0, %v1517
    %v1519 = vpop.f32.mrf.mxu0
    %v1520 = vadd.f32 0.0, %v1519
    %v1521 = vpop.f32.mrf.mxu0
    %v1522 = vpop.f32.mrf.mxu0
    %1523 = vdwg.mxu0
    %1524 = vmatprep.subr.bf16.mxu0 %v719
    %1525 = vmatpush1.bf16.msra.mxu0 %v718
    %1526 = vmatprep.subr.bf16.mxu0 %v715
    %1527 = vmatpush1.bf16.msra.mxu0 %v714
    %1528 = vmatprep.subr.bf16.mxu0 %v711
    %1529 = vmatpush1.bf16.msra.mxu0 %v710
    %1530 = vmatprep.subr.bf16.mxu0 %v707
    %1531 = vmatpush1.bf16.msra.mxu0 %v706
    %1532 = vmatprep.subr.bf16.mxu0 %v703
    %1533 = vmatpush1.bf16.msra.mxu0 %v702
    %1534 = vmatprep.subr.bf16.mxu0 %v699
    %1535 = vmatpush1.bf16.msra.mxu0 %v698
    %1536 = vmatprep.subr.bf16.mxu0 %v695
    %1537 = vmatpush1.bf16.msra.mxu0 %v694
    %1538 = vmatprep.subr.bf16.mxu0 %v691
    %1539 = vmatpush1.bf16.msra.mxu0 %v690
    %1540 = vmatprep.subr.bf16.mxu0 0
    %1541 = vmatpush2.bf16.msra.mxu0 0
    %1542 = vmatprep.subr.bf16.mxu0 0
    %1543 = vmatpush2.bf16.msra.mxu0 0
    %1544 = vmatprep.subr.bf16.mxu0 0
    %1545 = vmatpush2.bf16.msra.mxu0 0
    %1546 = vmatprep.subr.bf16.mxu0 0
    %1547 = vmatpush2.bf16.msra.mxu0 0
    %1548 = vmatprep.subr.bf16.mxu0 0
    %1549 = vmatpush2.bf16.msra.mxu0 0
    %1550 = vmatprep.subr.bf16.mxu0 0
    %1551 = vmatpush2.bf16.msra.mxu0 0
    %1552 = vmatprep.subr.bf16.mxu0 0
    %1553 = vmatpush2.bf16.msra.mxu0 0
    %1554 = vmatprep.subr.bf16.mxu0 0
    %1555 = vmatpush2.bf16.msra.mxu0 0
    %1556 = vmatprep.mubr.bf16.mxu0 0
    %1557 = vmatmul.mubr.bf16.gmra.mxu0 %v1482
    %v1558 = vpop.f32.mrf.mxu0
    %v1559 = vadd.f32 0.0, %v1558
    %v1560 = vpop.f32.mrf.mxu0
    %v1561 = vadd.f32 0.0, %v1560
    %v1562 = vpop.f32.mrf.mxu0
    %v1563 = vpop.f32.mrf.mxu0
    %1564 = vdwg.mxu0
    %v1565 = vadd.f32 %v1478, %v1518
    %v1566 = vadd.f32 %v1479, %v1520
    %v1567 = vadd.f32 %v1480, %v1559
    %v1568 = vadd.f32 %v1481, %v1561
    %v1569 = vadd.f32 %v1565, %v571
    %v1570 = vadd.f32 %v1566, %v575
    %v1571 = vadd.f32 %v1567, %v579
    %v1572 = vadd.f32 %v1568, %v583
    %v1573 = vxor.u32 %v1569, 2147483648
    %v1574 = vmul.f32 %v1573, 1.442695
    %v1575 = vpow.pop %v1574
    %v1576 = vadd.f32 %v1575, 1.0
    %v1577 = vrcp.pop %v1576
    %v1578 = vmul.f32 1.0, %v1577
    %v1579 = vxor.u32 %v1570, 2147483648
    %v1580 = vmul.f32 %v1579, 1.442695
    %v1581 = vpow.pop %v1580
    %v1582 = vadd.f32 %v1581, 1.0
    %v1583 = vrcp.pop %v1582
    %v1584 = vmul.f32 1.0, %v1583
    %v1585 = vtanh.pop %v1571
    %v1586 = vxor.u32 %v1572, 2147483648
    %v1587 = vmul.f32 %v1586, 1.442695
    %v1588 = vpow.pop %v1587
    %v1589 = vadd.f32 %v1588, 1.0
    %v1590 = vrcp.pop %v1589
    %v1591 = vmul.f32 1.0, %v1590
    %v1592 = vmul.f32 %v1584, %v1472
    %v1593 = vmul.f32 %v1578, %v1585
    %v1594 = vadd.f32 %v1592, %v1593
    %v1595 = vtanh.pop %v1594
    %v1596 = vmul.f32 %v1591, %v1595
    %s1597 = scalar_lea.vmem [#allocation3], 48
    %1598 = vst [vmem:[%s1597] sm:$0xff] %v1596
    %s1599 = scalar_lea.vmem [#allocation2], 224
    %v1600 = vld [vmem:[%s1599] sm:$0xff]
    %v1601 = vld [vmem:[%s1599 + $0x8] sm:$0xff]
    %v1602 = vld [vmem:[%s1599 + $0x10] sm:$0xff]
    %v1603 = vld [vmem:[%s1599 + $0x18] sm:$0xff]
    %v1604 = vpack.c.bf16 %v1596, %v1596
    %1605 = vmatprep.subr.bf16.mxu0 %v717
    %1606 = vmatpush1.bf16.msra.mxu0 %v716
    %1607 = vmatprep.subr.bf16.mxu0 %v713
    %1608 = vmatpush1.bf16.msra.mxu0 %v712
    %1609 = vmatprep.subr.bf16.mxu0 %v709
    %1610 = vmatpush1.bf16.msra.mxu0 %v708
    %1611 = vmatprep.subr.bf16.mxu0 %v705
    %1612 = vmatpush1.bf16.msra.mxu0 %v704
    %1613 = vmatprep.subr.bf16.mxu0 %v701
    %1614 = vmatpush1.bf16.msra.mxu0 %v700
    %1615 = vmatprep.subr.bf16.mxu0 %v697
    %1616 = vmatpush1.bf16.msra.mxu0 %v696
    %1617 = vmatprep.subr.bf16.mxu0 %v693
    %1618 = vmatpush1.bf16.msra.mxu0 %v692
    %1619 = vmatprep.subr.bf16.mxu0 %v689
    %1620 = vmatpush1.bf16.msra.mxu0 %v688
    %1621 = vmatprep.subr.bf16.mxu0 0
    %1622 = vmatpush2.bf16.msra.mxu0 0
    %1623 = vmatprep.subr.bf16.mxu0 0
    %1624 = vmatpush2.bf16.msra.mxu0 0
    %1625 = vmatprep.subr.bf16.mxu0 0
    %1626 = vmatpush2.bf16.msra.mxu0 0
    %1627 = vmatprep.subr.bf16.mxu0 0
    %1628 = vmatpush2.bf16.msra.mxu0 0
    %1629 = vmatprep.subr.bf16.mxu0 0
    %1630 = vmatpush2.bf16.msra.mxu0 0
    %1631 = vmatprep.subr.bf16.mxu0 0
    %1632 = vmatpush2.bf16.msra.mxu0 0
    %1633 = vmatprep.subr.bf16.mxu0 0
    %1634 = vmatpush2.bf16.msra.mxu0 0
    %1635 = vmatprep.subr.bf16.mxu0 0
    %1636 = vmatpush2.bf16.msra.mxu0 0
    %1637 = vmatprep.mubr.bf16.mxu0 0
    %1638 = vmatmul.mubr.bf16.gmra.mxu0 %v1604
    %v1639 = vpop.f32.mrf.mxu0
    %v1640 = vadd.f32 0.0, %v1639
    %v1641 = vpop.f32.mrf.mxu0
    %v1642 = vadd.f32 0.0, %v1641
    %v1643 = vpop.f32.mrf.mxu0
    %v1644 = vpop.f32.mrf.mxu0
    %1645 = vdwg.mxu0
    %1646 = vmatprep.subr.bf16.mxu0 %v719
    %1647 = vmatpush1.bf16.msra.mxu0 %v718
    %1648 = vmatprep.subr.bf16.mxu0 %v715
    %1649 = vmatpush1.bf16.msra.mxu0 %v714
    %1650 = vmatprep.subr.bf16.mxu0 %v711
    %1651 = vmatpush1.bf16.msra.mxu0 %v710
    %1652 = vmatprep.subr.bf16.mxu0 %v707
    %1653 = vmatpush1.bf16.msra.mxu0 %v706
    %1654 = vmatprep.subr.bf16.mxu0 %v703
    %1655 = vmatpush1.bf16.msra.mxu0 %v702
    %1656 = vmatprep.subr.bf16.mxu0 %v699
    %1657 = vmatpush1.bf16.msra.mxu0 %v698
    %1658 = vmatprep.subr.bf16.mxu0 %v695
    %1659 = vmatpush1.bf16.msra.mxu0 %v694
    %1660 = vmatprep.subr.bf16.mxu0 %v691
    %1661 = vmatpush1.bf16.msra.mxu0 %v690
    %1662 = vmatprep.subr.bf16.mxu0 0
    %1663 = vmatpush2.bf16.msra.mxu0 0
    %1664 = vmatprep.subr.bf16.mxu0 0
    %1665 = vmatpush2.bf16.msra.mxu0 0
    %1666 = vmatprep.subr.bf16.mxu0 0
    %1667 = vmatpush2.bf16.msra.mxu0 0
    %1668 = vmatprep.subr.bf16.mxu0 0
    %1669 = vmatpush2.bf16.msra.mxu0 0
    %1670 = vmatprep.subr.bf16.mxu0 0
    %1671 = vmatpush2.bf16.msra.mxu0 0
    %1672 = vmatprep.subr.bf16.mxu0 0
    %1673 = vmatpush2.bf16.msra.mxu0 0
    %1674 = vmatprep.subr.bf16.mxu0 0
    %1675 = vmatpush2.bf16.msra.mxu0 0
    %1676 = vmatprep.subr.bf16.mxu0 0
    %1677 = vmatpush2.bf16.msra.mxu0 0
    %1678 = vmatprep.mubr.bf16.mxu0 0
    %1679 = vmatmul.mubr.bf16.gmra.mxu0 %v1604
    %v1680 = vpop.f32.mrf.mxu0
    %v1681 = vadd.f32 0.0, %v1680
    %v1682 = vpop.f32.mrf.mxu0
    %v1683 = vadd.f32 0.0, %v1682
    %v1684 = vpop.f32.mrf.mxu0
    %v1685 = vpop.f32.mrf.mxu0
    %1686 = vdwg.mxu0
    %v1687 = vadd.f32 %v1600, %v1640
    %v1688 = vadd.f32 %v1601, %v1642
    %v1689 = vadd.f32 %v1602, %v1681
    %v1690 = vadd.f32 %v1603, %v1683
    %v1691 = vadd.f32 %v1687, %v571
    %v1692 = vadd.f32 %v1688, %v575
    %v1693 = vadd.f32 %v1689, %v579
    %v1694 = vadd.f32 %v1690, %v583
    %v1695 = vxor.u32 %v1691, 2147483648
    %v1696 = vmul.f32 %v1695, 1.442695
    %v1697 = vpow.pop %v1696
    %v1698 = vadd.f32 %v1697, 1.0
    %v1699 = vrcp.pop %v1698
    %v1700 = vmul.f32 1.0, %v1699
    %v1701 = vxor.u32 %v1692, 2147483648
    %v1702 = vmul.f32 %v1701, 1.442695
    %v1703 = vpow.pop %v1702
    %v1704 = vadd.f32 %v1703, 1.0
    %v1705 = vrcp.pop %v1704
    %v1706 = vmul.f32 1.0, %v1705
    %v1707 = vtanh.pop %v1693
    %v1708 = vxor.u32 %v1694, 2147483648
    %v1709 = vmul.f32 %v1708, 1.442695
    %v1710 = vpow.pop %v1709
    %v1711 = vadd.f32 %v1710, 1.0
    %v1712 = vrcp.pop %v1711
    %v1713 = vmul.f32 1.0, %v1712
    %v1714 = vmul.f32 %v1706, %v1594
    %v1715 = vmul.f32 %v1700, %v1707
    %v1716 = vadd.f32 %v1714, %v1715
    %v1717 = vtanh.pop %v1716
    %v1718 = vmul.f32 %v1713, %v1717
    %s1719 = scalar_lea.vmem [#allocation3], 56
    %1720 = vst [vmem:[%s1719] sm:$0xff] %v1718
    %v1721 = vld [vmem:[#allocation3] sm:$0xff]
    %v1722 = vld [vmem:[#allocation3 + $0x8] sm:$0xff]
    %v1723 = vld [vmem:[#allocation3 + $0x10] sm:$0xff]
    %v1724 = vld [vmem:[#allocation3 + $0x18] sm:$0xff]
    %v1725 = vld [vmem:[#allocation3 + $0x20] sm:$0xff]
    %v1726 = vld [vmem:[#allocation3 + $0x28] sm:$0xff]
    %v1727 = vld [vmem:[#allocation3 + $0x30] sm:$0xff]
    %v1728 = vld [vmem:[#allocation3 + $0x38] sm:$0xff]
    %v1729 = vpack.c.bf16 %v1722, %v1721
    %v1730 = vpack.c.bf16 %v1724, %v1723
    %v1731 = vpack.c.bf16 %v1726, %v1725
    %v1732 = vpack.c.bf16 %v1728, %v1727
    %v1733 = vld [vmem:[#allocation10] sm:$0xff]
    %v1734 = vld [vmem:[#allocation10 + $0x8] sm:$0xff]
    %v1735 = vld [vmem:[#allocation10 + $0x10] sm:$0xff]
    %v1736 = vld [vmem:[#allocation10 + $0x18] sm:$0xff]
    %v1737 = vld [vmem:[#allocation10 + $0x20] sm:$0xff]
    %v1738 = vld [vmem:[#allocation10 + $0x28] sm:$0xff]
    %v1739 = vld [vmem:[#allocation10 + $0x30] sm:$0xff]
    %v1740 = vld [vmem:[#allocation10 + $0x38] sm:$0xff]
    %v1741 = vld [vmem:[#allocation10 + $0x40] sm:$0xff]
    %v1742 = vld [vmem:[#allocation10 + $0x48] sm:$0xff]
    %v1743 = vld [vmem:[#allocation10 + $0x50] sm:$0xff]
    %v1744 = vld [vmem:[#allocation10 + $0x58] sm:$0xff]
    %v1745 = vld [vmem:[#allocation10 + $0x60] sm:$0xff]
    %v1746 = vld [vmem:[#allocation10 + $0x68] sm:$0xff]
    %v1747 = vld [vmem:[#allocation10 + $0x70] sm:$0xff]
    %v1748 = vld [vmem:[#allocation10 + $0x78] sm:$0xff]
    %v1749 = vld [vmem:[#allocation10 + $0x80] sm:$0xff]
    %v1750 = vld [vmem:[#allocation10 + $0x88] sm:$0xff]
    %v1751 = vld [vmem:[#allocation10 + $0x90] sm:$0xff]
    %v1752 = vld [vmem:[#allocation10 + $0x98] sm:$0xff]
    %v1753 = vld [vmem:[#allocation10 + $0xa0] sm:$0xff]
    %v1754 = vld [vmem:[#allocation10 + $0xa8] sm:$0xff]
    %v1755 = vld [vmem:[#allocation10 + $0xb0] sm:$0xff]
    %v1756 = vld [vmem:[#allocation10 + $0xb8] sm:$0xff]
    %v1757 = vld [vmem:[#allocation10 + $0xc0] sm:$0xff]
    %v1758 = vld [vmem:[#allocation10 + $0xc8] sm:$0xff]
    %v1759 = vld [vmem:[#allocation10 + $0xd0] sm:$0xff]
    %v1760 = vld [vmem:[#allocation10 + $0xd8] sm:$0xff]
    %v1761 = vld [vmem:[#allocation10 + $0xe0] sm:$0xff]
    %v1762 = vld [vmem:[#allocation10 + $0xe8] sm:$0xff]
    %v1763 = vld [vmem:[#allocation10 + $0xf0] sm:$0xff]
    %v1764 = vld [vmem:[#allocation10 + $0xf8] sm:$0xff]
    %v1797 = vunpack.c.l.b16 %v1733
    %v1798 = vunpack.c.h.b16 %v1733
    %v1799 = vunpack.c.l.b16 %v1734
    %v1800 = vunpack.c.h.b16 %v1734
    %v1801 = vunpack.c.l.b16 %v1735
    %v1802 = vunpack.c.h.b16 %v1735
    %v1803 = vunpack.c.l.b16 %v1736
    %v1804 = vunpack.c.h.b16 %v1736
    %v1805 = vunpack.c.l.b16 %v1737
    %v1806 = vunpack.c.h.b16 %v1737
    %v1807 = vunpack.c.l.b16 %v1738
    %v1808 = vunpack.c.h.b16 %v1738
    %v1809 = vunpack.c.l.b16 %v1739
    %v1810 = vunpack.c.h.b16 %v1739
    %v1811 = vunpack.c.l.b16 %v1740
    %v1812 = vunpack.c.h.b16 %v1740
    %v1813 = vunpack.c.l.b16 %v1741
    %v1814 = vunpack.c.h.b16 %v1741
    %v1815 = vunpack.c.l.b16 %v1742
    %v1816 = vunpack.c.h.b16 %v1742
    %v1817 = vunpack.c.l.b16 %v1743
    %v1818 = vunpack.c.h.b16 %v1743
    %v1819 = vunpack.c.l.b16 %v1744
    %v1820 = vunpack.c.h.b16 %v1744
    %v1821 = vunpack.c.l.b16 %v1745
    %v1822 = vunpack.c.h.b16 %v1745
    %v1823 = vunpack.c.l.b16 %v1746
    %v1824 = vunpack.c.h.b16 %v1746
    %v1825 = vunpack.c.l.b16 %v1747
    %v1826 = vunpack.c.h.b16 %v1747
    %v1827 = vunpack.c.l.b16 %v1748
    %v1828 = vunpack.c.h.b16 %v1748
    %v1829 = vunpack.c.l.b16 %v1749
    %v1830 = vunpack.c.h.b16 %v1749
    %v1831 = vunpack.c.l.b16 %v1750
    %v1832 = vunpack.c.h.b16 %v1750
    %v1833 = vunpack.c.l.b16 %v1751
    %v1834 = vunpack.c.h.b16 %v1751
    %v1835 = vunpack.c.l.b16 %v1752
    %v1836 = vunpack.c.h.b16 %v1752
    %v1837 = vunpack.c.l.b16 %v1753
    %v1838 = vunpack.c.h.b16 %v1753
    %v1839 = vunpack.c.l.b16 %v1754
    %v1840 = vunpack.c.h.b16 %v1754
    %v1841 = vunpack.c.l.b16 %v1755
    %v1842 = vunpack.c.h.b16 %v1755
    %v1843 = vunpack.c.l.b16 %v1756
    %v1844 = vunpack.c.h.b16 %v1756
    %v1845 = vunpack.c.l.b16 %v1757
    %v1846 = vunpack.c.h.b16 %v1757
    %v1847 = vunpack.c.l.b16 %v1758
    %v1848 = vunpack.c.h.b16 %v1758
    %v1849 = vunpack.c.l.b16 %v1759
    %v1850 = vunpack.c.h.b16 %v1759
    %v1851 = vunpack.c.l.b16 %v1760
    %v1852 = vunpack.c.h.b16 %v1760
    %v1853 = vunpack.c.l.b16 %v1761
    %v1854 = vunpack.c.h.b16 %v1761
    %v1855 = vunpack.c.l.b16 %v1762
    %v1856 = vunpack.c.h.b16 %v1762
    %v1857 = vunpack.c.l.b16 %v1763
    %v1858 = vunpack.c.h.b16 %v1763
    %v1859 = vunpack.c.l.b16 %v1764
    %v1860 = vunpack.c.h.b16 %v1764
    %v1861 = vpack.c.b16 %v1801, %v1797
    %v1862 = vpack.c.b16 %v1802, %v1798
    %v1863 = vpack.c.b16 %v1803, %v1799
    %v1864 = vpack.c.b16 %v1804, %v1800
    %v1865 = vpack.c.b16 %v1809, %v1805
    %v1866 = vpack.c.b16 %v1810, %v1806
    %v1867 = vpack.c.b16 %v1811, %v1807
    %v1868 = vpack.c.b16 %v1812, %v1808
    %v1869 = vpack.c.b16 %v1817, %v1813
    %v1870 = vpack.c.b16 %v1818, %v1814
    %v1871 = vpack.c.b16 %v1819, %v1815
    %v1872 = vpack.c.b16 %v1820, %v1816
    %v1873 = vpack.c.b16 %v1825, %v1821
    %v1874 = vpack.c.b16 %v1826, %v1822
    %v1875 = vpack.c.b16 %v1827, %v1823
    %v1876 = vpack.c.b16 %v1828, %v1824
    %v1877 = vpack.c.b16 %v1833, %v1829
    %v1878 = vpack.c.b16 %v1834, %v1830
    %v1879 = vpack.c.b16 %v1835, %v1831
    %v1880 = vpack.c.b16 %v1836, %v1832
    %v1881 = vpack.c.b16 %v1841, %v1837
    %v1882 = vpack.c.b16 %v1842, %v1838
    %v1883 = vpack.c.b16 %v1843, %v1839
    %v1884 = vpack.c.b16 %v1844, %v1840
    %v1885 = vpack.c.b16 %v1849, %v1845
    %v1886 = vpack.c.b16 %v1850, %v1846
    %v1887 = vpack.c.b16 %v1851, %v1847
    %v1888 = vpack.c.b16 %v1852, %v1848
    %v1889 = vpack.c.b16 %v1857, %v1853
    %v1890 = vpack.c.b16 %v1858, %v1854
    %v1891 = vpack.c.b16 %v1859, %v1855
    %v1892 = vpack.c.b16 %v1860, %v1856
    %1925 = vmatprep.subr.bf16.mxu0 %v1890
    %1926 = vmatpush1.bf16.msra.mxu0 %v1889
    %1927 = vmatprep.subr.bf16.mxu0 %v1886
    %1928 = vmatpush1.bf16.msra.mxu0 %v1885
    %1929 = vmatprep.subr.bf16.mxu0 %v1882
    %1930 = vmatpush1.bf16.msra.mxu0 %v1881
    %1931 = vmatprep.subr.bf16.mxu0 %v1878
    %1932 = vmatpush1.bf16.msra.mxu0 %v1877
    %1933 = vmatprep.subr.bf16.mxu0 %v1874
    %1934 = vmatpush1.bf16.msra.mxu0 %v1873
    %1935 = vmatprep.subr.bf16.mxu0 %v1870
    %1936 = vmatpush1.bf16.msra.mxu0 %v1869
    %1937 = vmatprep.subr.bf16.mxu0 %v1866
    %1938 = vmatpush1.bf16.msra.mxu0 %v1865
    %1939 = vmatprep.subr.bf16.mxu0 %v1862
    %1940 = vmatpush1.bf16.msra.mxu0 %v1861
    %1941 = vmatprep.subr.bf16.mxu0 0
    %1942 = vmatpush2.bf16.msra.mxu0 0
    %1943 = vmatprep.subr.bf16.mxu0 0
    %1944 = vmatpush2.bf16.msra.mxu0 0
    %1945 = vmatprep.subr.bf16.mxu0 0
    %1946 = vmatpush2.bf16.msra.mxu0 0
    %1947 = vmatprep.subr.bf16.mxu0 0
    %1948 = vmatpush2.bf16.msra.mxu0 0
    %1949 = vmatprep.subr.bf16.mxu0 0
    %1950 = vmatpush2.bf16.msra.mxu0 0
    %1951 = vmatprep.subr.bf16.mxu0 0
    %1952 = vmatpush2.bf16.msra.mxu0 0
    %1953 = vmatprep.subr.bf16.mxu0 0
    %1954 = vmatpush2.bf16.msra.mxu0 0
    %1955 = vmatprep.subr.bf16.mxu0 0
    %1956 = vmatpush2.bf16.msra.mxu0 0
    %1957 = vmatprep.mubr.bf16.mxu0 0
    %1958 = vmatmul.mubr.bf16.gmra.mxu0 %v1729
    %v1959 = vpop.f32.mrf.mxu0
    %v1960 = vadd.f32 0.0, %v1959
    %v1961 = vpop.f32.mrf.mxu0
    %v1962 = vadd.f32 0.0, %v1961
    %v1963 = vpop.f32.mrf.mxu0
    %v1964 = vadd.f32 0.0, %v1963
    %v1965 = vpop.f32.mrf.mxu0
    %v1966 = vadd.f32 0.0, %v1965
    %1967 = vmatprep.mubr.bf16.mxu0 0
    %1968 = vmatmul.mubr.bf16.gmra.mxu0 %v1730
    %v1969 = vpop.f32.mrf.mxu0
    %v1970 = vadd.f32 0.0, %v1969
    %v1971 = vpop.f32.mrf.mxu0
    %v1972 = vadd.f32 0.0, %v1971
    %v1973 = vpop.f32.mrf.mxu0
    %v1974 = vadd.f32 0.0, %v1973
    %v1975 = vpop.f32.mrf.mxu0
    %v1976 = vadd.f32 0.0, %v1975
    %1977 = vmatprep.mubr.bf16.mxu0 0
    %1978 = vmatmul.mubr.bf16.gmra.mxu0 %v1731
    %v1979 = vpop.f32.mrf.mxu0
    %v1980 = vadd.f32 0.0, %v1979
    %v1981 = vpop.f32.mrf.mxu0
    %v1982 = vadd.f32 0.0, %v1981
    %v1983 = vpop.f32.mrf.mxu0
    %v1984 = vadd.f32 0.0, %v1983
    %v1985 = vpop.f32.mrf.mxu0
    %v1986 = vadd.f32 0.0, %v1985
    %1987 = vmatprep.mubr.bf16.mxu0 0
    %1988 = vmatmul.mubr.bf16.gmra.mxu0 %v1732
    %v1989 = vpop.f32.mrf.mxu0
    %v1990 = vadd.f32 0.0, %v1989
    %v1991 = vpop.f32.mrf.mxu0
    %v1992 = vadd.f32 0.0, %v1991
    %v1993 = vpop.f32.mrf.mxu0
    %v1994 = vadd.f32 0.0, %v1993
    %v1995 = vpop.f32.mrf.mxu0
    %v1996 = vadd.f32 0.0, %v1995
    %1997 = vdwg.mxu0
    %1998 = vmatprep.subr.bf16.mxu0 %v1892
    %1999 = vmatpush1.bf16.msra.mxu0 %v1891
    %2000 = vmatprep.subr.bf16.mxu0 %v1888
    %2001 = vmatpush1.bf16.msra.mxu0 %v1887
    %2002 = vmatprep.subr.bf16.mxu0 %v1884
    %2003 = vmatpush1.bf16.msra.mxu0 %v1883
    %2004 = vmatprep.subr.bf16.mxu0 %v1880
    %2005 = vmatpush1.bf16.msra.mxu0 %v1879
    %2006 = vmatprep.subr.bf16.mxu0 %v1876
    %2007 = vmatpush1.bf16.msra.mxu0 %v1875
    %2008 = vmatprep.subr.bf16.mxu0 %v1872
    %2009 = vmatpush1.bf16.msra.mxu0 %v1871
    %2010 = vmatprep.subr.bf16.mxu0 %v1868
    %2011 = vmatpush1.bf16.msra.mxu0 %v1867
    %2012 = vmatprep.subr.bf16.mxu0 %v1864
    %2013 = vmatpush1.bf16.msra.mxu0 %v1863
    %2014 = vmatprep.subr.bf16.mxu0 0
    %2015 = vmatpush2.bf16.msra.mxu0 0
    %2016 = vmatprep.subr.bf16.mxu0 0
    %2017 = vmatpush2.bf16.msra.mxu0 0
    %2018 = vmatprep.subr.bf16.mxu0 0
    %2019 = vmatpush2.bf16.msra.mxu0 0
    %2020 = vmatprep.subr.bf16.mxu0 0
    %2021 = vmatpush2.bf16.msra.mxu0 0
    %2022 = vmatprep.subr.bf16.mxu0 0
    %2023 = vmatpush2.bf16.msra.mxu0 0
    %2024 = vmatprep.subr.bf16.mxu0 0
    %2025 = vmatpush2.bf16.msra.mxu0 0
    %2026 = vmatprep.subr.bf16.mxu0 0
    %2027 = vmatpush2.bf16.msra.mxu0 0
    %2028 = vmatprep.subr.bf16.mxu0 0
    %2029 = vmatpush2.bf16.msra.mxu0 0
    %2030 = vmatprep.mubr.bf16.mxu0 0
    %2031 = vmatmul.mubr.bf16.gmra.mxu0 %v1729
    %v2032 = vpop.f32.mrf.mxu0
    %v2033 = vadd.f32 0.0, %v2032
    %v2034 = vpop.f32.mrf.mxu0
    %v2035 = vadd.f32 0.0, %v2034
    %v2036 = vpop.f32.mrf.mxu0
    %v2037 = vadd.f32 0.0, %v2036
    %v2038 = vpop.f32.mrf.mxu0
    %v2039 = vadd.f32 0.0, %v2038
    %2040 = vmatprep.mubr.bf16.mxu0 0
    %2041 = vmatmul.mubr.bf16.gmra.mxu0 %v1730
    %v2042 = vpop.f32.mrf.mxu0
    %v2043 = vadd.f32 0.0, %v2042
    %v2044 = vpop.f32.mrf.mxu0
    %v2045 = vadd.f32 0.0, %v2044
    %v2046 = vpop.f32.mrf.mxu0
    %v2047 = vadd.f32 0.0, %v2046
    %v2048 = vpop.f32.mrf.mxu0
    %v2049 = vadd.f32 0.0, %v2048
    %2050 = vmatprep.mubr.bf16.mxu0 0
    %2051 = vmatmul.mubr.bf16.gmra.mxu0 %v1731
    %v2052 = vpop.f32.mrf.mxu0
    %v2053 = vadd.f32 0.0, %v2052
    %v2054 = vpop.f32.mrf.mxu0
    %v2055 = vadd.f32 0.0, %v2054
    %v2056 = vpop.f32.mrf.mxu0
    %v2057 = vadd.f32 0.0, %v2056
    %v2058 = vpop.f32.mrf.mxu0
    %v2059 = vadd.f32 0.0, %v2058
    %2060 = vmatprep.mubr.bf16.mxu0 0
    %2061 = vmatmul.mubr.bf16.gmra.mxu0 %v1732
    %v2062 = vpop.f32.mrf.mxu0
    %v2063 = vadd.f32 0.0, %v2062
    %v2064 = vpop.f32.mrf.mxu0
    %v2065 = vadd.f32 0.0, %v2064
    %v2066 = vpop.f32.mrf.mxu0
    %v2067 = vadd.f32 0.0, %v2066
    %v2068 = vpop.f32.mrf.mxu0
    %v2069 = vadd.f32 0.0, %v2068
    %2070 = vdwg.mxu0
    %2071 = vst [vmem:[#allocation2] sm:$0xff] %v1960
    %2072 = vst [vmem:[#allocation2 + $0x8] sm:$0xff] %v1962
    %2073 = vst [vmem:[#allocation2 + $0x10] sm:$0xff] %v2033
    %2074 = vst [vmem:[#allocation2 + $0x18] sm:$0xff] %v2035
    %2075 = vst [vmem:[#allocation2 + $0x20] sm:$0xff] %v1964
    %2076 = vst [vmem:[#allocation2 + $0x28] sm:$0xff] %v1966
    %2077 = vst [vmem:[#allocation2 + $0x30] sm:$0xff] %v2037
    %2078 = vst [vmem:[#allocation2 + $0x38] sm:$0xff] %v2039
    %2079 = vst [vmem:[#allocation2 + $0x40] sm:$0xff] %v1970
    %2080 = vst [vmem:[#allocation2 + $0x48] sm:$0xff] %v1972
    %2081 = vst [vmem:[#allocation2 + $0x50] sm:$0xff] %v2043
    %2082 = vst [vmem:[#allocation2 + $0x58] sm:$0xff] %v2045
    %2083 = vst [vmem:[#allocation2 + $0x60] sm:$0xff] %v1974
    %2084 = vst [vmem:[#allocation2 + $0x68] sm:$0xff] %v1976
    %2085 = vst [vmem:[#allocation2 + $0x70] sm:$0xff] %v2047
    %2086 = vst [vmem:[#allocation2 + $0x78] sm:$0xff] %v2049
    %2087 = vst [vmem:[#allocation2 + $0x80] sm:$0xff] %v1980
    %2088 = vst [vmem:[#allocation2 + $0x88] sm:$0xff] %v1982
    %2089 = vst [vmem:[#allocation2 + $0x90] sm:$0xff] %v2053
    %2090 = vst [vmem:[#allocation2 + $0x98] sm:$0xff] %v2055
    %2091 = vst [vmem:[#allocation2 + $0xa0] sm:$0xff] %v1984
    %2092 = vst [vmem:[#allocation2 + $0xa8] sm:$0xff] %v1986
    %2093 = vst [vmem:[#allocation2 + $0xb0] sm:$0xff] %v2057
    %2094 = vst [vmem:[#allocation2 + $0xb8] sm:$0xff] %v2059
    %2095 = vst [vmem:[#allocation2 + $0xc0] sm:$0xff] %v1990
    %2096 = vst [vmem:[#allocation2 + $0xc8] sm:$0xff] %v1992
    %2097 = vst [vmem:[#allocation2 + $0xd0] sm:$0xff] %v2063
    %2098 = vst [vmem:[#allocation2 + $0xd8] sm:$0xff] %v2065
    %2099 = vst [vmem:[#allocation2 + $0xe0] sm:$0xff] %v1994
    %2100 = vst [vmem:[#allocation2 + $0xe8] sm:$0xff] %v1996
    %2101 = vst [vmem:[#allocation2 + $0xf0] sm:$0xff] %v2067
    %2102 = vst [vmem:[#allocation2 + $0xf8] sm:$0xff] %v2069
    %v2103 = vld [vmem:[#allocation12] sm:$0xff]
    %v2104 = vld [vmem:[#allocation12 + $0x8] sm:$0xff]
    %v2105 = vld [vmem:[#allocation12 + $0x10] sm:$0xff]
    %v2106 = vld [vmem:[#allocation12 + $0x18] sm:$0xff]
    %v2107 = vld [vmem:[#allocation12 + $0x20] sm:$0xff]
    %v2108 = vld [vmem:[#allocation12 + $0x28] sm:$0xff]
    %v2109 = vld [vmem:[#allocation12 + $0x30] sm:$0xff]
    %v2110 = vld [vmem:[#allocation12 + $0x38] sm:$0xff]
    %v2111 = vld [vmem:[#allocation12 + $0x40] sm:$0xff]
    %v2112 = vld [vmem:[#allocation12 + $0x48] sm:$0xff]
    %v2113 = vld [vmem:[#allocation12 + $0x50] sm:$0xff]
    %v2114 = vld [vmem:[#allocation12 + $0x58] sm:$0xff]
    %v2115 = vld [vmem:[#allocation12 + $0x60] sm:$0xff]
    %v2116 = vld [vmem:[#allocation12 + $0x68] sm:$0xff]
    %v2117 = vld [vmem:[#allocation12 + $0x70] sm:$0xff]
    %v2118 = vld [vmem:[#allocation12 + $0x78] sm:$0xff]
    %v2119 = vld [vmem:[#allocation12 + $0x80] sm:$0xff]
    %v2120 = vld [vmem:[#allocation12 + $0x88] sm:$0xff]
    %v2121 = vld [vmem:[#allocation12 + $0x90] sm:$0xff]
    %v2122 = vld [vmem:[#allocation12 + $0x98] sm:$0xff]
    %v2123 = vld [vmem:[#allocation12 + $0xa0] sm:$0xff]
    %v2124 = vld [vmem:[#allocation12 + $0xa8] sm:$0xff]
    %v2125 = vld [vmem:[#allocation12 + $0xb0] sm:$0xff]
    %v2126 = vld [vmem:[#allocation12 + $0xb8] sm:$0xff]
    %v2127 = vld [vmem:[#allocation12 + $0xc0] sm:$0xff]
    %v2128 = vld [vmem:[#allocation12 + $0xc8] sm:$0xff]
    %v2129 = vld [vmem:[#allocation12 + $0xd0] sm:$0xff]
    %v2130 = vld [vmem:[#allocation12 + $0xd8] sm:$0xff]
    %v2131 = vld [vmem:[#allocation12 + $0xe0] sm:$0xff]
    %v2132 = vld [vmem:[#allocation12 + $0xe8] sm:$0xff]
    %v2133 = vld [vmem:[#allocation12 + $0xf0] sm:$0xff]
    %v2134 = vld [vmem:[#allocation12 + $0xf8] sm:$0xff]
    %v2135 = vld [vmem:[%s6] sm:$0xf]
    %v2137 = vlaneseq
    %v2138 = vshrl.u32 %v2137, 7
    %v2139 = vsub.s32 0, %v2138
    %v2140 = vrot.slane %v2135, %v2139
    %v2141 = vlaneseq
    %v2142 = vshrl.u32 %v2141, 7
    %v2143 = vsub.s32 1, %v2142
    %v2144 = vrot.slane %v2135, %v2143
    %v2145 = vlaneseq
    %v2146 = vshrl.u32 %v2145, 7
    %v2147 = vsub.s32 2, %v2146
    %v2148 = vrot.slane %v2135, %v2147
    %v2149 = vlaneseq
    %v2150 = vshrl.u32 %v2149, 7
    %v2151 = vsub.s32 3, %v2150
    %v2152 = vrot.slane %v2135, %v2151
    %v2157 = vld [vmem:[#allocation2] sm:$0xff]
    %v2158 = vld [vmem:[#allocation2 + $0x8] sm:$0xff]
    %v2159 = vld [vmem:[#allocation2 + $0x10] sm:$0xff]
    %v2160 = vld [vmem:[#allocation2 + $0x18] sm:$0xff]
    %v2193 = vunpack.c.l.b16 %v2103
    %v2194 = vunpack.c.h.b16 %v2103
    %v2195 = vunpack.c.l.b16 %v2104
    %v2196 = vunpack.c.h.b16 %v2104
    %v2197 = vunpack.c.l.b16 %v2105
    %v2198 = vunpack.c.h.b16 %v2105
    %v2199 = vunpack.c.l.b16 %v2106
    %v2200 = vunpack.c.h.b16 %v2106
    %v2201 = vunpack.c.l.b16 %v2107
    %v2202 = vunpack.c.h.b16 %v2107
    %v2203 = vunpack.c.l.b16 %v2108
    %v2204 = vunpack.c.h.b16 %v2108
    %v2205 = vunpack.c.l.b16 %v2109
    %v2206 = vunpack.c.h.b16 %v2109
    %v2207 = vunpack.c.l.b16 %v2110
    %v2208 = vunpack.c.h.b16 %v2110
    %v2209 = vunpack.c.l.b16 %v2111
    %v2210 = vunpack.c.h.b16 %v2111
    %v2211 = vunpack.c.l.b16 %v2112
    %v2212 = vunpack.c.h.b16 %v2112
    %v2213 = vunpack.c.l.b16 %v2113
    %v2214 = vunpack.c.h.b16 %v2113
    %v2215 = vunpack.c.l.b16 %v2114
    %v2216 = vunpack.c.h.b16 %v2114
    %v2217 = vunpack.c.l.b16 %v2115
    %v2218 = vunpack.c.h.b16 %v2115
    %v2219 = vunpack.c.l.b16 %v2116
    %v2220 = vunpack.c.h.b16 %v2116
    %v2221 = vunpack.c.l.b16 %v2117
    %v2222 = vunpack.c.h.b16 %v2117
    %v2223 = vunpack.c.l.b16 %v2118
    %v2224 = vunpack.c.h.b16 %v2118
    %v2225 = vunpack.c.l.b16 %v2119
    %v2226 = vunpack.c.h.b16 %v2119
    %v2227 = vunpack.c.l.b16 %v2120
    %v2228 = vunpack.c.h.b16 %v2120
    %v2229 = vunpack.c.l.b16 %v2121
    %v2230 = vunpack.c.h.b16 %v2121
    %v2231 = vunpack.c.l.b16 %v2122
    %v2232 = vunpack.c.h.b16 %v2122
    %v2233 = vunpack.c.l.b16 %v2123
    %v2234 = vunpack.c.h.b16 %v2123
    %v2235 = vunpack.c.l.b16 %v2124
    %v2236 = vunpack.c.h.b16 %v2124
    %v2237 = vunpack.c.l.b16 %v2125
    %v2238 = vunpack.c.h.b16 %v2125
    %v2239 = vunpack.c.l.b16 %v2126
    %v2240 = vunpack.c.h.b16 %v2126
    %v2241 = vunpack.c.l.b16 %v2127
    %v2242 = vunpack.c.h.b16 %v2127
    %v2243 = vunpack.c.l.b16 %v2128
    %v2244 = vunpack.c.h.b16 %v2128
    %v2245 = vunpack.c.l.b16 %v2129
    %v2246 = vunpack.c.h.b16 %v2129
    %v2247 = vunpack.c.l.b16 %v2130
    %v2248 = vunpack.c.h.b16 %v2130
    %v2249 = vunpack.c.l.b16 %v2131
    %v2250 = vunpack.c.h.b16 %v2131
    %v2251 = vunpack.c.l.b16 %v2132
    %v2252 = vunpack.c.h.b16 %v2132
    %v2253 = vunpack.c.l.b16 %v2133
    %v2254 = vunpack.c.h.b16 %v2133
    %v2255 = vunpack.c.l.b16 %v2134
    %v2256 = vunpack.c.h.b16 %v2134
    %v2257 = vpack.c.b16 %v2197, %v2193
    %v2258 = vpack.c.b16 %v2198, %v2194
    %v2259 = vpack.c.b16 %v2199, %v2195
    %v2260 = vpack.c.b16 %v2200, %v2196
    %v2261 = vpack.c.b16 %v2205, %v2201
    %v2262 = vpack.c.b16 %v2206, %v2202
    %v2263 = vpack.c.b16 %v2207, %v2203
    %v2264 = vpack.c.b16 %v2208, %v2204
    %v2265 = vpack.c.b16 %v2213, %v2209
    %v2266 = vpack.c.b16 %v2214, %v2210
    %v2267 = vpack.c.b16 %v2215, %v2211
    %v2268 = vpack.c.b16 %v2216, %v2212
    %v2269 = vpack.c.b16 %v2221, %v2217
    %v2270 = vpack.c.b16 %v2222, %v2218
    %v2271 = vpack.c.b16 %v2223, %v2219
    %v2272 = vpack.c.b16 %v2224, %v2220
    %v2273 = vpack.c.b16 %v2229, %v2225
    %v2274 = vpack.c.b16 %v2230, %v2226
    %v2275 = vpack.c.b16 %v2231, %v2227
    %v2276 = vpack.c.b16 %v2232, %v2228
    %v2277 = vpack.c.b16 %v2237, %v2233
    %v2278 = vpack.c.b16 %v2238, %v2234
    %v2279 = vpack.c.b16 %v2239, %v2235
    %v2280 = vpack.c.b16 %v2240, %v2236
    %v2281 = vpack.c.b16 %v2245, %v2241
    %v2282 = vpack.c.b16 %v2246, %v2242
    %v2283 = vpack.c.b16 %v2247, %v2243
    %v2284 = vpack.c.b16 %v2248, %v2244
    %v2285 = vpack.c.b16 %v2253, %v2249
    %v2286 = vpack.c.b16 %v2254, %v2250
    %v2287 = vpack.c.b16 %v2255, %v2251
    %v2288 = vpack.c.b16 %v2256, %v2252
    %2321 = vmatprep.subr.bf16.mxu0 %v2286
    %2322 = vmatpush1.bf16.msra.mxu0 %v2285
    %2323 = vmatprep.subr.bf16.mxu0 %v2282
    %2324 = vmatpush1.bf16.msra.mxu0 %v2281
    %2325 = vmatprep.subr.bf16.mxu0 %v2278
    %2326 = vmatpush1.bf16.msra.mxu0 %v2277
    %2327 = vmatprep.subr.bf16.mxu0 %v2274
    %2328 = vmatpush1.bf16.msra.mxu0 %v2273
    %2329 = vmatprep.subr.bf16.mxu0 %v2270
    %2330 = vmatpush1.bf16.msra.mxu0 %v2269
    %2331 = vmatprep.subr.bf16.mxu0 %v2266
    %2332 = vmatpush1.bf16.msra.mxu0 %v2265
    %2333 = vmatprep.subr.bf16.mxu0 %v2262
    %2334 = vmatpush1.bf16.msra.mxu0 %v2261
    %2335 = vmatprep.subr.bf16.mxu0 %v2258
    %2336 = vmatpush1.bf16.msra.mxu0 %v2257
    %2337 = vmatprep.subr.bf16.mxu0 0
    %2338 = vmatpush2.bf16.msra.mxu0 0
    %2339 = vmatprep.subr.bf16.mxu0 0
    %2340 = vmatpush2.bf16.msra.mxu0 0
    %2341 = vmatprep.subr.bf16.mxu0 0
    %2342 = vmatpush2.bf16.msra.mxu0 0
    %2343 = vmatprep.subr.bf16.mxu0 0
    %2344 = vmatpush2.bf16.msra.mxu0 0
    %2345 = vmatprep.subr.bf16.mxu0 0
    %2346 = vmatpush2.bf16.msra.mxu0 0
    %2347 = vmatprep.subr.bf16.mxu0 0
    %2348 = vmatpush2.bf16.msra.mxu0 0
    %2349 = vmatprep.subr.bf16.mxu0 0
    %2350 = vmatpush2.bf16.msra.mxu0 0
    %2351 = vmatprep.subr.bf16.mxu0 0
    %2352 = vmatpush2.bf16.msra.mxu0 0
    %2353 = vmatprep.mubr.bf16.mxu0 0
    %2354 = vmatmul.mubr.bf16.gmra.mxu0 0
    %v2355 = vpop.f32.mrf.mxu0
    %v2356 = vadd.f32 0.0, %v2355
    %v2357 = vpop.f32.mrf.mxu0
    %v2358 = vadd.f32 0.0, %v2357
    %v2359 = vpop.f32.mrf.mxu0
    %v2360 = vpop.f32.mrf.mxu0
    %2361 = vdwg.mxu0
    %2362 = vmatprep.subr.bf16.mxu0 %v2288
    %2363 = vmatpush1.bf16.msra.mxu0 %v2287
    %2364 = vmatprep.subr.bf16.mxu0 %v2284
    %2365 = vmatpush1.bf16.msra.mxu0 %v2283
    %2366 = vmatprep.subr.bf16.mxu0 %v2280
    %2367 = vmatpush1.bf16.msra.mxu0 %v2279
    %2368 = vmatprep.subr.bf16.mxu0 %v2276
    %2369 = vmatpush1.bf16.msra.mxu0 %v2275
    %2370 = vmatprep.subr.bf16.mxu0 %v2272
    %2371 = vmatpush1.bf16.msra.mxu0 %v2271
    %2372 = vmatprep.subr.bf16.mxu0 %v2268
    %2373 = vmatpush1.bf16.msra.mxu0 %v2267
    %2374 = vmatprep.subr.bf16.mxu0 %v2264
    %2375 = vmatpush1.bf16.msra.mxu0 %v2263
    %2376 = vmatprep.subr.bf16.mxu0 %v2260
    %2377 = vmatpush1.bf16.msra.mxu0 %v2259
    %2378 = vmatprep.subr.bf16.mxu0 0
    %2379 = vmatpush2.bf16.msra.mxu0 0
    %2380 = vmatprep.subr.bf16.mxu0 0
    %2381 = vmatpush2.bf16.msra.mxu0 0
    %2382 = vmatprep.subr.bf16.mxu0 0
    %2383 = vmatpush2.bf16.msra.mxu0 0
    %2384 = vmatprep.subr.bf16.mxu0 0
    %2385 = vmatpush2.bf16.msra.mxu0 0
    %2386 = vmatprep.subr.bf16.mxu0 0
    %2387 = vmatpush2.bf16.msra.mxu0 0
    %2388 = vmatprep.subr.bf16.mxu0 0
    %2389 = vmatpush2.bf16.msra.mxu0 0
    %2390 = vmatprep.subr.bf16.mxu0 0
    %2391 = vmatpush2.bf16.msra.mxu0 0
    %2392 = vmatprep.subr.bf16.mxu0 0
    %2393 = vmatpush2.bf16.msra.mxu0 0
    %2394 = vmatprep.mubr.bf16.mxu0 0
    %2395 = vmatmul.mubr.bf16.gmra.mxu0 0
    %v2396 = vpop.f32.mrf.mxu0
    %v2397 = vadd.f32 0.0, %v2396
    %v2398 = vpop.f32.mrf.mxu0
    %v2399 = vadd.f32 0.0, %v2398
    %v2400 = vpop.f32.mrf.mxu0
    %v2401 = vpop.f32.mrf.mxu0
    %2402 = vdwg.mxu0
    %v2403 = vadd.f32 %v2157, %v2356
    %v2404 = vadd.f32 %v2158, %v2358
    %v2405 = vadd.f32 %v2159, %v2397
    %v2406 = vadd.f32 %v2160, %v2399
    %v2407 = vadd.f32 %v2403, %v2140
    %v2408 = vadd.f32 %v2404, %v2144
    %v2409 = vadd.f32 %v2405, %v2148
    %v2410 = vadd.f32 %v2406, %v2152
    %v2411 = vxor.u32 %v2407, 2147483648
    %v2412 = vmul.f32 %v2411, 1.442695
    %v2413 = vpow.pop %v2412
    %v2414 = vadd.f32 %v2413, 1.0
    %v2415 = vrcp.pop %v2414
    %v2416 = vmul.f32 1.0, %v2415
    %v2417 = vxor.u32 %v2408, 2147483648
    %v2418 = vmul.f32 %v2417, 1.442695
    %v2419 = vpow.pop %v2418
    %v2420 = vadd.f32 %v2419, 1.0
    %v2421 = vrcp.pop %v2420
    %v2422 = vmul.f32 1.0, %v2421
    %v2423 = vtanh.pop %v2409
    %v2424 = vxor.u32 %v2410, 2147483648
    %v2425 = vmul.f32 %v2424, 1.442695
    %v2426 = vpow.pop %v2425
    %v2427 = vadd.f32 %v2426, 1.0
    %v2428 = vrcp.pop %v2427
    %v2429 = vmul.f32 1.0, %v2428
    %v2430 = vmul.f32 %v2422, 0.0
    %v2431 = vmul.f32 %v2416, %v2423
    %v2432 = vadd.f32 %v2430, %v2431
    %v2433 = vtanh.pop %v2432
    %v2434 = vmul.f32 %v2429, %v2433
    %2435 = vst [vmem:[#allocation3] sm:$0xff] %v2434
    %v2436 = vld [vmem:[%s867] sm:$0xff]
    %v2437 = vld [vmem:[%s867 + $0x8] sm:$0xff]
    %v2438 = vld [vmem:[%s867 + $0x10] sm:$0xff]
    %v2439 = vld [vmem:[%s867 + $0x18] sm:$0xff]
    %v2440 = vpack.c.bf16 %v2434, %v2434
    %2441 = vmatprep.subr.bf16.mxu0 %v2286
    %2442 = vmatpush1.bf16.msra.mxu0 %v2285
    %2443 = vmatprep.subr.bf16.mxu0 %v2282
    %2444 = vmatpush1.bf16.msra.mxu0 %v2281
    %2445 = vmatprep.subr.bf16.mxu0 %v2278
    %2446 = vmatpush1.bf16.msra.mxu0 %v2277
    %2447 = vmatprep.subr.bf16.mxu0 %v2274
    %2448 = vmatpush1.bf16.msra.mxu0 %v2273
    %2449 = vmatprep.subr.bf16.mxu0 %v2270
    %2450 = vmatpush1.bf16.msra.mxu0 %v2269
    %2451 = vmatprep.subr.bf16.mxu0 %v2266
    %2452 = vmatpush1.bf16.msra.mxu0 %v2265
    %2453 = vmatprep.subr.bf16.mxu0 %v2262
    %2454 = vmatpush1.bf16.msra.mxu0 %v2261
    %2455 = vmatprep.subr.bf16.mxu0 %v2258
    %2456 = vmatpush1.bf16.msra.mxu0 %v2257
    %2457 = vmatprep.subr.bf16.mxu0 0
    %2458 = vmatpush2.bf16.msra.mxu0 0
    %2459 = vmatprep.subr.bf16.mxu0 0
    %2460 = vmatpush2.bf16.msra.mxu0 0
    %2461 = vmatprep.subr.bf16.mxu0 0
    %2462 = vmatpush2.bf16.msra.mxu0 0
    %2463 = vmatprep.subr.bf16.mxu0 0
    %2464 = vmatpush2.bf16.msra.mxu0 0
    %2465 = vmatprep.subr.bf16.mxu0 0
    %2466 = vmatpush2.bf16.msra.mxu0 0
    %2467 = vmatprep.subr.bf16.mxu0 0
    %2468 = vmatpush2.bf16.msra.mxu0 0
    %2469 = vmatprep.subr.bf16.mxu0 0
    %2470 = vmatpush2.bf16.msra.mxu0 0
    %2471 = vmatprep.subr.bf16.mxu0 0
    %2472 = vmatpush2.bf16.msra.mxu0 0
    %2473 = vmatprep.mubr.bf16.mxu0 0
    %2474 = vmatmul.mubr.bf16.gmra.mxu0 %v2440
    %v2475 = vpop.f32.mrf.mxu0
    %v2476 = vadd.f32 0.0, %v2475
    %v2477 = vpop.f32.mrf.mxu0
    %v2478 = vadd.f32 0.0, %v2477
    %v2479 = vpop.f32.mrf.mxu0
    %v2480 = vpop.f32.mrf.mxu0
    %2481 = vdwg.mxu0
    %2482 = vmatprep.subr.bf16.mxu0 %v2288
    %2483 = vmatpush1.bf16.msra.mxu0 %v2287
    %2484 = vmatprep.subr.bf16.mxu0 %v2284
    %2485 = vmatpush1.bf16.msra.mxu0 %v2283
    %2486 = vmatprep.subr.bf16.mxu0 %v2280
    %2487 = vmatpush1.bf16.msra.mxu0 %v2279
    %2488 = vmatprep.subr.bf16.mxu0 %v2276
    %2489 = vmatpush1.bf16.msra.mxu0 %v2275
    %2490 = vmatprep.subr.bf16.mxu0 %v2272
    %2491 = vmatpush1.bf16.msra.mxu0 %v2271
    %2492 = vmatprep.subr.bf16.mxu0 %v2268
    %2493 = vmatpush1.bf16.msra.mxu0 %v2267
    %2494 = vmatprep.subr.bf16.mxu0 %v2264
    %2495 = vmatpush1.bf16.msra.mxu0 %v2263
    %2496 = vmatprep.subr.bf16.mxu0 %v2260
    %2497 = vmatpush1.bf16.msra.mxu0 %v2259
    %2498 = vmatprep.subr.bf16.mxu0 0
    %2499 = vmatpush2.bf16.msra.mxu0 0
    %2500 = vmatprep.subr.bf16.mxu0 0
    %2501 = vmatpush2.bf16.msra.mxu0 0
    %2502 = vmatprep.subr.bf16.mxu0 0
    %2503 = vmatpush2.bf16.msra.mxu0 0
    %2504 = vmatprep.subr.bf16.mxu0 0
    %2505 = vmatpush2.bf16.msra.mxu0 0
    %2506 = vmatprep.subr.bf16.mxu0 0
    %2507 = vmatpush2.bf16.msra.mxu0 0
    %2508 = vmatprep.subr.bf16.mxu0 0
    %2509 = vmatpush2.bf16.msra.mxu0 0
    %2510 = vmatprep.subr.bf16.mxu0 0
    %2511 = vmatpush2.bf16.msra.mxu0 0
    %2512 = vmatprep.subr.bf16.mxu0 0
    %2513 = vmatpush2.bf16.msra.mxu0 0
    %2514 = vmatprep.mubr.bf16.mxu0 0
    %2515 = vmatmul.mubr.bf16.gmra.mxu0 %v2440
    %v2516 = vpop.f32.mrf.mxu0
    %v2517 = vadd.f32 0.0, %v2516
    %v2518 = vpop.f32.mrf.mxu0
    %v2519 = vadd.f32 0.0, %v2518
    %v2520 = vpop.f32.mrf.mxu0
    %v2521 = vpop.f32.mrf.mxu0
    %2522 = vdwg.mxu0
    %v2523 = vadd.f32 %v2436, %v2476
    %v2524 = vadd.f32 %v2437, %v2478
    %v2525 = vadd.f32 %v2438, %v2517
    %v2526 = vadd.f32 %v2439, %v2519
    %v2527 = vadd.f32 %v2523, %v2140
    %v2528 = vadd.f32 %v2524, %v2144
    %v2529 = vadd.f32 %v2525, %v2148
    %v2530 = vadd.f32 %v2526, %v2152
    %v2531 = vxor.u32 %v2527, 2147483648
    %v2532 = vmul.f32 %v2531, 1.442695
    %v2533 = vpow.pop %v2532
    %v2534 = vadd.f32 %v2533, 1.0
    %v2535 = vrcp.pop %v2534
    %v2536 = vmul.f32 1.0, %v2535
    %v2537 = vxor.u32 %v2528, 2147483648
    %v2538 = vmul.f32 %v2537, 1.442695
    %v2539 = vpow.pop %v2538
    %v2540 = vadd.f32 %v2539, 1.0
    %v2541 = vrcp.pop %v2540
    %v2542 = vmul.f32 1.0, %v2541
    %v2543 = vtanh.pop %v2529
    %v2544 = vxor.u32 %v2530, 2147483648
    %v2545 = vmul.f32 %v2544, 1.442695
    %v2546 = vpow.pop %v2545
    %v2547 = vadd.f32 %v2546, 1.0
    %v2548 = vrcp.pop %v2547
    %v2549 = vmul.f32 1.0, %v2548
    %v2550 = vmul.f32 %v2542, %v2432
    %v2551 = vmul.f32 %v2536, %v2543
    %v2552 = vadd.f32 %v2550, %v2551
    %v2553 = vtanh.pop %v2552
    %v2554 = vmul.f32 %v2549, %v2553
    %2555 = vst [vmem:[%s987] sm:$0xff] %v2554
    %v2556 = vld [vmem:[%s989] sm:$0xff]
    %v2557 = vld [vmem:[%s989 + $0x8] sm:$0xff]
    %v2558 = vld [vmem:[%s989 + $0x10] sm:$0xff]
    %v2559 = vld [vmem:[%s989 + $0x18] sm:$0xff]
    %v2560 = vpack.c.bf16 %v2554, %v2554
    %2561 = vmatprep.subr.bf16.mxu0 %v2286
    %2562 = vmatpush1.bf16.msra.mxu0 %v2285
    %2563 = vmatprep.subr.bf16.mxu0 %v2282
    %2564 = vmatpush1.bf16.msra.mxu0 %v2281
    %2565 = vmatprep.subr.bf16.mxu0 %v2278
    %2566 = vmatpush1.bf16.msra.mxu0 %v2277
    %2567 = vmatprep.subr.bf16.mxu0 %v2274
    %2568 = vmatpush1.bf16.msra.mxu0 %v2273
    %2569 = vmatprep.subr.bf16.mxu0 %v2270
    %2570 = vmatpush1.bf16.msra.mxu0 %v2269
    %2571 = vmatprep.subr.bf16.mxu0 %v2266
    %2572 = vmatpush1.bf16.msra.mxu0 %v2265
    %2573 = vmatprep.subr.bf16.mxu0 %v2262
    %2574 = vmatpush1.bf16.msra.mxu0 %v2261
    %2575 = vmatprep.subr.bf16.mxu0 %v2258
    %2576 = vmatpush1.bf16.msra.mxu0 %v2257
    %2577 = vmatprep.subr.bf16.mxu0 0
    %2578 = vmatpush2.bf16.msra.mxu0 0
    %2579 = vmatprep.subr.bf16.mxu0 0
    %2580 = vmatpush2.bf16.msra.mxu0 0
    %2581 = vmatprep.subr.bf16.mxu0 0
    %2582 = vmatpush2.bf16.msra.mxu0 0
    %2583 = vmatprep.subr.bf16.mxu0 0
    %2584 = vmatpush2.bf16.msra.mxu0 0
    %2585 = vmatprep.subr.bf16.mxu0 0
    %2586 = vmatpush2.bf16.msra.mxu0 0
    %2587 = vmatprep.subr.bf16.mxu0 0
    %2588 = vmatpush2.bf16.msra.mxu0 0
    %2589 = vmatprep.subr.bf16.mxu0 0
    %2590 = vmatpush2.bf16.msra.mxu0 0
    %2591 = vmatprep.subr.bf16.mxu0 0
    %2592 = vmatpush2.bf16.msra.mxu0 0
    %2593 = vmatprep.mubr.bf16.mxu0 0
    %2594 = vmatmul.mubr.bf16.gmra.mxu0 %v2560
    %v2595 = vpop.f32.mrf.mxu0
    %v2596 = vadd.f32 0.0, %v2595
    %v2597 = vpop.f32.mrf.mxu0
    %v2598 = vadd.f32 0.0, %v2597
    %v2599 = vpop.f32.mrf.mxu0
    %v2600 = vpop.f32.mrf.mxu0
    %2601 = vdwg.mxu0
    %2602 = vmatprep.subr.bf16.mxu0 %v2288
    %2603 = vmatpush1.bf16.msra.mxu0 %v2287
    %2604 = vmatprep.subr.bf16.mxu0 %v2284
    %2605 = vmatpush1.bf16.msra.mxu0 %v2283
    %2606 = vmatprep.subr.bf16.mxu0 %v2280
    %2607 = vmatpush1.bf16.msra.mxu0 %v2279
    %2608 = vmatprep.subr.bf16.mxu0 %v2276
    %2609 = vmatpush1.bf16.msra.mxu0 %v2275
    %2610 = vmatprep.subr.bf16.mxu0 %v2272
    %2611 = vmatpush1.bf16.msra.mxu0 %v2271
    %2612 = vmatprep.subr.bf16.mxu0 %v2268
    %2613 = vmatpush1.bf16.msra.mxu0 %v2267
    %2614 = vmatprep.subr.bf16.mxu0 %v2264
    %2615 = vmatpush1.bf16.msra.mxu0 %v2263
    %2616 = vmatprep.subr.bf16.mxu0 %v2260
    %2617 = vmatpush1.bf16.msra.mxu0 %v2259
    %2618 = vmatprep.subr.bf16.mxu0 0
    %2619 = vmatpush2.bf16.msra.mxu0 0
    %2620 = vmatprep.subr.bf16.mxu0 0
    %2621 = vmatpush2.bf16.msra.mxu0 0
    %2622 = vmatprep.subr.bf16.mxu0 0
    %2623 = vmatpush2.bf16.msra.mxu0 0
    %2624 = vmatprep.subr.bf16.mxu0 0
    %2625 = vmatpush2.bf16.msra.mxu0 0
    %2626 = vmatprep.subr.bf16.mxu0 0
    %2627 = vmatpush2.bf16.msra.mxu0 0
    %2628 = vmatprep.subr.bf16.mxu0 0
    %2629 = vmatpush2.bf16.msra.mxu0 0
    %2630 = vmatprep.subr.bf16.mxu0 0
    %2631 = vmatpush2.bf16.msra.mxu0 0
    %2632 = vmatprep.subr.bf16.mxu0 0
    %2633 = vmatpush2.bf16.msra.mxu0 0
    %2634 = vmatprep.mubr.bf16.mxu0 0
    %2635 = vmatmul.mubr.bf16.gmra.mxu0 %v2560
    %v2636 = vpop.f32.mrf.mxu0
    %v2637 = vadd.f32 0.0, %v2636
    %v2638 = vpop.f32.mrf.mxu0
    %v2639 = vadd.f32 0.0, %v2638
    %v2640 = vpop.f32.mrf.mxu0
    %v2641 = vpop.f32.mrf.mxu0
    %2642 = vdwg.mxu0
    %v2643 = vadd.f32 %v2556, %v2596
    %v2644 = vadd.f32 %v2557, %v2598
    %v2645 = vadd.f32 %v2558, %v2637
    %v2646 = vadd.f32 %v2559, %v2639
    %v2647 = vadd.f32 %v2643, %v2140
    %v2648 = vadd.f32 %v2644, %v2144
    %v2649 = vadd.f32 %v2645, %v2148
    %v2650 = vadd.f32 %v2646, %v2152
    %v2651 = vxor.u32 %v2647, 2147483648
    %v2652 = vmul.f32 %v2651, 1.442695
    %v2653 = vpow.pop %v2652
    %v2654 = vadd.f32 %v2653, 1.0
    %v2655 = vrcp.pop %v2654
    %v2656 = vmul.f32 1.0, %v2655
    %v2657 = vxor.u32 %v2648, 2147483648
    %v2658 = vmul.f32 %v2657, 1.442695
    %v2659 = vpow.pop %v2658
    %v2660 = vadd.f32 %v2659, 1.0
    %v2661 = vrcp.pop %v2660
    %v2662 = vmul.f32 1.0, %v2661
    %v2663 = vtanh.pop %v2649
    %v2664 = vxor.u32 %v2650, 2147483648
    %v2665 = vmul.f32 %v2664, 1.442695
    %v2666 = vpow.pop %v2665
    %v2667 = vadd.f32 %v2666, 1.0
    %v2668 = vrcp.pop %v2667
    %v2669 = vmul.f32 1.0, %v2668
    %v2670 = vmul.f32 %v2662, %v2552
    %v2671 = vmul.f32 %v2656, %v2663
    %v2672 = vadd.f32 %v2670, %v2671
    %v2673 = vtanh.pop %v2672
    %v2674 = vmul.f32 %v2669, %v2673
    %2675 = vst [vmem:[%s1109] sm:$0xff] %v2674
    %v2676 = vld [vmem:[%s1111] sm:$0xff]
    %v2677 = vld [vmem:[%s1111 + $0x8] sm:$0xff]
    %v2678 = vld [vmem:[%s1111 + $0x10] sm:$0xff]
    %v2679 = vld [vmem:[%s1111 + $0x18] sm:$0xff]
    %v2680 = vpack.c.bf16 %v2674, %v2674
    %2681 = vmatprep.subr.bf16.mxu0 %v2286
    %2682 = vmatpush1.bf16.msra.mxu0 %v2285
    %2683 = vmatprep.subr.bf16.mxu0 %v2282
    %2684 = vmatpush1.bf16.msra.mxu0 %v2281
    %2685 = vmatprep.subr.bf16.mxu0 %v2278
    %2686 = vmatpush1.bf16.msra.mxu0 %v2277
    %2687 = vmatprep.subr.bf16.mxu0 %v2274
    %2688 = vmatpush1.bf16.msra.mxu0 %v2273
    %2689 = vmatprep.subr.bf16.mxu0 %v2270
    %2690 = vmatpush1.bf16.msra.mxu0 %v2269
    %2691 = vmatprep.subr.bf16.mxu0 %v2266
    %2692 = vmatpush1.bf16.msra.mxu0 %v2265
    %2693 = vmatprep.subr.bf16.mxu0 %v2262
    %2694 = vmatpush1.bf16.msra.mxu0 %v2261
    %2695 = vmatprep.subr.bf16.mxu0 %v2258
    %2696 = vmatpush1.bf16.msra.mxu0 %v2257
    %2697 = vmatprep.subr.bf16.mxu0 0
    %2698 = vmatpush2.bf16.msra.mxu0 0
    %2699 = vmatprep.subr.bf16.mxu0 0
    %2700 = vmatpush2.bf16.msra.mxu0 0
    %2701 = vmatprep.subr.bf16.mxu0 0
    %2702 = vmatpush2.bf16.msra.mxu0 0
    %2703 = vmatprep.subr.bf16.mxu0 0
    %2704 = vmatpush2.bf16.msra.mxu0 0
    %2705 = vmatprep.subr.bf16.mxu0 0
    %2706 = vmatpush2.bf16.msra.mxu0 0
    %2707 = vmatprep.subr.bf16.mxu0 0
    %2708 = vmatpush2.bf16.msra.mxu0 0
    %2709 = vmatprep.subr.bf16.mxu0 0
    %2710 = vmatpush2.bf16.msra.mxu0 0
    %2711 = vmatprep.subr.bf16.mxu0 0
    %2712 = vmatpush2.bf16.msra.mxu0 0
    %2713 = vmatprep.mubr.bf16.mxu0 0
    %2714 = vmatmul.mubr.bf16.gmra.mxu0 %v2680
    %v2715 = vpop.f32.mrf.mxu0
    %v2716 = vadd.f32 0.0, %v2715
    %v2717 = vpop.f32.mrf.mxu0
    %v2718 = vadd.f32 0.0, %v2717
    %v2719 = vpop.f32.mrf.mxu0
    %v2720 = vpop.f32.mrf.mxu0
    %2721 = vdwg.mxu0
    %2722 = vmatprep.subr.bf16.mxu0 %v2288
    %2723 = vmatpush1.bf16.msra.mxu0 %v2287
    %2724 = vmatprep.subr.bf16.mxu0 %v2284
    %2725 = vmatpush1.bf16.msra.mxu0 %v2283
    %2726 = vmatprep.subr.bf16.mxu0 %v2280
    %2727 = vmatpush1.bf16.msra.mxu0 %v2279
    %2728 = vmatprep.subr.bf16.mxu0 %v2276
    %2729 = vmatpush1.bf16.msra.mxu0 %v2275
    %2730 = vmatprep.subr.bf16.mxu0 %v2272
    %2731 = vmatpush1.bf16.msra.mxu0 %v2271
    %2732 = vmatprep.subr.bf16.mxu0 %v2268
    %2733 = vmatpush1.bf16.msra.mxu0 %v2267
    %2734 = vmatprep.subr.bf16.mxu0 %v2264
    %2735 = vmatpush1.bf16.msra.mxu0 %v2263
    %2736 = vmatprep.subr.bf16.mxu0 %v2260
    %2737 = vmatpush1.bf16.msra.mxu0 %v2259
    %2738 = vmatprep.subr.bf16.mxu0 0
    %2739 = vmatpush2.bf16.msra.mxu0 0
    %2740 = vmatprep.subr.bf16.mxu0 0
    %2741 = vmatpush2.bf16.msra.mxu0 0
    %2742 = vmatprep.subr.bf16.mxu0 0
    %2743 = vmatpush2.bf16.msra.mxu0 0
    %2744 = vmatprep.subr.bf16.mxu0 0
    %2745 = vmatpush2.bf16.msra.mxu0 0
    %2746 = vmatprep.subr.bf16.mxu0 0
    %2747 = vmatpush2.bf16.msra.mxu0 0
    %2748 = vmatprep.subr.bf16.mxu0 0
    %2749 = vmatpush2.bf16.msra.mxu0 0
    %2750 = vmatprep.subr.bf16.mxu0 0
    %2751 = vmatpush2.bf16.msra.mxu0 0
    %2752 = vmatprep.subr.bf16.mxu0 0
    %2753 = vmatpush2.bf16.msra.mxu0 0
    %2754 = vmatprep.mubr.bf16.mxu0 0
    %2755 = vmatmul.mubr.bf16.gmra.mxu0 %v2680
    %v2756 = vpop.f32.mrf.mxu0
    %v2757 = vadd.f32 0.0, %v2756
    %v2758 = vpop.f32.mrf.mxu0
    %v2759 = vadd.f32 0.0, %v2758
    %v2760 = vpop.f32.mrf.mxu0
    %v2761 = vpop.f32.mrf.mxu0
    %2762 = vdwg.mxu0
    %v2763 = vadd.f32 %v2676, %v2716
    %v2764 = vadd.f32 %v2677, %v2718
    %v2765 = vadd.f32 %v2678, %v2757
    %v2766 = vadd.f32 %v2679, %v2759
    %v2767 = vadd.f32 %v2763, %v2140
    %v2768 = vadd.f32 %v2764, %v2144
    %v2769 = vadd.f32 %v2765, %v2148
    %v2770 = vadd.f32 %v2766, %v2152
    %v2771 = vxor.u32 %v2767, 2147483648
    %v2772 = vmul.f32 %v2771, 1.442695
    %v2773 = vpow.pop %v2772
    %v2774 = vadd.f32 %v2773, 1.0
    %v2775 = vrcp.pop %v2774
    %v2776 = vmul.f32 1.0, %v2775
    %v2777 = vxor.u32 %v2768, 2147483648
    %v2778 = vmul.f32 %v2777, 1.442695
    %v2779 = vpow.pop %v2778
    %v2780 = vadd.f32 %v2779, 1.0
    %v2781 = vrcp.pop %v2780
    %v2782 = vmul.f32 1.0, %v2781
    %v2783 = vtanh.pop %v2769
    %v2784 = vxor.u32 %v2770, 2147483648
    %v2785 = vmul.f32 %v2784, 1.442695
    %v2786 = vpow.pop %v2785
    %v2787 = vadd.f32 %v2786, 1.0
    %v2788 = vrcp.pop %v2787
    %v2789 = vmul.f32 1.0, %v2788
    %v2790 = vmul.f32 %v2782, %v2672
    %v2791 = vmul.f32 %v2776, %v2783
    %v2792 = vadd.f32 %v2790, %v2791
    %v2793 = vtanh.pop %v2792
    %v2794 = vmul.f32 %v2789, %v2793
    %2795 = vst [vmem:[%s1231] sm:$0xff] %v2794
    %v2796 = vld [vmem:[%s1233] sm:$0xff]
    %v2797 = vld [vmem:[%s1233 + $0x8] sm:$0xff]
    %v2798 = vld [vmem:[%s1233 + $0x10] sm:$0xff]
    %v2799 = vld [vmem:[%s1233 + $0x18] sm:$0xff]
    %v2800 = vpack.c.bf16 %v2794, %v2794
    %2801 = vmatprep.subr.bf16.mxu0 %v2286
    %2802 = vmatpush1.bf16.msra.mxu0 %v2285
    %2803 = vmatprep.subr.bf16.mxu0 %v2282
    %2804 = vmatpush1.bf16.msra.mxu0 %v2281
    %2805 = vmatprep.subr.bf16.mxu0 %v2278
    %2806 = vmatpush1.bf16.msra.mxu0 %v2277
    %2807 = vmatprep.subr.bf16.mxu0 %v2274
    %2808 = vmatpush1.bf16.msra.mxu0 %v2273
    %2809 = vmatprep.subr.bf16.mxu0 %v2270
    %2810 = vmatpush1.bf16.msra.mxu0 %v2269
    %2811 = vmatprep.subr.bf16.mxu0 %v2266
    %2812 = vmatpush1.bf16.msra.mxu0 %v2265
    %2813 = vmatprep.subr.bf16.mxu0 %v2262
    %2814 = vmatpush1.bf16.msra.mxu0 %v2261
    %2815 = vmatprep.subr.bf16.mxu0 %v2258
    %2816 = vmatpush1.bf16.msra.mxu0 %v2257
    %2817 = vmatprep.subr.bf16.mxu0 0
    %2818 = vmatpush2.bf16.msra.mxu0 0
    %2819 = vmatprep.subr.bf16.mxu0 0
    %2820 = vmatpush2.bf16.msra.mxu0 0
    %2821 = vmatprep.subr.bf16.mxu0 0
    %2822 = vmatpush2.bf16.msra.mxu0 0
    %2823 = vmatprep.subr.bf16.mxu0 0
    %2824 = vmatpush2.bf16.msra.mxu0 0
    %2825 = vmatprep.subr.bf16.mxu0 0
    %2826 = vmatpush2.bf16.msra.mxu0 0
    %2827 = vmatprep.subr.bf16.mxu0 0
    %2828 = vmatpush2.bf16.msra.mxu0 0
    %2829 = vmatprep.subr.bf16.mxu0 0
    %2830 = vmatpush2.bf16.msra.mxu0 0
    %2831 = vmatprep.subr.bf16.mxu0 0
    %2832 = vmatpush2.bf16.msra.mxu0 0
    %2833 = vmatprep.mubr.bf16.mxu0 0
    %2834 = vmatmul.mubr.bf16.gmra.mxu0 %v2800
    %v2835 = vpop.f32.mrf.mxu0
    %v2836 = vadd.f32 0.0, %v2835
    %v2837 = vpop.f32.mrf.mxu0
    %v2838 = vadd.f32 0.0, %v2837
    %v2839 = vpop.f32.mrf.mxu0
    %v2840 = vpop.f32.mrf.mxu0
    %2841 = vdwg.mxu0
    %2842 = vmatprep.subr.bf16.mxu0 %v2288
    %2843 = vmatpush1.bf16.msra.mxu0 %v2287
    %2844 = vmatprep.subr.bf16.mxu0 %v2284
    %2845 = vmatpush1.bf16.msra.mxu0 %v2283
    %2846 = vmatprep.subr.bf16.mxu0 %v2280
    %2847 = vmatpush1.bf16.msra.mxu0 %v2279
    %2848 = vmatprep.subr.bf16.mxu0 %v2276
    %2849 = vmatpush1.bf16.msra.mxu0 %v2275
    %2850 = vmatprep.subr.bf16.mxu0 %v2272
    %2851 = vmatpush1.bf16.msra.mxu0 %v2271
    %2852 = vmatprep.subr.bf16.mxu0 %v2268
    %2853 = vmatpush1.bf16.msra.mxu0 %v2267
    %2854 = vmatprep.subr.bf16.mxu0 %v2264
    %2855 = vmatpush1.bf16.msra.mxu0 %v2263
    %2856 = vmatprep.subr.bf16.mxu0 %v2260
    %2857 = vmatpush1.bf16.msra.mxu0 %v2259
    %2858 = vmatprep.subr.bf16.mxu0 0
    %2859 = vmatpush2.bf16.msra.mxu0 0
    %2860 = vmatprep.subr.bf16.mxu0 0
    %2861 = vmatpush2.bf16.msra.mxu0 0
    %2862 = vmatprep.subr.bf16.mxu0 0
    %2863 = vmatpush2.bf16.msra.mxu0 0
    %2864 = vmatprep.subr.bf16.mxu0 0
    %2865 = vmatpush2.bf16.msra.mxu0 0
    %2866 = vmatprep.subr.bf16.mxu0 0
    %2867 = vmatpush2.bf16.msra.mxu0 0
    %2868 = vmatprep.subr.bf16.mxu0 0
    %2869 = vmatpush2.bf16.msra.mxu0 0
    %2870 = vmatprep.subr.bf16.mxu0 0
    %2871 = vmatpush2.bf16.msra.mxu0 0
    %2872 = vmatprep.subr.bf16.mxu0 0
    %2873 = vmatpush2.bf16.msra.mxu0 0
    %2874 = vmatprep.mubr.bf16.mxu0 0
    %2875 = vmatmul.mubr.bf16.gmra.mxu0 %v2800
    %v2876 = vpop.f32.mrf.mxu0
    %v2877 = vadd.f32 0.0, %v2876
    %v2878 = vpop.f32.mrf.mxu0
    %v2879 = vadd.f32 0.0, %v2878
    %v2880 = vpop.f32.mrf.mxu0
    %v2881 = vpop.f32.mrf.mxu0
    %2882 = vdwg.mxu0
    %v2883 = vadd.f32 %v2796, %v2836
    %v2884 = vadd.f32 %v2797, %v2838
    %v2885 = vadd.f32 %v2798, %v2877
    %v2886 = vadd.f32 %v2799, %v2879
    %v2887 = vadd.f32 %v2883, %v2140
    %v2888 = vadd.f32 %v2884, %v2144
    %v2889 = vadd.f32 %v2885, %v2148
    %v2890 = vadd.f32 %v2886, %v2152
    %v2891 = vxor.u32 %v2887, 2147483648
    %v2892 = vmul.f32 %v2891, 1.442695
    %v2893 = vpow.pop %v2892
    %v2894 = vadd.f32 %v2893, 1.0
    %v2895 = vrcp.pop %v2894
    %v2896 = vmul.f32 1.0, %v2895
    %v2897 = vxor.u32 %v2888, 2147483648
    %v2898 = vmul.f32 %v2897, 1.442695
    %v2899 = vpow.pop %v2898
    %v2900 = vadd.f32 %v2899, 1.0
    %v2901 = vrcp.pop %v2900
    %v2902 = vmul.f32 1.0, %v2901
    %v2903 = vtanh.pop %v2889
    %v2904 = vxor.u32 %v2890, 2147483648
    %v2905 = vmul.f32 %v2904, 1.442695
    %v2906 = vpow.pop %v2905
    %v2907 = vadd.f32 %v2906, 1.0
    %v2908 = vrcp.pop %v2907
    %v2909 = vmul.f32 1.0, %v2908
    %v2910 = vmul.f32 %v2902, %v2792
    %v2911 = vmul.f32 %v2896, %v2903
    %v2912 = vadd.f32 %v2910, %v2911
    %v2913 = vtanh.pop %v2912
    %v2914 = vmul.f32 %v2909, %v2913
    %2915 = vst [vmem:[%s1353] sm:$0xff] %v2914
    %v2916 = vld [vmem:[%s1355] sm:$0xff]
    %v2917 = vld [vmem:[%s1355 + $0x8] sm:$0xff]
    %v2918 = vld [vmem:[%s1355 + $0x10] sm:$0xff]
    %v2919 = vld [vmem:[%s1355 + $0x18] sm:$0xff]
    %v2920 = vpack.c.bf16 %v2914, %v2914
    %2921 = vmatprep.subr.bf16.mxu0 %v2286
    %2922 = vmatpush1.bf16.msra.mxu0 %v2285
    %2923 = vmatprep.subr.bf16.mxu0 %v2282
    %2924 = vmatpush1.bf16.msra.mxu0 %v2281
    %2925 = vmatprep.subr.bf16.mxu0 %v2278
    %2926 = vmatpush1.bf16.msra.mxu0 %v2277
    %2927 = vmatprep.subr.bf16.mxu0 %v2274
    %2928 = vmatpush1.bf16.msra.mxu0 %v2273
    %2929 = vmatprep.subr.bf16.mxu0 %v2270
    %2930 = vmatpush1.bf16.msra.mxu0 %v2269
    %2931 = vmatprep.subr.bf16.mxu0 %v2266
    %2932 = vmatpush1.bf16.msra.mxu0 %v2265
    %2933 = vmatprep.subr.bf16.mxu0 %v2262
    %2934 = vmatpush1.bf16.msra.mxu0 %v2261
    %2935 = vmatprep.subr.bf16.mxu0 %v2258
    %2936 = vmatpush1.bf16.msra.mxu0 %v2257
    %2937 = vmatprep.subr.bf16.mxu0 0
    %2938 = vmatpush2.bf16.msra.mxu0 0
    %2939 = vmatprep.subr.bf16.mxu0 0
    %2940 = vmatpush2.bf16.msra.mxu0 0
    %2941 = vmatprep.subr.bf16.mxu0 0
    %2942 = vmatpush2.bf16.msra.mxu0 0
    %2943 = vmatprep.subr.bf16.mxu0 0
    %2944 = vmatpush2.bf16.msra.mxu0 0
    %2945 = vmatprep.subr.bf16.mxu0 0
    %2946 = vmatpush2.bf16.msra.mxu0 0
    %2947 = vmatprep.subr.bf16.mxu0 0
    %2948 = vmatpush2.bf16.msra.mxu0 0
    %2949 = vmatprep.subr.bf16.mxu0 0
    %2950 = vmatpush2.bf16.msra.mxu0 0
    %2951 = vmatprep.subr.bf16.mxu0 0
    %2952 = vmatpush2.bf16.msra.mxu0 0
    %2953 = vmatprep.mubr.bf16.mxu0 0
    %2954 = vmatmul.mubr.bf16.gmra.mxu0 %v2920
    %v2955 = vpop.f32.mrf.mxu0
    %v2956 = vadd.f32 0.0, %v2955
    %v2957 = vpop.f32.mrf.mxu0
    %v2958 = vadd.f32 0.0, %v2957
    %v2959 = vpop.f32.mrf.mxu0
    %v2960 = vpop.f32.mrf.mxu0
    %2961 = vdwg.mxu0
    %2962 = vmatprep.subr.bf16.mxu0 %v2288
    %2963 = vmatpush1.bf16.msra.mxu0 %v2287
    %2964 = vmatprep.subr.bf16.mxu0 %v2284
    %2965 = vmatpush1.bf16.msra.mxu0 %v2283
    %2966 = vmatprep.subr.bf16.mxu0 %v2280
    %2967 = vmatpush1.bf16.msra.mxu0 %v2279
    %2968 = vmatprep.subr.bf16.mxu0 %v2276
    %2969 = vmatpush1.bf16.msra.mxu0 %v2275
    %2970 = vmatprep.subr.bf16.mxu0 %v2272
    %2971 = vmatpush1.bf16.msra.mxu0 %v2271
    %2972 = vmatprep.subr.bf16.mxu0 %v2268
    %2973 = vmatpush1.bf16.msra.mxu0 %v2267
    %2974 = vmatprep.subr.bf16.mxu0 %v2264
    %2975 = vmatpush1.bf16.msra.mxu0 %v2263
    %2976 = vmatprep.subr.bf16.mxu0 %v2260
    %2977 = vmatpush1.bf16.msra.mxu0 %v2259
    %2978 = vmatprep.subr.bf16.mxu0 0
    %2979 = vmatpush2.bf16.msra.mxu0 0
    %2980 = vmatprep.subr.bf16.mxu0 0
    %2981 = vmatpush2.bf16.msra.mxu0 0
    %2982 = vmatprep.subr.bf16.mxu0 0
    %2983 = vmatpush2.bf16.msra.mxu0 0
    %2984 = vmatprep.subr.bf16.mxu0 0
    %2985 = vmatpush2.bf16.msra.mxu0 0
    %2986 = vmatprep.subr.bf16.mxu0 0
    %2987 = vmatpush2.bf16.msra.mxu0 0
    %2988 = vmatprep.subr.bf16.mxu0 0
    %2989 = vmatpush2.bf16.msra.mxu0 0
    %2990 = vmatprep.subr.bf16.mxu0 0
    %2991 = vmatpush2.bf16.msra.mxu0 0
    %2992 = vmatprep.subr.bf16.mxu0 0
    %2993 = vmatpush2.bf16.msra.mxu0 0
    %2994 = vmatprep.mubr.bf16.mxu0 0
    %2995 = vmatmul.mubr.bf16.gmra.mxu0 %v2920
    %v2996 = vpop.f32.mrf.mxu0
    %v2997 = vadd.f32 0.0, %v2996
    %v2998 = vpop.f32.mrf.mxu0
    %v2999 = vadd.f32 0.0, %v2998
    %v3000 = vpop.f32.mrf.mxu0
    %v3001 = vpop.f32.mrf.mxu0
    %3002 = vdwg.mxu0
    %v3003 = vadd.f32 %v2916, %v2956
    %v3004 = vadd.f32 %v2917, %v2958
    %v3005 = vadd.f32 %v2918, %v2997
    %v3006 = vadd.f32 %v2919, %v2999
    %v3007 = vadd.f32 %v3003, %v2140
    %v3008 = vadd.f32 %v3004, %v2144
    %v3009 = vadd.f32 %v3005, %v2148
    %v3010 = vadd.f32 %v3006, %v2152
    %v3011 = vxor.u32 %v3007, 2147483648
    %v3012 = vmul.f32 %v3011, 1.442695
    %v3013 = vpow.pop %v3012
    %v3014 = vadd.f32 %v3013, 1.0
    %v3015 = vrcp.pop %v3014
    %v3016 = vmul.f32 1.0, %v3015
    %v3017 = vxor.u32 %v3008, 2147483648
    %v3018 = vmul.f32 %v3017, 1.442695
    %v3019 = vpow.pop %v3018
    %v3020 = vadd.f32 %v3019, 1.0
    %v3021 = vrcp.pop %v3020
    %v3022 = vmul.f32 1.0, %v3021
    %v3023 = vtanh.pop %v3009
    %v3024 = vxor.u32 %v3010, 2147483648
    %v3025 = vmul.f32 %v3024, 1.442695
    %v3026 = vpow.pop %v3025
    %v3027 = vadd.f32 %v3026, 1.0
    %v3028 = vrcp.pop %v3027
    %v3029 = vmul.f32 1.0, %v3028
    %v3030 = vmul.f32 %v3022, %v2912
    %v3031 = vmul.f32 %v3016, %v3023
    %v3032 = vadd.f32 %v3030, %v3031
    %v3033 = vtanh.pop %v3032
    %v3034 = vmul.f32 %v3029, %v3033
    %3035 = vst [vmem:[%s1475] sm:$0xff] %v3034
    %v3036 = vld [vmem:[%s1477] sm:$0xff]
    %v3037 = vld [vmem:[%s1477 + $0x8] sm:$0xff]
    %v3038 = vld [vmem:[%s1477 + $0x10] sm:$0xff]
    %v3039 = vld [vmem:[%s1477 + $0x18] sm:$0xff]
    %v3040 = vpack.c.bf16 %v3034, %v3034
    %3041 = vmatprep.subr.bf16.mxu0 %v2286
    %3042 = vmatpush1.bf16.msra.mxu0 %v2285
    %3043 = vmatprep.subr.bf16.mxu0 %v2282
    %3044 = vmatpush1.bf16.msra.mxu0 %v2281
    %3045 = vmatprep.subr.bf16.mxu0 %v2278
    %3046 = vmatpush1.bf16.msra.mxu0 %v2277
    %3047 = vmatprep.subr.bf16.mxu0 %v2274
    %3048 = vmatpush1.bf16.msra.mxu0 %v2273
    %3049 = vmatprep.subr.bf16.mxu0 %v2270
    %3050 = vmatpush1.bf16.msra.mxu0 %v2269
    %3051 = vmatprep.subr.bf16.mxu0 %v2266
    %3052 = vmatpush1.bf16.msra.mxu0 %v2265
    %3053 = vmatprep.subr.bf16.mxu0 %v2262
    %3054 = vmatpush1.bf16.msra.mxu0 %v2261
    %3055 = vmatprep.subr.bf16.mxu0 %v2258
    %3056 = vmatpush1.bf16.msra.mxu0 %v2257
    %3057 = vmatprep.subr.bf16.mxu0 0
    %3058 = vmatpush2.bf16.msra.mxu0 0
    %3059 = vmatprep.subr.bf16.mxu0 0
    %3060 = vmatpush2.bf16.msra.mxu0 0
    %3061 = vmatprep.subr.bf16.mxu0 0
    %3062 = vmatpush2.bf16.msra.mxu0 0
    %3063 = vmatprep.subr.bf16.mxu0 0
    %3064 = vmatpush2.bf16.msra.mxu0 0
    %3065 = vmatprep.subr.bf16.mxu0 0
    %3066 = vmatpush2.bf16.msra.mxu0 0
    %3067 = vmatprep.subr.bf16.mxu0 0
    %3068 = vmatpush2.bf16.msra.mxu0 0
    %3069 = vmatprep.subr.bf16.mxu0 0
    %3070 = vmatpush2.bf16.msra.mxu0 0
    %3071 = vmatprep.subr.bf16.mxu0 0
    %3072 = vmatpush2.bf16.msra.mxu0 0
    %3073 = vmatprep.mubr.bf16.mxu0 0
    %3074 = vmatmul.mubr.bf16.gmra.mxu0 %v3040
    %v3075 = vpop.f32.mrf.mxu0
    %v3076 = vadd.f32 0.0, %v3075
    %v3077 = vpop.f32.mrf.mxu0
    %v3078 = vadd.f32 0.0, %v3077
    %v3079 = vpop.f32.mrf.mxu0
    %v3080 = vpop.f32.mrf.mxu0
    %3081 = vdwg.mxu0
    %3082 = vmatprep.subr.bf16.mxu0 %v2288
    %3083 = vmatpush1.bf16.msra.mxu0 %v2287
    %3084 = vmatprep.subr.bf16.mxu0 %v2284
    %3085 = vmatpush1.bf16.msra.mxu0 %v2283
    %3086 = vmatprep.subr.bf16.mxu0 %v2280
    %3087 = vmatpush1.bf16.msra.mxu0 %v2279
    %3088 = vmatprep.subr.bf16.mxu0 %v2276
    %3089 = vmatpush1.bf16.msra.mxu0 %v2275
    %3090 = vmatprep.subr.bf16.mxu0 %v2272
    %3091 = vmatpush1.bf16.msra.mxu0 %v2271
    %3092 = vmatprep.subr.bf16.mxu0 %v2268
    %3093 = vmatpush1.bf16.msra.mxu0 %v2267
    %3094 = vmatprep.subr.bf16.mxu0 %v2264
    %3095 = vmatpush1.bf16.msra.mxu0 %v2263
    %3096 = vmatprep.subr.bf16.mxu0 %v2260
    %3097 = vmatpush1.bf16.msra.mxu0 %v2259
    %3098 = vmatprep.subr.bf16.mxu0 0
    %3099 = vmatpush2.bf16.msra.mxu0 0
    %3100 = vmatprep.subr.bf16.mxu0 0
    %3101 = vmatpush2.bf16.msra.mxu0 0
    %3102 = vmatprep.subr.bf16.mxu0 0
    %3103 = vmatpush2.bf16.msra.mxu0 0
    %3104 = vmatprep.subr.bf16.mxu0 0
    %3105 = vmatpush2.bf16.msra.mxu0 0
    %3106 = vmatprep.subr.bf16.mxu0 0
    %3107 = vmatpush2.bf16.msra.mxu0 0
    %3108 = vmatprep.subr.bf16.mxu0 0
    %3109 = vmatpush2.bf16.msra.mxu0 0
    %3110 = vmatprep.subr.bf16.mxu0 0
    %3111 = vmatpush2.bf16.msra.mxu0 0
    %3112 = vmatprep.subr.bf16.mxu0 0
    %3113 = vmatpush2.bf16.msra.mxu0 0
    %3114 = vmatprep.mubr.bf16.mxu0 0
    %3115 = vmatmul.mubr.bf16.gmra.mxu0 %v3040
    %v3116 = vpop.f32.mrf.mxu0
    %v3117 = vadd.f32 0.0, %v3116
    %v3118 = vpop.f32.mrf.mxu0
    %v3119 = vadd.f32 0.0, %v3118
    %v3120 = vpop.f32.mrf.mxu0
    %v3121 = vpop.f32.mrf.mxu0
    %3122 = vdwg.mxu0
    %v3123 = vadd.f32 %v3036, %v3076
    %v3124 = vadd.f32 %v3037, %v3078
    %v3125 = vadd.f32 %v3038, %v3117
    %v3126 = vadd.f32 %v3039, %v3119
    %v3127 = vadd.f32 %v3123, %v2140
    %v3128 = vadd.f32 %v3124, %v2144
    %v3129 = vadd.f32 %v3125, %v2148
    %v3130 = vadd.f32 %v3126, %v2152
    %v3131 = vxor.u32 %v3127, 2147483648
    %v3132 = vmul.f32 %v3131, 1.442695
    %v3133 = vpow.pop %v3132
    %v3134 = vadd.f32 %v3133, 1.0
    %v3135 = vrcp.pop %v3134
    %v3136 = vmul.f32 1.0, %v3135
    %v3137 = vxor.u32 %v3128, 2147483648
    %v3138 = vmul.f32 %v3137, 1.442695
    %v3139 = vpow.pop %v3138
    %v3140 = vadd.f32 %v3139, 1.0
    %v3141 = vrcp.pop %v3140
    %v3142 = vmul.f32 1.0, %v3141
    %v3143 = vtanh.pop %v3129
    %v3144 = vxor.u32 %v3130, 2147483648
    %v3145 = vmul.f32 %v3144, 1.442695
    %v3146 = vpow.pop %v3145
    %v3147 = vadd.f32 %v3146, 1.0
    %v3148 = vrcp.pop %v3147
    %v3149 = vmul.f32 1.0, %v3148
    %v3150 = vmul.f32 %v3142, %v3032
    %v3151 = vmul.f32 %v3136, %v3143
    %v3152 = vadd.f32 %v3150, %v3151
    %v3153 = vtanh.pop %v3152
    %v3154 = vmul.f32 %v3149, %v3153
    %3155 = vst [vmem:[%s1597] sm:$0xff] %v3154
    %v3156 = vld [vmem:[%s1599] sm:$0xff]
    %v3157 = vld [vmem:[%s1599 + $0x8] sm:$0xff]
    %v3158 = vld [vmem:[%s1599 + $0x10] sm:$0xff]
    %v3159 = vld [vmem:[%s1599 + $0x18] sm:$0xff]
    %v3160 = vpack.c.bf16 %v3154, %v3154
    %3161 = vmatprep.subr.bf16.mxu0 %v2286
    %3162 = vmatpush1.bf16.msra.mxu0 %v2285
    %3163 = vmatprep.subr.bf16.mxu0 %v2282
    %3164 = vmatpush1.bf16.msra.mxu0 %v2281
    %3165 = vmatprep.subr.bf16.mxu0 %v2278
    %3166 = vmatpush1.bf16.msra.mxu0 %v2277
    %3167 = vmatprep.subr.bf16.mxu0 %v2274
    %3168 = vmatpush1.bf16.msra.mxu0 %v2273
    %3169 = vmatprep.subr.bf16.mxu0 %v2270
    %3170 = vmatpush1.bf16.msra.mxu0 %v2269
    %3171 = vmatprep.subr.bf16.mxu0 %v2266
    %3172 = vmatpush1.bf16.msra.mxu0 %v2265
    %3173 = vmatprep.subr.bf16.mxu0 %v2262
    %3174 = vmatpush1.bf16.msra.mxu0 %v2261
    %3175 = vmatprep.subr.bf16.mxu0 %v2258
    %3176 = vmatpush1.bf16.msra.mxu0 %v2257
    %3177 = vmatprep.subr.bf16.mxu0 0
    %3178 = vmatpush2.bf16.msra.mxu0 0
    %3179 = vmatprep.subr.bf16.mxu0 0
    %3180 = vmatpush2.bf16.msra.mxu0 0
    %3181 = vmatprep.subr.bf16.mxu0 0
    %3182 = vmatpush2.bf16.msra.mxu0 0
    %3183 = vmatprep.subr.bf16.mxu0 0
    %3184 = vmatpush2.bf16.msra.mxu0 0
    %3185 = vmatprep.subr.bf16.mxu0 0
    %3186 = vmatpush2.bf16.msra.mxu0 0
    %3187 = vmatprep.subr.bf16.mxu0 0
    %3188 = vmatpush2.bf16.msra.mxu0 0
    %3189 = vmatprep.subr.bf16.mxu0 0
    %3190 = vmatpush2.bf16.msra.mxu0 0
    %3191 = vmatprep.subr.bf16.mxu0 0
    %3192 = vmatpush2.bf16.msra.mxu0 0
    %3193 = vmatprep.mubr.bf16.mxu0 0
    %3194 = vmatmul.mubr.bf16.gmra.mxu0 %v3160
    %v3195 = vpop.f32.mrf.mxu0
    %v3196 = vadd.f32 0.0, %v3195
    %v3197 = vpop.f32.mrf.mxu0
    %v3198 = vadd.f32 0.0, %v3197
    %v3199 = vpop.f32.mrf.mxu0
    %v3200 = vpop.f32.mrf.mxu0
    %3201 = vdwg.mxu0
    %3202 = vmatprep.subr.bf16.mxu0 %v2288
    %3203 = vmatpush1.bf16.msra.mxu0 %v2287
    %3204 = vmatprep.subr.bf16.mxu0 %v2284
    %3205 = vmatpush1.bf16.msra.mxu0 %v2283
    %3206 = vmatprep.subr.bf16.mxu0 %v2280
    %3207 = vmatpush1.bf16.msra.mxu0 %v2279
    %3208 = vmatprep.subr.bf16.mxu0 %v2276
    %3209 = vmatpush1.bf16.msra.mxu0 %v2275
    %3210 = vmatprep.subr.bf16.mxu0 %v2272
    %3211 = vmatpush1.bf16.msra.mxu0 %v2271
    %3212 = vmatprep.subr.bf16.mxu0 %v2268
    %3213 = vmatpush1.bf16.msra.mxu0 %v2267
    %3214 = vmatprep.subr.bf16.mxu0 %v2264
    %3215 = vmatpush1.bf16.msra.mxu0 %v2263
    %3216 = vmatprep.subr.bf16.mxu0 %v2260
    %3217 = vmatpush1.bf16.msra.mxu0 %v2259
    %3218 = vmatprep.subr.bf16.mxu0 0
    %3219 = vmatpush2.bf16.msra.mxu0 0
    %3220 = vmatprep.subr.bf16.mxu0 0
    %3221 = vmatpush2.bf16.msra.mxu0 0
    %3222 = vmatprep.subr.bf16.mxu0 0
    %3223 = vmatpush2.bf16.msra.mxu0 0
    %3224 = vmatprep.subr.bf16.mxu0 0
    %3225 = vmatpush2.bf16.msra.mxu0 0
    %3226 = vmatprep.subr.bf16.mxu0 0
    %3227 = vmatpush2.bf16.msra.mxu0 0
    %3228 = vmatprep.subr.bf16.mxu0 0
    %3229 = vmatpush2.bf16.msra.mxu0 0
    %3230 = vmatprep.subr.bf16.mxu0 0
    %3231 = vmatpush2.bf16.msra.mxu0 0
    %3232 = vmatprep.subr.bf16.mxu0 0
    %3233 = vmatpush2.bf16.msra.mxu0 0
    %3234 = vmatprep.mubr.bf16.mxu0 0
    %3235 = vmatmul.mubr.bf16.gmra.mxu0 %v3160
    %v3236 = vpop.f32.mrf.mxu0
    %v3237 = vadd.f32 0.0, %v3236
    %v3238 = vpop.f32.mrf.mxu0
    %v3239 = vadd.f32 0.0, %v3238
    %v3240 = vpop.f32.mrf.mxu0
    %v3241 = vpop.f32.mrf.mxu0
    %3242 = vdwg.mxu0
    %v3243 = vadd.f32 %v3156, %v3196
    %v3244 = vadd.f32 %v3157, %v3198
    %v3245 = vadd.f32 %v3158, %v3237
    %v3246 = vadd.f32 %v3159, %v3239
    %v3247 = vadd.f32 %v3243, %v2140
    %v3248 = vadd.f32 %v3244, %v2144
    %v3249 = vadd.f32 %v3245, %v2148
    %v3250 = vadd.f32 %v3246, %v2152
    %v3251 = vxor.u32 %v3247, 2147483648
    %v3252 = vmul.f32 %v3251, 1.442695
    %v3253 = vpow.pop %v3252
    %v3254 = vadd.f32 %v3253, 1.0
    %v3255 = vrcp.pop %v3254
    %v3256 = vmul.f32 1.0, %v3255
    %v3257 = vxor.u32 %v3248, 2147483648
    %v3258 = vmul.f32 %v3257, 1.442695
    %v3259 = vpow.pop %v3258
    %v3260 = vadd.f32 %v3259, 1.0
    %v3261 = vrcp.pop %v3260
    %v3262 = vmul.f32 1.0, %v3261
    %v3263 = vtanh.pop %v3249
    %v3264 = vxor.u32 %v3250, 2147483648
    %v3265 = vmul.f32 %v3264, 1.442695
    %v3266 = vpow.pop %v3265
    %v3267 = vadd.f32 %v3266, 1.0
    %v3268 = vrcp.pop %v3267
    %v3269 = vmul.f32 1.0, %v3268
    %v3270 = vmul.f32 %v3262, %v3152
    %v3271 = vmul.f32 %v3256, %v3263
    %v3272 = vadd.f32 %v3270, %v3271
    %v3273 = vtanh.pop %v3272
    %v3274 = vmul.f32 %v3269, %v3273
    %3275 = vst [vmem:[%s1719] sm:$0xff] %v3274
    %v3276 = vld [vmem:[#allocation3] sm:$0xff]
    %v3277 = vld [vmem:[#allocation3 + $0x8] sm:$0xff]
    %v3278 = vld [vmem:[#allocation3 + $0x10] sm:$0xff]
    %v3279 = vld [vmem:[#allocation3 + $0x18] sm:$0xff]
    %v3280 = vld [vmem:[#allocation3 + $0x20] sm:$0xff]
    %v3281 = vld [vmem:[#allocation3 + $0x28] sm:$0xff]
    %v3282 = vld [vmem:[#allocation3 + $0x30] sm:$0xff]
    %v3283 = vld [vmem:[#allocation3 + $0x38] sm:$0xff]
    %v3284 = vpack.c.bf16 %v3277, %v3276
    %v3285 = vpack.c.bf16 %v3279, %v3278
    %v3286 = vpack.c.bf16 %v3281, %v3280
    %v3287 = vpack.c.bf16 %v3283, %v3282
    %v3288 = vld [vmem:[#allocation13] sm:$0xff]
    %v3289 = vld [vmem:[#allocation13 + $0x8] sm:$0xff]
    %v3290 = vld [vmem:[#allocation13 + $0x10] sm:$0xff]
    %v3291 = vld [vmem:[#allocation13 + $0x18] sm:$0xff]
    %v3292 = vld [vmem:[#allocation13 + $0x20] sm:$0xff]
    %v3293 = vld [vmem:[#allocation13 + $0x28] sm:$0xff]
    %v3294 = vld [vmem:[#allocation13 + $0x30] sm:$0xff]
    %v3295 = vld [vmem:[#allocation13 + $0x38] sm:$0xff]
    %v3296 = vld [vmem:[#allocation13 + $0x40] sm:$0xff]
    %v3297 = vld [vmem:[#allocation13 + $0x48] sm:$0xff]
    %v3298 = vld [vmem:[#allocation13 + $0x50] sm:$0xff]
    %v3299 = vld [vmem:[#allocation13 + $0x58] sm:$0xff]
    %v3300 = vld [vmem:[#allocation13 + $0x60] sm:$0xff]
    %v3301 = vld [vmem:[#allocation13 + $0x68] sm:$0xff]
    %v3302 = vld [vmem:[#allocation13 + $0x70] sm:$0xff]
    %v3303 = vld [vmem:[#allocation13 + $0x78] sm:$0xff]
    %v3304 = vld [vmem:[#allocation13 + $0x80] sm:$0xff]
    %v3305 = vld [vmem:[#allocation13 + $0x88] sm:$0xff]
    %v3306 = vld [vmem:[#allocation13 + $0x90] sm:$0xff]
    %v3307 = vld [vmem:[#allocation13 + $0x98] sm:$0xff]
    %v3308 = vld [vmem:[#allocation13 + $0xa0] sm:$0xff]
    %v3309 = vld [vmem:[#allocation13 + $0xa8] sm:$0xff]
    %v3310 = vld [vmem:[#allocation13 + $0xb0] sm:$0xff]
    %v3311 = vld [vmem:[#allocation13 + $0xb8] sm:$0xff]
    %v3312 = vld [vmem:[#allocation13 + $0xc0] sm:$0xff]
    %v3313 = vld [vmem:[#allocation13 + $0xc8] sm:$0xff]
    %v3314 = vld [vmem:[#allocation13 + $0xd0] sm:$0xff]
    %v3315 = vld [vmem:[#allocation13 + $0xd8] sm:$0xff]
    %v3316 = vld [vmem:[#allocation13 + $0xe0] sm:$0xff]
    %v3317 = vld [vmem:[#allocation13 + $0xe8] sm:$0xff]
    %v3318 = vld [vmem:[#allocation13 + $0xf0] sm:$0xff]
    %v3319 = vld [vmem:[#allocation13 + $0xf8] sm:$0xff]
    %v3352 = vunpack.c.l.b16 %v3288
    %v3353 = vunpack.c.h.b16 %v3288
    %v3354 = vunpack.c.l.b16 %v3289
    %v3355 = vunpack.c.h.b16 %v3289
    %v3356 = vunpack.c.l.b16 %v3290
    %v3357 = vunpack.c.h.b16 %v3290
    %v3358 = vunpack.c.l.b16 %v3291
    %v3359 = vunpack.c.h.b16 %v3291
    %v3360 = vunpack.c.l.b16 %v3292
    %v3361 = vunpack.c.h.b16 %v3292
    %v3362 = vunpack.c.l.b16 %v3293
    %v3363 = vunpack.c.h.b16 %v3293
    %v3364 = vunpack.c.l.b16 %v3294
    %v3365 = vunpack.c.h.b16 %v3294
    %v3366 = vunpack.c.l.b16 %v3295
    %v3367 = vunpack.c.h.b16 %v3295
    %v3368 = vunpack.c.l.b16 %v3296
    %v3369 = vunpack.c.h.b16 %v3296
    %v3370 = vunpack.c.l.b16 %v3297
    %v3371 = vunpack.c.h.b16 %v3297
    %v3372 = vunpack.c.l.b16 %v3298
    %v3373 = vunpack.c.h.b16 %v3298
    %v3374 = vunpack.c.l.b16 %v3299
    %v3375 = vunpack.c.h.b16 %v3299
    %v3376 = vunpack.c.l.b16 %v3300
    %v3377 = vunpack.c.h.b16 %v3300
    %v3378 = vunpack.c.l.b16 %v3301
    %v3379 = vunpack.c.h.b16 %v3301
    %v3380 = vunpack.c.l.b16 %v3302
    %v3381 = vunpack.c.h.b16 %v3302
    %v3382 = vunpack.c.l.b16 %v3303
    %v3383 = vunpack.c.h.b16 %v3303
    %v3384 = vunpack.c.l.b16 %v3304
    %v3385 = vunpack.c.h.b16 %v3304
    %v3386 = vunpack.c.l.b16 %v3305
    %v3387 = vunpack.c.h.b16 %v3305
    %v3388 = vunpack.c.l.b16 %v3306
    %v3389 = vunpack.c.h.b16 %v3306
    %v3390 = vunpack.c.l.b16 %v3307
    %v3391 = vunpack.c.h.b16 %v3307
    %v3392 = vunpack.c.l.b16 %v3308
    %v3393 = vunpack.c.h.b16 %v3308
    %v3394 = vunpack.c.l.b16 %v3309
    %v3395 = vunpack.c.h.b16 %v3309
    %v3396 = vunpack.c.l.b16 %v3310
    %v3397 = vunpack.c.h.b16 %v3310
    %v3398 = vunpack.c.l.b16 %v3311
    %v3399 = vunpack.c.h.b16 %v3311
    %v3400 = vunpack.c.l.b16 %v3312
    %v3401 = vunpack.c.h.b16 %v3312
    %v3402 = vunpack.c.l.b16 %v3313
    %v3403 = vunpack.c.h.b16 %v3313
    %v3404 = vunpack.c.l.b16 %v3314
    %v3405 = vunpack.c.h.b16 %v3314
    %v3406 = vunpack.c.l.b16 %v3315
    %v3407 = vunpack.c.h.b16 %v3315
    %v3408 = vunpack.c.l.b16 %v3316
    %v3409 = vunpack.c.h.b16 %v3316
    %v3410 = vunpack.c.l.b16 %v3317
    %v3411 = vunpack.c.h.b16 %v3317
    %v3412 = vunpack.c.l.b16 %v3318
    %v3413 = vunpack.c.h.b16 %v3318
    %v3414 = vunpack.c.l.b16 %v3319
    %v3415 = vunpack.c.h.b16 %v3319
    %v3416 = vpack.c.b16 %v3356, %v3352
    %v3417 = vpack.c.b16 %v3357, %v3353
    %v3418 = vpack.c.b16 %v3358, %v3354
    %v3419 = vpack.c.b16 %v3359, %v3355
    %v3420 = vpack.c.b16 %v3364, %v3360
    %v3421 = vpack.c.b16 %v3365, %v3361
    %v3422 = vpack.c.b16 %v3366, %v3362
    %v3423 = vpack.c.b16 %v3367, %v3363
    %v3424 = vpack.c.b16 %v3372, %v3368
    %v3425 = vpack.c.b16 %v3373, %v3369
    %v3426 = vpack.c.b16 %v3374, %v3370
    %v3427 = vpack.c.b16 %v3375, %v3371
    %v3428 = vpack.c.b16 %v3380, %v3376
    %v3429 = vpack.c.b16 %v3381, %v3377
    %v3430 = vpack.c.b16 %v3382, %v3378
    %v3431 = vpack.c.b16 %v3383, %v3379
    %v3432 = vpack.c.b16 %v3388, %v3384
    %v3433 = vpack.c.b16 %v3389, %v3385
    %v3434 = vpack.c.b16 %v3390, %v3386
    %v3435 = vpack.c.b16 %v3391, %v3387
    %v3436 = vpack.c.b16 %v3396, %v3392
    %v3437 = vpack.c.b16 %v3397, %v3393
    %v3438 = vpack.c.b16 %v3398, %v3394
    %v3439 = vpack.c.b16 %v3399, %v3395
    %v3440 = vpack.c.b16 %v3404, %v3400
    %v3441 = vpack.c.b16 %v3405, %v3401
    %v3442 = vpack.c.b16 %v3406, %v3402
    %v3443 = vpack.c.b16 %v3407, %v3403
    %v3444 = vpack.c.b16 %v3412, %v3408
    %v3445 = vpack.c.b16 %v3413, %v3409
    %v3446 = vpack.c.b16 %v3414, %v3410
    %v3447 = vpack.c.b16 %v3415, %v3411
    %3480 = vmatprep.subr.bf16.mxu0 %v3445
    %3481 = vmatpush1.bf16.msra.mxu0 %v3444
    %3482 = vmatprep.subr.bf16.mxu0 %v3441
    %3483 = vmatpush1.bf16.msra.mxu0 %v3440
    %3484 = vmatprep.subr.bf16.mxu0 %v3437
    %3485 = vmatpush1.bf16.msra.mxu0 %v3436
    %3486 = vmatprep.subr.bf16.mxu0 %v3433
    %3487 = vmatpush1.bf16.msra.mxu0 %v3432
    %3488 = vmatprep.subr.bf16.mxu0 %v3429
    %3489 = vmatpush1.bf16.msra.mxu0 %v3428
    %3490 = vmatprep.subr.bf16.mxu0 %v3425
    %3491 = vmatpush1.bf16.msra.mxu0 %v3424
    %3492 = vmatprep.subr.bf16.mxu0 %v3421
    %3493 = vmatpush1.bf16.msra.mxu0 %v3420
    %3494 = vmatprep.subr.bf16.mxu0 %v3417
    %3495 = vmatpush1.bf16.msra.mxu0 %v3416
    %3496 = vmatprep.subr.bf16.mxu0 0
    %3497 = vmatpush2.bf16.msra.mxu0 0
    %3498 = vmatprep.subr.bf16.mxu0 0
    %3499 = vmatpush2.bf16.msra.mxu0 0
    %3500 = vmatprep.subr.bf16.mxu0 0
    %3501 = vmatpush2.bf16.msra.mxu0 0
    %3502 = vmatprep.subr.bf16.mxu0 0
    %3503 = vmatpush2.bf16.msra.mxu0 0
    %3504 = vmatprep.subr.bf16.mxu0 0
    %3505 = vmatpush2.bf16.msra.mxu0 0
    %3506 = vmatprep.subr.bf16.mxu0 0
    %3507 = vmatpush2.bf16.msra.mxu0 0
    %3508 = vmatprep.subr.bf16.mxu0 0
    %3509 = vmatpush2.bf16.msra.mxu0 0
    %3510 = vmatprep.subr.bf16.mxu0 0
    %3511 = vmatpush2.bf16.msra.mxu0 0
    %3512 = vmatprep.mubr.bf16.mxu0 0
    %3513 = vmatmul.mubr.bf16.gmra.mxu0 %v3284
    %v3514 = vpop.f32.mrf.mxu0
    %v3515 = vadd.f32 0.0, %v3514
    %v3516 = vpop.f32.mrf.mxu0
    %v3517 = vadd.f32 0.0, %v3516
    %v3518 = vpop.f32.mrf.mxu0
    %v3519 = vadd.f32 0.0, %v3518
    %v3520 = vpop.f32.mrf.mxu0
    %v3521 = vadd.f32 0.0, %v3520
    %3522 = vmatprep.mubr.bf16.mxu0 0
    %3523 = vmatmul.mubr.bf16.gmra.mxu0 %v3285
    %v3524 = vpop.f32.mrf.mxu0
    %v3525 = vadd.f32 0.0, %v3524
    %v3526 = vpop.f32.mrf.mxu0
    %v3527 = vadd.f32 0.0, %v3526
    %v3528 = vpop.f32.mrf.mxu0
    %v3529 = vadd.f32 0.0, %v3528
    %v3530 = vpop.f32.mrf.mxu0
    %v3531 = vadd.f32 0.0, %v3530
    %3532 = vmatprep.mubr.bf16.mxu0 0
    %3533 = vmatmul.mubr.bf16.gmra.mxu0 %v3286
    %v3534 = vpop.f32.mrf.mxu0
    %v3535 = vadd.f32 0.0, %v3534
    %v3536 = vpop.f32.mrf.mxu0
    %v3537 = vadd.f32 0.0, %v3536
    %v3538 = vpop.f32.mrf.mxu0
    %v3539 = vadd.f32 0.0, %v3538
    %v3540 = vpop.f32.mrf.mxu0
    %v3541 = vadd.f32 0.0, %v3540
    %3542 = vmatprep.mubr.bf16.mxu0 0
    %3543 = vmatmul.mubr.bf16.gmra.mxu0 %v3287
    %v3544 = vpop.f32.mrf.mxu0
    %v3545 = vadd.f32 0.0, %v3544
    %v3546 = vpop.f32.mrf.mxu0
    %v3547 = vadd.f32 0.0, %v3546
    %v3548 = vpop.f32.mrf.mxu0
    %v3549 = vadd.f32 0.0, %v3548
    %v3550 = vpop.f32.mrf.mxu0
    %v3551 = vadd.f32 0.0, %v3550
    %3552 = vdwg.mxu0
    %3553 = vmatprep.subr.bf16.mxu0 %v3447
    %3554 = vmatpush1.bf16.msra.mxu0 %v3446
    %3555 = vmatprep.subr.bf16.mxu0 %v3443
    %3556 = vmatpush1.bf16.msra.mxu0 %v3442
    %3557 = vmatprep.subr.bf16.mxu0 %v3439
    %3558 = vmatpush1.bf16.msra.mxu0 %v3438
    %3559 = vmatprep.subr.bf16.mxu0 %v3435
    %3560 = vmatpush1.bf16.msra.mxu0 %v3434
    %3561 = vmatprep.subr.bf16.mxu0 %v3431
    %3562 = vmatpush1.bf16.msra.mxu0 %v3430
    %3563 = vmatprep.subr.bf16.mxu0 %v3427
    %3564 = vmatpush1.bf16.msra.mxu0 %v3426
    %3565 = vmatprep.subr.bf16.mxu0 %v3423
    %3566 = vmatpush1.bf16.msra.mxu0 %v3422
    %3567 = vmatprep.subr.bf16.mxu0 %v3419
    %3568 = vmatpush1.bf16.msra.mxu0 %v3418
    %3569 = vmatprep.subr.bf16.mxu0 0
    %3570 = vmatpush2.bf16.msra.mxu0 0
    %3571 = vmatprep.subr.bf16.mxu0 0
    %3572 = vmatpush2.bf16.msra.mxu0 0
    %3573 = vmatprep.subr.bf16.mxu0 0
    %3574 = vmatpush2.bf16.msra.mxu0 0
    %3575 = vmatprep.subr.bf16.mxu0 0
    %3576 = vmatpush2.bf16.msra.mxu0 0
    %3577 = vmatprep.subr.bf16.mxu0 0
    %3578 = vmatpush2.bf16.msra.mxu0 0
    %3579 = vmatprep.subr.bf16.mxu0 0
    %3580 = vmatpush2.bf16.msra.mxu0 0
    %3581 = vmatprep.subr.bf16.mxu0 0
    %3582 = vmatpush2.bf16.msra.mxu0 0
    %3583 = vmatprep.subr.bf16.mxu0 0
    %3584 = vmatpush2.bf16.msra.mxu0 0
    %3585 = vmatprep.mubr.bf16.mxu0 0
    %3586 = vmatmul.mubr.bf16.gmra.mxu0 %v3284
    %v3587 = vpop.f32.mrf.mxu0
    %v3588 = vadd.f32 0.0, %v3587
    %v3589 = vpop.f32.mrf.mxu0
    %v3590 = vadd.f32 0.0, %v3589
    %v3591 = vpop.f32.mrf.mxu0
    %v3592 = vadd.f32 0.0, %v3591
    %v3593 = vpop.f32.mrf.mxu0
    %v3594 = vadd.f32 0.0, %v3593
    %3595 = vmatprep.mubr.bf16.mxu0 0
    %3596 = vmatmul.mubr.bf16.gmra.mxu0 %v3285
    %v3597 = vpop.f32.mrf.mxu0
    %v3598 = vadd.f32 0.0, %v3597
    %v3599 = vpop.f32.mrf.mxu0
    %v3600 = vadd.f32 0.0, %v3599
    %v3601 = vpop.f32.mrf.mxu0
    %v3602 = vadd.f32 0.0, %v3601
    %v3603 = vpop.f32.mrf.mxu0
    %v3604 = vadd.f32 0.0, %v3603
    %3605 = vmatprep.mubr.bf16.mxu0 0
    %3606 = vmatmul.mubr.bf16.gmra.mxu0 %v3286
    %v3607 = vpop.f32.mrf.mxu0
    %v3608 = vadd.f32 0.0, %v3607
    %v3609 = vpop.f32.mrf.mxu0
    %v3610 = vadd.f32 0.0, %v3609
    %v3611 = vpop.f32.mrf.mxu0
    %v3612 = vadd.f32 0.0, %v3611
    %v3613 = vpop.f32.mrf.mxu0
    %v3614 = vadd.f32 0.0, %v3613
    %3615 = vmatprep.mubr.bf16.mxu0 0
    %3616 = vmatmul.mubr.bf16.gmra.mxu0 %v3287
    %v3617 = vpop.f32.mrf.mxu0
    %v3618 = vadd.f32 0.0, %v3617
    %v3619 = vpop.f32.mrf.mxu0
    %v3620 = vadd.f32 0.0, %v3619
    %v3621 = vpop.f32.mrf.mxu0
    %v3622 = vadd.f32 0.0, %v3621
    %v3623 = vpop.f32.mrf.mxu0
    %v3624 = vadd.f32 0.0, %v3623
    %3625 = vdwg.mxu0
    %3626 = vst [vmem:[#allocation2] sm:$0xff] %v3515
    %3627 = vst [vmem:[#allocation2 + $0x8] sm:$0xff] %v3517
    %3628 = vst [vmem:[#allocation2 + $0x10] sm:$0xff] %v3588
    %3629 = vst [vmem:[#allocation2 + $0x18] sm:$0xff] %v3590
    %3630 = vst [vmem:[#allocation2 + $0x20] sm:$0xff] %v3519
    %3631 = vst [vmem:[#allocation2 + $0x28] sm:$0xff] %v3521
    %3632 = vst [vmem:[#allocation2 + $0x30] sm:$0xff] %v3592
    %3633 = vst [vmem:[#allocation2 + $0x38] sm:$0xff] %v3594
    %3634 = vst [vmem:[#allocation2 + $0x40] sm:$0xff] %v3525
    %3635 = vst [vmem:[#allocation2 + $0x48] sm:$0xff] %v3527
    %3636 = vst [vmem:[#allocation2 + $0x50] sm:$0xff] %v3598
    %3637 = vst [vmem:[#allocation2 + $0x58] sm:$0xff] %v3600
    %3638 = vst [vmem:[#allocation2 + $0x60] sm:$0xff] %v3529
    %3639 = vst [vmem:[#allocation2 + $0x68] sm:$0xff] %v3531
    %3640 = vst [vmem:[#allocation2 + $0x70] sm:$0xff] %v3602
    %3641 = vst [vmem:[#allocation2 + $0x78] sm:$0xff] %v3604
    %3642 = vst [vmem:[#allocation2 + $0x80] sm:$0xff] %v3535
    %3643 = vst [vmem:[#allocation2 + $0x88] sm:$0xff] %v3537
    %3644 = vst [vmem:[#allocation2 + $0x90] sm:$0xff] %v3608
    %3645 = vst [vmem:[#allocation2 + $0x98] sm:$0xff] %v3610
    %3646 = vst [vmem:[#allocation2 + $0xa0] sm:$0xff] %v3539
    %3647 = vst [vmem:[#allocation2 + $0xa8] sm:$0xff] %v3541
    %3648 = vst [vmem:[#allocation2 + $0xb0] sm:$0xff] %v3612
    %3649 = vst [vmem:[#allocation2 + $0xb8] sm:$0xff] %v3614
    %3650 = vst [vmem:[#allocation2 + $0xc0] sm:$0xff] %v3545
    %3651 = vst [vmem:[#allocation2 + $0xc8] sm:$0xff] %v3547
    %3652 = vst [vmem:[#allocation2 + $0xd0] sm:$0xff] %v3618
    %3653 = vst [vmem:[#allocation2 + $0xd8] sm:$0xff] %v3620
    %3654 = vst [vmem:[#allocation2 + $0xe0] sm:$0xff] %v3549
    %3655 = vst [vmem:[#allocation2 + $0xe8] sm:$0xff] %v3551
    %3656 = vst [vmem:[#allocation2 + $0xf0] sm:$0xff] %v3622
    %3657 = vst [vmem:[#allocation2 + $0xf8] sm:$0xff] %v3624
    %v3658 = vld [vmem:[#allocation15] sm:$0xff]
    %v3659 = vld [vmem:[#allocation15 + $0x8] sm:$0xff]
    %v3660 = vld [vmem:[#allocation15 + $0x10] sm:$0xff]
    %v3661 = vld [vmem:[#allocation15 + $0x18] sm:$0xff]
    %v3662 = vld [vmem:[#allocation15 + $0x20] sm:$0xff]
    %v3663 = vld [vmem:[#allocation15 + $0x28] sm:$0xff]
    %v3664 = vld [vmem:[#allocation15 + $0x30] sm:$0xff]
    %v3665 = vld [vmem:[#allocation15 + $0x38] sm:$0xff]
    %v3666 = vld [vmem:[#allocation15 + $0x40] sm:$0xff]
    %v3667 = vld [vmem:[#allocation15 + $0x48] sm:$0xff]
    %v3668 = vld [vmem:[#allocation15 + $0x50] sm:$0xff]
    %v3669 = vld [vmem:[#allocation15 + $0x58] sm:$0xff]
    %v3670 = vld [vmem:[#allocation15 + $0x60] sm:$0xff]
    %v3671 = vld [vmem:[#allocation15 + $0x68] sm:$0xff]
    %v3672 = vld [vmem:[#allocation15 + $0x70] sm:$0xff]
    %v3673 = vld [vmem:[#allocation15 + $0x78] sm:$0xff]
    %v3674 = vld [vmem:[#allocation15 + $0x80] sm:$0xff]
    %v3675 = vld [vmem:[#allocation15 + $0x88] sm:$0xff]
    %v3676 = vld [vmem:[#allocation15 + $0x90] sm:$0xff]
    %v3677 = vld [vmem:[#allocation15 + $0x98] sm:$0xff]
    %v3678 = vld [vmem:[#allocation15 + $0xa0] sm:$0xff]
    %v3679 = vld [vmem:[#allocation15 + $0xa8] sm:$0xff]
    %v3680 = vld [vmem:[#allocation15 + $0xb0] sm:$0xff]
    %v3681 = vld [vmem:[#allocation15 + $0xb8] sm:$0xff]
    %v3682 = vld [vmem:[#allocation15 + $0xc0] sm:$0xff]
    %v3683 = vld [vmem:[#allocation15 + $0xc8] sm:$0xff]
    %v3684 = vld [vmem:[#allocation15 + $0xd0] sm:$0xff]
    %v3685 = vld [vmem:[#allocation15 + $0xd8] sm:$0xff]
    %v3686 = vld [vmem:[#allocation15 + $0xe0] sm:$0xff]
    %v3687 = vld [vmem:[#allocation15 + $0xe8] sm:$0xff]
    %v3688 = vld [vmem:[#allocation15 + $0xf0] sm:$0xff]
    %v3689 = vld [vmem:[#allocation15 + $0xf8] sm:$0xff]
    %v3690 = vld [vmem:[%s9] sm:$0xf]
    %v3692 = vlaneseq
    %v3693 = vshrl.u32 %v3692, 7
    %v3694 = vsub.s32 0, %v3693
    %v3695 = vrot.slane %v3690, %v3694
    %v3696 = vlaneseq
    %v3697 = vshrl.u32 %v3696, 7
    %v3698 = vsub.s32 1, %v3697
    %v3699 = vrot.slane %v3690, %v3698
    %v3700 = vlaneseq
    %v3701 = vshrl.u32 %v3700, 7
    %v3702 = vsub.s32 2, %v3701
    %v3703 = vrot.slane %v3690, %v3702
    %v3704 = vlaneseq
    %v3705 = vshrl.u32 %v3704, 7
    %v3706 = vsub.s32 3, %v3705
    %v3707 = vrot.slane %v3690, %v3706
    %v3712 = vld [vmem:[#allocation2] sm:$0xff]
    %v3713 = vld [vmem:[#allocation2 + $0x8] sm:$0xff]
    %v3714 = vld [vmem:[#allocation2 + $0x10] sm:$0xff]
    %v3715 = vld [vmem:[#allocation2 + $0x18] sm:$0xff]
    %v3748 = vunpack.c.l.b16 %v3658
    %v3749 = vunpack.c.h.b16 %v3658
    %v3750 = vunpack.c.l.b16 %v3659
    %v3751 = vunpack.c.h.b16 %v3659
    %v3752 = vunpack.c.l.b16 %v3660
    %v3753 = vunpack.c.h.b16 %v3660
    %v3754 = vunpack.c.l.b16 %v3661
    %v3755 = vunpack.c.h.b16 %v3661
    %v3756 = vunpack.c.l.b16 %v3662
    %v3757 = vunpack.c.h.b16 %v3662
    %v3758 = vunpack.c.l.b16 %v3663
    %v3759 = vunpack.c.h.b16 %v3663
    %v3760 = vunpack.c.l.b16 %v3664
    %v3761 = vunpack.c.h.b16 %v3664
    %v3762 = vunpack.c.l.b16 %v3665
    %v3763 = vunpack.c.h.b16 %v3665
    %v3764 = vunpack.c.l.b16 %v3666
    %v3765 = vunpack.c.h.b16 %v3666
    %v3766 = vunpack.c.l.b16 %v3667
    %v3767 = vunpack.c.h.b16 %v3667
    %v3768 = vunpack.c.l.b16 %v3668
    %v3769 = vunpack.c.h.b16 %v3668
    %v3770 = vunpack.c.l.b16 %v3669
    %v3771 = vunpack.c.h.b16 %v3669
    %v3772 = vunpack.c.l.b16 %v3670
    %v3773 = vunpack.c.h.b16 %v3670
    %v3774 = vunpack.c.l.b16 %v3671
    %v3775 = vunpack.c.h.b16 %v3671
    %v3776 = vunpack.c.l.b16 %v3672
    %v3777 = vunpack.c.h.b16 %v3672
    %v3778 = vunpack.c.l.b16 %v3673
    %v3779 = vunpack.c.h.b16 %v3673
    %v3780 = vunpack.c.l.b16 %v3674
    %v3781 = vunpack.c.h.b16 %v3674
    %v3782 = vunpack.c.l.b16 %v3675
    %v3783 = vunpack.c.h.b16 %v3675
    %v3784 = vunpack.c.l.b16 %v3676
    %v3785 = vunpack.c.h.b16 %v3676
    %v3786 = vunpack.c.l.b16 %v3677
    %v3787 = vunpack.c.h.b16 %v3677
    %v3788 = vunpack.c.l.b16 %v3678
    %v3789 = vunpack.c.h.b16 %v3678
    %v3790 = vunpack.c.l.b16 %v3679
    %v3791 = vunpack.c.h.b16 %v3679
    %v3792 = vunpack.c.l.b16 %v3680
    %v3793 = vunpack.c.h.b16 %v3680
    %v3794 = vunpack.c.l.b16 %v3681
    %v3795 = vunpack.c.h.b16 %v3681
    %v3796 = vunpack.c.l.b16 %v3682
    %v3797 = vunpack.c.h.b16 %v3682
    %v3798 = vunpack.c.l.b16 %v3683
    %v3799 = vunpack.c.h.b16 %v3683
    %v3800 = vunpack.c.l.b16 %v3684
    %v3801 = vunpack.c.h.b16 %v3684
    %v3802 = vunpack.c.l.b16 %v3685
    %v3803 = vunpack.c.h.b16 %v3685
    %v3804 = vunpack.c.l.b16 %v3686
    %v3805 = vunpack.c.h.b16 %v3686
    %v3806 = vunpack.c.l.b16 %v3687
    %v3807 = vunpack.c.h.b16 %v3687
    %v3808 = vunpack.c.l.b16 %v3688
    %v3809 = vunpack.c.h.b16 %v3688
    %v3810 = vunpack.c.l.b16 %v3689
    %v3811 = vunpack.c.h.b16 %v3689
    %v3812 = vpack.c.b16 %v3752, %v3748
    %v3813 = vpack.c.b16 %v3753, %v3749
    %v3814 = vpack.c.b16 %v3754, %v3750
    %v3815 = vpack.c.b16 %v3755, %v3751
    %v3816 = vpack.c.b16 %v3760, %v3756
    %v3817 = vpack.c.b16 %v3761, %v3757
    %v3818 = vpack.c.b16 %v3762, %v3758
    %v3819 = vpack.c.b16 %v3763, %v3759
    %v3820 = vpack.c.b16 %v3768, %v3764
    %v3821 = vpack.c.b16 %v3769, %v3765
    %v3822 = vpack.c.b16 %v3770, %v3766
    %v3823 = vpack.c.b16 %v3771, %v3767
    %v3824 = vpack.c.b16 %v3776, %v3772
    %v3825 = vpack.c.b16 %v3777, %v3773
    %v3826 = vpack.c.b16 %v3778, %v3774
    %v3827 = vpack.c.b16 %v3779, %v3775
    %v3828 = vpack.c.b16 %v3784, %v3780
    %v3829 = vpack.c.b16 %v3785, %v3781
    %v3830 = vpack.c.b16 %v3786, %v3782
    %v3831 = vpack.c.b16 %v3787, %v3783
    %v3832 = vpack.c.b16 %v3792, %v3788
    %v3833 = vpack.c.b16 %v3793, %v3789
    %v3834 = vpack.c.b16 %v3794, %v3790
    %v3835 = vpack.c.b16 %v3795, %v3791
    %v3836 = vpack.c.b16 %v3800, %v3796
    %v3837 = vpack.c.b16 %v3801, %v3797
    %v3838 = vpack.c.b16 %v3802, %v3798
    %v3839 = vpack.c.b16 %v3803, %v3799
    %v3840 = vpack.c.b16 %v3808, %v3804
    %v3841 = vpack.c.b16 %v3809, %v3805
    %v3842 = vpack.c.b16 %v3810, %v3806
    %v3843 = vpack.c.b16 %v3811, %v3807
    %3876 = vmatprep.subr.bf16.mxu0 %v3841
    %3877 = vmatpush1.bf16.msra.mxu0 %v3840
    %3878 = vmatprep.subr.bf16.mxu0 %v3837
    %3879 = vmatpush1.bf16.msra.mxu0 %v3836
    %3880 = vmatprep.subr.bf16.mxu0 %v3833
    %3881 = vmatpush1.bf16.msra.mxu0 %v3832
    %3882 = vmatprep.subr.bf16.mxu0 %v3829
    %3883 = vmatpush1.bf16.msra.mxu0 %v3828
    %3884 = vmatprep.subr.bf16.mxu0 %v3825
    %3885 = vmatpush1.bf16.msra.mxu0 %v3824
    %3886 = vmatprep.subr.bf16.mxu0 %v3821
    %3887 = vmatpush1.bf16.msra.mxu0 %v3820
    %3888 = vmatprep.subr.bf16.mxu0 %v3817
    %3889 = vmatpush1.bf16.msra.mxu0 %v3816
    %3890 = vmatprep.subr.bf16.mxu0 %v3813
    %3891 = vmatpush1.bf16.msra.mxu0 %v3812
    %3892 = vmatprep.subr.bf16.mxu0 0
    %3893 = vmatpush2.bf16.msra.mxu0 0
    %3894 = vmatprep.subr.bf16.mxu0 0
    %3895 = vmatpush2.bf16.msra.mxu0 0
    %3896 = vmatprep.subr.bf16.mxu0 0
    %3897 = vmatpush2.bf16.msra.mxu0 0
    %3898 = vmatprep.subr.bf16.mxu0 0
    %3899 = vmatpush2.bf16.msra.mxu0 0
    %3900 = vmatprep.subr.bf16.mxu0 0
    %3901 = vmatpush2.bf16.msra.mxu0 0
    %3902 = vmatprep.subr.bf16.mxu0 0
    %3903 = vmatpush2.bf16.msra.mxu0 0
    %3904 = vmatprep.subr.bf16.mxu0 0
    %3905 = vmatpush2.bf16.msra.mxu0 0
    %3906 = vmatprep.subr.bf16.mxu0 0
    %3907 = vmatpush2.bf16.msra.mxu0 0
    %3908 = vmatprep.mubr.bf16.mxu0 0
    %3909 = vmatmul.mubr.bf16.gmra.mxu0 0
    %v3910 = vpop.f32.mrf.mxu0
    %v3911 = vadd.f32 0.0, %v3910
    %v3912 = vpop.f32.mrf.mxu0
    %v3913 = vadd.f32 0.0, %v3912
    %v3914 = vpop.f32.mrf.mxu0
    %v3915 = vpop.f32.mrf.mxu0
    %3916 = vdwg.mxu0
    %3917 = vmatprep.subr.bf16.mxu0 %v3843
    %3918 = vmatpush1.bf16.msra.mxu0 %v3842
    %3919 = vmatprep.subr.bf16.mxu0 %v3839
    %3920 = vmatpush1.bf16.msra.mxu0 %v3838
    %3921 = vmatprep.subr.bf16.mxu0 %v3835
    %3922 = vmatpush1.bf16.msra.mxu0 %v3834
    %3923 = vmatprep.subr.bf16.mxu0 %v3831
    %3924 = vmatpush1.bf16.msra.mxu0 %v3830
    %3925 = vmatprep.subr.bf16.mxu0 %v3827
    %3926 = vmatpush1.bf16.msra.mxu0 %v3826
    %3927 = vmatprep.subr.bf16.mxu0 %v3823
    %3928 = vmatpush1.bf16.msra.mxu0 %v3822
    %3929 = vmatprep.subr.bf16.mxu0 %v3819
    %3930 = vmatpush1.bf16.msra.mxu0 %v3818
    %3931 = vmatprep.subr.bf16.mxu0 %v3815
    %3932 = vmatpush1.bf16.msra.mxu0 %v3814
    %3933 = vmatprep.subr.bf16.mxu0 0
    %3934 = vmatpush2.bf16.msra.mxu0 0
    %3935 = vmatprep.subr.bf16.mxu0 0
    %3936 = vmatpush2.bf16.msra.mxu0 0
    %3937 = vmatprep.subr.bf16.mxu0 0
    %3938 = vmatpush2.bf16.msra.mxu0 0
    %3939 = vmatprep.subr.bf16.mxu0 0
    %3940 = vmatpush2.bf16.msra.mxu0 0
    %3941 = vmatprep.subr.bf16.mxu0 0
    %3942 = vmatpush2.bf16.msra.mxu0 0
    %3943 = vmatprep.subr.bf16.mxu0 0
    %3944 = vmatpush2.bf16.msra.mxu0 0
    %3945 = vmatprep.subr.bf16.mxu0 0
    %3946 = vmatpush2.bf16.msra.mxu0 0
    %3947 = vmatprep.subr.bf16.mxu0 0
    %3948 = vmatpush2.bf16.msra.mxu0 0
    %3949 = vmatprep.mubr.bf16.mxu0 0
    %3950 = vmatmul.mubr.bf16.gmra.mxu0 0
    %v3951 = vpop.f32.mrf.mxu0
    %v3952 = vadd.f32 0.0, %v3951
    %v3953 = vpop.f32.mrf.mxu0
    %v3954 = vadd.f32 0.0, %v3953
    %v3955 = vpop.f32.mrf.mxu0
    %v3956 = vpop.f32.mrf.mxu0
    %3957 = vdwg.mxu0
    %v3958 = vadd.f32 %v3712, %v3911
    %v3959 = vadd.f32 %v3713, %v3913
    %v3960 = vadd.f32 %v3714, %v3952
    %v3961 = vadd.f32 %v3715, %v3954
    %v3962 = vadd.f32 %v3958, %v3695
    %v3963 = vadd.f32 %v3959, %v3699
    %v3964 = vadd.f32 %v3960, %v3703
    %v3965 = vadd.f32 %v3961, %v3707
    %v3966 = vxor.u32 %v3962, 2147483648
    %v3967 = vmul.f32 %v3966, 1.442695
    %v3968 = vpow.pop %v3967
    %v3969 = vadd.f32 %v3968, 1.0
    %v3970 = vrcp.pop %v3969
    %v3971 = vmul.f32 1.0, %v3970
    %v3972 = vxor.u32 %v3963, 2147483648
    %v3973 = vmul.f32 %v3972, 1.442695
    %v3974 = vpow.pop %v3973
    %v3975 = vadd.f32 %v3974, 1.0
    %v3976 = vrcp.pop %v3975
    %v3977 = vmul.f32 1.0, %v3976
    %v3978 = vtanh.pop %v3964
    %v3979 = vxor.u32 %v3965, 2147483648
    %v3980 = vmul.f32 %v3979, 1.442695
    %v3981 = vpow.pop %v3980
    %v3982 = vadd.f32 %v3981, 1.0
    %v3983 = vrcp.pop %v3982
    %v3984 = vmul.f32 1.0, %v3983
    %v3985 = vmul.f32 %v3977, 0.0
    %v3986 = vmul.f32 %v3971, %v3978
    %v3987 = vadd.f32 %v3985, %v3986
    %v3988 = vtanh.pop %v3987
    %v3989 = vmul.f32 %v3984, %v3988
    %v3990 = vld [vmem:[%s867] sm:$0xff]
    %v3991 = vld [vmem:[%s867 + $0x8] sm:$0xff]
    %v3992 = vld [vmem:[%s867 + $0x10] sm:$0xff]
    %v3993 = vld [vmem:[%s867 + $0x18] sm:$0xff]
    %v3994 = vpack.c.bf16 %v3989, %v3989
    %3995 = vmatprep.subr.bf16.mxu0 %v3841
    %3996 = vmatpush1.bf16.msra.mxu0 %v3840
    %3997 = vmatprep.subr.bf16.mxu0 %v3837
    %3998 = vmatpush1.bf16.msra.mxu0 %v3836
    %3999 = vmatprep.subr.bf16.mxu0 %v3833
    %4000 = vmatpush1.bf16.msra.mxu0 %v3832
    %4001 = vmatprep.subr.bf16.mxu0 %v3829
    %4002 = vmatpush1.bf16.msra.mxu0 %v3828
    %4003 = vmatprep.subr.bf16.mxu0 %v3825
    %4004 = vmatpush1.bf16.msra.mxu0 %v3824
    %4005 = vmatprep.subr.bf16.mxu0 %v3821
    %4006 = vmatpush1.bf16.msra.mxu0 %v3820
    %4007 = vmatprep.subr.bf16.mxu0 %v3817
    %4008 = vmatpush1.bf16.msra.mxu0 %v3816
    %4009 = vmatprep.subr.bf16.mxu0 %v3813
    %4010 = vmatpush1.bf16.msra.mxu0 %v3812
    %4011 = vmatprep.subr.bf16.mxu0 0
    %4012 = vmatpush2.bf16.msra.mxu0 0
    %4013 = vmatprep.subr.bf16.mxu0 0
    %4014 = vmatpush2.bf16.msra.mxu0 0
    %4015 = vmatprep.subr.bf16.mxu0 0
    %4016 = vmatpush2.bf16.msra.mxu0 0
    %4017 = vmatprep.subr.bf16.mxu0 0
    %4018 = vmatpush2.bf16.msra.mxu0 0
    %4019 = vmatprep.subr.bf16.mxu0 0
    %4020 = vmatpush2.bf16.msra.mxu0 0
    %4021 = vmatprep.subr.bf16.mxu0 0
    %4022 = vmatpush2.bf16.msra.mxu0 0
    %4023 = vmatprep.subr.bf16.mxu0 0
    %4024 = vmatpush2.bf16.msra.mxu0 0
    %4025 = vmatprep.subr.bf16.mxu0 0
    %4026 = vmatpush2.bf16.msra.mxu0 0
    %4027 = vmatprep.mubr.bf16.mxu0 0
    %4028 = vmatmul.mubr.bf16.gmra.mxu0 %v3994
    %v4029 = vpop.f32.mrf.mxu0
    %v4030 = vadd.f32 0.0, %v4029
    %v4031 = vpop.f32.mrf.mxu0
    %v4032 = vadd.f32 0.0, %v4031
    %v4033 = vpop.f32.mrf.mxu0
    %v4034 = vpop.f32.mrf.mxu0
    %4035 = vdwg.mxu0
    %4036 = vmatprep.subr.bf16.mxu0 %v3843
    %4037 = vmatpush1.bf16.msra.mxu0 %v3842
    %4038 = vmatprep.subr.bf16.mxu0 %v3839
    %4039 = vmatpush1.bf16.msra.mxu0 %v3838
    %4040 = vmatprep.subr.bf16.mxu0 %v3835
    %4041 = vmatpush1.bf16.msra.mxu0 %v3834
    %4042 = vmatprep.subr.bf16.mxu0 %v3831
    %4043 = vmatpush1.bf16.msra.mxu0 %v3830
    %4044 = vmatprep.subr.bf16.mxu0 %v3827
    %4045 = vmatpush1.bf16.msra.mxu0 %v3826
    %4046 = vmatprep.subr.bf16.mxu0 %v3823
    %4047 = vmatpush1.bf16.msra.mxu0 %v3822
    %4048 = vmatprep.subr.bf16.mxu0 %v3819
    %4049 = vmatpush1.bf16.msra.mxu0 %v3818
    %4050 = vmatprep.subr.bf16.mxu0 %v3815
    %4051 = vmatpush1.bf16.msra.mxu0 %v3814
    %4052 = vmatprep.subr.bf16.mxu0 0
    %4053 = vmatpush2.bf16.msra.mxu0 0
    %4054 = vmatprep.subr.bf16.mxu0 0
    %4055 = vmatpush2.bf16.msra.mxu0 0
    %4056 = vmatprep.subr.bf16.mxu0 0
    %4057 = vmatpush2.bf16.msra.mxu0 0
    %4058 = vmatprep.subr.bf16.mxu0 0
    %4059 = vmatpush2.bf16.msra.mxu0 0
    %4060 = vmatprep.subr.bf16.mxu0 0
    %4061 = vmatpush2.bf16.msra.mxu0 0
    %4062 = vmatprep.subr.bf16.mxu0 0
    %4063 = vmatpush2.bf16.msra.mxu0 0
    %4064 = vmatprep.subr.bf16.mxu0 0
    %4065 = vmatpush2.bf16.msra.mxu0 0
    %4066 = vmatprep.subr.bf16.mxu0 0
    %4067 = vmatpush2.bf16.msra.mxu0 0
    %4068 = vmatprep.mubr.bf16.mxu0 0
    %4069 = vmatmul.mubr.bf16.gmra.mxu0 %v3994
    %v4070 = vpop.f32.mrf.mxu0
    %v4071 = vadd.f32 0.0, %v4070
    %v4072 = vpop.f32.mrf.mxu0
    %v4073 = vadd.f32 0.0, %v4072
    %v4074 = vpop.f32.mrf.mxu0
    %v4075 = vpop.f32.mrf.mxu0
    %4076 = vdwg.mxu0
    %v4077 = vadd.f32 %v3990, %v4030
    %v4078 = vadd.f32 %v3991, %v4032
    %v4079 = vadd.f32 %v3992, %v4071
    %v4080 = vadd.f32 %v3993, %v4073
    %v4081 = vadd.f32 %v4077, %v3695
    %v4082 = vadd.f32 %v4078, %v3699
    %v4083 = vadd.f32 %v4079, %v3703
    %v4084 = vadd.f32 %v4080, %v3707
    %v4085 = vxor.u32 %v4081, 2147483648
    %v4086 = vmul.f32 %v4085, 1.442695
    %v4087 = vpow.pop %v4086
    %v4088 = vadd.f32 %v4087, 1.0
    %v4089 = vrcp.pop %v4088
    %v4090 = vmul.f32 1.0, %v4089
    %v4091 = vxor.u32 %v4082, 2147483648
    %v4092 = vmul.f32 %v4091, 1.442695
    %v4093 = vpow.pop %v4092
    %v4094 = vadd.f32 %v4093, 1.0
    %v4095 = vrcp.pop %v4094
    %v4096 = vmul.f32 1.0, %v4095
    %v4097 = vtanh.pop %v4083
    %v4098 = vxor.u32 %v4084, 2147483648
    %v4099 = vmul.f32 %v4098, 1.442695
    %v4100 = vpow.pop %v4099
    %v4101 = vadd.f32 %v4100, 1.0
    %v4102 = vrcp.pop %v4101
    %v4103 = vmul.f32 1.0, %v4102
    %v4104 = vmul.f32 %v4096, %v3987
    %v4105 = vmul.f32 %v4090, %v4097
    %v4106 = vadd.f32 %v4104, %v4105
    %v4107 = vtanh.pop %v4106
    %v4108 = vmul.f32 %v4103, %v4107
    %v4109 = vld [vmem:[%s989] sm:$0xff]
    %v4110 = vld [vmem:[%s989 + $0x8] sm:$0xff]
    %v4111 = vld [vmem:[%s989 + $0x10] sm:$0xff]
    %v4112 = vld [vmem:[%s989 + $0x18] sm:$0xff]
    %v4113 = vpack.c.bf16 %v4108, %v4108
    %4114 = vmatprep.subr.bf16.mxu0 %v3841
    %4115 = vmatpush1.bf16.msra.mxu0 %v3840
    %4116 = vmatprep.subr.bf16.mxu0 %v3837
    %4117 = vmatpush1.bf16.msra.mxu0 %v3836
    %4118 = vmatprep.subr.bf16.mxu0 %v3833
    %4119 = vmatpush1.bf16.msra.mxu0 %v3832
    %4120 = vmatprep.subr.bf16.mxu0 %v3829
    %4121 = vmatpush1.bf16.msra.mxu0 %v3828
    %4122 = vmatprep.subr.bf16.mxu0 %v3825
    %4123 = vmatpush1.bf16.msra.mxu0 %v3824
    %4124 = vmatprep.subr.bf16.mxu0 %v3821
    %4125 = vmatpush1.bf16.msra.mxu0 %v3820
    %4126 = vmatprep.subr.bf16.mxu0 %v3817
    %4127 = vmatpush1.bf16.msra.mxu0 %v3816
    %4128 = vmatprep.subr.bf16.mxu0 %v3813
    %4129 = vmatpush1.bf16.msra.mxu0 %v3812
    %4130 = vmatprep.subr.bf16.mxu0 0
    %4131 = vmatpush2.bf16.msra.mxu0 0
    %4132 = vmatprep.subr.bf16.mxu0 0
    %4133 = vmatpush2.bf16.msra.mxu0 0
    %4134 = vmatprep.subr.bf16.mxu0 0
    %4135 = vmatpush2.bf16.msra.mxu0 0
    %4136 = vmatprep.subr.bf16.mxu0 0
    %4137 = vmatpush2.bf16.msra.mxu0 0
    %4138 = vmatprep.subr.bf16.mxu0 0
    %4139 = vmatpush2.bf16.msra.mxu0 0
    %4140 = vmatprep.subr.bf16.mxu0 0
    %4141 = vmatpush2.bf16.msra.mxu0 0
    %4142 = vmatprep.subr.bf16.mxu0 0
    %4143 = vmatpush2.bf16.msra.mxu0 0
    %4144 = vmatprep.subr.bf16.mxu0 0
    %4145 = vmatpush2.bf16.msra.mxu0 0
    %4146 = vmatprep.mubr.bf16.mxu0 0
    %4147 = vmatmul.mubr.bf16.gmra.mxu0 %v4113
    %v4148 = vpop.f32.mrf.mxu0
    %v4149 = vadd.f32 0.0, %v4148
    %v4150 = vpop.f32.mrf.mxu0
    %v4151 = vadd.f32 0.0, %v4150
    %v4152 = vpop.f32.mrf.mxu0
    %v4153 = vpop.f32.mrf.mxu0
    %4154 = vdwg.mxu0
    %4155 = vmatprep.subr.bf16.mxu0 %v3843
    %4156 = vmatpush1.bf16.msra.mxu0 %v3842
    %4157 = vmatprep.subr.bf16.mxu0 %v3839
    %4158 = vmatpush1.bf16.msra.mxu0 %v3838
    %4159 = vmatprep.subr.bf16.mxu0 %v3835
    %4160 = vmatpush1.bf16.msra.mxu0 %v3834
    %4161 = vmatprep.subr.bf16.mxu0 %v3831
    %4162 = vmatpush1.bf16.msra.mxu0 %v3830
    %4163 = vmatprep.subr.bf16.mxu0 %v3827
    %4164 = vmatpush1.bf16.msra.mxu0 %v3826
    %4165 = vmatprep.subr.bf16.mxu0 %v3823
    %4166 = vmatpush1.bf16.msra.mxu0 %v3822
    %4167 = vmatprep.subr.bf16.mxu0 %v3819
    %4168 = vmatpush1.bf16.msra.mxu0 %v3818
    %4169 = vmatprep.subr.bf16.mxu0 %v3815
    %4170 = vmatpush1.bf16.msra.mxu0 %v3814
    %4171 = vmatprep.subr.bf16.mxu0 0
    %4172 = vmatpush2.bf16.msra.mxu0 0
    %4173 = vmatprep.subr.bf16.mxu0 0
    %4174 = vmatpush2.bf16.msra.mxu0 0
    %4175 = vmatprep.subr.bf16.mxu0 0
    %4176 = vmatpush2.bf16.msra.mxu0 0
    %4177 = vmatprep.subr.bf16.mxu0 0
    %4178 = vmatpush2.bf16.msra.mxu0 0
    %4179 = vmatprep.subr.bf16.mxu0 0
    %4180 = vmatpush2.bf16.msra.mxu0 0
    %4181 = vmatprep.subr.bf16.mxu0 0
    %4182 = vmatpush2.bf16.msra.mxu0 0
    %4183 = vmatprep.subr.bf16.mxu0 0
    %4184 = vmatpush2.bf16.msra.mxu0 0
    %4185 = vmatprep.subr.bf16.mxu0 0
    %4186 = vmatpush2.bf16.msra.mxu0 0
    %4187 = vmatprep.mubr.bf16.mxu0 0
    %4188 = vmatmul.mubr.bf16.gmra.mxu0 %v4113
    %v4189 = vpop.f32.mrf.mxu0
    %v4190 = vadd.f32 0.0, %v4189
    %v4191 = vpop.f32.mrf.mxu0
    %v4192 = vadd.f32 0.0, %v4191
    %v4193 = vpop.f32.mrf.mxu0
    %v4194 = vpop.f32.mrf.mxu0
    %4195 = vdwg.mxu0
    %v4196 = vadd.f32 %v4109, %v4149
    %v4197 = vadd.f32 %v4110, %v4151
    %v4198 = vadd.f32 %v4111, %v4190
    %v4199 = vadd.f32 %v4112, %v4192
    %v4200 = vadd.f32 %v4196, %v3695
    %v4201 = vadd.f32 %v4197, %v3699
    %v4202 = vadd.f32 %v4198, %v3703
    %v4203 = vadd.f32 %v4199, %v3707
    %v4204 = vxor.u32 %v4200, 2147483648
    %v4205 = vmul.f32 %v4204, 1.442695
    %v4206 = vpow.pop %v4205
    %v4207 = vadd.f32 %v4206, 1.0
    %v4208 = vrcp.pop %v4207
    %v4209 = vmul.f32 1.0, %v4208
    %v4210 = vxor.u32 %v4201, 2147483648
    %v4211 = vmul.f32 %v4210, 1.442695
    %v4212 = vpow.pop %v4211
    %v4213 = vadd.f32 %v4212, 1.0
    %v4214 = vrcp.pop %v4213
    %v4215 = vmul.f32 1.0, %v4214
    %v4216 = vtanh.pop %v4202
    %v4217 = vxor.u32 %v4203, 2147483648
    %v4218 = vmul.f32 %v4217, 1.442695
    %v4219 = vpow.pop %v4218
    %v4220 = vadd.f32 %v4219, 1.0
    %v4221 = vrcp.pop %v4220
    %v4222 = vmul.f32 1.0, %v4221
    %v4223 = vmul.f32 %v4215, %v4106
    %v4224 = vmul.f32 %v4209, %v4216
    %v4225 = vadd.f32 %v4223, %v4224
    %v4226 = vtanh.pop %v4225
    %v4227 = vmul.f32 %v4222, %v4226
    %v4228 = vld [vmem:[%s1111] sm:$0xff]
    %v4229 = vld [vmem:[%s1111 + $0x8] sm:$0xff]
    %v4230 = vld [vmem:[%s1111 + $0x10] sm:$0xff]
    %v4231 = vld [vmem:[%s1111 + $0x18] sm:$0xff]
    %v4232 = vpack.c.bf16 %v4227, %v4227
    %4233 = vmatprep.subr.bf16.mxu0 %v3841
    %4234 = vmatpush1.bf16.msra.mxu0 %v3840
    %4235 = vmatprep.subr.bf16.mxu0 %v3837
    %4236 = vmatpush1.bf16.msra.mxu0 %v3836
    %4237 = vmatprep.subr.bf16.mxu0 %v3833
    %4238 = vmatpush1.bf16.msra.mxu0 %v3832
    %4239 = vmatprep.subr.bf16.mxu0 %v3829
    %4240 = vmatpush1.bf16.msra.mxu0 %v3828
    %4241 = vmatprep.subr.bf16.mxu0 %v3825
    %4242 = vmatpush1.bf16.msra.mxu0 %v3824
    %4243 = vmatprep.subr.bf16.mxu0 %v3821
    %4244 = vmatpush1.bf16.msra.mxu0 %v3820
    %4245 = vmatprep.subr.bf16.mxu0 %v3817
    %4246 = vmatpush1.bf16.msra.mxu0 %v3816
    %4247 = vmatprep.subr.bf16.mxu0 %v3813
    %4248 = vmatpush1.bf16.msra.mxu0 %v3812
    %4249 = vmatprep.subr.bf16.mxu0 0
    %4250 = vmatpush2.bf16.msra.mxu0 0
    %4251 = vmatprep.subr.bf16.mxu0 0
    %4252 = vmatpush2.bf16.msra.mxu0 0
    %4253 = vmatprep.subr.bf16.mxu0 0
    %4254 = vmatpush2.bf16.msra.mxu0 0
    %4255 = vmatprep.subr.bf16.mxu0 0
    %4256 = vmatpush2.bf16.msra.mxu0 0
    %4257 = vmatprep.subr.bf16.mxu0 0
    %4258 = vmatpush2.bf16.msra.mxu0 0
    %4259 = vmatprep.subr.bf16.mxu0 0
    %4260 = vmatpush2.bf16.msra.mxu0 0
    %4261 = vmatprep.subr.bf16.mxu0 0
    %4262 = vmatpush2.bf16.msra.mxu0 0
    %4263 = vmatprep.subr.bf16.mxu0 0
    %4264 = vmatpush2.bf16.msra.mxu0 0
    %4265 = vmatprep.mubr.bf16.mxu0 0
    %4266 = vmatmul.mubr.bf16.gmra.mxu0 %v4232
    %v4267 = vpop.f32.mrf.mxu0
    %v4268 = vadd.f32 0.0, %v4267
    %v4269 = vpop.f32.mrf.mxu0
    %v4270 = vadd.f32 0.0, %v4269
    %v4271 = vpop.f32.mrf.mxu0
    %v4272 = vpop.f32.mrf.mxu0
    %4273 = vdwg.mxu0
    %4274 = vmatprep.subr.bf16.mxu0 %v3843
    %4275 = vmatpush1.bf16.msra.mxu0 %v3842
    %4276 = vmatprep.subr.bf16.mxu0 %v3839
    %4277 = vmatpush1.bf16.msra.mxu0 %v3838
    %4278 = vmatprep.subr.bf16.mxu0 %v3835
    %4279 = vmatpush1.bf16.msra.mxu0 %v3834
    %4280 = vmatprep.subr.bf16.mxu0 %v3831
    %4281 = vmatpush1.bf16.msra.mxu0 %v3830
    %4282 = vmatprep.subr.bf16.mxu0 %v3827
    %4283 = vmatpush1.bf16.msra.mxu0 %v3826
    %4284 = vmatprep.subr.bf16.mxu0 %v3823
    %4285 = vmatpush1.bf16.msra.mxu0 %v3822
    %4286 = vmatprep.subr.bf16.mxu0 %v3819
    %4287 = vmatpush1.bf16.msra.mxu0 %v3818
    %4288 = vmatprep.subr.bf16.mxu0 %v3815
    %4289 = vmatpush1.bf16.msra.mxu0 %v3814
    %4290 = vmatprep.subr.bf16.mxu0 0
    %4291 = vmatpush2.bf16.msra.mxu0 0
    %4292 = vmatprep.subr.bf16.mxu0 0
    %4293 = vmatpush2.bf16.msra.mxu0 0
    %4294 = vmatprep.subr.bf16.mxu0 0
    %4295 = vmatpush2.bf16.msra.mxu0 0
    %4296 = vmatprep.subr.bf16.mxu0 0
    %4297 = vmatpush2.bf16.msra.mxu0 0
    %4298 = vmatprep.subr.bf16.mxu0 0
    %4299 = vmatpush2.bf16.msra.mxu0 0
    %4300 = vmatprep.subr.bf16.mxu0 0
    %4301 = vmatpush2.bf16.msra.mxu0 0
    %4302 = vmatprep.subr.bf16.mxu0 0
    %4303 = vmatpush2.bf16.msra.mxu0 0
    %4304 = vmatprep.subr.bf16.mxu0 0
    %4305 = vmatpush2.bf16.msra.mxu0 0
    %4306 = vmatprep.mubr.bf16.mxu0 0
    %4307 = vmatmul.mubr.bf16.gmra.mxu0 %v4232
    %v4308 = vpop.f32.mrf.mxu0
    %v4309 = vadd.f32 0.0, %v4308
    %v4310 = vpop.f32.mrf.mxu0
    %v4311 = vadd.f32 0.0, %v4310
    %v4312 = vpop.f32.mrf.mxu0
    %v4313 = vpop.f32.mrf.mxu0
    %4314 = vdwg.mxu0
    %v4315 = vadd.f32 %v4228, %v4268
    %v4316 = vadd.f32 %v4229, %v4270
    %v4317 = vadd.f32 %v4230, %v4309
    %v4318 = vadd.f32 %v4231, %v4311
    %v4319 = vadd.f32 %v4315, %v3695
    %v4320 = vadd.f32 %v4316, %v3699
    %v4321 = vadd.f32 %v4317, %v3703
    %v4322 = vadd.f32 %v4318, %v3707
    %v4323 = vxor.u32 %v4319, 2147483648
    %v4324 = vmul.f32 %v4323, 1.442695
    %v4325 = vpow.pop %v4324
    %v4326 = vadd.f32 %v4325, 1.0
    %v4327 = vrcp.pop %v4326
    %v4328 = vmul.f32 1.0, %v4327
    %v4329 = vxor.u32 %v4320, 2147483648
    %v4330 = vmul.f32 %v4329, 1.442695
    %v4331 = vpow.pop %v4330
    %v4332 = vadd.f32 %v4331, 1.0
    %v4333 = vrcp.pop %v4332
    %v4334 = vmul.f32 1.0, %v4333
    %v4335 = vtanh.pop %v4321
    %v4336 = vxor.u32 %v4322, 2147483648
    %v4337 = vmul.f32 %v4336, 1.442695
    %v4338 = vpow.pop %v4337
    %v4339 = vadd.f32 %v4338, 1.0
    %v4340 = vrcp.pop %v4339
    %v4341 = vmul.f32 1.0, %v4340
    %v4342 = vmul.f32 %v4334, %v4225
    %v4343 = vmul.f32 %v4328, %v4335
    %v4344 = vadd.f32 %v4342, %v4343
    %v4345 = vtanh.pop %v4344
    %v4346 = vmul.f32 %v4341, %v4345
    %v4347 = vld [vmem:[%s1233] sm:$0xff]
    %v4348 = vld [vmem:[%s1233 + $0x8] sm:$0xff]
    %v4349 = vld [vmem:[%s1233 + $0x10] sm:$0xff]
    %v4350 = vld [vmem:[%s1233 + $0x18] sm:$0xff]
    %v4351 = vpack.c.bf16 %v4346, %v4346
    %4352 = vmatprep.subr.bf16.mxu0 %v3841
    %4353 = vmatpush1.bf16.msra.mxu0 %v3840
    %4354 = vmatprep.subr.bf16.mxu0 %v3837
    %4355 = vmatpush1.bf16.msra.mxu0 %v3836
    %4356 = vmatprep.subr.bf16.mxu0 %v3833
    %4357 = vmatpush1.bf16.msra.mxu0 %v3832
    %4358 = vmatprep.subr.bf16.mxu0 %v3829
    %4359 = vmatpush1.bf16.msra.mxu0 %v3828
    %4360 = vmatprep.subr.bf16.mxu0 %v3825
    %4361 = vmatpush1.bf16.msra.mxu0 %v3824
    %4362 = vmatprep.subr.bf16.mxu0 %v3821
    %4363 = vmatpush1.bf16.msra.mxu0 %v3820
    %4364 = vmatprep.subr.bf16.mxu0 %v3817
    %4365 = vmatpush1.bf16.msra.mxu0 %v3816
    %4366 = vmatprep.subr.bf16.mxu0 %v3813
    %4367 = vmatpush1.bf16.msra.mxu0 %v3812
    %4368 = vmatprep.subr.bf16.mxu0 0
    %4369 = vmatpush2.bf16.msra.mxu0 0
    %4370 = vmatprep.subr.bf16.mxu0 0
    %4371 = vmatpush2.bf16.msra.mxu0 0
    %4372 = vmatprep.subr.bf16.mxu0 0
    %4373 = vmatpush2.bf16.msra.mxu0 0
    %4374 = vmatprep.subr.bf16.mxu0 0
    %4375 = vmatpush2.bf16.msra.mxu0 0
    %4376 = vmatprep.subr.bf16.mxu0 0
    %4377 = vmatpush2.bf16.msra.mxu0 0
    %4378 = vmatprep.subr.bf16.mxu0 0
    %4379 = vmatpush2.bf16.msra.mxu0 0
    %4380 = vmatprep.subr.bf16.mxu0 0
    %4381 = vmatpush2.bf16.msra.mxu0 0
    %4382 = vmatprep.subr.bf16.mxu0 0
    %4383 = vmatpush2.bf16.msra.mxu0 0
    %4384 = vmatprep.mubr.bf16.mxu0 0
    %4385 = vmatmul.mubr.bf16.gmra.mxu0 %v4351
    %v4386 = vpop.f32.mrf.mxu0
    %v4387 = vadd.f32 0.0, %v4386
    %v4388 = vpop.f32.mrf.mxu0
    %v4389 = vadd.f32 0.0, %v4388
    %v4390 = vpop.f32.mrf.mxu0
    %v4391 = vpop.f32.mrf.mxu0
    %4392 = vdwg.mxu0
    %4393 = vmatprep.subr.bf16.mxu0 %v3843
    %4394 = vmatpush1.bf16.msra.mxu0 %v3842
    %4395 = vmatprep.subr.bf16.mxu0 %v3839
    %4396 = vmatpush1.bf16.msra.mxu0 %v3838
    %4397 = vmatprep.subr.bf16.mxu0 %v3835
    %4398 = vmatpush1.bf16.msra.mxu0 %v3834
    %4399 = vmatprep.subr.bf16.mxu0 %v3831
    %4400 = vmatpush1.bf16.msra.mxu0 %v3830
    %4401 = vmatprep.subr.bf16.mxu0 %v3827
    %4402 = vmatpush1.bf16.msra.mxu0 %v3826
    %4403 = vmatprep.subr.bf16.mxu0 %v3823
    %4404 = vmatpush1.bf16.msra.mxu0 %v3822
    %4405 = vmatprep.subr.bf16.mxu0 %v3819
    %4406 = vmatpush1.bf16.msra.mxu0 %v3818
    %4407 = vmatprep.subr.bf16.mxu0 %v3815
    %4408 = vmatpush1.bf16.msra.mxu0 %v3814
    %4409 = vmatprep.subr.bf16.mxu0 0
    %4410 = vmatpush2.bf16.msra.mxu0 0
    %4411 = vmatprep.subr.bf16.mxu0 0
    %4412 = vmatpush2.bf16.msra.mxu0 0
    %4413 = vmatprep.subr.bf16.mxu0 0
    %4414 = vmatpush2.bf16.msra.mxu0 0
    %4415 = vmatprep.subr.bf16.mxu0 0
    %4416 = vmatpush2.bf16.msra.mxu0 0
    %4417 = vmatprep.subr.bf16.mxu0 0
    %4418 = vmatpush2.bf16.msra.mxu0 0
    %4419 = vmatprep.subr.bf16.mxu0 0
    %4420 = vmatpush2.bf16.msra.mxu0 0
    %4421 = vmatprep.subr.bf16.mxu0 0
    %4422 = vmatpush2.bf16.msra.mxu0 0
    %4423 = vmatprep.subr.bf16.mxu0 0
    %4424 = vmatpush2.bf16.msra.mxu0 0
    %4425 = vmatprep.mubr.bf16.mxu0 0
    %4426 = vmatmul.mubr.bf16.gmra.mxu0 %v4351
    %v4427 = vpop.f32.mrf.mxu0
    %v4428 = vadd.f32 0.0, %v4427
    %v4429 = vpop.f32.mrf.mxu0
    %v4430 = vadd.f32 0.0, %v4429
    %v4431 = vpop.f32.mrf.mxu0
    %v4432 = vpop.f32.mrf.mxu0
    %4433 = vdwg.mxu0
    %v4434 = vadd.f32 %v4347, %v4387
    %v4435 = vadd.f32 %v4348, %v4389
    %v4436 = vadd.f32 %v4349, %v4428
    %v4437 = vadd.f32 %v4350, %v4430
    %v4438 = vadd.f32 %v4434, %v3695
    %v4439 = vadd.f32 %v4435, %v3699
    %v4440 = vadd.f32 %v4436, %v3703
    %v4441 = vadd.f32 %v4437, %v3707
    %v4442 = vxor.u32 %v4438, 2147483648
    %v4443 = vmul.f32 %v4442, 1.442695
    %v4444 = vpow.pop %v4443
    %v4445 = vadd.f32 %v4444, 1.0
    %v4446 = vrcp.pop %v4445
    %v4447 = vmul.f32 1.0, %v4446
    %v4448 = vxor.u32 %v4439, 2147483648
    %v4449 = vmul.f32 %v4448, 1.442695
    %v4450 = vpow.pop %v4449
    %v4451 = vadd.f32 %v4450, 1.0
    %v4452 = vrcp.pop %v4451
    %v4453 = vmul.f32 1.0, %v4452
    %v4454 = vtanh.pop %v4440
    %v4455 = vxor.u32 %v4441, 2147483648
    %v4456 = vmul.f32 %v4455, 1.442695
    %v4457 = vpow.pop %v4456
    %v4458 = vadd.f32 %v4457, 1.0
    %v4459 = vrcp.pop %v4458
    %v4460 = vmul.f32 1.0, %v4459
    %v4461 = vmul.f32 %v4453, %v4344
    %v4462 = vmul.f32 %v4447, %v4454
    %v4463 = vadd.f32 %v4461, %v4462
    %v4464 = vtanh.pop %v4463
    %v4465 = vmul.f32 %v4460, %v4464
    %v4466 = vld [vmem:[%s1355] sm:$0xff]
    %v4467 = vld [vmem:[%s1355 + $0x8] sm:$0xff]
    %v4468 = vld [vmem:[%s1355 + $0x10] sm:$0xff]
    %v4469 = vld [vmem:[%s1355 + $0x18] sm:$0xff]
    %v4470 = vpack.c.bf16 %v4465, %v4465
    %4471 = vmatprep.subr.bf16.mxu0 %v3841
    %4472 = vmatpush1.bf16.msra.mxu0 %v3840
    %4473 = vmatprep.subr.bf16.mxu0 %v3837
    %4474 = vmatpush1.bf16.msra.mxu0 %v3836
    %4475 = vmatprep.subr.bf16.mxu0 %v3833
    %4476 = vmatpush1.bf16.msra.mxu0 %v3832
    %4477 = vmatprep.subr.bf16.mxu0 %v3829
    %4478 = vmatpush1.bf16.msra.mxu0 %v3828
    %4479 = vmatprep.subr.bf16.mxu0 %v3825
    %4480 = vmatpush1.bf16.msra.mxu0 %v3824
    %4481 = vmatprep.subr.bf16.mxu0 %v3821
    %4482 = vmatpush1.bf16.msra.mxu0 %v3820
    %4483 = vmatprep.subr.bf16.mxu0 %v3817
    %4484 = vmatpush1.bf16.msra.mxu0 %v3816
    %4485 = vmatprep.subr.bf16.mxu0 %v3813
    %4486 = vmatpush1.bf16.msra.mxu0 %v3812
    %4487 = vmatprep.subr.bf16.mxu0 0
    %4488 = vmatpush2.bf16.msra.mxu0 0
    %4489 = vmatprep.subr.bf16.mxu0 0
    %4490 = vmatpush2.bf16.msra.mxu0 0
    %4491 = vmatprep.subr.bf16.mxu0 0
    %4492 = vmatpush2.bf16.msra.mxu0 0
    %4493 = vmatprep.subr.bf16.mxu0 0
    %4494 = vmatpush2.bf16.msra.mxu0 0
    %4495 = vmatprep.subr.bf16.mxu0 0
    %4496 = vmatpush2.bf16.msra.mxu0 0
    %4497 = vmatprep.subr.bf16.mxu0 0
    %4498 = vmatpush2.bf16.msra.mxu0 0
    %4499 = vmatprep.subr.bf16.mxu0 0
    %4500 = vmatpush2.bf16.msra.mxu0 0
    %4501 = vmatprep.subr.bf16.mxu0 0
    %4502 = vmatpush2.bf16.msra.mxu0 0
    %4503 = vmatprep.mubr.bf16.mxu0 0
    %4504 = vmatmul.mubr.bf16.gmra.mxu0 %v4470
    %v4505 = vpop.f32.mrf.mxu0
    %v4506 = vadd.f32 0.0, %v4505
    %v4507 = vpop.f32.mrf.mxu0
    %v4508 = vadd.f32 0.0, %v4507
    %v4509 = vpop.f32.mrf.mxu0
    %v4510 = vpop.f32.mrf.mxu0
    %4511 = vdwg.mxu0
    %4512 = vmatprep.subr.bf16.mxu0 %v3843
    %4513 = vmatpush1.bf16.msra.mxu0 %v3842
    %4514 = vmatprep.subr.bf16.mxu0 %v3839
    %4515 = vmatpush1.bf16.msra.mxu0 %v3838
    %4516 = vmatprep.subr.bf16.mxu0 %v3835
    %4517 = vmatpush1.bf16.msra.mxu0 %v3834
    %4518 = vmatprep.subr.bf16.mxu0 %v3831
    %4519 = vmatpush1.bf16.msra.mxu0 %v3830
    %4520 = vmatprep.subr.bf16.mxu0 %v3827
    %4521 = vmatpush1.bf16.msra.mxu0 %v3826
    %4522 = vmatprep.subr.bf16.mxu0 %v3823
    %4523 = vmatpush1.bf16.msra.mxu0 %v3822
    %4524 = vmatprep.subr.bf16.mxu0 %v3819
    %4525 = vmatpush1.bf16.msra.mxu0 %v3818
    %4526 = vmatprep.subr.bf16.mxu0 %v3815
    %4527 = vmatpush1.bf16.msra.mxu0 %v3814
    %4528 = vmatprep.subr.bf16.mxu0 0
    %4529 = vmatpush2.bf16.msra.mxu0 0
    %4530 = vmatprep.subr.bf16.mxu0 0
    %4531 = vmatpush2.bf16.msra.mxu0 0
    %4532 = vmatprep.subr.bf16.mxu0 0
    %4533 = vmatpush2.bf16.msra.mxu0 0
    %4534 = vmatprep.subr.bf16.mxu0 0
    %4535 = vmatpush2.bf16.msra.mxu0 0
    %4536 = vmatprep.subr.bf16.mxu0 0
    %4537 = vmatpush2.bf16.msra.mxu0 0
    %4538 = vmatprep.subr.bf16.mxu0 0
    %4539 = vmatpush2.bf16.msra.mxu0 0
    %4540 = vmatprep.subr.bf16.mxu0 0
    %4541 = vmatpush2.bf16.msra.mxu0 0
    %4542 = vmatprep.subr.bf16.mxu0 0
    %4543 = vmatpush2.bf16.msra.mxu0 0
    %4544 = vmatprep.mubr.bf16.mxu0 0
    %4545 = vmatmul.mubr.bf16.gmra.mxu0 %v4470
    %v4546 = vpop.f32.mrf.mxu0
    %v4547 = vadd.f32 0.0, %v4546
    %v4548 = vpop.f32.mrf.mxu0
    %v4549 = vadd.f32 0.0, %v4548
    %v4550 = vpop.f32.mrf.mxu0
    %v4551 = vpop.f32.mrf.mxu0
    %4552 = vdwg.mxu0
    %v4553 = vadd.f32 %v4466, %v4506
    %v4554 = vadd.f32 %v4467, %v4508
    %v4555 = vadd.f32 %v4468, %v4547
    %v4556 = vadd.f32 %v4469, %v4549
    %v4557 = vadd.f32 %v4553, %v3695
    %v4558 = vadd.f32 %v4554, %v3699
    %v4559 = vadd.f32 %v4555, %v3703
    %v4560 = vadd.f32 %v4556, %v3707
    %v4561 = vxor.u32 %v4557, 2147483648
    %v4562 = vmul.f32 %v4561, 1.442695
    %v4563 = vpow.pop %v4562
    %v4564 = vadd.f32 %v4563, 1.0
    %v4565 = vrcp.pop %v4564
    %v4566 = vmul.f32 1.0, %v4565
    %v4567 = vxor.u32 %v4558, 2147483648
    %v4568 = vmul.f32 %v4567, 1.442695
    %v4569 = vpow.pop %v4568
    %v4570 = vadd.f32 %v4569, 1.0
    %v4571 = vrcp.pop %v4570
    %v4572 = vmul.f32 1.0, %v4571
    %v4573 = vtanh.pop %v4559
    %v4574 = vxor.u32 %v4560, 2147483648
    %v4575 = vmul.f32 %v4574, 1.442695
    %v4576 = vpow.pop %v4575
    %v4577 = vadd.f32 %v4576, 1.0
    %v4578 = vrcp.pop %v4577
    %v4579 = vmul.f32 1.0, %v4578
    %v4580 = vmul.f32 %v4572, %v4463
    %v4581 = vmul.f32 %v4566, %v4573
    %v4582 = vadd.f32 %v4580, %v4581
    %v4583 = vtanh.pop %v4582
    %v4584 = vmul.f32 %v4579, %v4583
    %v4585 = vld [vmem:[%s1477] sm:$0xff]
    %v4586 = vld [vmem:[%s1477 + $0x8] sm:$0xff]
    %v4587 = vld [vmem:[%s1477 + $0x10] sm:$0xff]
    %v4588 = vld [vmem:[%s1477 + $0x18] sm:$0xff]
    %v4589 = vpack.c.bf16 %v4584, %v4584
    %4590 = vmatprep.subr.bf16.mxu0 %v3841
    %4591 = vmatpush1.bf16.msra.mxu0 %v3840
    %4592 = vmatprep.subr.bf16.mxu0 %v3837
    %4593 = vmatpush1.bf16.msra.mxu0 %v3836
    %4594 = vmatprep.subr.bf16.mxu0 %v3833
    %4595 = vmatpush1.bf16.msra.mxu0 %v3832
    %4596 = vmatprep.subr.bf16.mxu0 %v3829
    %4597 = vmatpush1.bf16.msra.mxu0 %v3828
    %4598 = vmatprep.subr.bf16.mxu0 %v3825
    %4599 = vmatpush1.bf16.msra.mxu0 %v3824
    %4600 = vmatprep.subr.bf16.mxu0 %v3821
    %4601 = vmatpush1.bf16.msra.mxu0 %v3820
    %4602 = vmatprep.subr.bf16.mxu0 %v3817
    %4603 = vmatpush1.bf16.msra.mxu0 %v3816
    %4604 = vmatprep.subr.bf16.mxu0 %v3813
    %4605 = vmatpush1.bf16.msra.mxu0 %v3812
    %4606 = vmatprep.subr.bf16.mxu0 0
    %4607 = vmatpush2.bf16.msra.mxu0 0
    %4608 = vmatprep.subr.bf16.mxu0 0
    %4609 = vmatpush2.bf16.msra.mxu0 0
    %4610 = vmatprep.subr.bf16.mxu0 0
    %4611 = vmatpush2.bf16.msra.mxu0 0
    %4612 = vmatprep.subr.bf16.mxu0 0
    %4613 = vmatpush2.bf16.msra.mxu0 0
    %4614 = vmatprep.subr.bf16.mxu0 0
    %4615 = vmatpush2.bf16.msra.mxu0 0
    %4616 = vmatprep.subr.bf16.mxu0 0
    %4617 = vmatpush2.bf16.msra.mxu0 0
    %4618 = vmatprep.subr.bf16.mxu0 0
    %4619 = vmatpush2.bf16.msra.mxu0 0
    %4620 = vmatprep.subr.bf16.mxu0 0
    %4621 = vmatpush2.bf16.msra.mxu0 0
    %4622 = vmatprep.mubr.bf16.mxu0 0
    %4623 = vmatmul.mubr.bf16.gmra.mxu0 %v4589
    %v4624 = vpop.f32.mrf.mxu0
    %v4625 = vadd.f32 0.0, %v4624
    %v4626 = vpop.f32.mrf.mxu0
    %v4627 = vadd.f32 0.0, %v4626
    %v4628 = vpop.f32.mrf.mxu0
    %v4629 = vpop.f32.mrf.mxu0
    %4630 = vdwg.mxu0
    %4631 = vmatprep.subr.bf16.mxu0 %v3843
    %4632 = vmatpush1.bf16.msra.mxu0 %v3842
    %4633 = vmatprep.subr.bf16.mxu0 %v3839
    %4634 = vmatpush1.bf16.msra.mxu0 %v3838
    %4635 = vmatprep.subr.bf16.mxu0 %v3835
    %4636 = vmatpush1.bf16.msra.mxu0 %v3834
    %4637 = vmatprep.subr.bf16.mxu0 %v3831
    %4638 = vmatpush1.bf16.msra.mxu0 %v3830
    %4639 = vmatprep.subr.bf16.mxu0 %v3827
    %4640 = vmatpush1.bf16.msra.mxu0 %v3826
    %4641 = vmatprep.subr.bf16.mxu0 %v3823
    %4642 = vmatpush1.bf16.msra.mxu0 %v3822
    %4643 = vmatprep.subr.bf16.mxu0 %v3819
    %4644 = vmatpush1.bf16.msra.mxu0 %v3818
    %4645 = vmatprep.subr.bf16.mxu0 %v3815
    %4646 = vmatpush1.bf16.msra.mxu0 %v3814
    %4647 = vmatprep.subr.bf16.mxu0 0
    %4648 = vmatpush2.bf16.msra.mxu0 0
    %4649 = vmatprep.subr.bf16.mxu0 0
    %4650 = vmatpush2.bf16.msra.mxu0 0
    %4651 = vmatprep.subr.bf16.mxu0 0
    %4652 = vmatpush2.bf16.msra.mxu0 0
    %4653 = vmatprep.subr.bf16.mxu0 0
    %4654 = vmatpush2.bf16.msra.mxu0 0
    %4655 = vmatprep.subr.bf16.mxu0 0
    %4656 = vmatpush2.bf16.msra.mxu0 0
    %4657 = vmatprep.subr.bf16.mxu0 0
    %4658 = vmatpush2.bf16.msra.mxu0 0
    %4659 = vmatprep.subr.bf16.mxu0 0
    %4660 = vmatpush2.bf16.msra.mxu0 0
    %4661 = vmatprep.subr.bf16.mxu0 0
    %4662 = vmatpush2.bf16.msra.mxu0 0
    %4663 = vmatprep.mubr.bf16.mxu0 0
    %4664 = vmatmul.mubr.bf16.gmra.mxu0 %v4589
    %v4665 = vpop.f32.mrf.mxu0
    %v4666 = vadd.f32 0.0, %v4665
    %v4667 = vpop.f32.mrf.mxu0
    %v4668 = vadd.f32 0.0, %v4667
    %v4669 = vpop.f32.mrf.mxu0
    %v4670 = vpop.f32.mrf.mxu0
    %4671 = vdwg.mxu0
    %v4672 = vadd.f32 %v4585, %v4625
    %v4673 = vadd.f32 %v4586, %v4627
    %v4674 = vadd.f32 %v4587, %v4666
    %v4675 = vadd.f32 %v4588, %v4668
    %v4676 = vadd.f32 %v4672, %v3695
    %v4677 = vadd.f32 %v4673, %v3699
    %v4678 = vadd.f32 %v4674, %v3703
    %v4679 = vadd.f32 %v4675, %v3707
    %v4680 = vxor.u32 %v4676, 2147483648
    %v4681 = vmul.f32 %v4680, 1.442695
    %v4682 = vpow.pop %v4681
    %v4683 = vadd.f32 %v4682, 1.0
    %v4684 = vrcp.pop %v4683
    %v4685 = vmul.f32 1.0, %v4684
    %v4686 = vxor.u32 %v4677, 2147483648
    %v4687 = vmul.f32 %v4686, 1.442695
    %v4688 = vpow.pop %v4687
    %v4689 = vadd.f32 %v4688, 1.0
    %v4690 = vrcp.pop %v4689
    %v4691 = vmul.f32 1.0, %v4690
    %v4692 = vtanh.pop %v4678
    %v4693 = vxor.u32 %v4679, 2147483648
    %v4694 = vmul.f32 %v4693, 1.442695
    %v4695 = vpow.pop %v4694
    %v4696 = vadd.f32 %v4695, 1.0
    %v4697 = vrcp.pop %v4696
    %v4698 = vmul.f32 1.0, %v4697
    %v4699 = vmul.f32 %v4691, %v4582
    %v4700 = vmul.f32 %v4685, %v4692
    %v4701 = vadd.f32 %v4699, %v4700
    %v4702 = vtanh.pop %v4701
    %v4703 = vmul.f32 %v4698, %v4702
    %v4704 = vld [vmem:[%s1599] sm:$0xff]
    %v4705 = vld [vmem:[%s1599 + $0x8] sm:$0xff]
    %v4706 = vld [vmem:[%s1599 + $0x10] sm:$0xff]
    %v4707 = vld [vmem:[%s1599 + $0x18] sm:$0xff]
    %v4708 = vpack.c.bf16 %v4703, %v4703
    %4709 = vmatprep.subr.bf16.mxu0 %v3841
    %4710 = vmatpush1.bf16.msra.mxu0 %v3840
    %4711 = vmatprep.subr.bf16.mxu0 %v3837
    %4712 = vmatpush1.bf16.msra.mxu0 %v3836
    %4713 = vmatprep.subr.bf16.mxu0 %v3833
    %4714 = vmatpush1.bf16.msra.mxu0 %v3832
    %4715 = vmatprep.subr.bf16.mxu0 %v3829
    %4716 = vmatpush1.bf16.msra.mxu0 %v3828
    %4717 = vmatprep.subr.bf16.mxu0 %v3825
    %4718 = vmatpush1.bf16.msra.mxu0 %v3824
    %4719 = vmatprep.subr.bf16.mxu0 %v3821
    %4720 = vmatpush1.bf16.msra.mxu0 %v3820
    %4721 = vmatprep.subr.bf16.mxu0 %v3817
    %4722 = vmatpush1.bf16.msra.mxu0 %v3816
    %4723 = vmatprep.subr.bf16.mxu0 %v3813
    %4724 = vmatpush1.bf16.msra.mxu0 %v3812
    %4725 = vmatprep.subr.bf16.mxu0 0
    %4726 = vmatpush2.bf16.msra.mxu0 0
    %4727 = vmatprep.subr.bf16.mxu0 0
    %4728 = vmatpush2.bf16.msra.mxu0 0
    %4729 = vmatprep.subr.bf16.mxu0 0
    %4730 = vmatpush2.bf16.msra.mxu0 0
    %4731 = vmatprep.subr.bf16.mxu0 0
    %4732 = vmatpush2.bf16.msra.mxu0 0
    %4733 = vmatprep.subr.bf16.mxu0 0
    %4734 = vmatpush2.bf16.msra.mxu0 0
    %4735 = vmatprep.subr.bf16.mxu0 0
    %4736 = vmatpush2.bf16.msra.mxu0 0
    %4737 = vmatprep.subr.bf16.mxu0 0
    %4738 = vmatpush2.bf16.msra.mxu0 0
    %4739 = vmatprep.subr.bf16.mxu0 0
    %4740 = vmatpush2.bf16.msra.mxu0 0
    %4741 = vmatprep.mubr.bf16.mxu0 0
    %4742 = vmatmul.mubr.bf16.gmra.mxu0 %v4708
    %v4743 = vpop.f32.mrf.mxu0
    %v4744 = vadd.f32 0.0, %v4743
    %v4745 = vpop.f32.mrf.mxu0
    %v4746 = vadd.f32 0.0, %v4745
    %v4747 = vpop.f32.mrf.mxu0
    %v4748 = vpop.f32.mrf.mxu0
    %4749 = vdwg.mxu0
    %4750 = vmatprep.subr.bf16.mxu0 %v3843
    %4751 = vmatpush1.bf16.msra.mxu0 %v3842
    %4752 = vmatprep.subr.bf16.mxu0 %v3839
    %4753 = vmatpush1.bf16.msra.mxu0 %v3838
    %4754 = vmatprep.subr.bf16.mxu0 %v3835
    %4755 = vmatpush1.bf16.msra.mxu0 %v3834
    %4756 = vmatprep.subr.bf16.mxu0 %v3831
    %4757 = vmatpush1.bf16.msra.mxu0 %v3830
    %4758 = vmatprep.subr.bf16.mxu0 %v3827
    %4759 = vmatpush1.bf16.msra.mxu0 %v3826
    %4760 = vmatprep.subr.bf16.mxu0 %v3823
    %4761 = vmatpush1.bf16.msra.mxu0 %v3822
    %4762 = vmatprep.subr.bf16.mxu0 %v3819
    %4763 = vmatpush1.bf16.msra.mxu0 %v3818
    %4764 = vmatprep.subr.bf16.mxu0 %v3815
    %4765 = vmatpush1.bf16.msra.mxu0 %v3814
    %4766 = vmatprep.subr.bf16.mxu0 0
    %4767 = vmatpush2.bf16.msra.mxu0 0
    %4768 = vmatprep.subr.bf16.mxu0 0
    %4769 = vmatpush2.bf16.msra.mxu0 0
    %4770 = vmatprep.subr.bf16.mxu0 0
    %4771 = vmatpush2.bf16.msra.mxu0 0
    %4772 = vmatprep.subr.bf16.mxu0 0
    %4773 = vmatpush2.bf16.msra.mxu0 0
    %4774 = vmatprep.subr.bf16.mxu0 0
    %4775 = vmatpush2.bf16.msra.mxu0 0
    %4776 = vmatprep.subr.bf16.mxu0 0
    %4777 = vmatpush2.bf16.msra.mxu0 0
    %4778 = vmatprep.subr.bf16.mxu0 0
    %4779 = vmatpush2.bf16.msra.mxu0 0
    %4780 = vmatprep.subr.bf16.mxu0 0
    %4781 = vmatpush2.bf16.msra.mxu0 0
    %4782 = vmatprep.mubr.bf16.mxu0 0
    %4783 = vmatmul.mubr.bf16.gmra.mxu0 %v4708
    %v4784 = vpop.f32.mrf.mxu0
    %v4785 = vadd.f32 0.0, %v4784
    %v4786 = vpop.f32.mrf.mxu0
    %v4787 = vadd.f32 0.0, %v4786
    %v4788 = vpop.f32.mrf.mxu0
    %v4789 = vpop.f32.mrf.mxu0
    %4790 = vdwg.mxu0
    %v4791 = vadd.f32 %v4704, %v4744
    %v4792 = vadd.f32 %v4705, %v4746
    %v4793 = vadd.f32 %v4706, %v4785
    %v4794 = vadd.f32 %v4707, %v4787
    %v4795 = vadd.f32 %v4791, %v3695
    %v4796 = vadd.f32 %v4792, %v3699
    %v4797 = vadd.f32 %v4793, %v3703
    %v4798 = vadd.f32 %v4794, %v3707
    %v4799 = vxor.u32 %v4795, 2147483648
    %v4800 = vmul.f32 %v4799, 1.442695
    %v4801 = vpow.pop %v4800
    %v4802 = vadd.f32 %v4801, 1.0
    %v4803 = vrcp.pop %v4802
    %v4804 = vmul.f32 1.0, %v4803
    %v4805 = vxor.u32 %v4796, 2147483648
    %v4806 = vmul.f32 %v4805, 1.442695
    %v4807 = vpow.pop %v4806
    %v4808 = vadd.f32 %v4807, 1.0
    %v4809 = vrcp.pop %v4808
    %v4810 = vmul.f32 1.0, %v4809
    %v4811 = vtanh.pop %v4797
    %v4812 = vxor.u32 %v4798, 2147483648
    %v4813 = vmul.f32 %v4812, 1.442695
    %v4814 = vpow.pop %v4813
    %v4815 = vadd.f32 %v4814, 1.0
    %v4816 = vrcp.pop %v4815
    %v4817 = vmul.f32 1.0, %v4816
    %v4818 = vmul.f32 %v4810, %v4701
    %v4819 = vmul.f32 %v4804, %v4811
    %v4820 = vadd.f32 %v4818, %v4819
    %v4821 = vtanh.pop %v4820
    %v4822 = vmul.f32 %v4817, %v4821
    %v4823 = vpack.c.bf16 %v4822, %v4822
    %v4824 = vld [vmem:[#allocation16] sm:$0xf]
    %v4825 = vld [vmem:[#allocation16 + $0x4] sm:$0xf]
    %v4826 = vld [vmem:[#allocation16 + $0x8] sm:$0xf]
    %v4827 = vld [vmem:[#allocation16 + $0xc] sm:$0xf]
    %v4828 = vld [vmem:[#allocation16 + $0x10] sm:$0xf]
    %v4829 = vld [vmem:[#allocation16 + $0x14] sm:$0xf]
    %v4830 = vld [vmem:[#allocation16 + $0x18] sm:$0xf]
    %v4831 = vld [vmem:[#allocation16 + $0x1c] sm:$0xf]
    %v4832 = vld [vmem:[#allocation16 + $0x20] sm:$0xf]
    %v4833 = vld [vmem:[#allocation16 + $0x24] sm:$0xf]
    %v4834 = vld [vmem:[#allocation16 + $0x28] sm:$0xf]
    %v4835 = vld [vmem:[#allocation16 + $0x2c] sm:$0xf]
    %v4836 = vld [vmem:[#allocation16 + $0x30] sm:$0xf]
    %v4837 = vld [vmem:[#allocation16 + $0x34] sm:$0xf]
    %v4838 = vld [vmem:[#allocation16 + $0x38] sm:$0xf]
    %v4839 = vld [vmem:[#allocation16 + $0x3c] sm:$0xf]
    %v4840 = vld [vmem:[%s11] sm:$0x1]
    %v4842 = vlaneseq
    %v4843 = vshrl.u32 %v4842, 7
    %v4844 = vsub.s32 0, %v4843
    %v4845 = vrot.slane %v4840, %v4844
    %v4863 = vunpack.c.l.b16 %v4824
    %v4864 = vunpack.c.l.b16 %v4825
    %v4865 = vunpack.c.l.b16 %v4826
    %v4866 = vunpack.c.l.b16 %v4827
    %v4867 = vunpack.c.l.b16 %v4828
    %v4868 = vunpack.c.l.b16 %v4829
    %v4869 = vunpack.c.l.b16 %v4830
    %v4870 = vunpack.c.l.b16 %v4831
    %v4871 = vunpack.c.l.b16 %v4832
    %v4872 = vunpack.c.l.b16 %v4833
    %v4873 = vunpack.c.l.b16 %v4834
    %v4874 = vunpack.c.l.b16 %v4835
    %v4875 = vunpack.c.l.b16 %v4836
    %v4876 = vunpack.c.l.b16 %v4837
    %v4877 = vunpack.c.l.b16 %v4838
    %v4878 = vunpack.c.l.b16 %v4839
    %v4879 = vpack.c.b16 %v4864, %v4863
    %v4880 = vpack.c.b16 %v4866, %v4865
    %v4881 = vpack.c.b16 %v4868, %v4867
    %v4882 = vpack.c.b16 %v4870, %v4869
    %v4883 = vpack.c.b16 %v4872, %v4871
    %v4884 = vpack.c.b16 %v4874, %v4873
    %v4885 = vpack.c.b16 %v4876, %v4875
    %v4886 = vpack.c.b16 %v4878, %v4877
    %4895 = vmatprep.subr.bf16.mxu0 0
    %4896 = vmatpush1.bf16.msra.mxu0 %v4886
    %4897 = vmatprep.subr.bf16.mxu0 0
    %4898 = vmatpush1.bf16.msra.mxu0 %v4885
    %4899 = vmatprep.subr.bf16.mxu0 0
    %4900 = vmatpush1.bf16.msra.mxu0 %v4884
    %4901 = vmatprep.subr.bf16.mxu0 0
    %4902 = vmatpush1.bf16.msra.mxu0 %v4883
    %4903 = vmatprep.subr.bf16.mxu0 0
    %4904 = vmatpush1.bf16.msra.mxu0 %v4882
    %4905 = vmatprep.subr.bf16.mxu0 0
    %4906 = vmatpush1.bf16.msra.mxu0 %v4881
    %4907 = vmatprep.subr.bf16.mxu0 0
    %4908 = vmatpush1.bf16.msra.mxu0 %v4880
    %4909 = vmatprep.subr.bf16.mxu0 0
    %4910 = vmatpush1.bf16.msra.mxu0 %v4879
    %4911 = vmatprep.subr.bf16.mxu0 0
    %4912 = vmatpush2.bf16.msra.mxu0 0
    %4913 = vmatprep.subr.bf16.mxu0 0
    %4914 = vmatpush2.bf16.msra.mxu0 0
    %4915 = vmatprep.subr.bf16.mxu0 0
    %4916 = vmatpush2.bf16.msra.mxu0 0
    %4917 = vmatprep.subr.bf16.mxu0 0
    %4918 = vmatpush2.bf16.msra.mxu0 0
    %4919 = vmatprep.subr.bf16.mxu0 0
    %4920 = vmatpush2.bf16.msra.mxu0 0
    %4921 = vmatprep.subr.bf16.mxu0 0
    %4922 = vmatpush2.bf16.msra.mxu0 0
    %4923 = vmatprep.subr.bf16.mxu0 0
    %4924 = vmatpush2.bf16.msra.mxu0 0
    %4925 = vmatprep.subr.bf16.mxu0 0
    %4926 = vmatpush2.bf16.msra.mxu0 0
    %4927 = vmatprep.mubr.bf16.mxu0 0
    %4928 = vmatmul.mubr.bf16.gmra.mxu0 %v4823
    %v4929 = vpop.f32.mrf.mxu0
    %v4930 = vadd.f32 %v4845, %v4929
    %v4931 = vpop.f32.mrf.mxu0
    %v4932 = vpop.f32.mrf.mxu0
    %v4933 = vpop.f32.mrf.mxu0
    %4934 = vdwg.mxu0
    %4935 = vst [vmem:[#allocation18] sm:$0xff] %v4930
    // Predicated region
    $region82: #{tpu_custom_call.1} parent=1 // pred_check
      _
    $region83: #{tpu_custom_call.1} parent=1 // pred_check_branch
      %4937 = sbr.rel (0) target = $region85
    $region84: #{tpu_custom_call.1} parent=1 // pred_region
      %s4939 = ssub.s32 128, 128
      %4940 = vsyncadd [#allocation6], %s4939
      %s4942 = sshll.u32 [#allocation18], 4
      %s4943 = int_to_ptr.vmem [resolvable:$true] %s4942
      %4945 = dma.vmem_to_hbm [thread:$0]  %s4943, 128, %s12, [#allocation6]
    $region85: #{tpu_custom_call.1} parent=1 // pred_fallthru
      _
    // Predicated region
    $region86: #{tpu_custom_call.1} parent=1 // pred_check
      _
    $region87: #{tpu_custom_call.1} parent=1 // pred_check_branch
      %4947 = sbr.rel (0) target = $region89
    $region88: #{tpu_custom_call.1} parent=1 // pred_region
      %4948 = dma.done [#allocation6], 128
    $region89: #{tpu_custom_call.1} parent=1 // pred_fallthru
      _
    %4949 = vsyncpa [#allocation5], 1
    %4950 = vsyncpa [#allocation8], 1
    %4951 = vsyncpa [#allocation11], 1
    %4952 = vsyncpa [#allocation14], 1
    %4953 = vsyncpa [#allocation17], 1
    %4954 = vsyncpa [#allocation6], 1

</llo_original>
